<compile_context>
chip_gen: v7x
topology: tpu7x:2x2x1
jax: 0.10.0
libtpu: 0.0.40
codegen_flags: <defaults>
</compile_context>

<pallas_src>
import functools

import jax
import jax.numpy as jnp
from jax import lax
from jax.experimental import pallas as pl
from jax.experimental.pallas import tpu as pltpu

LEAKY_SLOPE = 0.1
BN_EPS = 1e-5


def _round_up(x, m):
    return ((x + m - 1) // m) * m


def _leaky(y):
    return jnp.where(y >= 0.0, y, LEAKY_SLOPE * y)


# ----------------------------------------------------------------------------
# Fused decoder kernel: all layers in one pallas_call, activations in VMEM
# ----------------------------------------------------------------------------
def _decoder_kernel(x_ref, w_ref, s_ref, o_ref, inpad_ref, act_ref, *,
                    num_layers, nb, h, w, cin, cout, cp):
    hl = h + 2 * (num_layers - 2)
    wl = w + 2 * (num_layers - 2)
    wl_pad = _round_up(wl, 8)

    # Borders of the padded scratches must read as zero; interiors are fully
    # overwritten below, so a single dense zero-fill per step suffices.
    inpad_ref[...] = jnp.zeros_like(inpad_ref)
    act_ref[...] = jnp.zeros_like(act_ref)

    def conv3x3(src_ref, b, ho, wo, c, li):
        """3x3 'valid' correlation over the zero-padded scratch as ONE MXU
        matmul (K = 9*c).  BN scale is pre-folded into the weight columns, so
        the VPU epilogue is just `+ shift` and LeakyReLU.  The output width is
        padded to a multiple of 8 so the (ho, wo_pad, 9c) <-> (ho*wo_pad, 9c)
        reshapes are layout-preserving; garbage columns (computed from the
        zero border) are dropped by the caller on write-back."""
        wo_pad = _round_up(wo, 8)
        xw = jnp.concatenate(
            [src_ref[b, 0:ho + 2, kw:kw + wo_pad, :] for kw in range(3)],
            axis=-1)                                       # (ho+2, wo_pad, 3c)
        col = jnp.concatenate([xw[kh:kh + ho] for kh in range(3)], axis=-1)
        lhs = col.reshape(ho * wo_pad, 9 * c)              # free: wo_pad % 8 == 0
        wk = w_ref[li, 0:9 * c, 0:cout]                    # BN scale folded in
        sh = s_ref[li:li + 1, 0:cout]                      # (1, cout)
        y = jnp.dot(lhs, wk, preferred_element_type=jnp.float32)
        y = _leaky(y + sh)                                 # f32 epilogue
        return y.reshape(ho, wo_pad, cout)

    for b in range(nb):                                    # batch folded (static)
        # ---- layer 0: Conv2d(k=3, s=1, p=1) + BN + LeakyReLU ---------------
        inpad_ref[b, 1:1 + h, 1:1 + w, :] = x_ref[b]
        y = conv3x3(inpad_ref, b, h, w, cin, 0)
        off = 0 if num_layers == 2 else 2
        act_ref[b, off:off + h, off:off + w, :] = y[:, 0:w, :]

        # ---- middle layers: ConvTranspose2d(k=3, s=1) == pad-2 correlation
        #      with the pre-flipped kernel (no zero-upsample path) -----------
        ho, wo = h, w
        for li in range(1, num_layers - 1):
            ho, wo = ho + 2, wo + 2
            y = conv3x3(act_ref, b, ho, wo, cout, li)
            off = 0 if li == num_layers - 2 else 2
            act_ref[b, off:off + ho, off:off + wo, :] = y[:, 0:wo, :]

        # ---- last layer: ConvTranspose2d(k=3, s=2, output_padding=1) -------
        # Phase-decomposed (sub-pixel): ONE matmul on the non-upsampled input
        # yields all 4 output phases; the module's [1:-1, 1:-1] crop is folded
        # into the phase selection; output lanes are zero-padded to cp=128 so
        # the only HBM store the kernel makes is lane- and sublane-dense.
        li = num_layers - 1
        xw = jnp.concatenate(
            [act_ref[b, 0:hl + 1, kw:kw + wl_pad, :] for kw in range(2)],
            axis=-1)                                       # (hl+1, wl_pad, 2c)
        col = jnp.concatenate([xw[kh:kh + hl] for kh in range(2)], axis=-1)
        lhs = col.reshape(hl * wl_pad, 4 * cout)
        wk = w_ref[li, 0:4 * cout, 0:cp]
        sh = s_ref[li:li + 1, 0:cp]
        y = _leaky(jnp.dot(lhs, wk, preferred_element_type=jnp.float32) + sh)
        o_ref[b] = y.reshape(hl, wl_pad, cp)


# ----------------------------------------------------------------------------
# Host-side parameter packing (BN scale folded into weight columns)
# ----------------------------------------------------------------------------
def _fold_bn(p):
    scale = p["gamma"] / jnp.sqrt(p["var"] + BN_EPS)
    shift = p["beta"] + scale * (p["b"] - p["mean"])
    return scale.astype(jnp.float32), shift.astype(jnp.float32)


def _pack_conv_weight(w, scale):
    # Conv2d (Cout, Cin, 3, 3) -> (9*Cin, Cout), K ordered (kh, kw, ci).
    cout, cin = w.shape[0], w.shape[1]
    wk = jnp.transpose(w, (2, 3, 1, 0)).reshape(9 * cin, cout)
    return (wk * scale[None, :]).astype(jnp.float32)


def _pack_deconv_s1_weight(w, scale):
    # ConvTranspose2d (Cin, Cout, 3, 3), spatially flipped -> (9*Cin, Cout).
    cin, cout = w.shape[0], w.shape[1]
    wf = jnp.transpose(w[:, :, ::-1, ::-1], (2, 3, 0, 1))       # (3,3,Cin,Cout)
    wk = wf.reshape(9 * cin, cout)
    return (wk * scale[None, :]).astype(jnp.float32)


def _pack_deconv_s2_weight(w, scale, shift):
    """Combined 4-phase weight (4*Cin, 4*Cout) and tiled shift (4*Cout,).
    Operand (K) blocks match the in-kernel order [x, x_right, x_down, x_dr];
    column blocks are [phase(0,0) | (0,1) | (1,0) | (1,1)] * Cout."""
    cin, cout = w.shape[0], w.shape[1]
    wf = jnp.transpose(w[:, :, ::-1, ::-1], (2, 3, 0, 1))       # wf[kh,kw]: (Cin,Cout)
    z = jnp.zeros((cin, cout), jnp.float32)
    w_ee = jnp.concatenate([wf[1, 1], z,        z,        z       ], axis=0)
    w_eo = jnp.concatenate([wf[1, 0], wf[1, 2], z,        z       ], axis=0)
    w_oe = jnp.concatenate([wf[0, 1], z,        wf[2, 1], z       ], axis=0)
    w_oo = jnp.concatenate([wf[0, 0], wf[0, 2], wf[2, 0], wf[2, 2]], axis=0)
    wbig = jnp.concatenate([w_ee, w_eo, w_oe, w_oo], axis=1)    # (4*Cin, 4*Cout)
    scale4 = jnp.tile(scale, 4)
    shift4 = jnp.tile(shift, 4)
    return (wbig * scale4[None, :]).astype(jnp.float32), shift4.astype(jnp.float32)


# ----------------------------------------------------------------------------
# Full forward pass (Pallas path)
# ----------------------------------------------------------------------------
def decoder_forward(x_nchw, params, num_layers, batch_block=None):
    assert num_layers >= 2
    n, cin, h, w = x_nchw.shape
    cout = params[0]["w"].shape[0]

    # Batch folded into one grid step by default (best on 1-TC v5e/v6e);
    # on v7x pass batch_block = n // 2 so both TensorCores get work.
    if batch_block is None:
        batch_block = n
    assert n % batch_block == 0

    hl = h + 2 * (num_layers - 2)
    wl = w + 2 * (num_layers - 2)
    wl_pad = _round_up(wl, 8)
    cp = _round_up(4 * cout, 128)            # lane-dense final store
    assert cout <= cp

    # Pack ALL per-layer parameters into two operands: a weight slab and a
    # shift slab (BN scale folded into the weight columns).
    kdims = [9 * cin] + [9 * cout] * (num_layers - 2) + [4 * cout]
    kmax = _round_up(max(kdims), 8)
    w_slab = jnp.zeros((num_layers, kmax, cp), jnp.float32)
    s_slab = jnp.zeros((num_layers, cp), jnp.float32)
    for i, p in enumerate(params):
        scale, shift = _fold_bn(p)
        if i == 0:
            wk, sh = _pack_conv_weight(p["w"], scale), shift
        elif i < num_layers - 1:
            wk, sh = _pack_deconv_s1_weight(p["w"], scale), shift
        else:
            wk, sh = _pack_deconv_s2_weight(p["w"], scale, shift)
        w_slab = w_slab.at[i, :wk.shape[0], :wk.shape[1]].set(wk)
        s_slab = s_slab.at[i, :sh.shape[0]].set(sh)

    x = jnp.transpose(x_nchw, (0, 2, 3, 1)).astype(jnp.float32)   # -> NHWC

    out = pl.pallas_call(
        functools.partial(_decoder_kernel, num_layers=num_layers,
                          nb=batch_block, h=h, w=w, cin=cin, cout=cout, cp=cp),
        out_shape=jax.ShapeDtypeStruct((n, hl, wl_pad, cp), jnp.float32),
        grid=(n // batch_block,),
        in_specs=[
            pl.BlockSpec((batch_block, h, w, cin), lambda b: (b, 0, 0, 0)),
            pl.BlockSpec((num_layers, kmax, cp), lambda b: (0, 0, 0)),
            pl.BlockSpec((num_layers, cp), lambda b: (0, 0)),
        ],
        out_specs=pl.BlockSpec((batch_block, hl, wl_pad, cp),
                               lambda b: (b, 0, 0, 0)),
        scratch_shapes=[
            # padded input for layer 0 (pad=1, width padded for aligned im2col)
            pltpu.VMEM((batch_block, h + 2, _round_up(w, 8) + 2, cin),
                       jnp.float32),
            # padded activation scratch shared by all remaining layers
            pltpu.VMEM((batch_block, hl + 2, wl_pad + 2, cout), jnp.float32),
        ],
        compiler_params=pltpu.CompilerParams(
            dimension_semantics=("parallel",),
            vmem_limit_bytes=32 * 1024 * 1024),
    )(x, w_slab, s_slab)

    # Tiny host epilogue on the final map only: drop padded width columns and
    # zero lanes, sub-pixel shuffle of the 4 phases, NCHW.
    y = out[:, :, :wl, :4 * cout].reshape(n, hl, wl, 2, 2, cout)
    y = jnp.transpose(y, (0, 5, 1, 3, 2, 4)).reshape(n, cout, 2 * hl, 2 * wl)
    return y


# ----------------------------------------------------------------------------
# Parameter initialization (deterministic, synthetic)
# ----------------------------------------------------------------------------
def init_params(key, in_channels, out_channels, num_layers):
    params = []
    keys = jax.random.split(key, num_layers)
    for i in range(num_layers):
        k = jax.random.split(keys[i], 6)
        if i == 0:
            w = 0.1 * jax.random.normal(k[0], (out_channels, in_channels, 3, 3),
                                        jnp.float32)
        else:
            w = 0.1 * jax.random.normal(k[0], (out_channels, out_channels, 3, 3),
                                        jnp.float32)
        params.append(dict(
            w=w,
            b=0.1 * jax.random.normal(k[1], (out_channels,), jnp.float32),
            gamma=1.0 + 0.1 * jax.random.normal(k[2], (out_channels,), jnp.float32),
            beta=0.1 * jax.random.normal(k[3], (out_channels,), jnp.float32),
            mean=0.1 * jax.random.normal(k[4], (out_channels,), jnp.float32),
            var=0.5 + 0.5 * jnp.abs(jax.random.normal(k[5], (out_channels,),
                                                      jnp.float32)),
        ))
    return params


# ----------------------------------------------------------------------------
# Pure-JAX reference (NCHW), mirrors the PyTorch forward (eval-mode BN)
# ----------------------------------------------------------------------------
def _bn_lrelu_ref(y, p):
    scale = p["gamma"] / jnp.sqrt(p["var"] + BN_EPS)
    y = (y - p["mean"][None, :, None, None]) * scale[None, :, None, None] \
        + p["beta"][None, :, None, None]
    return jnp.where(y >= 0.0, y, LEAKY_SLOPE * y)


def decoder_forward_ref(x, params, num_layers):
    strides = [1] * num_layers
    strides[-1] = 2
    for i, p in enumerate(params):
        if i == 0:
            y = lax.conv_general_dilated(
                x, p["w"], (1, 1), [(1, 1), (1, 1)],
                dimension_numbers=("NCHW", "OIHW", "NCHW"))
        else:
            s = strides[i]
            op = 1 if s > 1 else 0
            wf = jnp.transpose(p["w"][:, :, ::-1, ::-1], (1, 0, 2, 3))
            y = lax.conv_general_dilated(
                x, wf, (1, 1), [(2, 2 + op), (2, 2 + op)],
                lhs_dilation=(s, s),
                dimension_numbers=("NCHW", "OIHW", "NCHW"))
        y = y + p["b"][None, :, None, None]
        x = _bn_lrelu_ref(y, p)
    return x[:, :, 1:-1, 1:-1]


if __name__ == "__main__":
    key = jax.random.PRNGKey(0)
    kx, kp = jax.random.split(key)

    in_channels, out_channels, num_layers = 4, 8, 3
    x = jax.random.normal(kx, (2, in_channels, 16, 16), jnp.float32)
    params = init_params(kp, in_channels, out_channels, num_layers)

    fwd = jax.jit(decoder_forward, static_argnums=(2,))
    out = jax.block_until_ready(fwd(x, params, num_layers))

    ref = decoder_forward_ref(x, params, num_layers)
    assert out.shape == ref.shape == (2, out_channels, 36, 36), out.shape
    max_err = float(jnp.max(jnp.abs(out - ref)))
    assert max_err < 1e-3, f"max abs error {max_err}"

    print("KERNEL_OK")
</pallas_src>

<mosaic_0001>
module attributes {stable_mosaic.version = 11 : i64} {
  func.func @_decoder_kernel(%arg0: i32, %arg1: memref<2x16x16x4xf32, #tpu.memory_space<vmem>>, %arg2: memref<3x72x128xf32, #tpu.memory_space<vmem>>, %arg3: memref<3x128xf32, #tpu.memory_space<vmem>>, %arg4: memref<2x18x24x128xf32, #tpu.memory_space<vmem>>, %arg5: memref<2x18x18x4xf32, #tpu.memory_space<vmem>>, %arg6: memref<2x20x26x8xf32, #tpu.memory_space<vmem>>) attributes {dimension_semantics = [#tpu.dimension_semantics<parallel>], iteration_bounds = array<i64: 1>, scalar_prefetch = 0 : i64, scratch_operands = 2 : i64, tpu.core_type = #tpu.core_type<tc>, window_params = [{transform_indices = @transform_0, window_bounds = array<i64: 2, 16, 16, 4>}, {pipeline_mode = #tpu.pipeline_mode<synchronous>, transform_indices = @transform_1, window_bounds = array<i64: 3, 72, 128>}, {pipeline_mode = #tpu.pipeline_mode<synchronous>, transform_indices = @transform_2, window_bounds = array<i64: 3, 128>}, {transform_indices = @transform_3, window_bounds = array<i64: 2, 18, 24, 128>}]} {
    %cst = arith.constant 0.000000e+00 : f32
    %0 = vector.broadcast %cst : f32 to vector<2x18x18x4xf32>
    %c0 = arith.constant 0 : index
    %c0_0 = arith.constant 0 : index
    %c0_1 = arith.constant 0 : index
    %c0_2 = arith.constant 0 : index
    %1 = vector.load %arg5[%c0, %c0_0, %c0_1, %c0_2] : memref<2x18x18x4xf32, #tpu.memory_space<vmem>>, vector<2x18x18x4xf32>
    tpu.vector_store %arg5[%c0, %c0_0, %c0_1, %c0_2], %0 {strides = array<i32>} : memref<2x18x18x4xf32, #tpu.memory_space<vmem>>, vector<2x18x18x4xf32>,
    %cst_3 = arith.constant 0.000000e+00 : f32
    %2 = vector.broadcast %cst_3 : f32 to vector<2x20x26x8xf32>
    %c0_4 = arith.constant 0 : index
    %c0_5 = arith.constant 0 : index
    %c0_6 = arith.constant 0 : index
    %c0_7 = arith.constant 0 : index
    %3 = vector.load %arg6[%c0_4, %c0_5, %c0_6, %c0_7] : memref<2x20x26x8xf32, #tpu.memory_space<vmem>>, vector<2x20x26x8xf32>
    tpu.vector_store %arg6[%c0_4, %c0_5, %c0_6, %c0_7], %2 {strides = array<i32>} : memref<2x20x26x8xf32, #tpu.memory_space<vmem>>, vector<2x20x26x8xf32>,
    %c0_8 = arith.constant 0 : index
    %c0_9 = arith.constant 0 : index
    %c0_10 = arith.constant 0 : index
    %c0_11 = arith.constant 0 : index
    %4 = vector.load %arg1[%c0_8, %c0_9, %c0_10, %c0_11] : memref<2x16x16x4xf32, #tpu.memory_space<vmem>>, vector<1x16x16x4xf32>
    %5 = vector.shape_cast %4 : vector<1x16x16x4xf32> to vector<16x16x4xf32>
    %c0_12 = arith.constant 0 : index
    %c1 = arith.constant 1 : index
    %c1_13 = arith.constant 1 : index
    %c0_14 = arith.constant 0 : index
    %6 = vector.load %arg5[%c0_12, %c1, %c1_13, %c0_14] : memref<2x18x18x4xf32, #tpu.memory_space<vmem>>, vector<1x16x16x4xf32>
    %7 = vector.shape_cast %6 : vector<1x16x16x4xf32> to vector<16x16x4xf32>
    %8 = vector.shape_cast %5 : vector<16x16x4xf32> to vector<1x16x16x4xf32>
    tpu.vector_store %arg5[%c0_12, %c1, %c1_13, %c0_14], %8 {strides = array<i32>} : memref<2x18x18x4xf32, #tpu.memory_space<vmem>>, vector<1x16x16x4xf32>,
    %c0_15 = arith.constant 0 : index
    %c0_16 = arith.constant 0 : index
    %c0_17 = arith.constant 0 : index
    %c0_18 = arith.constant 0 : index
    %9 = vector.load %arg5[%c0_15, %c0_16, %c0_17, %c0_18] : memref<2x18x18x4xf32, #tpu.memory_space<vmem>>, vector<1x18x16x4xf32>
    %10 = vector.shape_cast %9 : vector<1x18x16x4xf32> to vector<18x16x4xf32>
    %c0_19 = arith.constant 0 : index
    %c0_20 = arith.constant 0 : index
    %c1_21 = arith.constant 1 : index
    %c0_22 = arith.constant 0 : index
    %11 = vector.load %arg5[%c0_19, %c0_20, %c1_21, %c0_22] : memref<2x18x18x4xf32, #tpu.memory_space<vmem>>, vector<1x18x16x4xf32>
    %12 = vector.shape_cast %11 : vector<1x18x16x4xf32> to vector<18x16x4xf32>
    %c0_23 = arith.constant 0 : index
    %c0_24 = arith.constant 0 : index
    %c2 = arith.constant 2 : index
    %c0_25 = arith.constant 0 : index
    %13 = vector.load %arg5[%c0_23, %c0_24, %c2, %c0_25] : memref<2x18x18x4xf32, #tpu.memory_space<vmem>>, vector<1x18x16x4xf32>
    %14 = vector.shape_cast %13 : vector<1x18x16x4xf32> to vector<18x16x4xf32>
    %15 = tpu.concatenate %10, %12, %14 in 2 : vector<18x16x4xf32>, vector<18x16x4xf32>, vector<18x16x4xf32> -> vector<18x16x12xf32>
    %16 = vector.extract_strided_slice %15 {offsets = [0, 0, 0], sizes = [16, 16, 12], strides = [1, 1, 1]} : vector<18x16x12xf32> to vector<16x16x12xf32>
    %17 = vector.extract_strided_slice %15 {offsets = [1, 0, 0], sizes = [16, 16, 12], strides = [1, 1, 1]} : vector<18x16x12xf32> to vector<16x16x12xf32>
    %18 = vector.extract_strided_slice %15 {offsets = [2, 0, 0], sizes = [16, 16, 12], strides = [1, 1, 1]} : vector<18x16x12xf32> to vector<16x16x12xf32>
    %19 = tpu.concatenate %16, %17, %18 in 2 : vector<16x16x12xf32>, vector<16x16x12xf32>, vector<16x16x12xf32> -> vector<16x16x36xf32>
    %20 = vector.shape_cast %19 : vector<16x16x36xf32> to vector<256x36xf32>
    %c0_26 = arith.constant 0 : index
    %c0_27 = arith.constant 0 : index
    %c0_28 = arith.constant 0 : index
    %21 = vector.load %arg2[%c0_26, %c0_27, %c0_28] : memref<3x72x128xf32, #tpu.memory_space<vmem>>, vector<1x36x8xf32>
    %22 = vector.shape_cast %21 : vector<1x36x8xf32> to vector<36x8xf32>
    %c0_29 = arith.constant 0 : index
    %c0_30 = arith.constant 0 : index
    %23 = vector.load %arg3[%c0_29, %c0_30] : memref<3x128xf32, #tpu.memory_space<vmem>>, vector<1x8xf32>
    %cst_31 = arith.constant dense<0.000000e+00> : vector<256x8xf32>
    %24 = tpu.matmul %20, %22, %cst_31 {dimension_numbers = #tpu.dot_dimension_numbers<[1], [0], [0], [1], [0, 0, 1, 1], [], []>} : vector<256x36xf32>, vector<36x8xf32>, vector<256x8xf32> -> vector<256x8xf32>
    %25 = vector.broadcast %23 : vector<1x8xf32> to vector<256x8xf32>
    %26 = arith.addf %24, %25 : vector<256x8xf32>
    %cst_32 = arith.constant 0.000000e+00 : f32
    %27 = vector.broadcast %cst_32 : f32 to vector<256x8xf32>
    %28 = arith.cmpf oge, %26, %27 : vector<256x8xf32>
    %cst_33 = arith.constant 1.000000e-01 : f32
    %29 = vector.broadcast %cst_33 : f32 to vector<256x8xf32>
    %30 = arith.mulf %29, %26 : vector<256x8xf32>
    %31 = arith.select %28, %26, %30 : vector<256x8xi1>, vector<256x8xf32>
    %32 = vector.shape_cast %31 : vector<256x8xf32> to vector<16x16x8xf32>
    %c0_34 = arith.constant 0 : index
    %c2_35 = arith.constant 2 : index
    %c2_36 = arith.constant 2 : index
    %c0_37 = arith.constant 0 : index
    %33 = vector.load %arg6[%c0_34, %c2_35, %c2_36, %c0_37] : memref<2x20x26x8xf32, #tpu.memory_space<vmem>>, vector<1x16x16x8xf32>
    %34 = vector.shape_cast %33 : vector<1x16x16x8xf32> to vector<16x16x8xf32>
    %35 = vector.shape_cast %32 : vector<16x16x8xf32> to vector<1x16x16x8xf32>
    tpu.vector_store %arg6[%c0_34, %c2_35, %c2_36, %c0_37], %35 {strides = array<i32>} : memref<2x20x26x8xf32, #tpu.memory_space<vmem>>, vector<1x16x16x8xf32>,
    %c0_38 = arith.constant 0 : index
    %c0_39 = arith.constant 0 : index
    %c0_40 = arith.constant 0 : index
    %c0_41 = arith.constant 0 : index
    %36 = vector.load %arg6[%c0_38, %c0_39, %c0_40, %c0_41] : memref<2x20x26x8xf32, #tpu.memory_space<vmem>>, vector<1x20x24x8xf32>
    %37 = vector.shape_cast %36 : vector<1x20x24x8xf32> to vector<20x24x8xf32>
    %c0_42 = arith.constant 0 : index
    %c0_43 = arith.constant 0 : index
    %c1_44 = arith.constant 1 : index
    %c0_45 = arith.constant 0 : index
    %38 = vector.load %arg6[%c0_42, %c0_43, %c1_44, %c0_45] : memref<2x20x26x8xf32, #tpu.memory_space<vmem>>, vector<1x20x24x8xf32>
    %39 = vector.shape_cast %38 : vector<1x20x24x8xf32> to vector<20x24x8xf32>
    %c0_46 = arith.constant 0 : index
    %c0_47 = arith.constant 0 : index
    %c2_48 = arith.constant 2 : index
    %c0_49 = arith.constant 0 : index
    %40 = vector.load %arg6[%c0_46, %c0_47, %c2_48, %c0_49] : memref<2x20x26x8xf32, #tpu.memory_space<vmem>>, vector<1x20x24x8xf32>
    %41 = vector.shape_cast %40 : vector<1x20x24x8xf32> to vector<20x24x8xf32>
    %42 = tpu.concatenate %37, %39, %41 in 2 : vector<20x24x8xf32>, vector<20x24x8xf32>, vector<20x24x8xf32> -> vector<20x24x24xf32>
    %43 = vector.extract_strided_slice %42 {offsets = [0, 0, 0], sizes = [18, 24, 24], strides = [1, 1, 1]} : vector<20x24x24xf32> to vector<18x24x24xf32>
    %44 = vector.extract_strided_slice %42 {offsets = [1, 0, 0], sizes = [18, 24, 24], strides = [1, 1, 1]} : vector<20x24x24xf32> to vector<18x24x24xf32>
    %45 = vector.extract_strided_slice %42 {offsets = [2, 0, 0], sizes = [18, 24, 24], strides = [1, 1, 1]} : vector<20x24x24xf32> to vector<18x24x24xf32>
    %46 = tpu.concatenate %43, %44, %45 in 2 : vector<18x24x24xf32>, vector<18x24x24xf32>, vector<18x24x24xf32> -> vector<18x24x72xf32>
    %47 = vector.shape_cast %46 : vector<18x24x72xf32> to vector<432x72xf32>
    %c1_50 = arith.constant 1 : index
    %c0_51 = arith.constant 0 : index
    %c0_52 = arith.constant 0 : index
    %48 = vector.load %arg2[%c1_50, %c0_51, %c0_52] : memref<3x72x128xf32, #tpu.memory_space<vmem>>, vector<1x72x8xf32>
    %49 = vector.shape_cast %48 : vector<1x72x8xf32> to vector<72x8xf32>
    %c1_53 = arith.constant 1 : index
    %c0_54 = arith.constant 0 : index
    %50 = vector.load %arg3[%c1_53, %c0_54] : memref<3x128xf32, #tpu.memory_space<vmem>>, vector<1x8xf32>
    %cst_55 = arith.constant dense<0.000000e+00> : vector<432x8xf32>
    %51 = tpu.matmul %47, %49, %cst_55 {dimension_numbers = #tpu.dot_dimension_numbers<[1], [0], [0], [1], [0, 0, 1, 1], [], []>} : vector<432x72xf32>, vector<72x8xf32>, vector<432x8xf32> -> vector<432x8xf32>
    %52 = vector.broadcast %50 : vector<1x8xf32> to vector<432x8xf32>
    %53 = arith.addf %51, %52 : vector<432x8xf32>
    %cst_56 = arith.constant 0.000000e+00 : f32
    %54 = vector.broadcast %cst_56 : f32 to vector<432x8xf32>
    %55 = arith.cmpf oge, %53, %54 : vector<432x8xf32>
    %cst_57 = arith.constant 1.000000e-01 : f32
    %56 = vector.broadcast %cst_57 : f32 to vector<432x8xf32>
    %57 = arith.mulf %56, %53 : vector<432x8xf32>
    %58 = arith.select %55, %53, %57 : vector<432x8xi1>, vector<432x8xf32>
    %59 = vector.shape_cast %58 : vector<432x8xf32> to vector<18x24x8xf32>
    %60 = vector.extract_strided_slice %59 {offsets = [0, 0, 0], sizes = [18, 18, 8], strides = [1, 1, 1]} : vector<18x24x8xf32> to vector<18x18x8xf32>
    %c0_58 = arith.constant 0 : index
    %c0_59 = arith.constant 0 : index
    %c0_60 = arith.constant 0 : index
    %c0_61 = arith.constant 0 : index
    %61 = vector.load %arg6[%c0_58, %c0_59, %c0_60, %c0_61] : memref<2x20x26x8xf32, #tpu.memory_space<vmem>>, vector<1x18x18x8xf32>
    %62 = vector.shape_cast %61 : vector<1x18x18x8xf32> to vector<18x18x8xf32>
    %63 = vector.shape_cast %60 : vector<18x18x8xf32> to vector<1x18x18x8xf32>
    tpu.vector_store %arg6[%c0_58, %c0_59, %c0_60, %c0_61], %63 {strides = array<i32>} : memref<2x20x26x8xf32, #tpu.memory_space<vmem>>, vector<1x18x18x8xf32>,
    %c0_62 = arith.constant 0 : index
    %c0_63 = arith.constant 0 : index
    %c0_64 = arith.constant 0 : index
    %c0_65 = arith.constant 0 : index
    %64 = vector.load %arg6[%c0_62, %c0_63, %c0_64, %c0_65] : memref<2x20x26x8xf32, #tpu.memory_space<vmem>>, vector<1x19x24x8xf32>
    %65 = vector.shape_cast %64 : vector<1x19x24x8xf32> to vector<19x24x8xf32>
    %c0_66 = arith.constant 0 : index
    %c0_67 = arith.constant 0 : index
    %c1_68 = arith.constant 1 : index
    %c0_69 = arith.constant 0 : index
    %66 = vector.load %arg6[%c0_66, %c0_67, %c1_68, %c0_69] : memref<2x20x26x8xf32, #tpu.memory_space<vmem>>, vector<1x19x24x8xf32>
    %67 = vector.shape_cast %66 : vector<1x19x24x8xf32> to vector<19x24x8xf32>
    %68 = tpu.concatenate %65, %67 in 2 : vector<19x24x8xf32>, vector<19x24x8xf32> -> vector<19x24x16xf32>
    %69 = vector.extract_strided_slice %68 {offsets = [0, 0, 0], sizes = [18, 24, 16], strides = [1, 1, 1]} : vector<19x24x16xf32> to vector<18x24x16xf32>
    %70 = vector.extract_strided_slice %68 {offsets = [1, 0, 0], sizes = [18, 24, 16], strides = [1, 1, 1]} : vector<19x24x16xf32> to vector<18x24x16xf32>
    %71 = tpu.concatenate %69, %70 in 2 : vector<18x24x16xf32>, vector<18x24x16xf32> -> vector<18x24x32xf32>
    %72 = vector.shape_cast %71 : vector<18x24x32xf32> to vector<432x32xf32>
    %c2_70 = arith.constant 2 : index
    %c0_71 = arith.constant 0 : index
    %c0_72 = arith.constant 0 : index
    %73 = vector.load %arg2[%c2_70, %c0_71, %c0_72] : memref<3x72x128xf32, #tpu.memory_space<vmem>>, vector<1x32x128xf32>
    %74 = vector.shape_cast %73 : vector<1x32x128xf32> to vector<32x128xf32>
    %c2_73 = arith.constant 2 : index
    %c0_74 = arith.constant 0 : index
    %75 = vector.load %arg3[%c2_73, %c0_74] : memref<3x128xf32, #tpu.memory_space<vmem>>, vector<1x128xf32>
    %cst_75 = arith.constant dense<0.000000e+00> : vector<432x128xf32>
    %76 = tpu.matmul %72, %74, %cst_75 {dimension_numbers = #tpu.dot_dimension_numbers<[1], [0], [0], [1], [0, 0, 1, 1], [], []>} : vector<432x32xf32>, vector<32x128xf32>, vector<432x128xf32> -> vector<432x128xf32>
    %77 = vector.broadcast %75 : vector<1x128xf32> to vector<432x128xf32>
    %78 = arith.addf %76, %77 : vector<432x128xf32>
    %cst_76 = arith.constant 0.000000e+00 : f32
    %79 = vector.broadcast %cst_76 : f32 to vector<432x128xf32>
    %80 = arith.cmpf oge, %78, %79 : vector<432x128xf32>
    %cst_77 = arith.constant 1.000000e-01 : f32
    %81 = vector.broadcast %cst_77 : f32 to vector<432x128xf32>
    %82 = arith.mulf %81, %78 : vector<432x128xf32>
    %83 = arith.select %80, %78, %82 : vector<432x128xi1>, vector<432x128xf32>
    %84 = vector.shape_cast %83 : vector<432x128xf32> to vector<18x24x128xf32>
    %c0_78 = arith.constant 0 : index
    %c0_79 = arith.constant 0 : index
    %c0_80 = arith.constant 0 : index
    %c0_81 = arith.constant 0 : index
    %85 = vector.load %arg4[%c0_78, %c0_79, %c0_80, %c0_81] : memref<2x18x24x128xf32, #tpu.memory_space<vmem>>, vector<1x18x24x128xf32>
    %86 = vector.shape_cast %85 : vector<1x18x24x128xf32> to vector<18x24x128xf32>
    %87 = vector.shape_cast %84 : vector<18x24x128xf32> to vector<1x18x24x128xf32>
    tpu.vector_store %arg4[%c0_78, %c0_79, %c0_80, %c0_81], %87 {strides = array<i32>} : memref<2x18x24x128xf32, #tpu.memory_space<vmem>>, vector<1x18x24x128xf32>,
    %c1_82 = arith.constant 1 : index
    %c0_83 = arith.constant 0 : index
    %c0_84 = arith.constant 0 : index
    %c0_85 = arith.constant 0 : index
    %88 = vector.load %arg1[%c1_82, %c0_83, %c0_84, %c0_85] : memref<2x16x16x4xf32, #tpu.memory_space<vmem>>, vector<1x16x16x4xf32>
    %89 = vector.shape_cast %88 : vector<1x16x16x4xf32> to vector<16x16x4xf32>
    %c1_86 = arith.constant 1 : index
    %c1_87 = arith.constant 1 : index
    %c1_88 = arith.constant 1 : index
    %c0_89 = arith.constant 0 : index
    %90 = vector.load %arg5[%c1_86, %c1_87, %c1_88, %c0_89] : memref<2x18x18x4xf32, #tpu.memory_space<vmem>>, vector<1x16x16x4xf32>
    %91 = vector.shape_cast %90 : vector<1x16x16x4xf32> to vector<16x16x4xf32>
    %92 = vector.shape_cast %89 : vector<16x16x4xf32> to vector<1x16x16x4xf32>
    tpu.vector_store %arg5[%c1_86, %c1_87, %c1_88, %c0_89], %92 {strides = array<i32>} : memref<2x18x18x4xf32, #tpu.memory_space<vmem>>, vector<1x16x16x4xf32>,
    %c1_90 = arith.constant 1 : index
    %c0_91 = arith.constant 0 : index
    %c0_92 = arith.constant 0 : index
    %c0_93 = arith.constant 0 : index
    %93 = vector.load %arg5[%c1_90, %c0_91, %c0_92, %c0_93] : memref<2x18x18x4xf32, #tpu.memory_space<vmem>>, vector<1x18x16x4xf32>
    %94 = vector.shape_cast %93 : vector<1x18x16x4xf32> to vector<18x16x4xf32>
    %c1_94 = arith.constant 1 : index
    %c0_95 = arith.constant 0 : index
    %c1_96 = arith.constant 1 : index
    %c0_97 = arith.constant 0 : index
    %95 = vector.load %arg5[%c1_94, %c0_95, %c1_96, %c0_97] : memref<2x18x18x4xf32, #tpu.memory_space<vmem>>, vector<1x18x16x4xf32>
    %96 = vector.shape_cast %95 : vector<1x18x16x4xf32> to vector<18x16x4xf32>
    %c1_98 = arith.constant 1 : index
    %c0_99 = arith.constant 0 : index
    %c2_100 = arith.constant 2 : index
    %c0_101 = arith.constant 0 : index
    %97 = vector.load %arg5[%c1_98, %c0_99, %c2_100, %c0_101] : memref<2x18x18x4xf32, #tpu.memory_space<vmem>>, vector<1x18x16x4xf32>
    %98 = vector.shape_cast %97 : vector<1x18x16x4xf32> to vector<18x16x4xf32>
    %99 = tpu.concatenate %94, %96, %98 in 2 : vector<18x16x4xf32>, vector<18x16x4xf32>, vector<18x16x4xf32> -> vector<18x16x12xf32>
    %100 = vector.extract_strided_slice %99 {offsets = [0, 0, 0], sizes = [16, 16, 12], strides = [1, 1, 1]} : vector<18x16x12xf32> to vector<16x16x12xf32>
    %101 = vector.extract_strided_slice %99 {offsets = [1, 0, 0], sizes = [16, 16, 12], strides = [1, 1, 1]} : vector<18x16x12xf32> to vector<16x16x12xf32>
    %102 = vector.extract_strided_slice %99 {offsets = [2, 0, 0], sizes = [16, 16, 12], strides = [1, 1, 1]} : vector<18x16x12xf32> to vector<16x16x12xf32>
    %103 = tpu.concatenate %100, %101, %102 in 2 : vector<16x16x12xf32>, vector<16x16x12xf32>, vector<16x16x12xf32> -> vector<16x16x36xf32>
    %104 = vector.shape_cast %103 : vector<16x16x36xf32> to vector<256x36xf32>
    %c0_102 = arith.constant 0 : index
    %c0_103 = arith.constant 0 : index
    %c0_104 = arith.constant 0 : index
    %105 = vector.load %arg2[%c0_102, %c0_103, %c0_104] : memref<3x72x128xf32, #tpu.memory_space<vmem>>, vector<1x36x8xf32>
    %106 = vector.shape_cast %105 : vector<1x36x8xf32> to vector<36x8xf32>
    %c0_105 = arith.constant 0 : index
    %c0_106 = arith.constant 0 : index
    %107 = vector.load %arg3[%c0_105, %c0_106] : memref<3x128xf32, #tpu.memory_space<vmem>>, vector<1x8xf32>
    %cst_107 = arith.constant dense<0.000000e+00> : vector<256x8xf32>
    %108 = tpu.matmul %104, %106, %cst_107 {dimension_numbers = #tpu.dot_dimension_numbers<[1], [0], [0], [1], [0, 0, 1, 1], [], []>} : vector<256x36xf32>, vector<36x8xf32>, vector<256x8xf32> -> vector<256x8xf32>
    %109 = vector.broadcast %107 : vector<1x8xf32> to vector<256x8xf32>
    %110 = arith.addf %108, %109 : vector<256x8xf32>
    %cst_108 = arith.constant 0.000000e+00 : f32
    %111 = vector.broadcast %cst_108 : f32 to vector<256x8xf32>
    %112 = arith.cmpf oge, %110, %111 : vector<256x8xf32>
    %cst_109 = arith.constant 1.000000e-01 : f32
    %113 = vector.broadcast %cst_109 : f32 to vector<256x8xf32>
    %114 = arith.mulf %113, %110 : vector<256x8xf32>
    %115 = arith.select %112, %110, %114 : vector<256x8xi1>, vector<256x8xf32>
    %116 = vector.shape_cast %115 : vector<256x8xf32> to vector<16x16x8xf32>
    %c1_110 = arith.constant 1 : index
    %c2_111 = arith.constant 2 : index
    %c2_112 = arith.constant 2 : index
    %c0_113 = arith.constant 0 : index
    %117 = vector.load %arg6[%c1_110, %c2_111, %c2_112, %c0_113] : memref<2x20x26x8xf32, #tpu.memory_space<vmem>>, vector<1x16x16x8xf32>
    %118 = vector.shape_cast %117 : vector<1x16x16x8xf32> to vector<16x16x8xf32>
    %119 = vector.shape_cast %116 : vector<16x16x8xf32> to vector<1x16x16x8xf32>
    tpu.vector_store %arg6[%c1_110, %c2_111, %c2_112, %c0_113], %119 {strides = array<i32>} : memref<2x20x26x8xf32, #tpu.memory_space<vmem>>, vector<1x16x16x8xf32>,
    %c1_114 = arith.constant 1 : index
    %c0_115 = arith.constant 0 : index
    %c0_116 = arith.constant 0 : index
    %c0_117 = arith.constant 0 : index
    %120 = vector.load %arg6[%c1_114, %c0_115, %c0_116, %c0_117] : memref<2x20x26x8xf32, #tpu.memory_space<vmem>>, vector<1x20x24x8xf32>
    %121 = vector.shape_cast %120 : vector<1x20x24x8xf32> to vector<20x24x8xf32>
    %c1_118 = arith.constant 1 : index
    %c0_119 = arith.constant 0 : index
    %c1_120 = arith.constant 1 : index
    %c0_121 = arith.constant 0 : index
    %122 = vector.load %arg6[%c1_118, %c0_119, %c1_120, %c0_121] : memref<2x20x26x8xf32, #tpu.memory_space<vmem>>, vector<1x20x24x8xf32>
    %123 = vector.shape_cast %122 : vector<1x20x24x8xf32> to vector<20x24x8xf32>
    %c1_122 = arith.constant 1 : index
    %c0_123 = arith.constant 0 : index
    %c2_124 = arith.constant 2 : index
    %c0_125 = arith.constant 0 : index
    %124 = vector.load %arg6[%c1_122, %c0_123, %c2_124, %c0_125] : memref<2x20x26x8xf32, #tpu.memory_space<vmem>>, vector<1x20x24x8xf32>
    %125 = vector.shape_cast %124 : vector<1x20x24x8xf32> to vector<20x24x8xf32>
    %126 = tpu.concatenate %121, %123, %125 in 2 : vector<20x24x8xf32>, vector<20x24x8xf32>, vector<20x24x8xf32> -> vector<20x24x24xf32>
    %127 = vector.extract_strided_slice %126 {offsets = [0, 0, 0], sizes = [18, 24, 24], strides = [1, 1, 1]} : vector<20x24x24xf32> to vector<18x24x24xf32>
    %128 = vector.extract_strided_slice %126 {offsets = [1, 0, 0], sizes = [18, 24, 24], strides = [1, 1, 1]} : vector<20x24x24xf32> to vector<18x24x24xf32>
    %129 = vector.extract_strided_slice %126 {offsets = [2, 0, 0], sizes = [18, 24, 24], strides = [1, 1, 1]} : vector<20x24x24xf32> to vector<18x24x24xf32>
    %130 = tpu.concatenate %127, %128, %129 in 2 : vector<18x24x24xf32>, vector<18x24x24xf32>, vector<18x24x24xf32> -> vector<18x24x72xf32>
    %131 = vector.shape_cast %130 : vector<18x24x72xf32> to vector<432x72xf32>
    %c1_126 = arith.constant 1 : index
    %c0_127 = arith.constant 0 : index
    %c0_128 = arith.constant 0 : index
    %132 = vector.load %arg2[%c1_126, %c0_127, %c0_128] : memref<3x72x128xf32, #tpu.memory_space<vmem>>, vector<1x72x8xf32>
    %133 = vector.shape_cast %132 : vector<1x72x8xf32> to vector<72x8xf32>
    %c1_129 = arith.constant 1 : index
    %c0_130 = arith.constant 0 : index
    %134 = vector.load %arg3[%c1_129, %c0_130] : memref<3x128xf32, #tpu.memory_space<vmem>>, vector<1x8xf32>
    %cst_131 = arith.constant dense<0.000000e+00> : vector<432x8xf32>
    %135 = tpu.matmul %131, %133, %cst_131 {dimension_numbers = #tpu.dot_dimension_numbers<[1], [0], [0], [1], [0, 0, 1, 1], [], []>} : vector<432x72xf32>, vector<72x8xf32>, vector<432x8xf32> -> vector<432x8xf32>
    %136 = vector.broadcast %134 : vector<1x8xf32> to vector<432x8xf32>
    %137 = arith.addf %135, %136 : vector<432x8xf32>
    %cst_132 = arith.constant 0.000000e+00 : f32
    %138 = vector.broadcast %cst_132 : f32 to vector<432x8xf32>
    %139 = arith.cmpf oge, %137, %138 : vector<432x8xf32>
    %cst_133 = arith.constant 1.000000e-01 : f32
    %140 = vector.broadcast %cst_133 : f32 to vector<432x8xf32>
    %141 = arith.mulf %140, %137 : vector<432x8xf32>
    %142 = arith.select %139, %137, %141 : vector<432x8xi1>, vector<432x8xf32>
    %143 = vector.shape_cast %142 : vector<432x8xf32> to vector<18x24x8xf32>
    %144 = vector.extract_strided_slice %143 {offsets = [0, 0, 0], sizes = [18, 18, 8], strides = [1, 1, 1]} : vector<18x24x8xf32> to vector<18x18x8xf32>
    %c1_134 = arith.constant 1 : index
    %c0_135 = arith.constant 0 : index
    %c0_136 = arith.constant 0 : index
    %c0_137 = arith.constant 0 : index
    %145 = vector.load %arg6[%c1_134, %c0_135, %c0_136, %c0_137] : memref<2x20x26x8xf32, #tpu.memory_space<vmem>>, vector<1x18x18x8xf32>
    %146 = vector.shape_cast %145 : vector<1x18x18x8xf32> to vector<18x18x8xf32>
    %147 = vector.shape_cast %144 : vector<18x18x8xf32> to vector<1x18x18x8xf32>
    tpu.vector_store %arg6[%c1_134, %c0_135, %c0_136, %c0_137], %147 {strides = array<i32>} : memref<2x20x26x8xf32, #tpu.memory_space<vmem>>, vector<1x18x18x8xf32>,
    %c1_138 = arith.constant 1 : index
    %c0_139 = arith.constant 0 : index
    %c0_140 = arith.constant 0 : index
    %c0_141 = arith.constant 0 : index
    %148 = vector.load %arg6[%c1_138, %c0_139, %c0_140, %c0_141] : memref<2x20x26x8xf32, #tpu.memory_space<vmem>>, vector<1x19x24x8xf32>
    %149 = vector.shape_cast %148 : vector<1x19x24x8xf32> to vector<19x24x8xf32>
    %c1_142 = arith.constant 1 : index
    %c0_143 = arith.constant 0 : index
    %c1_144 = arith.constant 1 : index
    %c0_145 = arith.constant 0 : index
    %150 = vector.load %arg6[%c1_142, %c0_143, %c1_144, %c0_145] : memref<2x20x26x8xf32, #tpu.memory_space<vmem>>, vector<1x19x24x8xf32>
    %151 = vector.shape_cast %150 : vector<1x19x24x8xf32> to vector<19x24x8xf32>
    %152 = tpu.concatenate %149, %151 in 2 : vector<19x24x8xf32>, vector<19x24x8xf32> -> vector<19x24x16xf32>
    %153 = vector.extract_strided_slice %152 {offsets = [0, 0, 0], sizes = [18, 24, 16], strides = [1, 1, 1]} : vector<19x24x16xf32> to vector<18x24x16xf32>
    %154 = vector.extract_strided_slice %152 {offsets = [1, 0, 0], sizes = [18, 24, 16], strides = [1, 1, 1]} : vector<19x24x16xf32> to vector<18x24x16xf32>
    %155 = tpu.concatenate %153, %154 in 2 : vector<18x24x16xf32>, vector<18x24x16xf32> -> vector<18x24x32xf32>
    %156 = vector.shape_cast %155 : vector<18x24x32xf32> to vector<432x32xf32>
    %c2_146 = arith.constant 2 : index
    %c0_147 = arith.constant 0 : index
    %c0_148 = arith.constant 0 : index
    %157 = vector.load %arg2[%c2_146, %c0_147, %c0_148] : memref<3x72x128xf32, #tpu.memory_space<vmem>>, vector<1x32x128xf32>
    %158 = vector.shape_cast %157 : vector<1x32x128xf32> to vector<32x128xf32>
    %c2_149 = arith.constant 2 : index
    %c0_150 = arith.constant 0 : index
    %159 = vector.load %arg3[%c2_149, %c0_150] : memref<3x128xf32, #tpu.memory_space<vmem>>, vector<1x128xf32>
    %cst_151 = arith.constant dense<0.000000e+00> : vector<432x128xf32>
    %160 = tpu.matmul %156, %158, %cst_151 {dimension_numbers = #tpu.dot_dimension_numbers<[1], [0], [0], [1], [0, 0, 1, 1], [], []>} : vector<432x32xf32>, vector<32x128xf32>, vector<432x128xf32> -> vector<432x128xf32>
    %161 = vector.broadcast %159 : vector<1x128xf32> to vector<432x128xf32>
    %162 = arith.addf %160, %161 : vector<432x128xf32>
    %cst_152 = arith.constant 0.000000e+00 : f32
    %163 = vector.broadcast %cst_152 : f32 to vector<432x128xf32>
    %164 = arith.cmpf oge, %162, %163 : vector<432x128xf32>
    %cst_153 = arith.constant 1.000000e-01 : f32
    %165 = vector.broadcast %cst_153 : f32 to vector<432x128xf32>
    %166 = arith.mulf %165, %162 : vector<432x128xf32>
    %167 = arith.select %164, %162, %166 : vector<432x128xi1>, vector<432x128xf32>
    %168 = vector.shape_cast %167 : vector<432x128xf32> to vector<18x24x128xf32>
    %c1_154 = arith.constant 1 : index
    %c0_155 = arith.constant 0 : index
    %c0_156 = arith.constant 0 : index
    %c0_157 = arith.constant 0 : index
    %169 = vector.load %arg4[%c1_154, %c0_155, %c0_156, %c0_157] : memref<2x18x24x128xf32, #tpu.memory_space<vmem>>, vector<1x18x24x128xf32>
    %170 = vector.shape_cast %169 : vector<1x18x24x128xf32> to vector<18x24x128xf32>
    %171 = vector.shape_cast %168 : vector<18x24x128xf32> to vector<1x18x24x128xf32>
    tpu.vector_store %arg4[%c1_154, %c0_155, %c0_156, %c0_157], %171 {strides = array<i32>} : memref<2x18x24x128xf32, #tpu.memory_space<vmem>>, vector<1x18x24x128xf32>,
    return
  }
  func.func @transform_0(%arg0: i32) -> (i32, i32, i32, i32) {
    %c0_i32 = arith.constant 0 : i32
    %c0_i32_0 = arith.constant 0 : i32
    %c0_i32_1 = arith.constant 0 : i32
    %c0_i32_2 = arith.constant 0 : i32
    return %arg0, %c0_i32, %c0_i32_0, %c0_i32_1 : i32, i32, i32, i32
  }
  func.func @transform_1(%arg0: i32) -> (i32, i32, i32) {
    %c0_i32 = arith.constant 0 : i32
    %c0_i32_0 = arith.constant 0 : i32
    %c0_i32_1 = arith.constant 0 : i32
    %c0_i32_2 = arith.constant 0 : i32
    return %c0_i32, %c0_i32_0, %c0_i32_1 : i32, i32, i32
  }
  func.func @transform_2(%arg0: i32) -> (i32, i32) {
    %c0_i32 = arith.constant 0 : i32
    %c0_i32_0 = arith.constant 0 : i32
    %c0_i32_1 = arith.constant 0 : i32
    return %c0_i32, %c0_i32_0 : i32, i32
  }
  func.func @transform_3(%arg0: i32) -> (i32, i32, i32, i32) {
    %c0_i32 = arith.constant 0 : i32
    %c0_i32_0 = arith.constant 0 : i32
    %c0_i32_1 = arith.constant 0 : i32
    %c0_i32_2 = arith.constant 0 : i32
    return %arg0, %c0_i32, %c0_i32_0, %c0_i32_1 : i32, i32, i32, i32
  }
}

</mosaic_0001>

<llo_original>
// kernel: tile.17
$region0: #{tile.17}
  #allocation0 [shape = 's32[1]{0}', space=sflag, size = 0x4, scoped, tag = 'scoped memory for tile.17']
  %s0 = inlined_call_operand.vmem [shape: f32[8], index: 0, kind: input, shape index: {}]
  %s1 = inlined_call_operand.vmem [shape: f32[4,8], index: 1, kind: output, shape index: {}]
  // Predicated region
  $region2: #{tile.17} parent=0 // pred_check
    _
  $region3: #{tile.17} parent=0 // pred_check_branch
    %3 = sbr.rel (0) target = $region5
  $region4: #{tile.17} parent=0 // pred_region
    _
  $region5: #{tile.17} parent=0 // pred_fallthru
    _
  %v4 = vld [vmem:[%s0] ss:$0 sm:$0xff]
  %5 = vst [vmem:[%s1] sm:$0xf] %v4

// kernel: decoder_forward.1
$region0: #{decoder_forward.1}
  #allocation0 [shape = 'u32[]', space=smem, size = 0x4, offset = 0x4, fixed_abs, tag = 'smem constant byte address 0x4 - core index']
  #allocation1 [shape = 'u32[144,128]{1,0:T(1,128)}', space=vmem, size = 0x12000, scoped, tag = 'internal scratch']
  #allocation2 [shape = 'f32[2,18,18,4]{3,2,1,0:T(8,128)}', space=vmem, size = 0x6c000, scoped, tag = 'scratch operand']
  #allocation3 [shape = 'f32[2,20,26,8]{3,2,1,0:T(8,128)}', space=vmem, size = 0xa0000, scoped, tag = 'scratch operand']
  %s0 = inlined_call_operand.vmem [shape: f32[2,16,16,4], index: 0, kind: input, shape index: {}]
  %s1 = inlined_call_operand.vmem [shape: f32[3,72,128], index: 1, kind: input, shape index: {}]
  %s2 = inlined_call_operand.vmem [shape: f32[3,128], index: 2, kind: input, shape index: {}]
  %s3 = inlined_call_operand.vmem [shape: f32[2,18,24,128], index: 3, kind: output, shape index: {}]
  %s4 = sld [smem:[#allocation0]]
  $region22: #{decoder_forward.1} parent=0
    _
  %s6 = ssub.s32 1, %s4
  %s7 = scalar_select 0, %s6, %s4
  // Predicated region
  $region2: #{decoder_forward.1} parent=0 // pred_check
    _
  $region3: #{decoder_forward.1} parent=0 // pred_check_branch
    %9 = sbr.rel (0) target = $region5
  $region4: #{decoder_forward.1} parent=0 // pred_region
    _
  $region5: #{decoder_forward.1} parent=0 // pred_fallthru
    _
  // Predicated region
  $region6: #{decoder_forward.1} parent=0 // pred_check
    _
  $region7: #{decoder_forward.1} parent=0 // pred_check_branch
    %11 = sbr.rel (0) target = $region9
  $region8: #{decoder_forward.1} parent=0 // pred_region
    _
  $region9: #{decoder_forward.1} parent=0 // pred_fallthru
    _
  // Predicated region
  $region10: #{decoder_forward.1} parent=0 // pred_check
    _
  $region11: #{decoder_forward.1} parent=0 // pred_check_branch
    %13 = sbr.rel (0) target = $region13
  $region12: #{decoder_forward.1} parent=0 // pred_region
    _
  $region13: #{decoder_forward.1} parent=0 // pred_fallthru
    _
  %vm14 = vcmask 31744
  %15 = vst.msk [vmem:[#allocation2] sm:$0xff] %vm14, 0.0
  %16 = vst.msk [vmem:[#allocation2 + $0x8] sm:$0xff] %vm14, 0.0
  %vm17 = vcmask 25600
  %18 = vst.msk [vmem:[#allocation2 + $0x10] sm:$0x3] %vm17, 0.0
  %19 = vst.msk [vmem:[#allocation2 + $0x18] sm:$0xff] %vm14, 0.0
  %20 = vst.msk [vmem:[#allocation2 + $0x20] sm:$0xff] %vm14, 0.0
  %21 = vst.msk [vmem:[#allocation2 + $0x28] sm:$0x3] %vm17, 0.0
  %22 = vst.msk [vmem:[#allocation2 + $0x30] sm:$0xff] %vm14, 0.0
  %23 = vst.msk [vmem:[#allocation2 + $0x38] sm:$0xff] %vm14, 0.0
  %24 = vst.msk [vmem:[#allocation2 + $0x40] sm:$0x3] %vm17, 0.0
  %25 = vst.msk [vmem:[#allocation2 + $0x48] sm:$0xff] %vm14, 0.0
  %26 = vst.msk [vmem:[#allocation2 + $0x50] sm:$0xff] %vm14, 0.0
  %27 = vst.msk [vmem:[#allocation2 + $0x58] sm:$0x3] %vm17, 0.0
  %28 = vst.msk [vmem:[#allocation2 + $0x60] sm:$0xff] %vm14, 0.0
  %29 = vst.msk [vmem:[#allocation2 + $0x68] sm:$0xff] %vm14, 0.0
  %30 = vst.msk [vmem:[#allocation2 + $0x70] sm:$0x3] %vm17, 0.0
  %31 = vst.msk [vmem:[#allocation2 + $0x78] sm:$0xff] %vm14, 0.0
  %32 = vst.msk [vmem:[#allocation2 + $0x80] sm:$0xff] %vm14, 0.0
  %33 = vst.msk [vmem:[#allocation2 + $0x88] sm:$0x3] %vm17, 0.0
  %34 = vst.msk [vmem:[#allocation2 + $0x90] sm:$0xff] %vm14, 0.0
  %35 = vst.msk [vmem:[#allocation2 + $0x98] sm:$0xff] %vm14, 0.0
  %36 = vst.msk [vmem:[#allocation2 + $0xa0] sm:$0x3] %vm17, 0.0
  %37 = vst.msk [vmem:[#allocation2 + $0xa8] sm:$0xff] %vm14, 0.0
  %38 = vst.msk [vmem:[#allocation2 + $0xb0] sm:$0xff] %vm14, 0.0
  %39 = vst.msk [vmem:[#allocation2 + $0xb8] sm:$0x3] %vm17, 0.0
  %40 = vst.msk [vmem:[#allocation2 + $0xc0] sm:$0xff] %vm14, 0.0
  %41 = vst.msk [vmem:[#allocation2 + $0xc8] sm:$0xff] %vm14, 0.0
  %42 = vst.msk [vmem:[#allocation2 + $0xd0] sm:$0x3] %vm17, 0.0
  %43 = vst.msk [vmem:[#allocation2 + $0xd8] sm:$0xff] %vm14, 0.0
  %44 = vst.msk [vmem:[#allocation2 + $0xe0] sm:$0xff] %vm14, 0.0
  %45 = vst.msk [vmem:[#allocation2 + $0xe8] sm:$0x3] %vm17, 0.0
  %46 = vst.msk [vmem:[#allocation2 + $0xf0] sm:$0xff] %vm14, 0.0
  %47 = vst.msk [vmem:[#allocation2 + $0xf8] sm:$0xff] %vm14, 0.0
  %48 = vst.msk [vmem:[#allocation2 + $0x100] sm:$0x3] %vm17, 0.0
  %49 = vst.msk [vmem:[#allocation2 + $0x108] sm:$0xff] %vm14, 0.0
  %50 = vst.msk [vmem:[#allocation2 + $0x110] sm:$0xff] %vm14, 0.0
  %51 = vst.msk [vmem:[#allocation2 + $0x118] sm:$0x3] %vm17, 0.0
  %52 = vst.msk [vmem:[#allocation2 + $0x120] sm:$0xff] %vm14, 0.0
  %53 = vst.msk [vmem:[#allocation2 + $0x128] sm:$0xff] %vm14, 0.0
  %54 = vst.msk [vmem:[#allocation2 + $0x130] sm:$0x3] %vm17, 0.0
  %55 = vst.msk [vmem:[#allocation2 + $0x138] sm:$0xff] %vm14, 0.0
  %56 = vst.msk [vmem:[#allocation2 + $0x140] sm:$0xff] %vm14, 0.0
  %57 = vst.msk [vmem:[#allocation2 + $0x148] sm:$0x3] %vm17, 0.0
  %58 = vst.msk [vmem:[#allocation2 + $0x150] sm:$0xff] %vm14, 0.0
  %59 = vst.msk [vmem:[#allocation2 + $0x158] sm:$0xff] %vm14, 0.0
  %60 = vst.msk [vmem:[#allocation2 + $0x160] sm:$0x3] %vm17, 0.0
  %61 = vst.msk [vmem:[#allocation2 + $0x168] sm:$0xff] %vm14, 0.0
  %62 = vst.msk [vmem:[#allocation2 + $0x170] sm:$0xff] %vm14, 0.0
  %63 = vst.msk [vmem:[#allocation2 + $0x178] sm:$0x3] %vm17, 0.0
  %64 = vst.msk [vmem:[#allocation2 + $0x180] sm:$0xff] %vm14, 0.0
  %65 = vst.msk [vmem:[#allocation2 + $0x188] sm:$0xff] %vm14, 0.0
  %66 = vst.msk [vmem:[#allocation2 + $0x190] sm:$0x3] %vm17, 0.0
  %67 = vst.msk [vmem:[#allocation2 + $0x198] sm:$0xff] %vm14, 0.0
  %68 = vst.msk [vmem:[#allocation2 + $0x1a0] sm:$0xff] %vm14, 0.0
  %69 = vst.msk [vmem:[#allocation2 + $0x1a8] sm:$0x3] %vm17, 0.0
  %70 = vst.msk [vmem:[#allocation2 + $0x1b0] sm:$0xff] %vm14, 0.0
  %71 = vst.msk [vmem:[#allocation2 + $0x1b8] sm:$0xff] %vm14, 0.0
  %72 = vst.msk [vmem:[#allocation2 + $0x1c0] sm:$0x3] %vm17, 0.0
  %73 = vst.msk [vmem:[#allocation2 + $0x1c8] sm:$0xff] %vm14, 0.0
  %74 = vst.msk [vmem:[#allocation2 + $0x1d0] sm:$0xff] %vm14, 0.0
  %75 = vst.msk [vmem:[#allocation2 + $0x1d8] sm:$0x3] %vm17, 0.0
  %76 = vst.msk [vmem:[#allocation2 + $0x1e0] sm:$0xff] %vm14, 0.0
  %77 = vst.msk [vmem:[#allocation2 + $0x1e8] sm:$0xff] %vm14, 0.0
  %78 = vst.msk [vmem:[#allocation2 + $0x1f0] sm:$0x3] %vm17, 0.0
  %79 = vst.msk [vmem:[#allocation2 + $0x1f8] sm:$0xff] %vm14, 0.0
  %80 = vst.msk [vmem:[#allocation2 + $0x200] sm:$0xff] %vm14, 0.0
  %81 = vst.msk [vmem:[#allocation2 + $0x208] sm:$0x3] %vm17, 0.0
  %82 = vst.msk [vmem:[#allocation2 + $0x210] sm:$0xff] %vm14, 0.0
  %83 = vst.msk [vmem:[#allocation2 + $0x218] sm:$0xff] %vm14, 0.0
  %84 = vst.msk [vmem:[#allocation2 + $0x220] sm:$0x3] %vm17, 0.0
  %85 = vst.msk [vmem:[#allocation2 + $0x228] sm:$0xff] %vm14, 0.0
  %86 = vst.msk [vmem:[#allocation2 + $0x230] sm:$0xff] %vm14, 0.0
  %87 = vst.msk [vmem:[#allocation2 + $0x238] sm:$0x3] %vm17, 0.0
  %88 = vst.msk [vmem:[#allocation2 + $0x240] sm:$0xff] %vm14, 0.0
  %89 = vst.msk [vmem:[#allocation2 + $0x248] sm:$0xff] %vm14, 0.0
  %90 = vst.msk [vmem:[#allocation2 + $0x250] sm:$0x3] %vm17, 0.0
  %91 = vst.msk [vmem:[#allocation2 + $0x258] sm:$0xff] %vm14, 0.0
  %92 = vst.msk [vmem:[#allocation2 + $0x260] sm:$0xff] %vm14, 0.0
  %93 = vst.msk [vmem:[#allocation2 + $0x268] sm:$0x3] %vm17, 0.0
  %94 = vst.msk [vmem:[#allocation2 + $0x270] sm:$0xff] %vm14, 0.0
  %95 = vst.msk [vmem:[#allocation2 + $0x278] sm:$0xff] %vm14, 0.0
  %96 = vst.msk [vmem:[#allocation2 + $0x280] sm:$0x3] %vm17, 0.0
  %97 = vst.msk [vmem:[#allocation2 + $0x288] sm:$0xff] %vm14, 0.0
  %98 = vst.msk [vmem:[#allocation2 + $0x290] sm:$0xff] %vm14, 0.0
  %99 = vst.msk [vmem:[#allocation2 + $0x298] sm:$0x3] %vm17, 0.0
  %100 = vst.msk [vmem:[#allocation2 + $0x2a0] sm:$0xff] %vm14, 0.0
  %101 = vst.msk [vmem:[#allocation2 + $0x2a8] sm:$0xff] %vm14, 0.0
  %102 = vst.msk [vmem:[#allocation2 + $0x2b0] sm:$0x3] %vm17, 0.0
  %103 = vst.msk [vmem:[#allocation2 + $0x2b8] sm:$0xff] %vm14, 0.0
  %104 = vst.msk [vmem:[#allocation2 + $0x2c0] sm:$0xff] %vm14, 0.0
  %105 = vst.msk [vmem:[#allocation2 + $0x2c8] sm:$0x3] %vm17, 0.0
  %106 = vst.msk [vmem:[#allocation2 + $0x2d0] sm:$0xff] %vm14, 0.0
  %107 = vst.msk [vmem:[#allocation2 + $0x2d8] sm:$0xff] %vm14, 0.0
  %108 = vst.msk [vmem:[#allocation2 + $0x2e0] sm:$0x3] %vm17, 0.0
  %109 = vst.msk [vmem:[#allocation2 + $0x2e8] sm:$0xff] %vm14, 0.0
  %110 = vst.msk [vmem:[#allocation2 + $0x2f0] sm:$0xff] %vm14, 0.0
  %111 = vst.msk [vmem:[#allocation2 + $0x2f8] sm:$0x3] %vm17, 0.0
  %112 = vst.msk [vmem:[#allocation2 + $0x300] sm:$0xff] %vm14, 0.0
  %113 = vst.msk [vmem:[#allocation2 + $0x308] sm:$0xff] %vm14, 0.0
  %114 = vst.msk [vmem:[#allocation2 + $0x310] sm:$0x3] %vm17, 0.0
  %115 = vst.msk [vmem:[#allocation2 + $0x318] sm:$0xff] %vm14, 0.0
  %116 = vst.msk [vmem:[#allocation2 + $0x320] sm:$0xff] %vm14, 0.0
  %117 = vst.msk [vmem:[#allocation2 + $0x328] sm:$0x3] %vm17, 0.0
  %118 = vst.msk [vmem:[#allocation2 + $0x330] sm:$0xff] %vm14, 0.0
  %119 = vst.msk [vmem:[#allocation2 + $0x338] sm:$0xff] %vm14, 0.0
  %120 = vst.msk [vmem:[#allocation2 + $0x340] sm:$0x3] %vm17, 0.0
  %121 = vst.msk [vmem:[#allocation2 + $0x348] sm:$0xff] %vm14, 0.0
  %122 = vst.msk [vmem:[#allocation2 + $0x350] sm:$0xff] %vm14, 0.0
  %123 = vst.msk [vmem:[#allocation2 + $0x358] sm:$0x3] %vm17, 0.0
  %vm124 = vcmask 64512
  %125 = vst.msk [vmem:[#allocation3] sm:$0xff] %vm124, 0.0
  %126 = vst.msk [vmem:[#allocation3 + $0x8] sm:$0xff] %vm124, 0.0
  %127 = vst.msk [vmem:[#allocation3 + $0x10] sm:$0xff] %vm124, 0.0
  %vm128 = vcmask 58368
  %129 = vst.msk [vmem:[#allocation3 + $0x18] sm:$0x3] %vm128, 0.0
  %130 = vst.msk [vmem:[#allocation3 + $0x20] sm:$0xff] %vm124, 0.0
  %131 = vst.msk [vmem:[#allocation3 + $0x28] sm:$0xff] %vm124, 0.0
  %132 = vst.msk [vmem:[#allocation3 + $0x30] sm:$0xff] %vm124, 0.0
  %133 = vst.msk [vmem:[#allocation3 + $0x38] sm:$0x3] %vm128, 0.0
  %134 = vst.msk [vmem:[#allocation3 + $0x40] sm:$0xff] %vm124, 0.0
  %135 = vst.msk [vmem:[#allocation3 + $0x48] sm:$0xff] %vm124, 0.0
  %136 = vst.msk [vmem:[#allocation3 + $0x50] sm:$0xff] %vm124, 0.0
  %137 = vst.msk [vmem:[#allocation3 + $0x58] sm:$0x3] %vm128, 0.0
  %138 = vst.msk [vmem:[#allocation3 + $0x60] sm:$0xff] %vm124, 0.0
  %139 = vst.msk [vmem:[#allocation3 + $0x68] sm:$0xff] %vm124, 0.0
  %140 = vst.msk [vmem:[#allocation3 + $0x70] sm:$0xff] %vm124, 0.0
  %141 = vst.msk [vmem:[#allocation3 + $0x78] sm:$0x3] %vm128, 0.0
  %142 = vst.msk [vmem:[#allocation3 + $0x80] sm:$0xff] %vm124, 0.0
  %143 = vst.msk [vmem:[#allocation3 + $0x88] sm:$0xff] %vm124, 0.0
  %144 = vst.msk [vmem:[#allocation3 + $0x90] sm:$0xff] %vm124, 0.0
  %145 = vst.msk [vmem:[#allocation3 + $0x98] sm:$0x3] %vm128, 0.0
  %146 = vst.msk [vmem:[#allocation3 + $0xa0] sm:$0xff] %vm124, 0.0
  %147 = vst.msk [vmem:[#allocation3 + $0xa8] sm:$0xff] %vm124, 0.0
  %148 = vst.msk [vmem:[#allocation3 + $0xb0] sm:$0xff] %vm124, 0.0
  %149 = vst.msk [vmem:[#allocation3 + $0xb8] sm:$0x3] %vm128, 0.0
  %150 = vst.msk [vmem:[#allocation3 + $0xc0] sm:$0xff] %vm124, 0.0
  %151 = vst.msk [vmem:[#allocation3 + $0xc8] sm:$0xff] %vm124, 0.0
  %152 = vst.msk [vmem:[#allocation3 + $0xd0] sm:$0xff] %vm124, 0.0
  %153 = vst.msk [vmem:[#allocation3 + $0xd8] sm:$0x3] %vm128, 0.0
  %154 = vst.msk [vmem:[#allocation3 + $0xe0] sm:$0xff] %vm124, 0.0
  %155 = vst.msk [vmem:[#allocation3 + $0xe8] sm:$0xff] %vm124, 0.0
  %156 = vst.msk [vmem:[#allocation3 + $0xf0] sm:$0xff] %vm124, 0.0
  %157 = vst.msk [vmem:[#allocation3 + $0xf8] sm:$0x3] %vm128, 0.0
  %158 = vst.msk [vmem:[#allocation3 + $0x100] sm:$0xff] %vm124, 0.0
  %159 = vst.msk [vmem:[#allocation3 + $0x108] sm:$0xff] %vm124, 0.0
  %160 = vst.msk [vmem:[#allocation3 + $0x110] sm:$0xff] %vm124, 0.0
  %161 = vst.msk [vmem:[#allocation3 + $0x118] sm:$0x3] %vm128, 0.0
  %162 = vst.msk [vmem:[#allocation3 + $0x120] sm:$0xff] %vm124, 0.0
  %163 = vst.msk [vmem:[#allocation3 + $0x128] sm:$0xff] %vm124, 0.0
  %164 = vst.msk [vmem:[#allocation3 + $0x130] sm:$0xff] %vm124, 0.0
  %165 = vst.msk [vmem:[#allocation3 + $0x138] sm:$0x3] %vm128, 0.0
  %166 = vst.msk [vmem:[#allocation3 + $0x140] sm:$0xff] %vm124, 0.0
  %167 = vst.msk [vmem:[#allocation3 + $0x148] sm:$0xff] %vm124, 0.0
  %168 = vst.msk [vmem:[#allocation3 + $0x150] sm:$0xff] %vm124, 0.0
  %169 = vst.msk [vmem:[#allocation3 + $0x158] sm:$0x3] %vm128, 0.0
  %170 = vst.msk [vmem:[#allocation3 + $0x160] sm:$0xff] %vm124, 0.0
  %171 = vst.msk [vmem:[#allocation3 + $0x168] sm:$0xff] %vm124, 0.0
  %172 = vst.msk [vmem:[#allocation3 + $0x170] sm:$0xff] %vm124, 0.0
  %173 = vst.msk [vmem:[#allocation3 + $0x178] sm:$0x3] %vm128, 0.0
  %174 = vst.msk [vmem:[#allocation3 + $0x180] sm:$0xff] %vm124, 0.0
  %175 = vst.msk [vmem:[#allocation3 + $0x188] sm:$0xff] %vm124, 0.0
  %176 = vst.msk [vmem:[#allocation3 + $0x190] sm:$0xff] %vm124, 0.0
  %177 = vst.msk [vmem:[#allocation3 + $0x198] sm:$0x3] %vm128, 0.0
  %178 = vst.msk [vmem:[#allocation3 + $0x1a0] sm:$0xff] %vm124, 0.0
  %179 = vst.msk [vmem:[#allocation3 + $0x1a8] sm:$0xff] %vm124, 0.0
  %180 = vst.msk [vmem:[#allocation3 + $0x1b0] sm:$0xff] %vm124, 0.0
  %181 = vst.msk [vmem:[#allocation3 + $0x1b8] sm:$0x3] %vm128, 0.0
  %182 = vst.msk [vmem:[#allocation3 + $0x1c0] sm:$0xff] %vm124, 0.0
  %183 = vst.msk [vmem:[#allocation3 + $0x1c8] sm:$0xff] %vm124, 0.0
  %184 = vst.msk [vmem:[#allocation3 + $0x1d0] sm:$0xff] %vm124, 0.0
  %185 = vst.msk [vmem:[#allocation3 + $0x1d8] sm:$0x3] %vm128, 0.0
  %186 = vst.msk [vmem:[#allocation3 + $0x1e0] sm:$0xff] %vm124, 0.0
  %187 = vst.msk [vmem:[#allocation3 + $0x1e8] sm:$0xff] %vm124, 0.0
  %188 = vst.msk [vmem:[#allocation3 + $0x1f0] sm:$0xff] %vm124, 0.0
  %189 = vst.msk [vmem:[#allocation3 + $0x1f8] sm:$0x3] %vm128, 0.0
  %190 = vst.msk [vmem:[#allocation3 + $0x200] sm:$0xff] %vm124, 0.0
  %191 = vst.msk [vmem:[#allocation3 + $0x208] sm:$0xff] %vm124, 0.0
  %192 = vst.msk [vmem:[#allocation3 + $0x210] sm:$0xff] %vm124, 0.0
  %193 = vst.msk [vmem:[#allocation3 + $0x218] sm:$0x3] %vm128, 0.0
  %194 = vst.msk [vmem:[#allocation3 + $0x220] sm:$0xff] %vm124, 0.0
  %195 = vst.msk [vmem:[#allocation3 + $0x228] sm:$0xff] %vm124, 0.0
  %196 = vst.msk [vmem:[#allocation3 + $0x230] sm:$0xff] %vm124, 0.0
  %197 = vst.msk [vmem:[#allocation3 + $0x238] sm:$0x3] %vm128, 0.0
  %198 = vst.msk [vmem:[#allocation3 + $0x240] sm:$0xff] %vm124, 0.0
  %199 = vst.msk [vmem:[#allocation3 + $0x248] sm:$0xff] %vm124, 0.0
  %200 = vst.msk [vmem:[#allocation3 + $0x250] sm:$0xff] %vm124, 0.0
  %201 = vst.msk [vmem:[#allocation3 + $0x258] sm:$0x3] %vm128, 0.0
  %202 = vst.msk [vmem:[#allocation3 + $0x260] sm:$0xff] %vm124, 0.0
  %203 = vst.msk [vmem:[#allocation3 + $0x268] sm:$0xff] %vm124, 0.0
  %204 = vst.msk [vmem:[#allocation3 + $0x270] sm:$0xff] %vm124, 0.0
  %205 = vst.msk [vmem:[#allocation3 + $0x278] sm:$0x3] %vm128, 0.0
  %206 = vst.msk [vmem:[#allocation3 + $0x280] sm:$0xff] %vm124, 0.0
  %207 = vst.msk [vmem:[#allocation3 + $0x288] sm:$0xff] %vm124, 0.0
  %208 = vst.msk [vmem:[#allocation3 + $0x290] sm:$0xff] %vm124, 0.0
  %209 = vst.msk [vmem:[#allocation3 + $0x298] sm:$0x3] %vm128, 0.0
  %210 = vst.msk [vmem:[#allocation3 + $0x2a0] sm:$0xff] %vm124, 0.0
  %211 = vst.msk [vmem:[#allocation3 + $0x2a8] sm:$0xff] %vm124, 0.0
  %212 = vst.msk [vmem:[#allocation3 + $0x2b0] sm:$0xff] %vm124, 0.0
  %213 = vst.msk [vmem:[#allocation3 + $0x2b8] sm:$0x3] %vm128, 0.0
  %214 = vst.msk [vmem:[#allocation3 + $0x2c0] sm:$0xff] %vm124, 0.0
  %215 = vst.msk [vmem:[#allocation3 + $0x2c8] sm:$0xff] %vm124, 0.0
  %216 = vst.msk [vmem:[#allocation3 + $0x2d0] sm:$0xff] %vm124, 0.0
  %217 = vst.msk [vmem:[#allocation3 + $0x2d8] sm:$0x3] %vm128, 0.0
  %218 = vst.msk [vmem:[#allocation3 + $0x2e0] sm:$0xff] %vm124, 0.0
  %219 = vst.msk [vmem:[#allocation3 + $0x2e8] sm:$0xff] %vm124, 0.0
  %220 = vst.msk [vmem:[#allocation3 + $0x2f0] sm:$0xff] %vm124, 0.0
  %221 = vst.msk [vmem:[#allocation3 + $0x2f8] sm:$0x3] %vm128, 0.0
  %222 = vst.msk [vmem:[#allocation3 + $0x300] sm:$0xff] %vm124, 0.0
  %223 = vst.msk [vmem:[#allocation3 + $0x308] sm:$0xff] %vm124, 0.0
  %224 = vst.msk [vmem:[#allocation3 + $0x310] sm:$0xff] %vm124, 0.0
  %225 = vst.msk [vmem:[#allocation3 + $0x318] sm:$0x3] %vm128, 0.0
  %226 = vst.msk [vmem:[#allocation3 + $0x320] sm:$0xff] %vm124, 0.0
  %227 = vst.msk [vmem:[#allocation3 + $0x328] sm:$0xff] %vm124, 0.0
  %228 = vst.msk [vmem:[#allocation3 + $0x330] sm:$0xff] %vm124, 0.0
  %229 = vst.msk [vmem:[#allocation3 + $0x338] sm:$0x3] %vm128, 0.0
  %230 = vst.msk [vmem:[#allocation3 + $0x340] sm:$0xff] %vm124, 0.0
  %231 = vst.msk [vmem:[#allocation3 + $0x348] sm:$0xff] %vm124, 0.0
  %232 = vst.msk [vmem:[#allocation3 + $0x350] sm:$0xff] %vm124, 0.0
  %233 = vst.msk [vmem:[#allocation3 + $0x358] sm:$0x3] %vm128, 0.0
  %234 = vst.msk [vmem:[#allocation3 + $0x360] sm:$0xff] %vm124, 0.0
  %235 = vst.msk [vmem:[#allocation3 + $0x368] sm:$0xff] %vm124, 0.0
  %236 = vst.msk [vmem:[#allocation3 + $0x370] sm:$0xff] %vm124, 0.0
  %237 = vst.msk [vmem:[#allocation3 + $0x378] sm:$0x3] %vm128, 0.0
  %238 = vst.msk [vmem:[#allocation3 + $0x380] sm:$0xff] %vm124, 0.0
  %239 = vst.msk [vmem:[#allocation3 + $0x388] sm:$0xff] %vm124, 0.0
  %240 = vst.msk [vmem:[#allocation3 + $0x390] sm:$0xff] %vm124, 0.0
  %241 = vst.msk [vmem:[#allocation3 + $0x398] sm:$0x3] %vm128, 0.0
  %242 = vst.msk [vmem:[#allocation3 + $0x3a0] sm:$0xff] %vm124, 0.0
  %243 = vst.msk [vmem:[#allocation3 + $0x3a8] sm:$0xff] %vm124, 0.0
  %244 = vst.msk [vmem:[#allocation3 + $0x3b0] sm:$0xff] %vm124, 0.0
  %245 = vst.msk [vmem:[#allocation3 + $0x3b8] sm:$0x3] %vm128, 0.0
  %246 = vst.msk [vmem:[#allocation3 + $0x3c0] sm:$0xff] %vm124, 0.0
  %247 = vst.msk [vmem:[#allocation3 + $0x3c8] sm:$0xff] %vm124, 0.0
  %248 = vst.msk [vmem:[#allocation3 + $0x3d0] sm:$0xff] %vm124, 0.0
  %249 = vst.msk [vmem:[#allocation3 + $0x3d8] sm:$0x3] %vm128, 0.0
  %250 = vst.msk [vmem:[#allocation3 + $0x3e0] sm:$0xff] %vm124, 0.0
  %251 = vst.msk [vmem:[#allocation3 + $0x3e8] sm:$0xff] %vm124, 0.0
  %252 = vst.msk [vmem:[#allocation3 + $0x3f0] sm:$0xff] %vm124, 0.0
  %253 = vst.msk [vmem:[#allocation3 + $0x3f8] sm:$0x3] %vm128, 0.0
  %254 = vst.msk [vmem:[#allocation3 + $0x400] sm:$0xff] %vm124, 0.0
  %255 = vst.msk [vmem:[#allocation3 + $0x408] sm:$0xff] %vm124, 0.0
  %256 = vst.msk [vmem:[#allocation3 + $0x410] sm:$0xff] %vm124, 0.0
  %257 = vst.msk [vmem:[#allocation3 + $0x418] sm:$0x3] %vm128, 0.0
  %258 = vst.msk [vmem:[#allocation3 + $0x420] sm:$0xff] %vm124, 0.0
  %259 = vst.msk [vmem:[#allocation3 + $0x428] sm:$0xff] %vm124, 0.0
  %260 = vst.msk [vmem:[#allocation3 + $0x430] sm:$0xff] %vm124, 0.0
  %261 = vst.msk [vmem:[#allocation3 + $0x438] sm:$0x3] %vm128, 0.0
  %262 = vst.msk [vmem:[#allocation3 + $0x440] sm:$0xff] %vm124, 0.0
  %263 = vst.msk [vmem:[#allocation3 + $0x448] sm:$0xff] %vm124, 0.0
  %264 = vst.msk [vmem:[#allocation3 + $0x450] sm:$0xff] %vm124, 0.0
  %265 = vst.msk [vmem:[#allocation3 + $0x458] sm:$0x3] %vm128, 0.0
  %266 = vst.msk [vmem:[#allocation3 + $0x460] sm:$0xff] %vm124, 0.0
  %267 = vst.msk [vmem:[#allocation3 + $0x468] sm:$0xff] %vm124, 0.0
  %268 = vst.msk [vmem:[#allocation3 + $0x470] sm:$0xff] %vm124, 0.0
  %269 = vst.msk [vmem:[#allocation3 + $0x478] sm:$0x3] %vm128, 0.0
  %270 = vst.msk [vmem:[#allocation3 + $0x480] sm:$0xff] %vm124, 0.0
  %271 = vst.msk [vmem:[#allocation3 + $0x488] sm:$0xff] %vm124, 0.0
  %272 = vst.msk [vmem:[#allocation3 + $0x490] sm:$0xff] %vm124, 0.0
  %273 = vst.msk [vmem:[#allocation3 + $0x498] sm:$0x3] %vm128, 0.0
  %274 = vst.msk [vmem:[#allocation3 + $0x4a0] sm:$0xff] %vm124, 0.0
  %275 = vst.msk [vmem:[#allocation3 + $0x4a8] sm:$0xff] %vm124, 0.0
  %276 = vst.msk [vmem:[#allocation3 + $0x4b0] sm:$0xff] %vm124, 0.0
  %277 = vst.msk [vmem:[#allocation3 + $0x4b8] sm:$0x3] %vm128, 0.0
  %278 = vst.msk [vmem:[#allocation3 + $0x4c0] sm:$0xff] %vm124, 0.0
  %279 = vst.msk [vmem:[#allocation3 + $0x4c8] sm:$0xff] %vm124, 0.0
  %280 = vst.msk [vmem:[#allocation3 + $0x4d0] sm:$0xff] %vm124, 0.0
  %281 = vst.msk [vmem:[#allocation3 + $0x4d8] sm:$0x3] %vm128, 0.0
  %282 = vst.msk [vmem:[#allocation3 + $0x4e0] sm:$0xff] %vm124, 0.0
  %283 = vst.msk [vmem:[#allocation3 + $0x4e8] sm:$0xff] %vm124, 0.0
  %284 = vst.msk [vmem:[#allocation3 + $0x4f0] sm:$0xff] %vm124, 0.0
  %285 = vst.msk [vmem:[#allocation3 + $0x4f8] sm:$0x3] %vm128, 0.0
  %v286 = vld [vmem:[%s0] sm:$0xff]
  %v287 = vld [vmem:[%s0 + $0x8] sm:$0xff]
  %v288 = vld [vmem:[%s0 + $0x10] sm:$0xff]
  %v289 = vld [vmem:[%s0 + $0x18] sm:$0xff]
  %v290 = vld [vmem:[%s0 + $0x20] sm:$0xff]
  %v291 = vld [vmem:[%s0 + $0x28] sm:$0xff]
  %v292 = vld [vmem:[%s0 + $0x30] sm:$0xff]
  %v293 = vld [vmem:[%s0 + $0x38] sm:$0xff]
  %v294 = vld [vmem:[%s0 + $0x40] sm:$0xff]
  %v295 = vld [vmem:[%s0 + $0x48] sm:$0xff]
  %v296 = vld [vmem:[%s0 + $0x50] sm:$0xff]
  %v297 = vld [vmem:[%s0 + $0x58] sm:$0xff]
  %v298 = vld [vmem:[%s0 + $0x60] sm:$0xff]
  %v299 = vld [vmem:[%s0 + $0x68] sm:$0xff]
  %v300 = vld [vmem:[%s0 + $0x70] sm:$0xff]
  %v301 = vld [vmem:[%s0 + $0x78] sm:$0xff]
  %v302 = vld [vmem:[%s0 + $0x80] sm:$0xff]
  %v303 = vld [vmem:[%s0 + $0x88] sm:$0xff]
  %v304 = vld [vmem:[%s0 + $0x90] sm:$0xff]
  %v305 = vld [vmem:[%s0 + $0x98] sm:$0xff]
  %v306 = vld [vmem:[%s0 + $0xa0] sm:$0xff]
  %v307 = vld [vmem:[%s0 + $0xa8] sm:$0xff]
  %v308 = vld [vmem:[%s0 + $0xb0] sm:$0xff]
  %v309 = vld [vmem:[%s0 + $0xb8] sm:$0xff]
  %v310 = vld [vmem:[%s0 + $0xc0] sm:$0xff]
  %v311 = vld [vmem:[%s0 + $0xc8] sm:$0xff]
  %v312 = vld [vmem:[%s0 + $0xd0] sm:$0xff]
  %v313 = vld [vmem:[%s0 + $0xd8] sm:$0xff]
  %v314 = vld [vmem:[%s0 + $0xe0] sm:$0xff]
  %v315 = vld [vmem:[%s0 + $0xe8] sm:$0xff]
  %v316 = vld [vmem:[%s0 + $0xf0] sm:$0xff]
  %v317 = vld [vmem:[%s0 + $0xf8] sm:$0xff]
  %s318 = scalar_lea.vmem [#allocation2], 24
  %319 = vst.msk [vmem:[%s318 + $0x1] sm:$0xff] %vm14, %v286
  %320 = vst.msk [vmem:[%s318 + $0x9] sm:$0xff] %vm14, %v287
  %321 = vst.msk [vmem:[%s318 + $0x19] sm:$0xff] %vm14, %v288
  %322 = vst.msk [vmem:[%s318 + $0x21] sm:$0xff] %vm14, %v289
  %323 = vst.msk [vmem:[%s318 + $0x31] sm:$0xff] %vm14, %v290
  %324 = vst.msk [vmem:[%s318 + $0x39] sm:$0xff] %vm14, %v291
  %325 = vst.msk [vmem:[%s318 + $0x49] sm:$0xff] %vm14, %v292
  %326 = vst.msk [vmem:[%s318 + $0x51] sm:$0xff] %vm14, %v293
  %327 = vst.msk [vmem:[%s318 + $0x61] sm:$0xff] %vm14, %v294
  %328 = vst.msk [vmem:[%s318 + $0x69] sm:$0xff] %vm14, %v295
  %329 = vst.msk [vmem:[%s318 + $0x79] sm:$0xff] %vm14, %v296
  %330 = vst.msk [vmem:[%s318 + $0x81] sm:$0xff] %vm14, %v297
  %331 = vst.msk [vmem:[%s318 + $0x91] sm:$0xff] %vm14, %v298
  %332 = vst.msk [vmem:[%s318 + $0x99] sm:$0xff] %vm14, %v299
  %333 = vst.msk [vmem:[%s318 + $0xa9] sm:$0xff] %vm14, %v300
  %334 = vst.msk [vmem:[%s318 + $0xb1] sm:$0xff] %vm14, %v301
  %335 = vst.msk [vmem:[%s318 + $0xc1] sm:$0xff] %vm14, %v302
  %336 = vst.msk [vmem:[%s318 + $0xc9] sm:$0xff] %vm14, %v303
  %337 = vst.msk [vmem:[%s318 + $0xd9] sm:$0xff] %vm14, %v304
  %338 = vst.msk [vmem:[%s318 + $0xe1] sm:$0xff] %vm14, %v305
  %339 = vst.msk [vmem:[%s318 + $0xf1] sm:$0xff] %vm14, %v306
  %340 = vst.msk [vmem:[%s318 + $0xf9] sm:$0xff] %vm14, %v307
  %341 = vst.msk [vmem:[%s318 + $0x109] sm:$0xff] %vm14, %v308
  %342 = vst.msk [vmem:[%s318 + $0x111] sm:$0xff] %vm14, %v309
  %343 = vst.msk [vmem:[%s318 + $0x121] sm:$0xff] %vm14, %v310
  %344 = vst.msk [vmem:[%s318 + $0x129] sm:$0xff] %vm14, %v311
  %345 = vst.msk [vmem:[%s318 + $0x139] sm:$0xff] %vm14, %v312
  %346 = vst.msk [vmem:[%s318 + $0x141] sm:$0xff] %vm14, %v313
  %347 = vst.msk [vmem:[%s318 + $0x151] sm:$0xff] %vm14, %v314
  %348 = vst.msk [vmem:[%s318 + $0x159] sm:$0xff] %vm14, %v315
  %349 = vst.msk [vmem:[%s318 + $0x169] sm:$0xff] %vm14, %v316
  %350 = vst.msk [vmem:[%s318 + $0x171] sm:$0xff] %vm14, %v317
  %v351 = vld [vmem:[#allocation2] sm:$0xff]
  %v352 = vld [vmem:[#allocation2 + $0x8] sm:$0xff]
  %v353 = vld [vmem:[#allocation2 + $0x18] sm:$0xff]
  %v354 = vld [vmem:[#allocation2 + $0x20] sm:$0xff]
  %v355 = vld [vmem:[#allocation2 + $0x30] sm:$0xff]
  %v356 = vld [vmem:[#allocation2 + $0x38] sm:$0xff]
  %v357 = vld [vmem:[#allocation2 + $0x48] sm:$0xff]
  %v358 = vld [vmem:[#allocation2 + $0x50] sm:$0xff]
  %v359 = vld [vmem:[#allocation2 + $0x60] sm:$0xff]
  %v360 = vld [vmem:[#allocation2 + $0x68] sm:$0xff]
  %v361 = vld [vmem:[#allocation2 + $0x78] sm:$0xff]
  %v362 = vld [vmem:[#allocation2 + $0x80] sm:$0xff]
  %v363 = vld [vmem:[#allocation2 + $0x90] sm:$0xff]
  %v364 = vld [vmem:[#allocation2 + $0x98] sm:$0xff]
  %v365 = vld [vmem:[#allocation2 + $0xa8] sm:$0xff]
  %v366 = vld [vmem:[#allocation2 + $0xb0] sm:$0xff]
  %v367 = vld [vmem:[#allocation2 + $0xc0] sm:$0xff]
  %v368 = vld [vmem:[#allocation2 + $0xc8] sm:$0xff]
  %v369 = vld [vmem:[#allocation2 + $0xd8] sm:$0xff]
  %v370 = vld [vmem:[#allocation2 + $0xe0] sm:$0xff]
  %v371 = vld [vmem:[#allocation2 + $0xf0] sm:$0xff]
  %v372 = vld [vmem:[#allocation2 + $0xf8] sm:$0xff]
  %v373 = vld [vmem:[#allocation2 + $0x108] sm:$0xff]
  %v374 = vld [vmem:[#allocation2 + $0x110] sm:$0xff]
  %v375 = vld [vmem:[#allocation2 + $0x120] sm:$0xff]
  %v376 = vld [vmem:[#allocation2 + $0x128] sm:$0xff]
  %v377 = vld [vmem:[#allocation2 + $0x138] sm:$0xff]
  %v378 = vld [vmem:[#allocation2 + $0x140] sm:$0xff]
  %v379 = vld [vmem:[#allocation2 + $0x150] sm:$0xff]
  %v380 = vld [vmem:[#allocation2 + $0x158] sm:$0xff]
  %v381 = vld [vmem:[#allocation2 + $0x168] sm:$0xff]
  %v382 = vld [vmem:[#allocation2 + $0x170] sm:$0xff]
  %v383 = vld [vmem:[#allocation2 + $0x180] sm:$0xff]
  %v384 = vld [vmem:[#allocation2 + $0x188] sm:$0xff]
  %v385 = vld [vmem:[#allocation2 + $0x198] sm:$0xff]
  %v386 = vld [vmem:[#allocation2 + $0x1a0] sm:$0xff]
  %v387 = vld [vmem:[#allocation2 + $0x1] sm:$0xff]
  %v388 = vld [vmem:[#allocation2 + $0x9] sm:$0xff]
  %v389 = vld [vmem:[#allocation2 + $0x19] sm:$0xff]
  %v390 = vld [vmem:[#allocation2 + $0x21] sm:$0xff]
  %v391 = vld [vmem:[#allocation2 + $0x31] sm:$0xff]
  %v392 = vld [vmem:[#allocation2 + $0x39] sm:$0xff]
  %v393 = vld [vmem:[#allocation2 + $0x49] sm:$0xff]
  %v394 = vld [vmem:[#allocation2 + $0x51] sm:$0xff]
  %v395 = vld [vmem:[#allocation2 + $0x61] sm:$0xff]
  %v396 = vld [vmem:[#allocation2 + $0x69] sm:$0xff]
  %v397 = vld [vmem:[#allocation2 + $0x79] sm:$0xff]
  %v398 = vld [vmem:[#allocation2 + $0x81] sm:$0xff]
  %v399 = vld [vmem:[#allocation2 + $0x91] sm:$0xff]
  %v400 = vld [vmem:[#allocation2 + $0x99] sm:$0xff]
  %v401 = vld [vmem:[#allocation2 + $0xa9] sm:$0xff]
  %v402 = vld [vmem:[#allocation2 + $0xb1] sm:$0xff]
  %v403 = vld [vmem:[#allocation2 + $0xc1] sm:$0xff]
  %v404 = vld [vmem:[#allocation2 + $0xc9] sm:$0xff]
  %v405 = vld [vmem:[#allocation2 + $0xd9] sm:$0xff]
  %v406 = vld [vmem:[#allocation2 + $0xe1] sm:$0xff]
  %v407 = vld [vmem:[#allocation2 + $0xf1] sm:$0xff]
  %v408 = vld [vmem:[#allocation2 + $0xf9] sm:$0xff]
  %v409 = vld [vmem:[#allocation2 + $0x109] sm:$0xff]
  %v410 = vld [vmem:[#allocation2 + $0x111] sm:$0xff]
  %v411 = vld [vmem:[#allocation2 + $0x121] sm:$0xff]
  %v412 = vld [vmem:[#allocation2 + $0x129] sm:$0xff]
  %v413 = vld [vmem:[#allocation2 + $0x139] sm:$0xff]
  %v414 = vld [vmem:[#allocation2 + $0x141] sm:$0xff]
  %v415 = vld [vmem:[#allocation2 + $0x151] sm:$0xff]
  %v416 = vld [vmem:[#allocation2 + $0x159] sm:$0xff]
  %v417 = vld [vmem:[#allocation2 + $0x169] sm:$0xff]
  %v418 = vld [vmem:[#allocation2 + $0x171] sm:$0xff]
  %v419 = vld [vmem:[#allocation2 + $0x181] sm:$0xff]
  %v420 = vld [vmem:[#allocation2 + $0x189] sm:$0xff]
  %v421 = vld [vmem:[#allocation2 + $0x199] sm:$0xff]
  %v422 = vld [vmem:[#allocation2 + $0x1a1] sm:$0xff]
  %v423 = vld [vmem:[#allocation2 + $0x2] sm:$0xff]
  %v424 = vld [vmem:[#allocation2 + $0xa] sm:$0xff]
  %v425 = vld [vmem:[#allocation2 + $0x1a] sm:$0xff]
  %v426 = vld [vmem:[#allocation2 + $0x22] sm:$0xff]
  %v427 = vld [vmem:[#allocation2 + $0x32] sm:$0xff]
  %v428 = vld [vmem:[#allocation2 + $0x3a] sm:$0xff]
  %v429 = vld [vmem:[#allocation2 + $0x4a] sm:$0xff]
  %v430 = vld [vmem:[#allocation2 + $0x52] sm:$0xff]
  %v431 = vld [vmem:[#allocation2 + $0x62] sm:$0xff]
  %v432 = vld [vmem:[#allocation2 + $0x6a] sm:$0xff]
  %v433 = vld [vmem:[#allocation2 + $0x7a] sm:$0xff]
  %v434 = vld [vmem:[#allocation2 + $0x82] sm:$0xff]
  %v435 = vld [vmem:[#allocation2 + $0x92] sm:$0xff]
  %v436 = vld [vmem:[#allocation2 + $0x9a] sm:$0xff]
  %v437 = vld [vmem:[#allocation2 + $0xaa] sm:$0xff]
  %v438 = vld [vmem:[#allocation2 + $0xb2] sm:$0xff]
  %v439 = vld [vmem:[#allocation2 + $0xc2] sm:$0xff]
  %v440 = vld [vmem:[#allocation2 + $0xca] sm:$0xff]
  %v441 = vld [vmem:[#allocation2 + $0xda] sm:$0xff]
  %v442 = vld [vmem:[#allocation2 + $0xe2] sm:$0xff]
  %v443 = vld [vmem:[#allocation2 + $0xf2] sm:$0xff]
  %v444 = vld [vmem:[#allocation2 + $0xfa] sm:$0xff]
  %v445 = vld [vmem:[#allocation2 + $0x10a] sm:$0xff]
  %v446 = vld [vmem:[#allocation2 + $0x112] sm:$0xff]
  %v447 = vld [vmem:[#allocation2 + $0x122] sm:$0xff]
  %v448 = vld [vmem:[#allocation2 + $0x12a] sm:$0xff]
  %v449 = vld [vmem:[#allocation2 + $0x13a] sm:$0xff]
  %v450 = vld [vmem:[#allocation2 + $0x142] sm:$0xff]
  %v451 = vld [vmem:[#allocation2 + $0x152] sm:$0xff]
  %v452 = vld [vmem:[#allocation2 + $0x15a] sm:$0xff]
  %v453 = vld [vmem:[#allocation2 + $0x16a] sm:$0xff]
  %v454 = vld [vmem:[#allocation2 + $0x172] sm:$0xff]
  %v455 = vld [vmem:[#allocation2 + $0x182] sm:$0xff]
  %v456 = vld [vmem:[#allocation2 + $0x18a] sm:$0xff]
  %v457 = vld [vmem:[#allocation2 + $0x19a] sm:$0xff]
  %v458 = vld [vmem:[#allocation2 + $0x1a2] sm:$0xff]
  %495 = vrot.lane.b32.xlu0 %v387, 4
  %v496 = vpop.permute.xlu0 %495
  %497 = vrot.lane.b32.xlu0 %v388, 4
  %v498 = vpop.permute.xlu0 %497
  %499 = vrot.lane.b32.xlu0 %v389, 4
  %v500 = vpop.permute.xlu0 %499
  %501 = vrot.lane.b32.xlu0 %v390, 4
  %v502 = vpop.permute.xlu0 %501
  %503 = vrot.lane.b32.xlu0 %v391, 4
  %v504 = vpop.permute.xlu0 %503
  %505 = vrot.lane.b32.xlu0 %v392, 4
  %v506 = vpop.permute.xlu0 %505
  %507 = vrot.lane.b32.xlu0 %v393, 4
  %v508 = vpop.permute.xlu0 %507
  %509 = vrot.lane.b32.xlu0 %v394, 4
  %v510 = vpop.permute.xlu0 %509
  %511 = vrot.lane.b32.xlu0 %v395, 4
  %v512 = vpop.permute.xlu0 %511
  %513 = vrot.lane.b32.xlu0 %v396, 4
  %v514 = vpop.permute.xlu0 %513
  %515 = vrot.lane.b32.xlu0 %v397, 4
  %v516 = vpop.permute.xlu0 %515
  %517 = vrot.lane.b32.xlu0 %v398, 4
  %v518 = vpop.permute.xlu0 %517
  %519 = vrot.lane.b32.xlu0 %v399, 4
  %v520 = vpop.permute.xlu0 %519
  %521 = vrot.lane.b32.xlu0 %v400, 4
  %v522 = vpop.permute.xlu0 %521
  %523 = vrot.lane.b32.xlu0 %v401, 4
  %v524 = vpop.permute.xlu0 %523
  %525 = vrot.lane.b32.xlu0 %v402, 4
  %v526 = vpop.permute.xlu0 %525
  %527 = vrot.lane.b32.xlu0 %v403, 4
  %v528 = vpop.permute.xlu0 %527
  %529 = vrot.lane.b32.xlu0 %v404, 4
  %v530 = vpop.permute.xlu0 %529
  %531 = vrot.lane.b32.xlu0 %v405, 4
  %v532 = vpop.permute.xlu0 %531
  %533 = vrot.lane.b32.xlu0 %v406, 4
  %v534 = vpop.permute.xlu0 %533
  %535 = vrot.lane.b32.xlu0 %v407, 4
  %v536 = vpop.permute.xlu0 %535
  %537 = vrot.lane.b32.xlu0 %v408, 4
  %v538 = vpop.permute.xlu0 %537
  %539 = vrot.lane.b32.xlu0 %v409, 4
  %v540 = vpop.permute.xlu0 %539
  %541 = vrot.lane.b32.xlu0 %v410, 4
  %v542 = vpop.permute.xlu0 %541
  %543 = vrot.lane.b32.xlu0 %v411, 4
  %v544 = vpop.permute.xlu0 %543
  %545 = vrot.lane.b32.xlu0 %v412, 4
  %v546 = vpop.permute.xlu0 %545
  %547 = vrot.lane.b32.xlu0 %v413, 4
  %v548 = vpop.permute.xlu0 %547
  %549 = vrot.lane.b32.xlu0 %v414, 4
  %v550 = vpop.permute.xlu0 %549
  %551 = vrot.lane.b32.xlu0 %v415, 4
  %v552 = vpop.permute.xlu0 %551
  %553 = vrot.lane.b32.xlu0 %v416, 4
  %v554 = vpop.permute.xlu0 %553
  %555 = vrot.lane.b32.xlu0 %v417, 4
  %v556 = vpop.permute.xlu0 %555
  %557 = vrot.lane.b32.xlu0 %v418, 4
  %v558 = vpop.permute.xlu0 %557
  %559 = vrot.lane.b32.xlu0 %v419, 4
  %v560 = vpop.permute.xlu0 %559
  %561 = vrot.lane.b32.xlu0 %v420, 4
  %v562 = vpop.permute.xlu0 %561
  %563 = vrot.lane.b32.xlu0 %v421, 4
  %v564 = vpop.permute.xlu0 %563
  %565 = vrot.lane.b32.xlu0 %v422, 4
  %v566 = vpop.permute.xlu0 %565
  %639 = vrot.lane.b32.xlu0 %v423, 8
  %v640 = vpop.permute.xlu0 %639
  %641 = vrot.lane.b32.xlu0 %v424, 8
  %v642 = vpop.permute.xlu0 %641
  %643 = vrot.lane.b32.xlu0 %v425, 8
  %v644 = vpop.permute.xlu0 %643
  %645 = vrot.lane.b32.xlu0 %v426, 8
  %v646 = vpop.permute.xlu0 %645
  %647 = vrot.lane.b32.xlu0 %v427, 8
  %v648 = vpop.permute.xlu0 %647
  %649 = vrot.lane.b32.xlu0 %v428, 8
  %v650 = vpop.permute.xlu0 %649
  %651 = vrot.lane.b32.xlu0 %v429, 8
  %v652 = vpop.permute.xlu0 %651
  %653 = vrot.lane.b32.xlu0 %v430, 8
  %v654 = vpop.permute.xlu0 %653
  %655 = vrot.lane.b32.xlu0 %v431, 8
  %v656 = vpop.permute.xlu0 %655
  %657 = vrot.lane.b32.xlu0 %v432, 8
  %v658 = vpop.permute.xlu0 %657
  %659 = vrot.lane.b32.xlu0 %v433, 8
  %v660 = vpop.permute.xlu0 %659
  %661 = vrot.lane.b32.xlu0 %v434, 8
  %v662 = vpop.permute.xlu0 %661
  %663 = vrot.lane.b32.xlu0 %v435, 8
  %v664 = vpop.permute.xlu0 %663
  %665 = vrot.lane.b32.xlu0 %v436, 8
  %v666 = vpop.permute.xlu0 %665
  %667 = vrot.lane.b32.xlu0 %v437, 8
  %v668 = vpop.permute.xlu0 %667
  %669 = vrot.lane.b32.xlu0 %v438, 8
  %v670 = vpop.permute.xlu0 %669
  %671 = vrot.lane.b32.xlu0 %v439, 8
  %v672 = vpop.permute.xlu0 %671
  %673 = vrot.lane.b32.xlu0 %v440, 8
  %v674 = vpop.permute.xlu0 %673
  %675 = vrot.lane.b32.xlu0 %v441, 8
  %v676 = vpop.permute.xlu0 %675
  %677 = vrot.lane.b32.xlu0 %v442, 8
  %v678 = vpop.permute.xlu0 %677
  %679 = vrot.lane.b32.xlu0 %v443, 8
  %v680 = vpop.permute.xlu0 %679
  %681 = vrot.lane.b32.xlu0 %v444, 8
  %v682 = vpop.permute.xlu0 %681
  %683 = vrot.lane.b32.xlu0 %v445, 8
  %v684 = vpop.permute.xlu0 %683
  %685 = vrot.lane.b32.xlu0 %v446, 8
  %v686 = vpop.permute.xlu0 %685
  %687 = vrot.lane.b32.xlu0 %v447, 8
  %v688 = vpop.permute.xlu0 %687
  %689 = vrot.lane.b32.xlu0 %v448, 8
  %v690 = vpop.permute.xlu0 %689
  %691 = vrot.lane.b32.xlu0 %v449, 8
  %v692 = vpop.permute.xlu0 %691
  %693 = vrot.lane.b32.xlu0 %v450, 8
  %v694 = vpop.permute.xlu0 %693
  %695 = vrot.lane.b32.xlu0 %v451, 8
  %v696 = vpop.permute.xlu0 %695
  %697 = vrot.lane.b32.xlu0 %v452, 8
  %v698 = vpop.permute.xlu0 %697
  %699 = vrot.lane.b32.xlu0 %v453, 8
  %v700 = vpop.permute.xlu0 %699
  %701 = vrot.lane.b32.xlu0 %v454, 8
  %v702 = vpop.permute.xlu0 %701
  %703 = vrot.lane.b32.xlu0 %v455, 8
  %v704 = vpop.permute.xlu0 %703
  %705 = vrot.lane.b32.xlu0 %v456, 8
  %v706 = vpop.permute.xlu0 %705
  %707 = vrot.lane.b32.xlu0 %v457, 8
  %v708 = vpop.permute.xlu0 %707
  %709 = vrot.lane.b32.xlu0 %v458, 8
  %v710 = vpop.permute.xlu0 %709
  %v747 = vsel %vm14, %v351, %v496
  %v748 = vsel %vm14, %v352, %v498
  %v749 = vsel %vm14, %v353, %v500
  %v750 = vsel %vm14, %v354, %v502
  %v751 = vsel %vm14, %v355, %v504
  %v752 = vsel %vm14, %v356, %v506
  %v753 = vsel %vm14, %v357, %v508
  %v754 = vsel %vm14, %v358, %v510
  %v755 = vsel %vm14, %v359, %v512
  %v756 = vsel %vm14, %v360, %v514
  %v757 = vsel %vm14, %v361, %v516
  %v758 = vsel %vm14, %v362, %v518
  %v759 = vsel %vm14, %v363, %v520
  %v760 = vsel %vm14, %v364, %v522
  %v761 = vsel %vm14, %v365, %v524
  %v762 = vsel %vm14, %v366, %v526
  %v763 = vsel %vm14, %v367, %v528
  %v764 = vsel %vm14, %v368, %v530
  %v765 = vsel %vm14, %v369, %v532
  %v766 = vsel %vm14, %v370, %v534
  %v767 = vsel %vm14, %v371, %v536
  %v768 = vsel %vm14, %v372, %v538
  %v769 = vsel %vm14, %v373, %v540
  %v770 = vsel %vm14, %v374, %v542
  %v771 = vsel %vm14, %v375, %v544
  %v772 = vsel %vm14, %v376, %v546
  %v773 = vsel %vm14, %v377, %v548
  %v774 = vsel %vm14, %v378, %v550
  %v775 = vsel %vm14, %v379, %v552
  %v776 = vsel %vm14, %v380, %v554
  %v777 = vsel %vm14, %v381, %v556
  %v778 = vsel %vm14, %v382, %v558
  %v779 = vsel %vm14, %v383, %v560
  %v780 = vsel %vm14, %v384, %v562
  %v781 = vsel %vm14, %v385, %v564
  %v782 = vsel %vm14, %v386, %v566
  %v783 = vsel %vm124, %v747, %v640
  %v784 = vsel %vm124, %v748, %v642
  %v785 = vsel %vm124, %v749, %v644
  %v786 = vsel %vm124, %v750, %v646
  %v787 = vsel %vm124, %v751, %v648
  %v788 = vsel %vm124, %v752, %v650
  %v789 = vsel %vm124, %v753, %v652
  %v790 = vsel %vm124, %v754, %v654
  %v791 = vsel %vm124, %v755, %v656
  %v792 = vsel %vm124, %v756, %v658
  %v793 = vsel %vm124, %v757, %v660
  %v794 = vsel %vm124, %v758, %v662
  %v795 = vsel %vm124, %v759, %v664
  %v796 = vsel %vm124, %v760, %v666
  %v797 = vsel %vm124, %v761, %v668
  %v798 = vsel %vm124, %v762, %v670
  %v799 = vsel %vm124, %v763, %v672
  %v800 = vsel %vm124, %v764, %v674
  %v801 = vsel %vm124, %v765, %v676
  %v802 = vsel %vm124, %v766, %v678
  %v803 = vsel %vm124, %v767, %v680
  %v804 = vsel %vm124, %v768, %v682
  %v805 = vsel %vm124, %v769, %v684
  %v806 = vsel %vm124, %v770, %v686
  %v807 = vsel %vm124, %v771, %v688
  %v808 = vsel %vm124, %v772, %v690
  %v809 = vsel %vm124, %v773, %v692
  %v810 = vsel %vm124, %v774, %v694
  %v811 = vsel %vm124, %v775, %v696
  %v812 = vsel %vm124, %v776, %v698
  %v813 = vsel %vm124, %v777, %v700
  %v814 = vsel %vm124, %v778, %v702
  %v815 = vsel %vm124, %v779, %v704
  %v816 = vsel %vm124, %v780, %v706
  %v817 = vsel %vm124, %v781, %v708
  %v818 = vsel %vm124, %v782, %v710
  %851 = vrot.lane.b32.xlu0 %v785, 12
  %v852 = vpop.permute.xlu0 %851
  %853 = vrot.lane.b32.xlu0 %v786, 12
  %v854 = vpop.permute.xlu0 %853
  %855 = vrot.lane.b32.xlu0 %v787, 12
  %v856 = vpop.permute.xlu0 %855
  %857 = vrot.lane.b32.xlu0 %v788, 12
  %v858 = vpop.permute.xlu0 %857
  %859 = vrot.lane.b32.xlu0 %v789, 12
  %v860 = vpop.permute.xlu0 %859
  %861 = vrot.lane.b32.xlu0 %v790, 12
  %v862 = vpop.permute.xlu0 %861
  %863 = vrot.lane.b32.xlu0 %v791, 12
  %v864 = vpop.permute.xlu0 %863
  %865 = vrot.lane.b32.xlu0 %v792, 12
  %v866 = vpop.permute.xlu0 %865
  %867 = vrot.lane.b32.xlu0 %v793, 12
  %v868 = vpop.permute.xlu0 %867
  %869 = vrot.lane.b32.xlu0 %v794, 12
  %v870 = vpop.permute.xlu0 %869
  %871 = vrot.lane.b32.xlu0 %v795, 12
  %v872 = vpop.permute.xlu0 %871
  %873 = vrot.lane.b32.xlu0 %v796, 12
  %v874 = vpop.permute.xlu0 %873
  %875 = vrot.lane.b32.xlu0 %v797, 12
  %v876 = vpop.permute.xlu0 %875
  %877 = vrot.lane.b32.xlu0 %v798, 12
  %v878 = vpop.permute.xlu0 %877
  %879 = vrot.lane.b32.xlu0 %v799, 12
  %v880 = vpop.permute.xlu0 %879
  %881 = vrot.lane.b32.xlu0 %v800, 12
  %v882 = vpop.permute.xlu0 %881
  %883 = vrot.lane.b32.xlu0 %v801, 12
  %v884 = vpop.permute.xlu0 %883
  %885 = vrot.lane.b32.xlu0 %v802, 12
  %v886 = vpop.permute.xlu0 %885
  %887 = vrot.lane.b32.xlu0 %v803, 12
  %v888 = vpop.permute.xlu0 %887
  %889 = vrot.lane.b32.xlu0 %v804, 12
  %v890 = vpop.permute.xlu0 %889
  %891 = vrot.lane.b32.xlu0 %v805, 12
  %v892 = vpop.permute.xlu0 %891
  %893 = vrot.lane.b32.xlu0 %v806, 12
  %v894 = vpop.permute.xlu0 %893
  %895 = vrot.lane.b32.xlu0 %v807, 12
  %v896 = vpop.permute.xlu0 %895
  %897 = vrot.lane.b32.xlu0 %v808, 12
  %v898 = vpop.permute.xlu0 %897
  %899 = vrot.lane.b32.xlu0 %v809, 12
  %v900 = vpop.permute.xlu0 %899
  %901 = vrot.lane.b32.xlu0 %v810, 12
  %v902 = vpop.permute.xlu0 %901
  %903 = vrot.lane.b32.xlu0 %v811, 12
  %v904 = vpop.permute.xlu0 %903
  %905 = vrot.lane.b32.xlu0 %v812, 12
  %v906 = vpop.permute.xlu0 %905
  %907 = vrot.lane.b32.xlu0 %v813, 12
  %v908 = vpop.permute.xlu0 %907
  %909 = vrot.lane.b32.xlu0 %v814, 12
  %v910 = vpop.permute.xlu0 %909
  %911 = vrot.lane.b32.xlu0 %v815, 12
  %v912 = vpop.permute.xlu0 %911
  %913 = vrot.lane.b32.xlu0 %v816, 12
  %v914 = vpop.permute.xlu0 %913
  %949 = vrot.lane.b32.xlu0 %v787, 24
  %v950 = vpop.permute.xlu0 %949
  %951 = vrot.lane.b32.xlu0 %v788, 24
  %v952 = vpop.permute.xlu0 %951
  %953 = vrot.lane.b32.xlu0 %v789, 24
  %v954 = vpop.permute.xlu0 %953
  %955 = vrot.lane.b32.xlu0 %v790, 24
  %v956 = vpop.permute.xlu0 %955
  %957 = vrot.lane.b32.xlu0 %v791, 24
  %v958 = vpop.permute.xlu0 %957
  %959 = vrot.lane.b32.xlu0 %v792, 24
  %v960 = vpop.permute.xlu0 %959
  %961 = vrot.lane.b32.xlu0 %v793, 24
  %v962 = vpop.permute.xlu0 %961
  %963 = vrot.lane.b32.xlu0 %v794, 24
  %v964 = vpop.permute.xlu0 %963
  %965 = vrot.lane.b32.xlu0 %v795, 24
  %v966 = vpop.permute.xlu0 %965
  %967 = vrot.lane.b32.xlu0 %v796, 24
  %v968 = vpop.permute.xlu0 %967
  %969 = vrot.lane.b32.xlu0 %v797, 24
  %v970 = vpop.permute.xlu0 %969
  %971 = vrot.lane.b32.xlu0 %v798, 24
  %v972 = vpop.permute.xlu0 %971
  %973 = vrot.lane.b32.xlu0 %v799, 24
  %v974 = vpop.permute.xlu0 %973
  %975 = vrot.lane.b32.xlu0 %v800, 24
  %v976 = vpop.permute.xlu0 %975
  %977 = vrot.lane.b32.xlu0 %v801, 24
  %v978 = vpop.permute.xlu0 %977
  %979 = vrot.lane.b32.xlu0 %v802, 24
  %v980 = vpop.permute.xlu0 %979
  %981 = vrot.lane.b32.xlu0 %v803, 24
  %v982 = vpop.permute.xlu0 %981
  %983 = vrot.lane.b32.xlu0 %v804, 24
  %v984 = vpop.permute.xlu0 %983
  %985 = vrot.lane.b32.xlu0 %v805, 24
  %v986 = vpop.permute.xlu0 %985
  %987 = vrot.lane.b32.xlu0 %v806, 24
  %v988 = vpop.permute.xlu0 %987
  %989 = vrot.lane.b32.xlu0 %v807, 24
  %v990 = vpop.permute.xlu0 %989
  %991 = vrot.lane.b32.xlu0 %v808, 24
  %v992 = vpop.permute.xlu0 %991
  %993 = vrot.lane.b32.xlu0 %v809, 24
  %v994 = vpop.permute.xlu0 %993
  %995 = vrot.lane.b32.xlu0 %v810, 24
  %v996 = vpop.permute.xlu0 %995
  %997 = vrot.lane.b32.xlu0 %v811, 24
  %v998 = vpop.permute.xlu0 %997
  %999 = vrot.lane.b32.xlu0 %v812, 24
  %v1000 = vpop.permute.xlu0 %999
  %1001 = vrot.lane.b32.xlu0 %v813, 24
  %v1002 = vpop.permute.xlu0 %1001
  %1003 = vrot.lane.b32.xlu0 %v814, 24
  %v1004 = vpop.permute.xlu0 %1003
  %1005 = vrot.lane.b32.xlu0 %v815, 24
  %v1006 = vpop.permute.xlu0 %1005
  %1007 = vrot.lane.b32.xlu0 %v816, 24
  %v1008 = vpop.permute.xlu0 %1007
  %1009 = vrot.lane.b32.xlu0 %v817, 24
  %v1010 = vpop.permute.xlu0 %1009
  %1011 = vrot.lane.b32.xlu0 %v818, 24
  %v1012 = vpop.permute.xlu0 %1011
  %vm1045 = vcmask 97280
  %v1046 = vsel %vm1045, %v783, %v852
  %v1047 = vsel %vm1045, %v784, %v854
  %v1048 = vsel %vm1045, %v785, %v856
  %v1049 = vsel %vm1045, %v786, %v858
  %v1050 = vsel %vm1045, %v787, %v860
  %v1051 = vsel %vm1045, %v788, %v862
  %v1052 = vsel %vm1045, %v789, %v864
  %v1053 = vsel %vm1045, %v790, %v866
  %v1054 = vsel %vm1045, %v791, %v868
  %v1055 = vsel %vm1045, %v792, %v870
  %v1056 = vsel %vm1045, %v793, %v872
  %v1057 = vsel %vm1045, %v794, %v874
  %v1058 = vsel %vm1045, %v795, %v876
  %v1059 = vsel %vm1045, %v796, %v878
  %v1060 = vsel %vm1045, %v797, %v880
  %v1061 = vsel %vm1045, %v798, %v882
  %v1062 = vsel %vm1045, %v799, %v884
  %v1063 = vsel %vm1045, %v800, %v886
  %v1064 = vsel %vm1045, %v801, %v888
  %v1065 = vsel %vm1045, %v802, %v890
  %v1066 = vsel %vm1045, %v803, %v892
  %v1067 = vsel %vm1045, %v804, %v894
  %v1068 = vsel %vm1045, %v805, %v896
  %v1069 = vsel %vm1045, %v806, %v898
  %v1070 = vsel %vm1045, %v807, %v900
  %v1071 = vsel %vm1045, %v808, %v902
  %v1072 = vsel %vm1045, %v809, %v904
  %v1073 = vsel %vm1045, %v810, %v906
  %v1074 = vsel %vm1045, %v811, %v908
  %v1075 = vsel %vm1045, %v812, %v910
  %v1076 = vsel %vm1045, %v813, %v912
  %v1077 = vsel %vm1045, %v814, %v914
  %vm1078 = vcmask 195584
  %v1079 = vsel %vm1078, %v1046, %v950
  %v1080 = vsel %vm1078, %v1047, %v952
  %v1081 = vsel %vm1078, %v1048, %v954
  %v1082 = vsel %vm1078, %v1049, %v956
  %v1083 = vsel %vm1078, %v1050, %v958
  %v1084 = vsel %vm1078, %v1051, %v960
  %v1085 = vsel %vm1078, %v1052, %v962
  %v1086 = vsel %vm1078, %v1053, %v964
  %v1087 = vsel %vm1078, %v1054, %v966
  %v1088 = vsel %vm1078, %v1055, %v968
  %v1089 = vsel %vm1078, %v1056, %v970
  %v1090 = vsel %vm1078, %v1057, %v972
  %v1091 = vsel %vm1078, %v1058, %v974
  %v1092 = vsel %vm1078, %v1059, %v976
  %v1093 = vsel %vm1078, %v1060, %v978
  %v1094 = vsel %vm1078, %v1061, %v980
  %v1095 = vsel %vm1078, %v1062, %v982
  %v1096 = vsel %vm1078, %v1063, %v984
  %v1097 = vsel %vm1078, %v1064, %v986
  %v1098 = vsel %vm1078, %v1065, %v988
  %v1099 = vsel %vm1078, %v1066, %v990
  %v1100 = vsel %vm1078, %v1067, %v992
  %v1101 = vsel %vm1078, %v1068, %v994
  %v1102 = vsel %vm1078, %v1069, %v996
  %v1103 = vsel %vm1078, %v1070, %v998
  %v1104 = vsel %vm1078, %v1071, %v1000
  %v1105 = vsel %vm1078, %v1072, %v1002
  %v1106 = vsel %vm1078, %v1073, %v1004
  %v1107 = vsel %vm1078, %v1074, %v1006
  %v1108 = vsel %vm1078, %v1075, %v1008
  %v1109 = vsel %vm1078, %v1076, %v1010
  %v1110 = vsel %vm1078, %v1077, %v1012
  %v1111 = vld [vmem:[%s1] sm:$0xff]
  %v1112 = vld [vmem:[%s1 + $0x8] sm:$0xff]
  %v1113 = vld [vmem:[%s1 + $0x10] sm:$0xff]
  %v1114 = vld [vmem:[%s1 + $0x18] sm:$0xff]
  %v1115 = vld [vmem:[%s1 + $0x20] sm:$0xf]
  %v1116 = vld [vmem:[%s2] sm:$0x1]
  %v1117 = vlaneseq
  %v1118 = vshrl.u32 %v1117, 7
  %v1119 = vsub.s32 0, %v1118
  %v1120 = vrot.slane %v1116, %v1119
  %vm1121 = vcmask 293888
  %v1123 = vsel %vm1121, %v1079, 0
  %v1126 = vsel %vm1121, %v1080, 0
  %v1129 = vsel %vm1121, %v1081, 0
  %v1132 = vsel %vm1121, %v1082, 0
  %v1135 = vsel %vm1121, %v1083, 0
  %v1138 = vsel %vm1121, %v1084, 0
  %v1141 = vsel %vm1121, %v1085, 0
  %v1144 = vsel %vm1121, %v1086, 0
  %v1147 = vsel %vm1121, %v1087, 0
  %v1150 = vsel %vm1121, %v1088, 0
  %v1153 = vsel %vm1121, %v1089, 0
  %v1156 = vsel %vm1121, %v1090, 0
  %v1159 = vsel %vm1121, %v1091, 0
  %v1162 = vsel %vm1121, %v1092, 0
  %v1165 = vsel %vm1121, %v1093, 0
  %v1168 = vsel %vm1121, %v1094, 0
  %v1171 = vsel %vm1121, %v1095, 0
  %v1174 = vsel %vm1121, %v1096, 0
  %v1177 = vsel %vm1121, %v1097, 0
  %v1180 = vsel %vm1121, %v1098, 0
  %v1183 = vsel %vm1121, %v1099, 0
  %v1186 = vsel %vm1121, %v1100, 0
  %v1189 = vsel %vm1121, %v1101, 0
  %v1192 = vsel %vm1121, %v1102, 0
  %v1195 = vsel %vm1121, %v1103, 0
  %v1198 = vsel %vm1121, %v1104, 0
  %v1201 = vsel %vm1121, %v1105, 0
  %v1204 = vsel %vm1121, %v1106, 0
  %v1207 = vsel %vm1121, %v1107, 0
  %v1210 = vsel %vm1121, %v1108, 0
  %v1213 = vsel %vm1121, %v1109, 0
  %v1216 = vsel %vm1121, %v1110, 0
  %vm1218 = vcmask 1043456
  %v1220 = vsel %vm1218, %v1115, 0
  %1222 = vmatprep.subr.mxu0 0.0
  %1223 = vmatpush1.msra.mxu0 %v1111
  %1224 = vmatprep.subr.mxu0 0.0
  %1225 = vmatpush1.msra.mxu0 %v1112
  %1226 = vmatprep.subr.mxu0 0.0
  %1227 = vmatpush1.msra.mxu0 %v1113
  %1228 = vmatprep.subr.mxu0 0.0
  %1229 = vmatpush1.msra.mxu0 %v1114
  %1230 = vmatprep.subr.mxu0 0.0
  %1231 = vmatpush1.msra.mxu0 %v1220
  %1232 = vmatprep.subr.mxu0 0.0
  %1233 = vmatpush1.msra.mxu0 0.0
  %1234 = vmatprep.subr.mxu0 0.0
  %1235 = vmatpush1.msra.mxu0 0.0
  %1236 = vmatprep.subr.mxu0 0.0
  %1237 = vmatpush1.msra.mxu0 0.0
  %1238 = vmatprep.subr.mxu0 0.0
  %1239 = vmatpush1.msra.mxu0 0.0
  %1240 = vmatprep.subr.mxu0 0.0
  %1241 = vmatpush1.msra.mxu0 0.0
  %1242 = vmatprep.subr.mxu0 0.0
  %1243 = vmatpush1.msra.mxu0 0.0
  %1244 = vmatprep.subr.mxu0 0.0
  %1245 = vmatpush1.msra.mxu0 0.0
  %1246 = vmatprep.subr.mxu0 0.0
  %1247 = vmatpush1.msra.mxu0 0.0
  %1248 = vmatprep.subr.mxu0 0.0
  %1249 = vmatpush1.msra.mxu0 0.0
  %1250 = vmatprep.subr.mxu0 0.0
  %1251 = vmatpush1.msra.mxu0 0.0
  %1252 = vmatprep.subr.mxu0 0.0
  %1253 = vmatpush1.msra.mxu0 0.0
  %1254 = vmatprep.subr.mxu0 0.0
  %1255 = vmatpush1.msra.mxu0 0.0
  %1256 = vmatprep.subr.mxu0 0.0
  %1257 = vmatpush1.msra.mxu0 0.0
  %1258 = vmatprep.subr.mxu0 0.0
  %1259 = vmatpush1.msra.mxu0 0.0
  %1260 = vmatprep.subr.mxu0 0.0
  %1261 = vmatpush1.msra.mxu0 0.0
  %1262 = vmatprep.subr.mxu0 0.0
  %1263 = vmatpush1.msra.mxu0 0.0
  %1264 = vmatprep.subr.mxu0 0.0
  %1265 = vmatpush1.msra.mxu0 0.0
  %1266 = vmatprep.subr.mxu0 0.0
  %1267 = vmatpush1.msra.mxu0 0.0
  %1268 = vmatprep.subr.mxu0 0.0
  %1269 = vmatpush1.msra.mxu0 0.0
  %1270 = vmatprep.subr.mxu0 0.0
  %1271 = vmatpush1.msra.mxu0 0.0
  %1272 = vmatprep.subr.mxu0 0.0
  %1273 = vmatpush1.msra.mxu0 0.0
  %1274 = vmatprep.subr.mxu0 0.0
  %1275 = vmatpush1.msra.mxu0 0.0
  %1276 = vmatprep.subr.mxu0 0.0
  %1277 = vmatpush1.msra.mxu0 0.0
  %1278 = vmatprep.subr.mxu0 0.0
  %1279 = vmatpush1.msra.mxu0 0.0
  %1280 = vmatprep.subr.mxu0 0.0
  %1281 = vmatpush1.msra.mxu0 0.0
  %1282 = vmatprep.subr.mxu0 0.0
  %1283 = vmatpush1.msra.mxu0 0.0
  %1284 = vmatprep.subr.mxu0 0.0
  %1285 = vmatpush1.msra.mxu0 0.0
  %1286 = vmatprep.mubr.f32.mxu0 0.0
  %1287 = vmatmul.mubr.f32.gmra.mrb[0].mxu0 %v1123
  %v1288 = vpop.f32.mrb[0].mxu0
  %v1289 = vadd.f32 %v1120, %v1288
  %v1290 = vpop.f32.mrb[0].mxu0
  %1291 = vmatprep.mubr.f32.mxu0 0.0
  %1292 = vmatmul.mubr.f32.gmra.mrb[0].mxu0 %v1126
  %v1293 = vpop.f32.mrb[0].mxu0
  %v1294 = vadd.f32 %v1120, %v1293
  %v1295 = vpop.f32.mrb[0].mxu0
  %1296 = vmatprep.mubr.f32.mxu0 0.0
  %1297 = vmatmul.mubr.f32.gmra.mrb[0].mxu0 %v1129
  %v1298 = vpop.f32.mrb[0].mxu0
  %v1299 = vadd.f32 %v1120, %v1298
  %v1300 = vpop.f32.mrb[0].mxu0
  %1301 = vmatprep.mubr.f32.mxu0 0.0
  %1302 = vmatmul.mubr.f32.gmra.mrb[0].mxu0 %v1132
  %v1303 = vpop.f32.mrb[0].mxu0
  %v1304 = vadd.f32 %v1120, %v1303
  %v1305 = vpop.f32.mrb[0].mxu0
  %1306 = vmatprep.mubr.f32.mxu0 0.0
  %1307 = vmatmul.mubr.f32.gmra.mrb[0].mxu0 %v1135
  %v1308 = vpop.f32.mrb[0].mxu0
  %v1309 = vadd.f32 %v1120, %v1308
  %v1310 = vpop.f32.mrb[0].mxu0
  %1311 = vmatprep.mubr.f32.mxu0 0.0
  %1312 = vmatmul.mubr.f32.gmra.mrb[0].mxu0 %v1138
  %v1313 = vpop.f32.mrb[0].mxu0
  %v1314 = vadd.f32 %v1120, %v1313
  %v1315 = vpop.f32.mrb[0].mxu0
  %1316 = vmatprep.mubr.f32.mxu0 0.0
  %1317 = vmatmul.mubr.f32.gmra.mrb[0].mxu0 %v1141
  %v1318 = vpop.f32.mrb[0].mxu0
  %v1319 = vadd.f32 %v1120, %v1318
  %v1320 = vpop.f32.mrb[0].mxu0
  %1321 = vmatprep.mubr.f32.mxu0 0.0
  %1322 = vmatmul.mubr.f32.gmra.mrb[0].mxu0 %v1144
  %v1323 = vpop.f32.mrb[0].mxu0
  %v1324 = vadd.f32 %v1120, %v1323
  %v1325 = vpop.f32.mrb[0].mxu0
  %1326 = vmatprep.mubr.f32.mxu0 0.0
  %1327 = vmatmul.mubr.f32.gmra.mrb[0].mxu0 %v1147
  %v1328 = vpop.f32.mrb[0].mxu0
  %v1329 = vadd.f32 %v1120, %v1328
  %v1330 = vpop.f32.mrb[0].mxu0
  %1331 = vmatprep.mubr.f32.mxu0 0.0
  %1332 = vmatmul.mubr.f32.gmra.mrb[0].mxu0 %v1150
  %v1333 = vpop.f32.mrb[0].mxu0
  %v1334 = vadd.f32 %v1120, %v1333
  %v1335 = vpop.f32.mrb[0].mxu0
  %1336 = vmatprep.mubr.f32.mxu0 0.0
  %1337 = vmatmul.mubr.f32.gmra.mrb[0].mxu0 %v1153
  %v1338 = vpop.f32.mrb[0].mxu0
  %v1339 = vadd.f32 %v1120, %v1338
  %v1340 = vpop.f32.mrb[0].mxu0
  %1341 = vmatprep.mubr.f32.mxu0 0.0
  %1342 = vmatmul.mubr.f32.gmra.mrb[0].mxu0 %v1156
  %v1343 = vpop.f32.mrb[0].mxu0
  %v1344 = vadd.f32 %v1120, %v1343
  %v1345 = vpop.f32.mrb[0].mxu0
  %1346 = vmatprep.mubr.f32.mxu0 0.0
  %1347 = vmatmul.mubr.f32.gmra.mrb[0].mxu0 %v1159
  %v1348 = vpop.f32.mrb[0].mxu0
  %v1349 = vadd.f32 %v1120, %v1348
  %v1350 = vpop.f32.mrb[0].mxu0
  %1351 = vmatprep.mubr.f32.mxu0 0.0
  %1352 = vmatmul.mubr.f32.gmra.mrb[0].mxu0 %v1162
  %v1353 = vpop.f32.mrb[0].mxu0
  %v1354 = vadd.f32 %v1120, %v1353
  %v1355 = vpop.f32.mrb[0].mxu0
  %1356 = vmatprep.mubr.f32.mxu0 0.0
  %1357 = vmatmul.mubr.f32.gmra.mrb[0].mxu0 %v1165
  %v1358 = vpop.f32.mrb[0].mxu0
  %v1359 = vadd.f32 %v1120, %v1358
  %v1360 = vpop.f32.mrb[0].mxu0
  %1361 = vmatprep.mubr.f32.mxu0 0.0
  %1362 = vmatmul.mubr.f32.gmra.mrb[0].mxu0 %v1168
  %v1363 = vpop.f32.mrb[0].mxu0
  %v1364 = vadd.f32 %v1120, %v1363
  %v1365 = vpop.f32.mrb[0].mxu0
  %1366 = vmatprep.mubr.f32.mxu0 0.0
  %1367 = vmatmul.mubr.f32.gmra.mrb[0].mxu0 %v1171
  %v1368 = vpop.f32.mrb[0].mxu0
  %v1369 = vadd.f32 %v1120, %v1368
  %v1370 = vpop.f32.mrb[0].mxu0
  %1371 = vmatprep.mubr.f32.mxu0 0.0
  %1372 = vmatmul.mubr.f32.gmra.mrb[0].mxu0 %v1174
  %v1373 = vpop.f32.mrb[0].mxu0
  %v1374 = vadd.f32 %v1120, %v1373
  %v1375 = vpop.f32.mrb[0].mxu0
  %1376 = vmatprep.mubr.f32.mxu0 0.0
  %1377 = vmatmul.mubr.f32.gmra.mrb[0].mxu0 %v1177
  %v1378 = vpop.f32.mrb[0].mxu0
  %v1379 = vadd.f32 %v1120, %v1378
  %v1380 = vpop.f32.mrb[0].mxu0
  %1381 = vmatprep.mubr.f32.mxu0 0.0
  %1382 = vmatmul.mubr.f32.gmra.mrb[0].mxu0 %v1180
  %v1383 = vpop.f32.mrb[0].mxu0
  %v1384 = vadd.f32 %v1120, %v1383
  %v1385 = vpop.f32.mrb[0].mxu0
  %1386 = vmatprep.mubr.f32.mxu0 0.0
  %1387 = vmatmul.mubr.f32.gmra.mrb[0].mxu0 %v1183
  %v1388 = vpop.f32.mrb[0].mxu0
  %v1389 = vadd.f32 %v1120, %v1388
  %v1390 = vpop.f32.mrb[0].mxu0
  %1391 = vmatprep.mubr.f32.mxu0 0.0
  %1392 = vmatmul.mubr.f32.gmra.mrb[0].mxu0 %v1186
  %v1393 = vpop.f32.mrb[0].mxu0
  %v1394 = vadd.f32 %v1120, %v1393
  %v1395 = vpop.f32.mrb[0].mxu0
  %1396 = vmatprep.mubr.f32.mxu0 0.0
  %1397 = vmatmul.mubr.f32.gmra.mrb[0].mxu0 %v1189
  %v1398 = vpop.f32.mrb[0].mxu0
  %v1399 = vadd.f32 %v1120, %v1398
  %v1400 = vpop.f32.mrb[0].mxu0
  %1401 = vmatprep.mubr.f32.mxu0 0.0
  %1402 = vmatmul.mubr.f32.gmra.mrb[0].mxu0 %v1192
  %v1403 = vpop.f32.mrb[0].mxu0
  %v1404 = vadd.f32 %v1120, %v1403
  %v1405 = vpop.f32.mrb[0].mxu0
  %1406 = vmatprep.mubr.f32.mxu0 0.0
  %1407 = vmatmul.mubr.f32.gmra.mrb[0].mxu0 %v1195
  %v1408 = vpop.f32.mrb[0].mxu0
  %v1409 = vadd.f32 %v1120, %v1408
  %v1410 = vpop.f32.mrb[0].mxu0
  %1411 = vmatprep.mubr.f32.mxu0 0.0
  %1412 = vmatmul.mubr.f32.gmra.mrb[0].mxu0 %v1198
  %v1413 = vpop.f32.mrb[0].mxu0
  %v1414 = vadd.f32 %v1120, %v1413
  %v1415 = vpop.f32.mrb[0].mxu0
  %1416 = vmatprep.mubr.f32.mxu0 0.0
  %1417 = vmatmul.mubr.f32.gmra.mrb[0].mxu0 %v1201
  %v1418 = vpop.f32.mrb[0].mxu0
  %v1419 = vadd.f32 %v1120, %v1418
  %v1420 = vpop.f32.mrb[0].mxu0
  %1421 = vmatprep.mubr.f32.mxu0 0.0
  %1422 = vmatmul.mubr.f32.gmra.mrb[0].mxu0 %v1204
  %v1423 = vpop.f32.mrb[0].mxu0
  %v1424 = vadd.f32 %v1120, %v1423
  %v1425 = vpop.f32.mrb[0].mxu0
  %1426 = vmatprep.mubr.f32.mxu0 0.0
  %1427 = vmatmul.mubr.f32.gmra.mrb[0].mxu0 %v1207
  %v1428 = vpop.f32.mrb[0].mxu0
  %v1429 = vadd.f32 %v1120, %v1428
  %v1430 = vpop.f32.mrb[0].mxu0
  %1431 = vmatprep.mubr.f32.mxu0 0.0
  %1432 = vmatmul.mubr.f32.gmra.mrb[0].mxu0 %v1210
  %v1433 = vpop.f32.mrb[0].mxu0
  %v1434 = vadd.f32 %v1120, %v1433
  %v1435 = vpop.f32.mrb[0].mxu0
  %1436 = vmatprep.mubr.f32.mxu0 0.0
  %1437 = vmatmul.mubr.f32.gmra.mrb[0].mxu0 %v1213
  %v1438 = vpop.f32.mrb[0].mxu0
  %v1439 = vadd.f32 %v1120, %v1438
  %v1440 = vpop.f32.mrb[0].mxu0
  %1441 = vmatprep.mubr.f32.mxu0 0.0
  %1442 = vmatmul.mubr.f32.gmra.mrb[0].mxu0 %v1216
  %v1443 = vpop.f32.mrb[0].mxu0
  %v1444 = vadd.f32 %v1120, %v1443
  %v1445 = vpop.f32.mrb[0].mxu0
  %1446 = vdwg.mxu0
  %vm1447 = vcmp.ge.f32.partialorder %v1289, 0.0
  %vm1448 = vcmp.ge.f32.partialorder %v1294, 0.0
  %vm1449 = vcmp.ge.f32.partialorder %v1299, 0.0
  %vm1450 = vcmp.ge.f32.partialorder %v1304, 0.0
  %vm1451 = vcmp.ge.f32.partialorder %v1309, 0.0
  %vm1452 = vcmp.ge.f32.partialorder %v1314, 0.0
  %vm1453 = vcmp.ge.f32.partialorder %v1319, 0.0
  %vm1454 = vcmp.ge.f32.partialorder %v1324, 0.0
  %vm1455 = vcmp.ge.f32.partialorder %v1329, 0.0
  %vm1456 = vcmp.ge.f32.partialorder %v1334, 0.0
  %vm1457 = vcmp.ge.f32.partialorder %v1339, 0.0
  %vm1458 = vcmp.ge.f32.partialorder %v1344, 0.0
  %vm1459 = vcmp.ge.f32.partialorder %v1349, 0.0
  %vm1460 = vcmp.ge.f32.partialorder %v1354, 0.0
  %vm1461 = vcmp.ge.f32.partialorder %v1359, 0.0
  %vm1462 = vcmp.ge.f32.partialorder %v1364, 0.0
  %vm1463 = vcmp.ge.f32.partialorder %v1369, 0.0
  %vm1464 = vcmp.ge.f32.partialorder %v1374, 0.0
  %vm1465 = vcmp.ge.f32.partialorder %v1379, 0.0
  %vm1466 = vcmp.ge.f32.partialorder %v1384, 0.0
  %vm1467 = vcmp.ge.f32.partialorder %v1389, 0.0
  %vm1468 = vcmp.ge.f32.partialorder %v1394, 0.0
  %vm1469 = vcmp.ge.f32.partialorder %v1399, 0.0
  %vm1470 = vcmp.ge.f32.partialorder %v1404, 0.0
  %vm1471 = vcmp.ge.f32.partialorder %v1409, 0.0
  %vm1472 = vcmp.ge.f32.partialorder %v1414, 0.0
  %vm1473 = vcmp.ge.f32.partialorder %v1419, 0.0
  %vm1474 = vcmp.ge.f32.partialorder %v1424, 0.0
  %vm1475 = vcmp.ge.f32.partialorder %v1429, 0.0
  %vm1476 = vcmp.ge.f32.partialorder %v1434, 0.0
  %vm1477 = vcmp.ge.f32.partialorder %v1439, 0.0
  %vm1478 = vcmp.ge.f32.partialorder %v1444, 0.0
  %v1479 = vmul.f32 %v1289, 0.1
  %v1480 = vmul.f32 %v1294, 0.1
  %v1481 = vmul.f32 %v1299, 0.1
  %v1482 = vmul.f32 %v1304, 0.1
  %v1483 = vmul.f32 %v1309, 0.1
  %v1484 = vmul.f32 %v1314, 0.1
  %v1485 = vmul.f32 %v1319, 0.1
  %v1486 = vmul.f32 %v1324, 0.1
  %v1487 = vmul.f32 %v1329, 0.1
  %v1488 = vmul.f32 %v1334, 0.1
  %v1489 = vmul.f32 %v1339, 0.1
  %v1490 = vmul.f32 %v1344, 0.1
  %v1491 = vmul.f32 %v1349, 0.1
  %v1492 = vmul.f32 %v1354, 0.1
  %v1493 = vmul.f32 %v1359, 0.1
  %v1494 = vmul.f32 %v1364, 0.1
  %v1495 = vmul.f32 %v1369, 0.1
  %v1496 = vmul.f32 %v1374, 0.1
  %v1497 = vmul.f32 %v1379, 0.1
  %v1498 = vmul.f32 %v1384, 0.1
  %v1499 = vmul.f32 %v1389, 0.1
  %v1500 = vmul.f32 %v1394, 0.1
  %v1501 = vmul.f32 %v1399, 0.1
  %v1502 = vmul.f32 %v1404, 0.1
  %v1503 = vmul.f32 %v1409, 0.1
  %v1504 = vmul.f32 %v1414, 0.1
  %v1505 = vmul.f32 %v1419, 0.1
  %v1506 = vmul.f32 %v1424, 0.1
  %v1507 = vmul.f32 %v1429, 0.1
  %v1508 = vmul.f32 %v1434, 0.1
  %v1509 = vmul.f32 %v1439, 0.1
  %v1510 = vmul.f32 %v1444, 0.1
  %v1511 = vsel %vm1447, %v1289, %v1479
  %v1512 = vsel %vm1448, %v1294, %v1480
  %v1513 = vsel %vm1449, %v1299, %v1481
  %v1514 = vsel %vm1450, %v1304, %v1482
  %v1515 = vsel %vm1451, %v1309, %v1483
  %v1516 = vsel %vm1452, %v1314, %v1484
  %v1517 = vsel %vm1453, %v1319, %v1485
  %v1518 = vsel %vm1454, %v1324, %v1486
  %v1519 = vsel %vm1455, %v1329, %v1487
  %v1520 = vsel %vm1456, %v1334, %v1488
  %v1521 = vsel %vm1457, %v1339, %v1489
  %v1522 = vsel %vm1458, %v1344, %v1490
  %v1523 = vsel %vm1459, %v1349, %v1491
  %v1524 = vsel %vm1460, %v1354, %v1492
  %v1525 = vsel %vm1461, %v1359, %v1493
  %v1526 = vsel %vm1462, %v1364, %v1494
  %v1527 = vsel %vm1463, %v1369, %v1495
  %v1528 = vsel %vm1464, %v1374, %v1496
  %v1529 = vsel %vm1465, %v1379, %v1497
  %v1530 = vsel %vm1466, %v1384, %v1498
  %v1531 = vsel %vm1467, %v1389, %v1499
  %v1532 = vsel %vm1468, %v1394, %v1500
  %v1533 = vsel %vm1469, %v1399, %v1501
  %v1534 = vsel %vm1470, %v1404, %v1502
  %v1535 = vsel %vm1471, %v1409, %v1503
  %v1536 = vsel %vm1472, %v1414, %v1504
  %v1537 = vsel %vm1473, %v1419, %v1505
  %v1538 = vsel %vm1474, %v1424, %v1506
  %v1539 = vsel %vm1475, %v1429, %v1507
  %v1540 = vsel %vm1476, %v1434, %v1508
  %v1541 = vsel %vm1477, %v1439, %v1509
  %v1542 = vsel %vm1478, %v1444, %v1510
  %s1543 = scalar_lea.vmem [#allocation3], 64
  %1544 = vst.msk [vmem:[%s1543 + $0x2] sm:$0xff] %vm124, %v1511
  %1545 = vst.msk [vmem:[%s1543 + $0xa] sm:$0xff] %vm124, %v1512
  %1546 = vst.msk [vmem:[%s1543 + $0x22] sm:$0xff] %vm124, %v1513
  %1547 = vst.msk [vmem:[%s1543 + $0x2a] sm:$0xff] %vm124, %v1514
  %1548 = vst.msk [vmem:[%s1543 + $0x42] sm:$0xff] %vm124, %v1515
  %1549 = vst.msk [vmem:[%s1543 + $0x4a] sm:$0xff] %vm124, %v1516
  %1550 = vst.msk [vmem:[%s1543 + $0x62] sm:$0xff] %vm124, %v1517
  %1551 = vst.msk [vmem:[%s1543 + $0x6a] sm:$0xff] %vm124, %v1518
  %1552 = vst.msk [vmem:[%s1543 + $0x82] sm:$0xff] %vm124, %v1519
  %1553 = vst.msk [vmem:[%s1543 + $0x8a] sm:$0xff] %vm124, %v1520
  %1554 = vst.msk [vmem:[%s1543 + $0xa2] sm:$0xff] %vm124, %v1521
  %1555 = vst.msk [vmem:[%s1543 + $0xaa] sm:$0xff] %vm124, %v1522
  %1556 = vst.msk [vmem:[%s1543 + $0xc2] sm:$0xff] %vm124, %v1523
  %1557 = vst.msk [vmem:[%s1543 + $0xca] sm:$0xff] %vm124, %v1524
  %1558 = vst.msk [vmem:[%s1543 + $0xe2] sm:$0xff] %vm124, %v1525
  %1559 = vst.msk [vmem:[%s1543 + $0xea] sm:$0xff] %vm124, %v1526
  %1560 = vst.msk [vmem:[%s1543 + $0x102] sm:$0xff] %vm124, %v1527
  %1561 = vst.msk [vmem:[%s1543 + $0x10a] sm:$0xff] %vm124, %v1528
  %1562 = vst.msk [vmem:[%s1543 + $0x122] sm:$0xff] %vm124, %v1529
  %1563 = vst.msk [vmem:[%s1543 + $0x12a] sm:$0xff] %vm124, %v1530
  %1564 = vst.msk [vmem:[%s1543 + $0x142] sm:$0xff] %vm124, %v1531
  %1565 = vst.msk [vmem:[%s1543 + $0x14a] sm:$0xff] %vm124, %v1532
  %1566 = vst.msk [vmem:[%s1543 + $0x162] sm:$0xff] %vm124, %v1533
  %1567 = vst.msk [vmem:[%s1543 + $0x16a] sm:$0xff] %vm124, %v1534
  %1568 = vst.msk [vmem:[%s1543 + $0x182] sm:$0xff] %vm124, %v1535
  %1569 = vst.msk [vmem:[%s1543 + $0x18a] sm:$0xff] %vm124, %v1536
  %1570 = vst.msk [vmem:[%s1543 + $0x1a2] sm:$0xff] %vm124, %v1537
  %1571 = vst.msk [vmem:[%s1543 + $0x1aa] sm:$0xff] %vm124, %v1538
  %1572 = vst.msk [vmem:[%s1543 + $0x1c2] sm:$0xff] %vm124, %v1539
  %1573 = vst.msk [vmem:[%s1543 + $0x1ca] sm:$0xff] %vm124, %v1540
  %1574 = vst.msk [vmem:[%s1543 + $0x1e2] sm:$0xff] %vm124, %v1541
  %1575 = vst.msk [vmem:[%s1543 + $0x1ea] sm:$0xff] %vm124, %v1542
  %v1576 = vld [vmem:[#allocation3] sm:$0xff]
  %v1577 = vld [vmem:[#allocation3 + $0x8] sm:$0xff]
  %v1578 = vld [vmem:[#allocation3 + $0x10] sm:$0xff]
  %v1579 = vld [vmem:[#allocation3 + $0x20] sm:$0xff]
  %v1580 = vld [vmem:[#allocation3 + $0x28] sm:$0xff]
  %v1581 = vld [vmem:[#allocation3 + $0x30] sm:$0xff]
  %v1582 = vld [vmem:[#allocation3 + $0x40] sm:$0xff]
  %v1583 = vld [vmem:[#allocation3 + $0x48] sm:$0xff]
  %v1584 = vld [vmem:[#allocation3 + $0x50] sm:$0xff]
  %v1585 = vld [vmem:[#allocation3 + $0x60] sm:$0xff]
  %v1586 = vld [vmem:[#allocation3 + $0x68] sm:$0xff]
  %v1587 = vld [vmem:[#allocation3 + $0x70] sm:$0xff]
  %v1588 = vld [vmem:[#allocation3 + $0x80] sm:$0xff]
  %v1589 = vld [vmem:[#allocation3 + $0x88] sm:$0xff]
  %v1590 = vld [vmem:[#allocation3 + $0x90] sm:$0xff]
  %v1591 = vld [vmem:[#allocation3 + $0xa0] sm:$0xff]
  %v1592 = vld [vmem:[#allocation3 + $0xa8] sm:$0xff]
  %v1593 = vld [vmem:[#allocation3 + $0xb0] sm:$0xff]
  %v1594 = vld [vmem:[#allocation3 + $0xc0] sm:$0xff]
  %v1595 = vld [vmem:[#allocation3 + $0xc8] sm:$0xff]
  %v1596 = vld [vmem:[#allocation3 + $0xd0] sm:$0xff]
  %v1597 = vld [vmem:[#allocation3 + $0xe0] sm:$0xff]
  %v1598 = vld [vmem:[#allocation3 + $0xe8] sm:$0xff]
  %v1599 = vld [vmem:[#allocation3 + $0xf0] sm:$0xff]
  %v1600 = vld [vmem:[#allocation3 + $0x100] sm:$0xff]
  %v1601 = vld [vmem:[#allocation3 + $0x108] sm:$0xff]
  %v1602 = vld [vmem:[#allocation3 + $0x110] sm:$0xff]
  %v1603 = vld [vmem:[#allocation3 + $0x120] sm:$0xff]
  %v1604 = vld [vmem:[#allocation3 + $0x128] sm:$0xff]
  %v1605 = vld [vmem:[#allocation3 + $0x130] sm:$0xff]
  %v1606 = vld [vmem:[#allocation3 + $0x140] sm:$0xff]
  %v1607 = vld [vmem:[#allocation3 + $0x148] sm:$0xff]
  %v1608 = vld [vmem:[#allocation3 + $0x150] sm:$0xff]
  %v1609 = vld [vmem:[#allocation3 + $0x160] sm:$0xff]
  %v1610 = vld [vmem:[#allocation3 + $0x168] sm:$0xff]
  %v1611 = vld [vmem:[#allocation3 + $0x170] sm:$0xff]
  %v1612 = vld [vmem:[#allocation3 + $0x180] sm:$0xff]
  %v1613 = vld [vmem:[#allocation3 + $0x188] sm:$0xff]
  %v1614 = vld [vmem:[#allocation3 + $0x190] sm:$0xff]
  %v1615 = vld [vmem:[#allocation3 + $0x1a0] sm:$0xff]
  %v1616 = vld [vmem:[#allocation3 + $0x1a8] sm:$0xff]
  %v1617 = vld [vmem:[#allocation3 + $0x1b0] sm:$0xff]
  %v1618 = vld [vmem:[#allocation3 + $0x1c0] sm:$0xff]
  %v1619 = vld [vmem:[#allocation3 + $0x1c8] sm:$0xff]
  %v1620 = vld [vmem:[#allocation3 + $0x1d0] sm:$0xff]
  %v1621 = vld [vmem:[#allocation3 + $0x1e0] sm:$0xff]
  %v1622 = vld [vmem:[#allocation3 + $0x1e8] sm:$0xff]
  %v1623 = vld [vmem:[#allocation3 + $0x1f0] sm:$0xff]
  %v1624 = vld [vmem:[#allocation3 + $0x200] sm:$0xff]
  %v1625 = vld [vmem:[#allocation3 + $0x208] sm:$0xff]
  %v1626 = vld [vmem:[#allocation3 + $0x210] sm:$0xff]
  %v1627 = vld [vmem:[#allocation3 + $0x220] sm:$0xff]
  %v1628 = vld [vmem:[#allocation3 + $0x228] sm:$0xff]
  %v1629 = vld [vmem:[#allocation3 + $0x230] sm:$0xff]
  %v1630 = vld [vmem:[#allocation3 + $0x240] sm:$0xff]
  %v1631 = vld [vmem:[#allocation3 + $0x248] sm:$0xff]
  %v1632 = vld [vmem:[#allocation3 + $0x250] sm:$0xff]
  %v1633 = vld [vmem:[#allocation3 + $0x260] sm:$0xff]
  %v1634 = vld [vmem:[#allocation3 + $0x268] sm:$0xff]
  %v1635 = vld [vmem:[#allocation3 + $0x270] sm:$0xff]
  %v1636 = vld [vmem:[#allocation3 + $0x1] sm:$0xff]
  %v1637 = vld [vmem:[#allocation3 + $0x9] sm:$0xff]
  %v1638 = vld [vmem:[#allocation3 + $0x11] sm:$0xff]
  %v1639 = vld [vmem:[#allocation3 + $0x21] sm:$0xff]
  %v1640 = vld [vmem:[#allocation3 + $0x29] sm:$0xff]
  %v1641 = vld [vmem:[#allocation3 + $0x31] sm:$0xff]
  %v1642 = vld [vmem:[#allocation3 + $0x41] sm:$0xff]
  %v1643 = vld [vmem:[#allocation3 + $0x49] sm:$0xff]
  %v1644 = vld [vmem:[#allocation3 + $0x51] sm:$0xff]
  %v1645 = vld [vmem:[#allocation3 + $0x61] sm:$0xff]
  %v1646 = vld [vmem:[#allocation3 + $0x69] sm:$0xff]
  %v1647 = vld [vmem:[#allocation3 + $0x71] sm:$0xff]
  %v1648 = vld [vmem:[#allocation3 + $0x81] sm:$0xff]
  %v1649 = vld [vmem:[#allocation3 + $0x89] sm:$0xff]
  %v1650 = vld [vmem:[#allocation3 + $0x91] sm:$0xff]
  %v1651 = vld [vmem:[#allocation3 + $0xa1] sm:$0xff]
  %v1652 = vld [vmem:[#allocation3 + $0xa9] sm:$0xff]
  %v1653 = vld [vmem:[#allocation3 + $0xb1] sm:$0xff]
  %v1654 = vld [vmem:[#allocation3 + $0xc1] sm:$0xff]
  %v1655 = vld [vmem:[#allocation3 + $0xc9] sm:$0xff]
  %v1656 = vld [vmem:[#allocation3 + $0xd1] sm:$0xff]
  %v1657 = vld [vmem:[#allocation3 + $0xe1] sm:$0xff]
  %v1658 = vld [vmem:[#allocation3 + $0xe9] sm:$0xff]
  %v1659 = vld [vmem:[#allocation3 + $0xf1] sm:$0xff]
  %v1660 = vld [vmem:[#allocation3 + $0x101] sm:$0xff]
  %v1661 = vld [vmem:[#allocation3 + $0x109] sm:$0xff]
  %v1662 = vld [vmem:[#allocation3 + $0x111] sm:$0xff]
  %v1663 = vld [vmem:[#allocation3 + $0x121] sm:$0xff]
  %v1664 = vld [vmem:[#allocation3 + $0x129] sm:$0xff]
  %v1665 = vld [vmem:[#allocation3 + $0x131] sm:$0xff]
  %v1666 = vld [vmem:[#allocation3 + $0x141] sm:$0xff]
  %v1667 = vld [vmem:[#allocation3 + $0x149] sm:$0xff]
  %v1668 = vld [vmem:[#allocation3 + $0x151] sm:$0xff]
  %v1669 = vld [vmem:[#allocation3 + $0x161] sm:$0xff]
  %v1670 = vld [vmem:[#allocation3 + $0x169] sm:$0xff]
  %v1671 = vld [vmem:[#allocation3 + $0x171] sm:$0xff]
  %v1672 = vld [vmem:[#allocation3 + $0x181] sm:$0xff]
  %v1673 = vld [vmem:[#allocation3 + $0x189] sm:$0xff]
  %v1674 = vld [vmem:[#allocation3 + $0x191] sm:$0xff]
  %v1675 = vld [vmem:[#allocation3 + $0x1a1] sm:$0xff]
  %v1676 = vld [vmem:[#allocation3 + $0x1a9] sm:$0xff]
  %v1677 = vld [vmem:[#allocation3 + $0x1b1] sm:$0xff]
  %v1678 = vld [vmem:[#allocation3 + $0x1c1] sm:$0xff]
  %v1679 = vld [vmem:[#allocation3 + $0x1c9] sm:$0xff]
  %v1680 = vld [vmem:[#allocation3 + $0x1d1] sm:$0xff]
  %v1681 = vld [vmem:[#allocation3 + $0x1e1] sm:$0xff]
  %v1682 = vld [vmem:[#allocation3 + $0x1e9] sm:$0xff]
  %v1683 = vld [vmem:[#allocation3 + $0x1f1] sm:$0xff]
  %v1684 = vld [vmem:[#allocation3 + $0x201] sm:$0xff]
  %v1685 = vld [vmem:[#allocation3 + $0x209] sm:$0xff]
  %v1686 = vld [vmem:[#allocation3 + $0x211] sm:$0xff]
  %v1687 = vld [vmem:[#allocation3 + $0x221] sm:$0xff]
  %v1688 = vld [vmem:[#allocation3 + $0x229] sm:$0xff]
  %v1689 = vld [vmem:[#allocation3 + $0x231] sm:$0xff]
  %v1690 = vld [vmem:[#allocation3 + $0x241] sm:$0xff]
  %v1691 = vld [vmem:[#allocation3 + $0x249] sm:$0xff]
  %v1692 = vld [vmem:[#allocation3 + $0x251] sm:$0xff]
  %v1693 = vld [vmem:[#allocation3 + $0x261] sm:$0xff]
  %v1694 = vld [vmem:[#allocation3 + $0x269] sm:$0xff]
  %v1695 = vld [vmem:[#allocation3 + $0x271] sm:$0xff]
  %v1696 = vld [vmem:[#allocation3 + $0x2] sm:$0xff]
  %v1697 = vld [vmem:[#allocation3 + $0xa] sm:$0xff]
  %v1698 = vld [vmem:[#allocation3 + $0x12] sm:$0xff]
  %v1699 = vld [vmem:[#allocation3 + $0x22] sm:$0xff]
  %v1700 = vld [vmem:[#allocation3 + $0x2a] sm:$0xff]
  %v1701 = vld [vmem:[#allocation3 + $0x32] sm:$0xff]
  %v1702 = vld [vmem:[#allocation3 + $0x42] sm:$0xff]
  %v1703 = vld [vmem:[#allocation3 + $0x4a] sm:$0xff]
  %v1704 = vld [vmem:[#allocation3 + $0x52] sm:$0xff]
  %v1705 = vld [vmem:[#allocation3 + $0x62] sm:$0xff]
  %v1706 = vld [vmem:[#allocation3 + $0x6a] sm:$0xff]
  %v1707 = vld [vmem:[#allocation3 + $0x72] sm:$0xff]
  %v1708 = vld [vmem:[#allocation3 + $0x82] sm:$0xff]
  %v1709 = vld [vmem:[#allocation3 + $0x8a] sm:$0xff]
  %v1710 = vld [vmem:[#allocation3 + $0x92] sm:$0xff]
  %v1711 = vld [vmem:[#allocation3 + $0xa2] sm:$0xff]
  %v1712 = vld [vmem:[#allocation3 + $0xaa] sm:$0xff]
  %v1713 = vld [vmem:[#allocation3 + $0xb2] sm:$0xff]
  %v1714 = vld [vmem:[#allocation3 + $0xc2] sm:$0xff]
  %v1715 = vld [vmem:[#allocation3 + $0xca] sm:$0xff]
  %v1716 = vld [vmem:[#allocation3 + $0xd2] sm:$0xff]
  %v1717 = vld [vmem:[#allocation3 + $0xe2] sm:$0xff]
  %v1718 = vld [vmem:[#allocation3 + $0xea] sm:$0xff]
  %v1719 = vld [vmem:[#allocation3 + $0xf2] sm:$0xff]
  %v1720 = vld [vmem:[#allocation3 + $0x102] sm:$0xff]
  %v1721 = vld [vmem:[#allocation3 + $0x10a] sm:$0xff]
  %v1722 = vld [vmem:[#allocation3 + $0x112] sm:$0xff]
  %v1723 = vld [vmem:[#allocation3 + $0x122] sm:$0xff]
  %v1724 = vld [vmem:[#allocation3 + $0x12a] sm:$0xff]
  %v1725 = vld [vmem:[#allocation3 + $0x132] sm:$0xff]
  %v1726 = vld [vmem:[#allocation3 + $0x142] sm:$0xff]
  %v1727 = vld [vmem:[#allocation3 + $0x14a] sm:$0xff]
  %v1728 = vld [vmem:[#allocation3 + $0x152] sm:$0xff]
  %v1729 = vld [vmem:[#allocation3 + $0x162] sm:$0xff]
  %v1730 = vld [vmem:[#allocation3 + $0x16a] sm:$0xff]
  %v1731 = vld [vmem:[#allocation3 + $0x172] sm:$0xff]
  %v1732 = vld [vmem:[#allocation3 + $0x182] sm:$0xff]
  %v1733 = vld [vmem:[#allocation3 + $0x18a] sm:$0xff]
  %v1734 = vld [vmem:[#allocation3 + $0x192] sm:$0xff]
  %v1735 = vld [vmem:[#allocation3 + $0x1a2] sm:$0xff]
  %v1736 = vld [vmem:[#allocation3 + $0x1aa] sm:$0xff]
  %v1737 = vld [vmem:[#allocation3 + $0x1b2] sm:$0xff]
  %v1738 = vld [vmem:[#allocation3 + $0x1c2] sm:$0xff]
  %v1739 = vld [vmem:[#allocation3 + $0x1ca] sm:$0xff]
  %v1740 = vld [vmem:[#allocation3 + $0x1d2] sm:$0xff]
  %v1741 = vld [vmem:[#allocation3 + $0x1e2] sm:$0xff]
  %v1742 = vld [vmem:[#allocation3 + $0x1ea] sm:$0xff]
  %v1743 = vld [vmem:[#allocation3 + $0x1f2] sm:$0xff]
  %v1744 = vld [vmem:[#allocation3 + $0x202] sm:$0xff]
  %v1745 = vld [vmem:[#allocation3 + $0x20a] sm:$0xff]
  %v1746 = vld [vmem:[#allocation3 + $0x212] sm:$0xff]
  %v1747 = vld [vmem:[#allocation3 + $0x222] sm:$0xff]
  %v1748 = vld [vmem:[#allocation3 + $0x22a] sm:$0xff]
  %v1749 = vld [vmem:[#allocation3 + $0x232] sm:$0xff]
  %v1750 = vld [vmem:[#allocation3 + $0x242] sm:$0xff]
  %v1751 = vld [vmem:[#allocation3 + $0x24a] sm:$0xff]
  %v1752 = vld [vmem:[#allocation3 + $0x252] sm:$0xff]
  %v1753 = vld [vmem:[#allocation3 + $0x262] sm:$0xff]
  %v1754 = vld [vmem:[#allocation3 + $0x26a] sm:$0xff]
  %v1755 = vld [vmem:[#allocation3 + $0x272] sm:$0xff]
  %1816 = vrot.lane.b32.xlu0 %v1636, 8
  %v1817 = vpop.permute.xlu0 %1816
  %1818 = vrot.lane.b32.xlu0 %v1637, 8
  %v1819 = vpop.permute.xlu0 %1818
  %1820 = vrot.lane.b32.xlu0 %v1638, 8
  %v1821 = vpop.permute.xlu0 %1820
  %1822 = vrot.lane.b32.xlu0 %v1639, 8
  %v1823 = vpop.permute.xlu0 %1822
  %1824 = vrot.lane.b32.xlu0 %v1640, 8
  %v1825 = vpop.permute.xlu0 %1824
  %1826 = vrot.lane.b32.xlu0 %v1641, 8
  %v1827 = vpop.permute.xlu0 %1826
  %1828 = vrot.lane.b32.xlu0 %v1642, 8
  %v1829 = vpop.permute.xlu0 %1828
  %1830 = vrot.lane.b32.xlu0 %v1643, 8
  %v1831 = vpop.permute.xlu0 %1830
  %1832 = vrot.lane.b32.xlu0 %v1644, 8
  %v1833 = vpop.permute.xlu0 %1832
  %1834 = vrot.lane.b32.xlu0 %v1645, 8
  %v1835 = vpop.permute.xlu0 %1834
  %1836 = vrot.lane.b32.xlu0 %v1646, 8
  %v1837 = vpop.permute.xlu0 %1836
  %1838 = vrot.lane.b32.xlu0 %v1647, 8
  %v1839 = vpop.permute.xlu0 %1838
  %1840 = vrot.lane.b32.xlu0 %v1648, 8
  %v1841 = vpop.permute.xlu0 %1840
  %1842 = vrot.lane.b32.xlu0 %v1649, 8
  %v1843 = vpop.permute.xlu0 %1842
  %1844 = vrot.lane.b32.xlu0 %v1650, 8
  %v1845 = vpop.permute.xlu0 %1844
  %1846 = vrot.lane.b32.xlu0 %v1651, 8
  %v1847 = vpop.permute.xlu0 %1846
  %1848 = vrot.lane.b32.xlu0 %v1652, 8
  %v1849 = vpop.permute.xlu0 %1848
  %1850 = vrot.lane.b32.xlu0 %v1653, 8
  %v1851 = vpop.permute.xlu0 %1850
  %1852 = vrot.lane.b32.xlu0 %v1654, 8
  %v1853 = vpop.permute.xlu0 %1852
  %1854 = vrot.lane.b32.xlu0 %v1655, 8
  %v1855 = vpop.permute.xlu0 %1854
  %1856 = vrot.lane.b32.xlu0 %v1656, 8
  %v1857 = vpop.permute.xlu0 %1856
  %1858 = vrot.lane.b32.xlu0 %v1657, 8
  %v1859 = vpop.permute.xlu0 %1858
  %1860 = vrot.lane.b32.xlu0 %v1658, 8
  %v1861 = vpop.permute.xlu0 %1860
  %1862 = vrot.lane.b32.xlu0 %v1659, 8
  %v1863 = vpop.permute.xlu0 %1862
  %1864 = vrot.lane.b32.xlu0 %v1660, 8
  %v1865 = vpop.permute.xlu0 %1864
  %1866 = vrot.lane.b32.xlu0 %v1661, 8
  %v1867 = vpop.permute.xlu0 %1866
  %1868 = vrot.lane.b32.xlu0 %v1662, 8
  %v1869 = vpop.permute.xlu0 %1868
  %1870 = vrot.lane.b32.xlu0 %v1663, 8
  %v1871 = vpop.permute.xlu0 %1870
  %1872 = vrot.lane.b32.xlu0 %v1664, 8
  %v1873 = vpop.permute.xlu0 %1872
  %1874 = vrot.lane.b32.xlu0 %v1665, 8
  %v1875 = vpop.permute.xlu0 %1874
  %1876 = vrot.lane.b32.xlu0 %v1666, 8
  %v1877 = vpop.permute.xlu0 %1876
  %1878 = vrot.lane.b32.xlu0 %v1667, 8
  %v1879 = vpop.permute.xlu0 %1878
  %1880 = vrot.lane.b32.xlu0 %v1668, 8
  %v1881 = vpop.permute.xlu0 %1880
  %1882 = vrot.lane.b32.xlu0 %v1669, 8
  %v1883 = vpop.permute.xlu0 %1882
  %1884 = vrot.lane.b32.xlu0 %v1670, 8
  %v1885 = vpop.permute.xlu0 %1884
  %1886 = vrot.lane.b32.xlu0 %v1671, 8
  %v1887 = vpop.permute.xlu0 %1886
  %1888 = vrot.lane.b32.xlu0 %v1672, 8
  %v1889 = vpop.permute.xlu0 %1888
  %1890 = vrot.lane.b32.xlu0 %v1673, 8
  %v1891 = vpop.permute.xlu0 %1890
  %1892 = vrot.lane.b32.xlu0 %v1674, 8
  %v1893 = vpop.permute.xlu0 %1892
  %1894 = vrot.lane.b32.xlu0 %v1675, 8
  %v1895 = vpop.permute.xlu0 %1894
  %1896 = vrot.lane.b32.xlu0 %v1676, 8
  %v1897 = vpop.permute.xlu0 %1896
  %1898 = vrot.lane.b32.xlu0 %v1677, 8
  %v1899 = vpop.permute.xlu0 %1898
  %1900 = vrot.lane.b32.xlu0 %v1678, 8
  %v1901 = vpop.permute.xlu0 %1900
  %1902 = vrot.lane.b32.xlu0 %v1679, 8
  %v1903 = vpop.permute.xlu0 %1902
  %1904 = vrot.lane.b32.xlu0 %v1680, 8
  %v1905 = vpop.permute.xlu0 %1904
  %1906 = vrot.lane.b32.xlu0 %v1681, 8
  %v1907 = vpop.permute.xlu0 %1906
  %1908 = vrot.lane.b32.xlu0 %v1682, 8
  %v1909 = vpop.permute.xlu0 %1908
  %1910 = vrot.lane.b32.xlu0 %v1683, 8
  %v1911 = vpop.permute.xlu0 %1910
  %1912 = vrot.lane.b32.xlu0 %v1684, 8
  %v1913 = vpop.permute.xlu0 %1912
  %1914 = vrot.lane.b32.xlu0 %v1685, 8
  %v1915 = vpop.permute.xlu0 %1914
  %1916 = vrot.lane.b32.xlu0 %v1686, 8
  %v1917 = vpop.permute.xlu0 %1916
  %1918 = vrot.lane.b32.xlu0 %v1687, 8
  %v1919 = vpop.permute.xlu0 %1918
  %1920 = vrot.lane.b32.xlu0 %v1688, 8
  %v1921 = vpop.permute.xlu0 %1920
  %1922 = vrot.lane.b32.xlu0 %v1689, 8
  %v1923 = vpop.permute.xlu0 %1922
  %1924 = vrot.lane.b32.xlu0 %v1690, 8
  %v1925 = vpop.permute.xlu0 %1924
  %1926 = vrot.lane.b32.xlu0 %v1691, 8
  %v1927 = vpop.permute.xlu0 %1926
  %1928 = vrot.lane.b32.xlu0 %v1692, 8
  %v1929 = vpop.permute.xlu0 %1928
  %1930 = vrot.lane.b32.xlu0 %v1693, 8
  %v1931 = vpop.permute.xlu0 %1930
  %1932 = vrot.lane.b32.xlu0 %v1694, 8
  %v1933 = vpop.permute.xlu0 %1932
  %1934 = vrot.lane.b32.xlu0 %v1695, 8
  %v1935 = vpop.permute.xlu0 %1934
  %2056 = vrot.lane.b32.xlu0 %v1696, 16
  %v2057 = vpop.permute.xlu0 %2056
  %2058 = vrot.lane.b32.xlu0 %v1697, 16
  %v2059 = vpop.permute.xlu0 %2058
  %2060 = vrot.lane.b32.xlu0 %v1698, 16
  %v2061 = vpop.permute.xlu0 %2060
  %2062 = vrot.lane.b32.xlu0 %v1699, 16
  %v2063 = vpop.permute.xlu0 %2062
  %2064 = vrot.lane.b32.xlu0 %v1700, 16
  %v2065 = vpop.permute.xlu0 %2064
  %2066 = vrot.lane.b32.xlu0 %v1701, 16
  %v2067 = vpop.permute.xlu0 %2066
  %2068 = vrot.lane.b32.xlu0 %v1702, 16
  %v2069 = vpop.permute.xlu0 %2068
  %2070 = vrot.lane.b32.xlu0 %v1703, 16
  %v2071 = vpop.permute.xlu0 %2070
  %2072 = vrot.lane.b32.xlu0 %v1704, 16
  %v2073 = vpop.permute.xlu0 %2072
  %2074 = vrot.lane.b32.xlu0 %v1705, 16
  %v2075 = vpop.permute.xlu0 %2074
  %2076 = vrot.lane.b32.xlu0 %v1706, 16
  %v2077 = vpop.permute.xlu0 %2076
  %2078 = vrot.lane.b32.xlu0 %v1707, 16
  %v2079 = vpop.permute.xlu0 %2078
  %2080 = vrot.lane.b32.xlu0 %v1708, 16
  %v2081 = vpop.permute.xlu0 %2080
  %2082 = vrot.lane.b32.xlu0 %v1709, 16
  %v2083 = vpop.permute.xlu0 %2082
  %2084 = vrot.lane.b32.xlu0 %v1710, 16
  %v2085 = vpop.permute.xlu0 %2084
  %2086 = vrot.lane.b32.xlu0 %v1711, 16
  %v2087 = vpop.permute.xlu0 %2086
  %2088 = vrot.lane.b32.xlu0 %v1712, 16
  %v2089 = vpop.permute.xlu0 %2088
  %2090 = vrot.lane.b32.xlu0 %v1713, 16
  %v2091 = vpop.permute.xlu0 %2090
  %2092 = vrot.lane.b32.xlu0 %v1714, 16
  %v2093 = vpop.permute.xlu0 %2092
  %2094 = vrot.lane.b32.xlu0 %v1715, 16
  %v2095 = vpop.permute.xlu0 %2094
  %2096 = vrot.lane.b32.xlu0 %v1716, 16
  %v2097 = vpop.permute.xlu0 %2096
  %2098 = vrot.lane.b32.xlu0 %v1717, 16
  %v2099 = vpop.permute.xlu0 %2098
  %2100 = vrot.lane.b32.xlu0 %v1718, 16
  %v2101 = vpop.permute.xlu0 %2100
  %2102 = vrot.lane.b32.xlu0 %v1719, 16
  %v2103 = vpop.permute.xlu0 %2102
  %2104 = vrot.lane.b32.xlu0 %v1720, 16
  %v2105 = vpop.permute.xlu0 %2104
  %2106 = vrot.lane.b32.xlu0 %v1721, 16
  %v2107 = vpop.permute.xlu0 %2106
  %2108 = vrot.lane.b32.xlu0 %v1722, 16
  %v2109 = vpop.permute.xlu0 %2108
  %2110 = vrot.lane.b32.xlu0 %v1723, 16
  %v2111 = vpop.permute.xlu0 %2110
  %2112 = vrot.lane.b32.xlu0 %v1724, 16
  %v2113 = vpop.permute.xlu0 %2112
  %2114 = vrot.lane.b32.xlu0 %v1725, 16
  %v2115 = vpop.permute.xlu0 %2114
  %2116 = vrot.lane.b32.xlu0 %v1726, 16
  %v2117 = vpop.permute.xlu0 %2116
  %2118 = vrot.lane.b32.xlu0 %v1727, 16
  %v2119 = vpop.permute.xlu0 %2118
  %2120 = vrot.lane.b32.xlu0 %v1728, 16
  %v2121 = vpop.permute.xlu0 %2120
  %2122 = vrot.lane.b32.xlu0 %v1729, 16
  %v2123 = vpop.permute.xlu0 %2122
  %2124 = vrot.lane.b32.xlu0 %v1730, 16
  %v2125 = vpop.permute.xlu0 %2124
  %2126 = vrot.lane.b32.xlu0 %v1731, 16
  %v2127 = vpop.permute.xlu0 %2126
  %2128 = vrot.lane.b32.xlu0 %v1732, 16
  %v2129 = vpop.permute.xlu0 %2128
  %2130 = vrot.lane.b32.xlu0 %v1733, 16
  %v2131 = vpop.permute.xlu0 %2130
  %2132 = vrot.lane.b32.xlu0 %v1734, 16
  %v2133 = vpop.permute.xlu0 %2132
  %2134 = vrot.lane.b32.xlu0 %v1735, 16
  %v2135 = vpop.permute.xlu0 %2134
  %2136 = vrot.lane.b32.xlu0 %v1736, 16
  %v2137 = vpop.permute.xlu0 %2136
  %2138 = vrot.lane.b32.xlu0 %v1737, 16
  %v2139 = vpop.permute.xlu0 %2138
  %2140 = vrot.lane.b32.xlu0 %v1738, 16
  %v2141 = vpop.permute.xlu0 %2140
  %2142 = vrot.lane.b32.xlu0 %v1739, 16
  %v2143 = vpop.permute.xlu0 %2142
  %2144 = vrot.lane.b32.xlu0 %v1740, 16
  %v2145 = vpop.permute.xlu0 %2144
  %2146 = vrot.lane.b32.xlu0 %v1741, 16
  %v2147 = vpop.permute.xlu0 %2146
  %2148 = vrot.lane.b32.xlu0 %v1742, 16
  %v2149 = vpop.permute.xlu0 %2148
  %2150 = vrot.lane.b32.xlu0 %v1743, 16
  %v2151 = vpop.permute.xlu0 %2150
  %2152 = vrot.lane.b32.xlu0 %v1744, 16
  %v2153 = vpop.permute.xlu0 %2152
  %2154 = vrot.lane.b32.xlu0 %v1745, 16
  %v2155 = vpop.permute.xlu0 %2154
  %2156 = vrot.lane.b32.xlu0 %v1746, 16
  %v2157 = vpop.permute.xlu0 %2156
  %2158 = vrot.lane.b32.xlu0 %v1747, 16
  %v2159 = vpop.permute.xlu0 %2158
  %2160 = vrot.lane.b32.xlu0 %v1748, 16
  %v2161 = vpop.permute.xlu0 %2160
  %2162 = vrot.lane.b32.xlu0 %v1749, 16
  %v2163 = vpop.permute.xlu0 %2162
  %2164 = vrot.lane.b32.xlu0 %v1750, 16
  %v2165 = vpop.permute.xlu0 %2164
  %2166 = vrot.lane.b32.xlu0 %v1751, 16
  %v2167 = vpop.permute.xlu0 %2166
  %2168 = vrot.lane.b32.xlu0 %v1752, 16
  %v2169 = vpop.permute.xlu0 %2168
  %2170 = vrot.lane.b32.xlu0 %v1753, 16
  %v2171 = vpop.permute.xlu0 %2170
  %2172 = vrot.lane.b32.xlu0 %v1754, 16
  %v2173 = vpop.permute.xlu0 %2172
  %2174 = vrot.lane.b32.xlu0 %v1755, 16
  %v2175 = vpop.permute.xlu0 %2174
  %v2236 = vsel %vm124, %v1576, %v1817
  %v2237 = vsel %vm124, %v1577, %v1819
  %v2238 = vsel %vm124, %v1578, %v1821
  %v2239 = vsel %vm124, %v1579, %v1823
  %v2240 = vsel %vm124, %v1580, %v1825
  %v2241 = vsel %vm124, %v1581, %v1827
  %v2242 = vsel %vm124, %v1582, %v1829
  %v2243 = vsel %vm124, %v1583, %v1831
  %v2244 = vsel %vm124, %v1584, %v1833
  %v2245 = vsel %vm124, %v1585, %v1835
  %v2246 = vsel %vm124, %v1586, %v1837
  %v2247 = vsel %vm124, %v1587, %v1839
  %v2248 = vsel %vm124, %v1588, %v1841
  %v2249 = vsel %vm124, %v1589, %v1843
  %v2250 = vsel %vm124, %v1590, %v1845
  %v2251 = vsel %vm124, %v1591, %v1847
  %v2252 = vsel %vm124, %v1592, %v1849
  %v2253 = vsel %vm124, %v1593, %v1851
  %v2254 = vsel %vm124, %v1594, %v1853
  %v2255 = vsel %vm124, %v1595, %v1855
  %v2256 = vsel %vm124, %v1596, %v1857
  %v2257 = vsel %vm124, %v1597, %v1859
  %v2258 = vsel %vm124, %v1598, %v1861
  %v2259 = vsel %vm124, %v1599, %v1863
  %v2260 = vsel %vm124, %v1600, %v1865
  %v2261 = vsel %vm124, %v1601, %v1867
  %v2262 = vsel %vm124, %v1602, %v1869
  %v2263 = vsel %vm124, %v1603, %v1871
  %v2264 = vsel %vm124, %v1604, %v1873
  %v2265 = vsel %vm124, %v1605, %v1875
  %v2266 = vsel %vm124, %v1606, %v1877
  %v2267 = vsel %vm124, %v1607, %v1879
  %v2268 = vsel %vm124, %v1608, %v1881
  %v2269 = vsel %vm124, %v1609, %v1883
  %v2270 = vsel %vm124, %v1610, %v1885
  %v2271 = vsel %vm124, %v1611, %v1887
  %v2272 = vsel %vm124, %v1612, %v1889
  %v2273 = vsel %vm124, %v1613, %v1891
  %v2274 = vsel %vm124, %v1614, %v1893
  %v2275 = vsel %vm124, %v1615, %v1895
  %v2276 = vsel %vm124, %v1616, %v1897
  %v2277 = vsel %vm124, %v1617, %v1899
  %v2278 = vsel %vm124, %v1618, %v1901
  %v2279 = vsel %vm124, %v1619, %v1903
  %v2280 = vsel %vm124, %v1620, %v1905
  %v2281 = vsel %vm124, %v1621, %v1907
  %v2282 = vsel %vm124, %v1622, %v1909
  %v2283 = vsel %vm124, %v1623, %v1911
  %v2284 = vsel %vm124, %v1624, %v1913
  %v2285 = vsel %vm124, %v1625, %v1915
  %v2286 = vsel %vm124, %v1626, %v1917
  %v2287 = vsel %vm124, %v1627, %v1919
  %v2288 = vsel %vm124, %v1628, %v1921
  %v2289 = vsel %vm124, %v1629, %v1923
  %v2290 = vsel %vm124, %v1630, %v1925
  %v2291 = vsel %vm124, %v1631, %v1927
  %v2292 = vsel %vm124, %v1632, %v1929
  %v2293 = vsel %vm124, %v1633, %v1931
  %v2294 = vsel %vm124, %v1634, %v1933
  %v2295 = vsel %vm124, %v1635, %v1935
  %vm2296 = vcmask 130048
  %v2297 = vsel %vm2296, %v2236, %v2057
  %v2298 = vsel %vm2296, %v2237, %v2059
  %v2299 = vsel %vm2296, %v2238, %v2061
  %v2300 = vsel %vm2296, %v2239, %v2063
  %v2301 = vsel %vm2296, %v2240, %v2065
  %v2302 = vsel %vm2296, %v2241, %v2067
  %v2303 = vsel %vm2296, %v2242, %v2069
  %v2304 = vsel %vm2296, %v2243, %v2071
  %v2305 = vsel %vm2296, %v2244, %v2073
  %v2306 = vsel %vm2296, %v2245, %v2075
  %v2307 = vsel %vm2296, %v2246, %v2077
  %v2308 = vsel %vm2296, %v2247, %v2079
  %v2309 = vsel %vm2296, %v2248, %v2081
  %v2310 = vsel %vm2296, %v2249, %v2083
  %v2311 = vsel %vm2296, %v2250, %v2085
  %v2312 = vsel %vm2296, %v2251, %v2087
  %v2313 = vsel %vm2296, %v2252, %v2089
  %v2314 = vsel %vm2296, %v2253, %v2091
  %v2315 = vsel %vm2296, %v2254, %v2093
  %v2316 = vsel %vm2296, %v2255, %v2095
  %v2317 = vsel %vm2296, %v2256, %v2097
  %v2318 = vsel %vm2296, %v2257, %v2099
  %v2319 = vsel %vm2296, %v2258, %v2101
  %v2320 = vsel %vm2296, %v2259, %v2103
  %v2321 = vsel %vm2296, %v2260, %v2105
  %v2322 = vsel %vm2296, %v2261, %v2107
  %v2323 = vsel %vm2296, %v2262, %v2109
  %v2324 = vsel %vm2296, %v2263, %v2111
  %v2325 = vsel %vm2296, %v2264, %v2113
  %v2326 = vsel %vm2296, %v2265, %v2115
  %v2327 = vsel %vm2296, %v2266, %v2117
  %v2328 = vsel %vm2296, %v2267, %v2119
  %v2329 = vsel %vm2296, %v2268, %v2121
  %v2330 = vsel %vm2296, %v2269, %v2123
  %v2331 = vsel %vm2296, %v2270, %v2125
  %v2332 = vsel %vm2296, %v2271, %v2127
  %v2333 = vsel %vm2296, %v2272, %v2129
  %v2334 = vsel %vm2296, %v2273, %v2131
  %v2335 = vsel %vm2296, %v2274, %v2133
  %v2336 = vsel %vm2296, %v2275, %v2135
  %v2337 = vsel %vm2296, %v2276, %v2137
  %v2338 = vsel %vm2296, %v2277, %v2139
  %v2339 = vsel %vm2296, %v2278, %v2141
  %v2340 = vsel %vm2296, %v2279, %v2143
  %v2341 = vsel %vm2296, %v2280, %v2145
  %v2342 = vsel %vm2296, %v2281, %v2147
  %v2343 = vsel %vm2296, %v2282, %v2149
  %v2344 = vsel %vm2296, %v2283, %v2151
  %v2345 = vsel %vm2296, %v2284, %v2153
  %v2346 = vsel %vm2296, %v2285, %v2155
  %v2347 = vsel %vm2296, %v2286, %v2157
  %v2348 = vsel %vm2296, %v2287, %v2159
  %v2349 = vsel %vm2296, %v2288, %v2161
  %v2350 = vsel %vm2296, %v2289, %v2163
  %v2351 = vsel %vm2296, %v2290, %v2165
  %v2352 = vsel %vm2296, %v2291, %v2167
  %v2353 = vsel %vm2296, %v2292, %v2169
  %v2354 = vsel %vm2296, %v2293, %v2171
  %v2355 = vsel %vm2296, %v2294, %v2173
  %v2356 = vsel %vm2296, %v2295, %v2175
  %2411 = vrot.lane.b32.xlu0 %v2300, 24
  %v2412 = vpop.permute.xlu0 %2411
  %2413 = vrot.lane.b32.xlu0 %v2301, 24
  %v2414 = vpop.permute.xlu0 %2413
  %2415 = vrot.lane.b32.xlu0 %v2302, 24
  %v2416 = vpop.permute.xlu0 %2415
  %2417 = vrot.lane.b32.xlu0 %v2303, 24
  %v2418 = vpop.permute.xlu0 %2417
  %2419 = vrot.lane.b32.xlu0 %v2304, 24
  %v2420 = vpop.permute.xlu0 %2419
  %2421 = vrot.lane.b32.xlu0 %v2305, 24
  %v2422 = vpop.permute.xlu0 %2421
  %2423 = vrot.lane.b32.xlu0 %v2306, 24
  %v2424 = vpop.permute.xlu0 %2423
  %2425 = vrot.lane.b32.xlu0 %v2307, 24
  %v2426 = vpop.permute.xlu0 %2425
  %2427 = vrot.lane.b32.xlu0 %v2308, 24
  %v2428 = vpop.permute.xlu0 %2427
  %2429 = vrot.lane.b32.xlu0 %v2309, 24
  %v2430 = vpop.permute.xlu0 %2429
  %2431 = vrot.lane.b32.xlu0 %v2310, 24
  %v2432 = vpop.permute.xlu0 %2431
  %2433 = vrot.lane.b32.xlu0 %v2311, 24
  %v2434 = vpop.permute.xlu0 %2433
  %2435 = vrot.lane.b32.xlu0 %v2312, 24
  %v2436 = vpop.permute.xlu0 %2435
  %2437 = vrot.lane.b32.xlu0 %v2313, 24
  %v2438 = vpop.permute.xlu0 %2437
  %2439 = vrot.lane.b32.xlu0 %v2314, 24
  %v2440 = vpop.permute.xlu0 %2439
  %2441 = vrot.lane.b32.xlu0 %v2315, 24
  %v2442 = vpop.permute.xlu0 %2441
  %2443 = vrot.lane.b32.xlu0 %v2316, 24
  %v2444 = vpop.permute.xlu0 %2443
  %2445 = vrot.lane.b32.xlu0 %v2317, 24
  %v2446 = vpop.permute.xlu0 %2445
  %2447 = vrot.lane.b32.xlu0 %v2318, 24
  %v2448 = vpop.permute.xlu0 %2447
  %2449 = vrot.lane.b32.xlu0 %v2319, 24
  %v2450 = vpop.permute.xlu0 %2449
  %2451 = vrot.lane.b32.xlu0 %v2320, 24
  %v2452 = vpop.permute.xlu0 %2451
  %2453 = vrot.lane.b32.xlu0 %v2321, 24
  %v2454 = vpop.permute.xlu0 %2453
  %2455 = vrot.lane.b32.xlu0 %v2322, 24
  %v2456 = vpop.permute.xlu0 %2455
  %2457 = vrot.lane.b32.xlu0 %v2323, 24
  %v2458 = vpop.permute.xlu0 %2457
  %2459 = vrot.lane.b32.xlu0 %v2324, 24
  %v2460 = vpop.permute.xlu0 %2459
  %2461 = vrot.lane.b32.xlu0 %v2325, 24
  %v2462 = vpop.permute.xlu0 %2461
  %2463 = vrot.lane.b32.xlu0 %v2326, 24
  %v2464 = vpop.permute.xlu0 %2463
  %2465 = vrot.lane.b32.xlu0 %v2327, 24
  %v2466 = vpop.permute.xlu0 %2465
  %2467 = vrot.lane.b32.xlu0 %v2328, 24
  %v2468 = vpop.permute.xlu0 %2467
  %2469 = vrot.lane.b32.xlu0 %v2329, 24
  %v2470 = vpop.permute.xlu0 %2469
  %2471 = vrot.lane.b32.xlu0 %v2330, 24
  %v2472 = vpop.permute.xlu0 %2471
  %2473 = vrot.lane.b32.xlu0 %v2331, 24
  %v2474 = vpop.permute.xlu0 %2473
  %2475 = vrot.lane.b32.xlu0 %v2332, 24
  %v2476 = vpop.permute.xlu0 %2475
  %2477 = vrot.lane.b32.xlu0 %v2333, 24
  %v2478 = vpop.permute.xlu0 %2477
  %2479 = vrot.lane.b32.xlu0 %v2334, 24
  %v2480 = vpop.permute.xlu0 %2479
  %2481 = vrot.lane.b32.xlu0 %v2335, 24
  %v2482 = vpop.permute.xlu0 %2481
  %2483 = vrot.lane.b32.xlu0 %v2336, 24
  %v2484 = vpop.permute.xlu0 %2483
  %2485 = vrot.lane.b32.xlu0 %v2337, 24
  %v2486 = vpop.permute.xlu0 %2485
  %2487 = vrot.lane.b32.xlu0 %v2338, 24
  %v2488 = vpop.permute.xlu0 %2487
  %2489 = vrot.lane.b32.xlu0 %v2339, 24
  %v2490 = vpop.permute.xlu0 %2489
  %2491 = vrot.lane.b32.xlu0 %v2340, 24
  %v2492 = vpop.permute.xlu0 %2491
  %2493 = vrot.lane.b32.xlu0 %v2341, 24
  %v2494 = vpop.permute.xlu0 %2493
  %2495 = vrot.lane.b32.xlu0 %v2342, 24
  %v2496 = vpop.permute.xlu0 %2495
  %2497 = vrot.lane.b32.xlu0 %v2343, 24
  %v2498 = vpop.permute.xlu0 %2497
  %2499 = vrot.lane.b32.xlu0 %v2344, 24
  %v2500 = vpop.permute.xlu0 %2499
  %2501 = vrot.lane.b32.xlu0 %v2345, 24
  %v2502 = vpop.permute.xlu0 %2501
  %2503 = vrot.lane.b32.xlu0 %v2346, 24
  %v2504 = vpop.permute.xlu0 %2503
  %2505 = vrot.lane.b32.xlu0 %v2347, 24
  %v2506 = vpop.permute.xlu0 %2505
  %2507 = vrot.lane.b32.xlu0 %v2348, 24
  %v2508 = vpop.permute.xlu0 %2507
  %2509 = vrot.lane.b32.xlu0 %v2349, 24
  %v2510 = vpop.permute.xlu0 %2509
  %2511 = vrot.lane.b32.xlu0 %v2350, 24
  %v2512 = vpop.permute.xlu0 %2511
  %2513 = vrot.lane.b32.xlu0 %v2351, 24
  %v2514 = vpop.permute.xlu0 %2513
  %2515 = vrot.lane.b32.xlu0 %v2352, 24
  %v2516 = vpop.permute.xlu0 %2515
  %2517 = vrot.lane.b32.xlu0 %v2353, 24
  %v2518 = vpop.permute.xlu0 %2517
  %2576 = vrot.lane.b32.xlu0 %v2303, 48
  %v2577 = vpop.permute.xlu0 %2576
  %2578 = vrot.lane.b32.xlu0 %v2304, 48
  %v2579 = vpop.permute.xlu0 %2578
  %2580 = vrot.lane.b32.xlu0 %v2305, 48
  %v2581 = vpop.permute.xlu0 %2580
  %2582 = vrot.lane.b32.xlu0 %v2306, 48
  %v2583 = vpop.permute.xlu0 %2582
  %2584 = vrot.lane.b32.xlu0 %v2307, 48
  %v2585 = vpop.permute.xlu0 %2584
  %2586 = vrot.lane.b32.xlu0 %v2308, 48
  %v2587 = vpop.permute.xlu0 %2586
  %2588 = vrot.lane.b32.xlu0 %v2309, 48
  %v2589 = vpop.permute.xlu0 %2588
  %2590 = vrot.lane.b32.xlu0 %v2310, 48
  %v2591 = vpop.permute.xlu0 %2590
  %2592 = vrot.lane.b32.xlu0 %v2311, 48
  %v2593 = vpop.permute.xlu0 %2592
  %2594 = vrot.lane.b32.xlu0 %v2312, 48
  %v2595 = vpop.permute.xlu0 %2594
  %2596 = vrot.lane.b32.xlu0 %v2313, 48
  %v2597 = vpop.permute.xlu0 %2596
  %2598 = vrot.lane.b32.xlu0 %v2314, 48
  %v2599 = vpop.permute.xlu0 %2598
  %2600 = vrot.lane.b32.xlu0 %v2315, 48
  %v2601 = vpop.permute.xlu0 %2600
  %2602 = vrot.lane.b32.xlu0 %v2316, 48
  %v2603 = vpop.permute.xlu0 %2602
  %2604 = vrot.lane.b32.xlu0 %v2317, 48
  %v2605 = vpop.permute.xlu0 %2604
  %2606 = vrot.lane.b32.xlu0 %v2318, 48
  %v2607 = vpop.permute.xlu0 %2606
  %2608 = vrot.lane.b32.xlu0 %v2319, 48
  %v2609 = vpop.permute.xlu0 %2608
  %2610 = vrot.lane.b32.xlu0 %v2320, 48
  %v2611 = vpop.permute.xlu0 %2610
  %2612 = vrot.lane.b32.xlu0 %v2321, 48
  %v2613 = vpop.permute.xlu0 %2612
  %2614 = vrot.lane.b32.xlu0 %v2322, 48
  %v2615 = vpop.permute.xlu0 %2614
  %2616 = vrot.lane.b32.xlu0 %v2323, 48
  %v2617 = vpop.permute.xlu0 %2616
  %2618 = vrot.lane.b32.xlu0 %v2324, 48
  %v2619 = vpop.permute.xlu0 %2618
  %2620 = vrot.lane.b32.xlu0 %v2325, 48
  %v2621 = vpop.permute.xlu0 %2620
  %2622 = vrot.lane.b32.xlu0 %v2326, 48
  %v2623 = vpop.permute.xlu0 %2622
  %2624 = vrot.lane.b32.xlu0 %v2327, 48
  %v2625 = vpop.permute.xlu0 %2624
  %2626 = vrot.lane.b32.xlu0 %v2328, 48
  %v2627 = vpop.permute.xlu0 %2626
  %2628 = vrot.lane.b32.xlu0 %v2329, 48
  %v2629 = vpop.permute.xlu0 %2628
  %2630 = vrot.lane.b32.xlu0 %v2330, 48
  %v2631 = vpop.permute.xlu0 %2630
  %2632 = vrot.lane.b32.xlu0 %v2331, 48
  %v2633 = vpop.permute.xlu0 %2632
  %2634 = vrot.lane.b32.xlu0 %v2332, 48
  %v2635 = vpop.permute.xlu0 %2634
  %2636 = vrot.lane.b32.xlu0 %v2333, 48
  %v2637 = vpop.permute.xlu0 %2636
  %2638 = vrot.lane.b32.xlu0 %v2334, 48
  %v2639 = vpop.permute.xlu0 %2638
  %2640 = vrot.lane.b32.xlu0 %v2335, 48
  %v2641 = vpop.permute.xlu0 %2640
  %2642 = vrot.lane.b32.xlu0 %v2336, 48
  %v2643 = vpop.permute.xlu0 %2642
  %2644 = vrot.lane.b32.xlu0 %v2337, 48
  %v2645 = vpop.permute.xlu0 %2644
  %2646 = vrot.lane.b32.xlu0 %v2338, 48
  %v2647 = vpop.permute.xlu0 %2646
  %2648 = vrot.lane.b32.xlu0 %v2339, 48
  %v2649 = vpop.permute.xlu0 %2648
  %2650 = vrot.lane.b32.xlu0 %v2340, 48
  %v2651 = vpop.permute.xlu0 %2650
  %2652 = vrot.lane.b32.xlu0 %v2341, 48
  %v2653 = vpop.permute.xlu0 %2652
  %2654 = vrot.lane.b32.xlu0 %v2342, 48
  %v2655 = vpop.permute.xlu0 %2654
  %2656 = vrot.lane.b32.xlu0 %v2343, 48
  %v2657 = vpop.permute.xlu0 %2656
  %2658 = vrot.lane.b32.xlu0 %v2344, 48
  %v2659 = vpop.permute.xlu0 %2658
  %2660 = vrot.lane.b32.xlu0 %v2345, 48
  %v2661 = vpop.permute.xlu0 %2660
  %2662 = vrot.lane.b32.xlu0 %v2346, 48
  %v2663 = vpop.permute.xlu0 %2662
  %2664 = vrot.lane.b32.xlu0 %v2347, 48
  %v2665 = vpop.permute.xlu0 %2664
  %2666 = vrot.lane.b32.xlu0 %v2348, 48
  %v2667 = vpop.permute.xlu0 %2666
  %2668 = vrot.lane.b32.xlu0 %v2349, 48
  %v2669 = vpop.permute.xlu0 %2668
  %2670 = vrot.lane.b32.xlu0 %v2350, 48
  %v2671 = vpop.permute.xlu0 %2670
  %2672 = vrot.lane.b32.xlu0 %v2351, 48
  %v2673 = vpop.permute.xlu0 %2672
  %2674 = vrot.lane.b32.xlu0 %v2352, 48
  %v2675 = vpop.permute.xlu0 %2674
  %2676 = vrot.lane.b32.xlu0 %v2353, 48
  %v2677 = vpop.permute.xlu0 %2676
  %2678 = vrot.lane.b32.xlu0 %v2354, 48
  %v2679 = vpop.permute.xlu0 %2678
  %2680 = vrot.lane.b32.xlu0 %v2355, 48
  %v2681 = vpop.permute.xlu0 %2680
  %2682 = vrot.lane.b32.xlu0 %v2356, 48
  %v2683 = vpop.permute.xlu0 %2682
  %v2738 = vsel %vm1078, %v2297, %v2412
  %v2739 = vsel %vm1078, %v2298, %v2414
  %v2740 = vsel %vm1078, %v2299, %v2416
  %v2741 = vsel %vm1078, %v2300, %v2418
  %v2742 = vsel %vm1078, %v2301, %v2420
  %v2743 = vsel %vm1078, %v2302, %v2422
  %v2744 = vsel %vm1078, %v2303, %v2424
  %v2745 = vsel %vm1078, %v2304, %v2426
  %v2746 = vsel %vm1078, %v2305, %v2428
  %v2747 = vsel %vm1078, %v2306, %v2430
  %v2748 = vsel %vm1078, %v2307, %v2432
  %v2749 = vsel %vm1078, %v2308, %v2434
  %v2750 = vsel %vm1078, %v2309, %v2436
  %v2751 = vsel %vm1078, %v2310, %v2438
  %v2752 = vsel %vm1078, %v2311, %v2440
  %v2753 = vsel %vm1078, %v2312, %v2442
  %v2754 = vsel %vm1078, %v2313, %v2444
  %v2755 = vsel %vm1078, %v2314, %v2446
  %v2756 = vsel %vm1078, %v2315, %v2448
  %v2757 = vsel %vm1078, %v2316, %v2450
  %v2758 = vsel %vm1078, %v2317, %v2452
  %v2759 = vsel %vm1078, %v2318, %v2454
  %v2760 = vsel %vm1078, %v2319, %v2456
  %v2761 = vsel %vm1078, %v2320, %v2458
  %v2762 = vsel %vm1078, %v2321, %v2460
  %v2763 = vsel %vm1078, %v2322, %v2462
  %v2764 = vsel %vm1078, %v2323, %v2464
  %v2765 = vsel %vm1078, %v2324, %v2466
  %v2766 = vsel %vm1078, %v2325, %v2468
  %v2767 = vsel %vm1078, %v2326, %v2470
  %v2768 = vsel %vm1078, %v2327, %v2472
  %v2769 = vsel %vm1078, %v2328, %v2474
  %v2770 = vsel %vm1078, %v2329, %v2476
  %v2771 = vsel %vm1078, %v2330, %v2478
  %v2772 = vsel %vm1078, %v2331, %v2480
  %v2773 = vsel %vm1078, %v2332, %v2482
  %v2774 = vsel %vm1078, %v2333, %v2484
  %v2775 = vsel %vm1078, %v2334, %v2486
  %v2776 = vsel %vm1078, %v2335, %v2488
  %v2777 = vsel %vm1078, %v2336, %v2490
  %v2778 = vsel %vm1078, %v2337, %v2492
  %v2779 = vsel %vm1078, %v2338, %v2494
  %v2780 = vsel %vm1078, %v2339, %v2496
  %v2781 = vsel %vm1078, %v2340, %v2498
  %v2782 = vsel %vm1078, %v2341, %v2500
  %v2783 = vsel %vm1078, %v2342, %v2502
  %v2784 = vsel %vm1078, %v2343, %v2504
  %v2785 = vsel %vm1078, %v2344, %v2506
  %v2786 = vsel %vm1078, %v2345, %v2508
  %v2787 = vsel %vm1078, %v2346, %v2510
  %v2788 = vsel %vm1078, %v2347, %v2512
  %v2789 = vsel %vm1078, %v2348, %v2514
  %v2790 = vsel %vm1078, %v2349, %v2516
  %v2791 = vsel %vm1078, %v2350, %v2518
  %vm2792 = vcmask 392192
  %v2793 = vsel %vm2792, %v2738, %v2577
  %v2794 = vsel %vm2792, %v2739, %v2579
  %v2795 = vsel %vm2792, %v2740, %v2581
  %v2796 = vsel %vm2792, %v2741, %v2583
  %v2797 = vsel %vm2792, %v2742, %v2585
  %v2798 = vsel %vm2792, %v2743, %v2587
  %v2799 = vsel %vm2792, %v2744, %v2589
  %v2800 = vsel %vm2792, %v2745, %v2591
  %v2801 = vsel %vm2792, %v2746, %v2593
  %v2802 = vsel %vm2792, %v2747, %v2595
  %v2803 = vsel %vm2792, %v2748, %v2597
  %v2804 = vsel %vm2792, %v2749, %v2599
  %v2805 = vsel %vm2792, %v2750, %v2601
  %v2806 = vsel %vm2792, %v2751, %v2603
  %v2807 = vsel %vm2792, %v2752, %v2605
  %v2808 = vsel %vm2792, %v2753, %v2607
  %v2809 = vsel %vm2792, %v2754, %v2609
  %v2810 = vsel %vm2792, %v2755, %v2611
  %v2811 = vsel %vm2792, %v2756, %v2613
  %v2812 = vsel %vm2792, %v2757, %v2615
  %v2813 = vsel %vm2792, %v2758, %v2617
  %v2814 = vsel %vm2792, %v2759, %v2619
  %v2815 = vsel %vm2792, %v2760, %v2621
  %v2816 = vsel %vm2792, %v2761, %v2623
  %v2817 = vsel %vm2792, %v2762, %v2625
  %v2818 = vsel %vm2792, %v2763, %v2627
  %v2819 = vsel %vm2792, %v2764, %v2629
  %v2820 = vsel %vm2792, %v2765, %v2631
  %v2821 = vsel %vm2792, %v2766, %v2633
  %v2822 = vsel %vm2792, %v2767, %v2635
  %v2823 = vsel %vm2792, %v2768, %v2637
  %v2824 = vsel %vm2792, %v2769, %v2639
  %v2825 = vsel %vm2792, %v2770, %v2641
  %v2826 = vsel %vm2792, %v2771, %v2643
  %v2827 = vsel %vm2792, %v2772, %v2645
  %v2828 = vsel %vm2792, %v2773, %v2647
  %v2829 = vsel %vm2792, %v2774, %v2649
  %v2830 = vsel %vm2792, %v2775, %v2651
  %v2831 = vsel %vm2792, %v2776, %v2653
  %v2832 = vsel %vm2792, %v2777, %v2655
  %v2833 = vsel %vm2792, %v2778, %v2657
  %v2834 = vsel %vm2792, %v2779, %v2659
  %v2835 = vsel %vm2792, %v2780, %v2661
  %v2836 = vsel %vm2792, %v2781, %v2663
  %v2837 = vsel %vm2792, %v2782, %v2665
  %v2838 = vsel %vm2792, %v2783, %v2667
  %v2839 = vsel %vm2792, %v2784, %v2669
  %v2840 = vsel %vm2792, %v2785, %v2671
  %v2841 = vsel %vm2792, %v2786, %v2673
  %v2842 = vsel %vm2792, %v2787, %v2675
  %v2843 = vsel %vm2792, %v2788, %v2677
  %v2844 = vsel %vm2792, %v2789, %v2679
  %v2845 = vsel %vm2792, %v2790, %v2681
  %v2846 = vsel %vm2792, %v2791, %v2683
  %s2847 = scalar_lea.vmem %s1, 72
  %v2848 = vld [vmem:[%s2847] sm:$0xff]
  %v2849 = vld [vmem:[%s2847 + $0x8] sm:$0xff]
  %v2850 = vld [vmem:[%s2847 + $0x10] sm:$0xff]
  %v2851 = vld [vmem:[%s2847 + $0x18] sm:$0xff]
  %v2852 = vld [vmem:[%s2847 + $0x20] sm:$0xff]
  %v2853 = vld [vmem:[%s2847 + $0x28] sm:$0xff]
  %v2854 = vld [vmem:[%s2847 + $0x30] sm:$0xff]
  %v2855 = vld [vmem:[%s2847 + $0x38] sm:$0xff]
  %v2856 = vld [vmem:[%s2847 + $0x40] sm:$0xff]
  %v2857 = vld [vmem:[%s2 + $0x1] sm:$0x1]
  %v2858 = vlaneseq
  %v2859 = vshrl.u32 %v2858, 7
  %v2860 = vsub.s32 0, %v2859
  %v2861 = vrot.slane %v2857, %v2860
  %vm2862 = vcmask 588800
  %v2864 = vsel %vm2862, %v2793, 0
  %v2867 = vsel %vm2862, %v2794, 0
  %v2870 = vsel %vm2862, %v2795, 0
  %v2873 = vsel %vm2862, %v2796, 0
  %v2876 = vsel %vm2862, %v2797, 0
  %v2879 = vsel %vm2862, %v2798, 0
  %v2882 = vsel %vm2862, %v2799, 0
  %v2885 = vsel %vm2862, %v2800, 0
  %v2888 = vsel %vm2862, %v2801, 0
  %v2891 = vsel %vm2862, %v2802, 0
  %v2894 = vsel %vm2862, %v2803, 0
  %v2897 = vsel %vm2862, %v2804, 0
  %v2900 = vsel %vm2862, %v2805, 0
  %v2903 = vsel %vm2862, %v2806, 0
  %v2906 = vsel %vm2862, %v2807, 0
  %v2909 = vsel %vm2862, %v2808, 0
  %v2912 = vsel %vm2862, %v2809, 0
  %v2915 = vsel %vm2862, %v2810, 0
  %v2918 = vsel %vm2862, %v2811, 0
  %v2921 = vsel %vm2862, %v2812, 0
  %v2924 = vsel %vm2862, %v2813, 0
  %v2927 = vsel %vm2862, %v2814, 0
  %v2930 = vsel %vm2862, %v2815, 0
  %v2933 = vsel %vm2862, %v2816, 0
  %v2936 = vsel %vm2862, %v2817, 0
  %v2939 = vsel %vm2862, %v2818, 0
  %v2942 = vsel %vm2862, %v2819, 0
  %v2945 = vsel %vm2862, %v2820, 0
  %v2948 = vsel %vm2862, %v2821, 0
  %v2951 = vsel %vm2862, %v2822, 0
  %v2954 = vsel %vm2862, %v2823, 0
  %v2957 = vsel %vm2862, %v2824, 0
  %v2960 = vsel %vm2862, %v2825, 0
  %v2963 = vsel %vm2862, %v2826, 0
  %v2966 = vsel %vm2862, %v2827, 0
  %v2969 = vsel %vm2862, %v2828, 0
  %v2972 = vsel %vm2862, %v2829, 0
  %v2975 = vsel %vm2862, %v2830, 0
  %v2978 = vsel %vm2862, %v2831, 0
  %v2981 = vsel %vm2862, %v2832, 0
  %v2984 = vsel %vm2862, %v2833, 0
  %v2987 = vsel %vm2862, %v2834, 0
  %v2990 = vsel %vm2862, %v2835, 0
  %v2993 = vsel %vm2862, %v2836, 0
  %v2996 = vsel %vm2862, %v2837, 0
  %v2999 = vsel %vm2862, %v2838, 0
  %v3002 = vsel %vm2862, %v2839, 0
  %v3005 = vsel %vm2862, %v2840, 0
  %v3008 = vsel %vm2862, %v2841, 0
  %v3011 = vsel %vm2862, %v2842, 0
  %v3014 = vsel %vm2862, %v2843, 0
  %v3017 = vsel %vm2862, %v2844, 0
  %v3020 = vsel %vm2862, %v2845, 0
  %v3023 = vsel %vm2862, %v2846, 0
  %3025 = vmatprep.subr.mxu0 0.0
  %3026 = vmatpush1.msra.mxu0 %v2848
  %3027 = vmatprep.subr.mxu0 0.0
  %3028 = vmatpush1.msra.mxu0 %v2849
  %3029 = vmatprep.subr.mxu0 0.0
  %3030 = vmatpush1.msra.mxu0 %v2850
  %3031 = vmatprep.subr.mxu0 0.0
  %3032 = vmatpush1.msra.mxu0 %v2851
  %3033 = vmatprep.subr.mxu0 0.0
  %3034 = vmatpush1.msra.mxu0 %v2852
  %3035 = vmatprep.subr.mxu0 0.0
  %3036 = vmatpush1.msra.mxu0 %v2853
  %3037 = vmatprep.subr.mxu0 0.0
  %3038 = vmatpush1.msra.mxu0 %v2854
  %3039 = vmatprep.subr.mxu0 0.0
  %3040 = vmatpush1.msra.mxu0 %v2855
  %3041 = vmatprep.subr.mxu0 0.0
  %3042 = vmatpush1.msra.mxu0 %v2856
  %3043 = vmatprep.subr.mxu0 0.0
  %3044 = vmatpush1.msra.mxu0 0.0
  %3045 = vmatprep.subr.mxu0 0.0
  %3046 = vmatpush1.msra.mxu0 0.0
  %3047 = vmatprep.subr.mxu0 0.0
  %3048 = vmatpush1.msra.mxu0 0.0
  %3049 = vmatprep.subr.mxu0 0.0
  %3050 = vmatpush1.msra.mxu0 0.0
  %3051 = vmatprep.subr.mxu0 0.0
  %3052 = vmatpush1.msra.mxu0 0.0
  %3053 = vmatprep.subr.mxu0 0.0
  %3054 = vmatpush1.msra.mxu0 0.0
  %3055 = vmatprep.subr.mxu0 0.0
  %3056 = vmatpush1.msra.mxu0 0.0
  %3057 = vmatprep.subr.mxu0 0.0
  %3058 = vmatpush1.msra.mxu0 0.0
  %3059 = vmatprep.subr.mxu0 0.0
  %3060 = vmatpush1.msra.mxu0 0.0
  %3061 = vmatprep.subr.mxu0 0.0
  %3062 = vmatpush1.msra.mxu0 0.0
  %3063 = vmatprep.subr.mxu0 0.0
  %3064 = vmatpush1.msra.mxu0 0.0
  %3065 = vmatprep.subr.mxu0 0.0
  %3066 = vmatpush1.msra.mxu0 0.0
  %3067 = vmatprep.subr.mxu0 0.0
  %3068 = vmatpush1.msra.mxu0 0.0
  %3069 = vmatprep.subr.mxu0 0.0
  %3070 = vmatpush1.msra.mxu0 0.0
  %3071 = vmatprep.subr.mxu0 0.0
  %3072 = vmatpush1.msra.mxu0 0.0
  %3073 = vmatprep.subr.mxu0 0.0
  %3074 = vmatpush1.msra.mxu0 0.0
  %3075 = vmatprep.subr.mxu0 0.0
  %3076 = vmatpush1.msra.mxu0 0.0
  %3077 = vmatprep.subr.mxu0 0.0
  %3078 = vmatpush1.msra.mxu0 0.0
  %3079 = vmatprep.subr.mxu0 0.0
  %3080 = vmatpush1.msra.mxu0 0.0
  %3081 = vmatprep.subr.mxu0 0.0
  %3082 = vmatpush1.msra.mxu0 0.0
  %3083 = vmatprep.subr.mxu0 0.0
  %3084 = vmatpush1.msra.mxu0 0.0
  %3085 = vmatprep.subr.mxu0 0.0
  %3086 = vmatpush1.msra.mxu0 0.0
  %3087 = vmatprep.subr.mxu0 0.0
  %3088 = vmatpush1.msra.mxu0 0.0
  %3089 = vmatprep.mubr.f32.mxu0 0.0
  %3090 = vmatmul.mubr.f32.gmra.mrb[0].mxu0 %v2864
  %v3091 = vpop.f32.mrb[0].mxu0
  %v3092 = vadd.f32 %v2861, %v3091
  %v3093 = vpop.f32.mrb[0].mxu0
  %3094 = vmatprep.mubr.f32.mxu0 0.0
  %3095 = vmatmul.mubr.f32.gmra.mrb[0].mxu0 %v2867
  %v3096 = vpop.f32.mrb[0].mxu0
  %v3097 = vadd.f32 %v2861, %v3096
  %v3098 = vpop.f32.mrb[0].mxu0
  %3099 = vmatprep.mubr.f32.mxu0 0.0
  %3100 = vmatmul.mubr.f32.gmra.mrb[0].mxu0 %v2870
  %v3101 = vpop.f32.mrb[0].mxu0
  %v3102 = vadd.f32 %v2861, %v3101
  %v3103 = vpop.f32.mrb[0].mxu0
  %3104 = vmatprep.mubr.f32.mxu0 0.0
  %3105 = vmatmul.mubr.f32.gmra.mrb[0].mxu0 %v2873
  %v3106 = vpop.f32.mrb[0].mxu0
  %v3107 = vadd.f32 %v2861, %v3106
  %v3108 = vpop.f32.mrb[0].mxu0
  %3109 = vmatprep.mubr.f32.mxu0 0.0
  %3110 = vmatmul.mubr.f32.gmra.mrb[0].mxu0 %v2876
  %v3111 = vpop.f32.mrb[0].mxu0
  %v3112 = vadd.f32 %v2861, %v3111
  %v3113 = vpop.f32.mrb[0].mxu0
  %3114 = vmatprep.mubr.f32.mxu0 0.0
  %3115 = vmatmul.mubr.f32.gmra.mrb[0].mxu0 %v2879
  %v3116 = vpop.f32.mrb[0].mxu0
  %v3117 = vadd.f32 %v2861, %v3116
  %v3118 = vpop.f32.mrb[0].mxu0
  %3119 = vmatprep.mubr.f32.mxu0 0.0
  %3120 = vmatmul.mubr.f32.gmra.mrb[0].mxu0 %v2882
  %v3121 = vpop.f32.mrb[0].mxu0
  %v3122 = vadd.f32 %v2861, %v3121
  %v3123 = vpop.f32.mrb[0].mxu0
  %3124 = vmatprep.mubr.f32.mxu0 0.0
  %3125 = vmatmul.mubr.f32.gmra.mrb[0].mxu0 %v2885
  %v3126 = vpop.f32.mrb[0].mxu0
  %v3127 = vadd.f32 %v2861, %v3126
  %v3128 = vpop.f32.mrb[0].mxu0
  %3129 = vmatprep.mubr.f32.mxu0 0.0
  %3130 = vmatmul.mubr.f32.gmra.mrb[0].mxu0 %v2888
  %v3131 = vpop.f32.mrb[0].mxu0
  %v3132 = vadd.f32 %v2861, %v3131
  %v3133 = vpop.f32.mrb[0].mxu0
  %3134 = vmatprep.mubr.f32.mxu0 0.0
  %3135 = vmatmul.mubr.f32.gmra.mrb[0].mxu0 %v2891
  %v3136 = vpop.f32.mrb[0].mxu0
  %v3137 = vadd.f32 %v2861, %v3136
  %v3138 = vpop.f32.mrb[0].mxu0
  %3139 = vmatprep.mubr.f32.mxu0 0.0
  %3140 = vmatmul.mubr.f32.gmra.mrb[0].mxu0 %v2894
  %v3141 = vpop.f32.mrb[0].mxu0
  %v3142 = vadd.f32 %v2861, %v3141
  %v3143 = vpop.f32.mrb[0].mxu0
  %3144 = vmatprep.mubr.f32.mxu0 0.0
  %3145 = vmatmul.mubr.f32.gmra.mrb[0].mxu0 %v2897
  %v3146 = vpop.f32.mrb[0].mxu0
  %v3147 = vadd.f32 %v2861, %v3146
  %v3148 = vpop.f32.mrb[0].mxu0
  %3149 = vmatprep.mubr.f32.mxu0 0.0
  %3150 = vmatmul.mubr.f32.gmra.mrb[0].mxu0 %v2900
  %v3151 = vpop.f32.mrb[0].mxu0
  %v3152 = vadd.f32 %v2861, %v3151
  %v3153 = vpop.f32.mrb[0].mxu0
  %3154 = vmatprep.mubr.f32.mxu0 0.0
  %3155 = vmatmul.mubr.f32.gmra.mrb[0].mxu0 %v2903
  %v3156 = vpop.f32.mrb[0].mxu0
  %v3157 = vadd.f32 %v2861, %v3156
  %v3158 = vpop.f32.mrb[0].mxu0
  %3159 = vmatprep.mubr.f32.mxu0 0.0
  %3160 = vmatmul.mubr.f32.gmra.mrb[0].mxu0 %v2906
  %v3161 = vpop.f32.mrb[0].mxu0
  %v3162 = vadd.f32 %v2861, %v3161
  %v3163 = vpop.f32.mrb[0].mxu0
  %3164 = vmatprep.mubr.f32.mxu0 0.0
  %3165 = vmatmul.mubr.f32.gmra.mrb[0].mxu0 %v2909
  %v3166 = vpop.f32.mrb[0].mxu0
  %v3167 = vadd.f32 %v2861, %v3166
  %v3168 = vpop.f32.mrb[0].mxu0
  %3169 = vmatprep.mubr.f32.mxu0 0.0
  %3170 = vmatmul.mubr.f32.gmra.mrb[0].mxu0 %v2912
  %v3171 = vpop.f32.mrb[0].mxu0
  %v3172 = vadd.f32 %v2861, %v3171
  %v3173 = vpop.f32.mrb[0].mxu0
  %3174 = vmatprep.mubr.f32.mxu0 0.0
  %3175 = vmatmul.mubr.f32.gmra.mrb[0].mxu0 %v2915
  %v3176 = vpop.f32.mrb[0].mxu0
  %v3177 = vadd.f32 %v2861, %v3176
  %v3178 = vpop.f32.mrb[0].mxu0
  %3179 = vmatprep.mubr.f32.mxu0 0.0
  %3180 = vmatmul.mubr.f32.gmra.mrb[0].mxu0 %v2918
  %v3181 = vpop.f32.mrb[0].mxu0
  %v3182 = vadd.f32 %v2861, %v3181
  %v3183 = vpop.f32.mrb[0].mxu0
  %3184 = vmatprep.mubr.f32.mxu0 0.0
  %3185 = vmatmul.mubr.f32.gmra.mrb[0].mxu0 %v2921
  %v3186 = vpop.f32.mrb[0].mxu0
  %v3187 = vadd.f32 %v2861, %v3186
  %v3188 = vpop.f32.mrb[0].mxu0
  %3189 = vmatprep.mubr.f32.mxu0 0.0
  %3190 = vmatmul.mubr.f32.gmra.mrb[0].mxu0 %v2924
  %v3191 = vpop.f32.mrb[0].mxu0
  %v3192 = vadd.f32 %v2861, %v3191
  %v3193 = vpop.f32.mrb[0].mxu0
  %3194 = vmatprep.mubr.f32.mxu0 0.0
  %3195 = vmatmul.mubr.f32.gmra.mrb[0].mxu0 %v2927
  %v3196 = vpop.f32.mrb[0].mxu0
  %v3197 = vadd.f32 %v2861, %v3196
  %v3198 = vpop.f32.mrb[0].mxu0
  %3199 = vmatprep.mubr.f32.mxu0 0.0
  %3200 = vmatmul.mubr.f32.gmra.mrb[0].mxu0 %v2930
  %v3201 = vpop.f32.mrb[0].mxu0
  %v3202 = vadd.f32 %v2861, %v3201
  %v3203 = vpop.f32.mrb[0].mxu0
  %3204 = vmatprep.mubr.f32.mxu0 0.0
  %3205 = vmatmul.mubr.f32.gmra.mrb[0].mxu0 %v2933
  %v3206 = vpop.f32.mrb[0].mxu0
  %v3207 = vadd.f32 %v2861, %v3206
  %v3208 = vpop.f32.mrb[0].mxu0
  %3209 = vmatprep.mubr.f32.mxu0 0.0
  %3210 = vmatmul.mubr.f32.gmra.mrb[0].mxu0 %v2936
  %v3211 = vpop.f32.mrb[0].mxu0
  %v3212 = vadd.f32 %v2861, %v3211
  %v3213 = vpop.f32.mrb[0].mxu0
  %3214 = vmatprep.mubr.f32.mxu0 0.0
  %3215 = vmatmul.mubr.f32.gmra.mrb[0].mxu0 %v2939
  %v3216 = vpop.f32.mrb[0].mxu0
  %v3217 = vadd.f32 %v2861, %v3216
  %v3218 = vpop.f32.mrb[0].mxu0
  %3219 = vmatprep.mubr.f32.mxu0 0.0
  %3220 = vmatmul.mubr.f32.gmra.mrb[0].mxu0 %v2942
  %v3221 = vpop.f32.mrb[0].mxu0
  %v3222 = vadd.f32 %v2861, %v3221
  %v3223 = vpop.f32.mrb[0].mxu0
  %3224 = vmatprep.mubr.f32.mxu0 0.0
  %3225 = vmatmul.mubr.f32.gmra.mrb[0].mxu0 %v2945
  %v3226 = vpop.f32.mrb[0].mxu0
  %v3227 = vadd.f32 %v2861, %v3226
  %v3228 = vpop.f32.mrb[0].mxu0
  %3229 = vmatprep.mubr.f32.mxu0 0.0
  %3230 = vmatmul.mubr.f32.gmra.mrb[0].mxu0 %v2948
  %v3231 = vpop.f32.mrb[0].mxu0
  %v3232 = vadd.f32 %v2861, %v3231
  %v3233 = vpop.f32.mrb[0].mxu0
  %3234 = vmatprep.mubr.f32.mxu0 0.0
  %3235 = vmatmul.mubr.f32.gmra.mrb[0].mxu0 %v2951
  %v3236 = vpop.f32.mrb[0].mxu0
  %v3237 = vadd.f32 %v2861, %v3236
  %v3238 = vpop.f32.mrb[0].mxu0
  %3239 = vmatprep.mubr.f32.mxu0 0.0
  %3240 = vmatmul.mubr.f32.gmra.mrb[0].mxu0 %v2954
  %v3241 = vpop.f32.mrb[0].mxu0
  %v3242 = vadd.f32 %v2861, %v3241
  %v3243 = vpop.f32.mrb[0].mxu0
  %3244 = vmatprep.mubr.f32.mxu0 0.0
  %3245 = vmatmul.mubr.f32.gmra.mrb[0].mxu0 %v2957
  %v3246 = vpop.f32.mrb[0].mxu0
  %v3247 = vadd.f32 %v2861, %v3246
  %v3248 = vpop.f32.mrb[0].mxu0
  %3249 = vmatprep.mubr.f32.mxu0 0.0
  %3250 = vmatmul.mubr.f32.gmra.mrb[0].mxu0 %v2960
  %v3251 = vpop.f32.mrb[0].mxu0
  %v3252 = vadd.f32 %v2861, %v3251
  %v3253 = vpop.f32.mrb[0].mxu0
  %3254 = vmatprep.mubr.f32.mxu0 0.0
  %3255 = vmatmul.mubr.f32.gmra.mrb[0].mxu0 %v2963
  %v3256 = vpop.f32.mrb[0].mxu0
  %v3257 = vadd.f32 %v2861, %v3256
  %v3258 = vpop.f32.mrb[0].mxu0
  %3259 = vmatprep.mubr.f32.mxu0 0.0
  %3260 = vmatmul.mubr.f32.gmra.mrb[0].mxu0 %v2966
  %v3261 = vpop.f32.mrb[0].mxu0
  %v3262 = vadd.f32 %v2861, %v3261
  %v3263 = vpop.f32.mrb[0].mxu0
  %3264 = vmatprep.mubr.f32.mxu0 0.0
  %3265 = vmatmul.mubr.f32.gmra.mrb[0].mxu0 %v2969
  %v3266 = vpop.f32.mrb[0].mxu0
  %v3267 = vadd.f32 %v2861, %v3266
  %v3268 = vpop.f32.mrb[0].mxu0
  %3269 = vmatprep.mubr.f32.mxu0 0.0
  %3270 = vmatmul.mubr.f32.gmra.mrb[0].mxu0 %v2972
  %v3271 = vpop.f32.mrb[0].mxu0
  %v3272 = vadd.f32 %v2861, %v3271
  %v3273 = vpop.f32.mrb[0].mxu0
  %3274 = vmatprep.mubr.f32.mxu0 0.0
  %3275 = vmatmul.mubr.f32.gmra.mrb[0].mxu0 %v2975
  %v3276 = vpop.f32.mrb[0].mxu0
  %v3277 = vadd.f32 %v2861, %v3276
  %v3278 = vpop.f32.mrb[0].mxu0
  %3279 = vmatprep.mubr.f32.mxu0 0.0
  %3280 = vmatmul.mubr.f32.gmra.mrb[0].mxu0 %v2978
  %v3281 = vpop.f32.mrb[0].mxu0
  %v3282 = vadd.f32 %v2861, %v3281
  %v3283 = vpop.f32.mrb[0].mxu0
  %3284 = vmatprep.mubr.f32.mxu0 0.0
  %3285 = vmatmul.mubr.f32.gmra.mrb[0].mxu0 %v2981
  %v3286 = vpop.f32.mrb[0].mxu0
  %v3287 = vadd.f32 %v2861, %v3286
  %v3288 = vpop.f32.mrb[0].mxu0
  %3289 = vmatprep.mubr.f32.mxu0 0.0
  %3290 = vmatmul.mubr.f32.gmra.mrb[0].mxu0 %v2984
  %v3291 = vpop.f32.mrb[0].mxu0
  %v3292 = vadd.f32 %v2861, %v3291
  %v3293 = vpop.f32.mrb[0].mxu0
  %3294 = vmatprep.mubr.f32.mxu0 0.0
  %3295 = vmatmul.mubr.f32.gmra.mrb[0].mxu0 %v2987
  %v3296 = vpop.f32.mrb[0].mxu0
  %v3297 = vadd.f32 %v2861, %v3296
  %v3298 = vpop.f32.mrb[0].mxu0
  %3299 = vmatprep.mubr.f32.mxu0 0.0
  %3300 = vmatmul.mubr.f32.gmra.mrb[0].mxu0 %v2990
  %v3301 = vpop.f32.mrb[0].mxu0
  %v3302 = vadd.f32 %v2861, %v3301
  %v3303 = vpop.f32.mrb[0].mxu0
  %3304 = vmatprep.mubr.f32.mxu0 0.0
  %3305 = vmatmul.mubr.f32.gmra.mrb[0].mxu0 %v2993
  %v3306 = vpop.f32.mrb[0].mxu0
  %v3307 = vadd.f32 %v2861, %v3306
  %v3308 = vpop.f32.mrb[0].mxu0
  %3309 = vmatprep.mubr.f32.mxu0 0.0
  %3310 = vmatmul.mubr.f32.gmra.mrb[0].mxu0 %v2996
  %v3311 = vpop.f32.mrb[0].mxu0
  %v3312 = vadd.f32 %v2861, %v3311
  %v3313 = vpop.f32.mrb[0].mxu0
  %3314 = vmatprep.mubr.f32.mxu0 0.0
  %3315 = vmatmul.mubr.f32.gmra.mrb[0].mxu0 %v2999
  %v3316 = vpop.f32.mrb[0].mxu0
  %v3317 = vadd.f32 %v2861, %v3316
  %v3318 = vpop.f32.mrb[0].mxu0
  %3319 = vmatprep.mubr.f32.mxu0 0.0
  %3320 = vmatmul.mubr.f32.gmra.mrb[0].mxu0 %v3002
  %v3321 = vpop.f32.mrb[0].mxu0
  %v3322 = vadd.f32 %v2861, %v3321
  %v3323 = vpop.f32.mrb[0].mxu0
  %3324 = vmatprep.mubr.f32.mxu0 0.0
  %3325 = vmatmul.mubr.f32.gmra.mrb[0].mxu0 %v3005
  %v3326 = vpop.f32.mrb[0].mxu0
  %v3327 = vadd.f32 %v2861, %v3326
  %v3328 = vpop.f32.mrb[0].mxu0
  %3329 = vmatprep.mubr.f32.mxu0 0.0
  %3330 = vmatmul.mubr.f32.gmra.mrb[0].mxu0 %v3008
  %v3331 = vpop.f32.mrb[0].mxu0
  %v3332 = vadd.f32 %v2861, %v3331
  %v3333 = vpop.f32.mrb[0].mxu0
  %3334 = vmatprep.mubr.f32.mxu0 0.0
  %3335 = vmatmul.mubr.f32.gmra.mrb[0].mxu0 %v3011
  %v3336 = vpop.f32.mrb[0].mxu0
  %v3337 = vadd.f32 %v2861, %v3336
  %v3338 = vpop.f32.mrb[0].mxu0
  %3339 = vmatprep.mubr.f32.mxu0 0.0
  %3340 = vmatmul.mubr.f32.gmra.mrb[0].mxu0 %v3014
  %v3341 = vpop.f32.mrb[0].mxu0
  %v3342 = vadd.f32 %v2861, %v3341
  %v3343 = vpop.f32.mrb[0].mxu0
  %3344 = vmatprep.mubr.f32.mxu0 0.0
  %3345 = vmatmul.mubr.f32.gmra.mrb[0].mxu0 %v3017
  %v3346 = vpop.f32.mrb[0].mxu0
  %v3347 = vadd.f32 %v2861, %v3346
  %v3348 = vpop.f32.mrb[0].mxu0
  %3349 = vmatprep.mubr.f32.mxu0 0.0
  %3350 = vmatmul.mubr.f32.gmra.mrb[0].mxu0 %v3020
  %v3351 = vpop.f32.mrb[0].mxu0
  %v3352 = vadd.f32 %v2861, %v3351
  %v3353 = vpop.f32.mrb[0].mxu0
  %3354 = vmatprep.mubr.f32.mxu0 0.0
  %3355 = vmatmul.mubr.f32.gmra.mrb[0].mxu0 %v3023
  %v3356 = vpop.f32.mrb[0].mxu0
  %v3357 = vadd.f32 %v2861, %v3356
  %v3358 = vpop.f32.mrb[0].mxu0
  %3359 = vdwg.mxu0
  %vm3360 = vcmp.ge.f32.partialorder %v3092, 0.0
  %vm3361 = vcmp.ge.f32.partialorder %v3097, 0.0
  %vm3362 = vcmp.ge.f32.partialorder %v3102, 0.0
  %vm3363 = vcmp.ge.f32.partialorder %v3107, 0.0
  %vm3364 = vcmp.ge.f32.partialorder %v3112, 0.0
  %vm3365 = vcmp.ge.f32.partialorder %v3117, 0.0
  %vm3366 = vcmp.ge.f32.partialorder %v3122, 0.0
  %vm3367 = vcmp.ge.f32.partialorder %v3127, 0.0
  %vm3368 = vcmp.ge.f32.partialorder %v3132, 0.0
  %vm3369 = vcmp.ge.f32.partialorder %v3137, 0.0
  %vm3370 = vcmp.ge.f32.partialorder %v3142, 0.0
  %vm3371 = vcmp.ge.f32.partialorder %v3147, 0.0
  %vm3372 = vcmp.ge.f32.partialorder %v3152, 0.0
  %vm3373 = vcmp.ge.f32.partialorder %v3157, 0.0
  %vm3374 = vcmp.ge.f32.partialorder %v3162, 0.0
  %vm3375 = vcmp.ge.f32.partialorder %v3167, 0.0
  %vm3376 = vcmp.ge.f32.partialorder %v3172, 0.0
  %vm3377 = vcmp.ge.f32.partialorder %v3177, 0.0
  %vm3378 = vcmp.ge.f32.partialorder %v3182, 0.0
  %vm3379 = vcmp.ge.f32.partialorder %v3187, 0.0
  %vm3380 = vcmp.ge.f32.partialorder %v3192, 0.0
  %vm3381 = vcmp.ge.f32.partialorder %v3197, 0.0
  %vm3382 = vcmp.ge.f32.partialorder %v3202, 0.0
  %vm3383 = vcmp.ge.f32.partialorder %v3207, 0.0
  %vm3384 = vcmp.ge.f32.partialorder %v3212, 0.0
  %vm3385 = vcmp.ge.f32.partialorder %v3217, 0.0
  %vm3386 = vcmp.ge.f32.partialorder %v3222, 0.0
  %vm3387 = vcmp.ge.f32.partialorder %v3227, 0.0
  %vm3388 = vcmp.ge.f32.partialorder %v3232, 0.0
  %vm3389 = vcmp.ge.f32.partialorder %v3237, 0.0
  %vm3390 = vcmp.ge.f32.partialorder %v3242, 0.0
  %vm3391 = vcmp.ge.f32.partialorder %v3247, 0.0
  %vm3392 = vcmp.ge.f32.partialorder %v3252, 0.0
  %vm3393 = vcmp.ge.f32.partialorder %v3257, 0.0
  %vm3394 = vcmp.ge.f32.partialorder %v3262, 0.0
  %vm3395 = vcmp.ge.f32.partialorder %v3267, 0.0
  %vm3396 = vcmp.ge.f32.partialorder %v3272, 0.0
  %vm3397 = vcmp.ge.f32.partialorder %v3277, 0.0
  %vm3398 = vcmp.ge.f32.partialorder %v3282, 0.0
  %vm3399 = vcmp.ge.f32.partialorder %v3287, 0.0
  %vm3400 = vcmp.ge.f32.partialorder %v3292, 0.0
  %vm3401 = vcmp.ge.f32.partialorder %v3297, 0.0
  %vm3402 = vcmp.ge.f32.partialorder %v3302, 0.0
  %vm3403 = vcmp.ge.f32.partialorder %v3307, 0.0
  %vm3404 = vcmp.ge.f32.partialorder %v3312, 0.0
  %vm3405 = vcmp.ge.f32.partialorder %v3317, 0.0
  %vm3406 = vcmp.ge.f32.partialorder %v3322, 0.0
  %vm3407 = vcmp.ge.f32.partialorder %v3327, 0.0
  %vm3408 = vcmp.ge.f32.partialorder %v3332, 0.0
  %vm3409 = vcmp.ge.f32.partialorder %v3337, 0.0
  %vm3410 = vcmp.ge.f32.partialorder %v3342, 0.0
  %vm3411 = vcmp.ge.f32.partialorder %v3347, 0.0
  %vm3412 = vcmp.ge.f32.partialorder %v3352, 0.0
  %vm3413 = vcmp.ge.f32.partialorder %v3357, 0.0
  %v3414 = vmul.f32 %v3092, 0.1
  %v3415 = vmul.f32 %v3097, 0.1
  %v3416 = vmul.f32 %v3102, 0.1
  %v3417 = vmul.f32 %v3107, 0.1
  %v3418 = vmul.f32 %v3112, 0.1
  %v3419 = vmul.f32 %v3117, 0.1
  %v3420 = vmul.f32 %v3122, 0.1
  %v3421 = vmul.f32 %v3127, 0.1
  %v3422 = vmul.f32 %v3132, 0.1
  %v3423 = vmul.f32 %v3137, 0.1
  %v3424 = vmul.f32 %v3142, 0.1
  %v3425 = vmul.f32 %v3147, 0.1
  %v3426 = vmul.f32 %v3152, 0.1
  %v3427 = vmul.f32 %v3157, 0.1
  %v3428 = vmul.f32 %v3162, 0.1
  %v3429 = vmul.f32 %v3167, 0.1
  %v3430 = vmul.f32 %v3172, 0.1
  %v3431 = vmul.f32 %v3177, 0.1
  %v3432 = vmul.f32 %v3182, 0.1
  %v3433 = vmul.f32 %v3187, 0.1
  %v3434 = vmul.f32 %v3192, 0.1
  %v3435 = vmul.f32 %v3197, 0.1
  %v3436 = vmul.f32 %v3202, 0.1
  %v3437 = vmul.f32 %v3207, 0.1
  %v3438 = vmul.f32 %v3212, 0.1
  %v3439 = vmul.f32 %v3217, 0.1
  %v3440 = vmul.f32 %v3222, 0.1
  %v3441 = vmul.f32 %v3227, 0.1
  %v3442 = vmul.f32 %v3232, 0.1
  %v3443 = vmul.f32 %v3237, 0.1
  %v3444 = vmul.f32 %v3242, 0.1
  %v3445 = vmul.f32 %v3247, 0.1
  %v3446 = vmul.f32 %v3252, 0.1
  %v3447 = vmul.f32 %v3257, 0.1
  %v3448 = vmul.f32 %v3262, 0.1
  %v3449 = vmul.f32 %v3267, 0.1
  %v3450 = vmul.f32 %v3272, 0.1
  %v3451 = vmul.f32 %v3277, 0.1
  %v3452 = vmul.f32 %v3282, 0.1
  %v3453 = vmul.f32 %v3287, 0.1
  %v3454 = vmul.f32 %v3292, 0.1
  %v3455 = vmul.f32 %v3297, 0.1
  %v3456 = vmul.f32 %v3302, 0.1
  %v3457 = vmul.f32 %v3307, 0.1
  %v3458 = vmul.f32 %v3312, 0.1
  %v3459 = vmul.f32 %v3317, 0.1
  %v3460 = vmul.f32 %v3322, 0.1
  %v3461 = vmul.f32 %v3327, 0.1
  %v3462 = vmul.f32 %v3332, 0.1
  %v3463 = vmul.f32 %v3337, 0.1
  %v3464 = vmul.f32 %v3342, 0.1
  %v3465 = vmul.f32 %v3347, 0.1
  %v3466 = vmul.f32 %v3352, 0.1
  %v3467 = vmul.f32 %v3357, 0.1
  %v3468 = vsel %vm3360, %v3092, %v3414
  %v3469 = vsel %vm3361, %v3097, %v3415
  %v3470 = vsel %vm3362, %v3102, %v3416
  %v3471 = vsel %vm3363, %v3107, %v3417
  %v3472 = vsel %vm3364, %v3112, %v3418
  %v3473 = vsel %vm3365, %v3117, %v3419
  %v3474 = vsel %vm3366, %v3122, %v3420
  %v3475 = vsel %vm3367, %v3127, %v3421
  %v3476 = vsel %vm3368, %v3132, %v3422
  %v3477 = vsel %vm3369, %v3137, %v3423
  %v3478 = vsel %vm3370, %v3142, %v3424
  %v3479 = vsel %vm3371, %v3147, %v3425
  %v3480 = vsel %vm3372, %v3152, %v3426
  %v3481 = vsel %vm3373, %v3157, %v3427
  %v3482 = vsel %vm3374, %v3162, %v3428
  %v3483 = vsel %vm3375, %v3167, %v3429
  %v3484 = vsel %vm3376, %v3172, %v3430
  %v3485 = vsel %vm3377, %v3177, %v3431
  %v3486 = vsel %vm3378, %v3182, %v3432
  %v3487 = vsel %vm3379, %v3187, %v3433
  %v3488 = vsel %vm3380, %v3192, %v3434
  %v3489 = vsel %vm3381, %v3197, %v3435
  %v3490 = vsel %vm3382, %v3202, %v3436
  %v3491 = vsel %vm3383, %v3207, %v3437
  %v3492 = vsel %vm3384, %v3212, %v3438
  %v3493 = vsel %vm3385, %v3217, %v3439
  %v3494 = vsel %vm3386, %v3222, %v3440
  %v3495 = vsel %vm3387, %v3227, %v3441
  %v3496 = vsel %vm3388, %v3232, %v3442
  %v3497 = vsel %vm3389, %v3237, %v3443
  %v3498 = vsel %vm3390, %v3242, %v3444
  %v3499 = vsel %vm3391, %v3247, %v3445
  %v3500 = vsel %vm3392, %v3252, %v3446
  %v3501 = vsel %vm3393, %v3257, %v3447
  %v3502 = vsel %vm3394, %v3262, %v3448
  %v3503 = vsel %vm3395, %v3267, %v3449
  %v3504 = vsel %vm3396, %v3272, %v3450
  %v3505 = vsel %vm3397, %v3277, %v3451
  %v3506 = vsel %vm3398, %v3282, %v3452
  %v3507 = vsel %vm3399, %v3287, %v3453
  %v3508 = vsel %vm3400, %v3292, %v3454
  %v3509 = vsel %vm3401, %v3297, %v3455
  %v3510 = vsel %vm3402, %v3302, %v3456
  %v3511 = vsel %vm3403, %v3307, %v3457
  %v3512 = vsel %vm3404, %v3312, %v3458
  %v3513 = vsel %vm3405, %v3317, %v3459
  %v3514 = vsel %vm3406, %v3322, %v3460
  %v3515 = vsel %vm3407, %v3327, %v3461
  %v3516 = vsel %vm3408, %v3332, %v3462
  %v3517 = vsel %vm3409, %v3337, %v3463
  %v3518 = vsel %vm3410, %v3342, %v3464
  %v3519 = vsel %vm3411, %v3347, %v3465
  %v3520 = vsel %vm3412, %v3352, %v3466
  %v3521 = vsel %vm3413, %v3357, %v3467
  %3522 = vst.msk [vmem:[#allocation3] sm:$0xff] %vm124, %v3468
  %3523 = vst.msk [vmem:[#allocation3 + $0x8] sm:$0xff] %vm124, %v3469
  %3524 = vst.msk [vmem:[#allocation3 + $0x10] sm:$0x3] %vm128, %v3470
  %3525 = vst.msk [vmem:[#allocation3 + $0x20] sm:$0xff] %vm124, %v3471
  %3526 = vst.msk [vmem:[#allocation3 + $0x28] sm:$0xff] %vm124, %v3472
  %3527 = vst.msk [vmem:[#allocation3 + $0x30] sm:$0x3] %vm128, %v3473
  %3528 = vst.msk [vmem:[#allocation3 + $0x40] sm:$0xff] %vm124, %v3474
  %3529 = vst.msk [vmem:[#allocation3 + $0x48] sm:$0xff] %vm124, %v3475
  %3530 = vst.msk [vmem:[#allocation3 + $0x50] sm:$0x3] %vm128, %v3476
  %3531 = vst.msk [vmem:[#allocation3 + $0x60] sm:$0xff] %vm124, %v3477
  %3532 = vst.msk [vmem:[#allocation3 + $0x68] sm:$0xff] %vm124, %v3478
  %3533 = vst.msk [vmem:[#allocation3 + $0x70] sm:$0x3] %vm128, %v3479
  %3534 = vst.msk [vmem:[#allocation3 + $0x80] sm:$0xff] %vm124, %v3480
  %3535 = vst.msk [vmem:[#allocation3 + $0x88] sm:$0xff] %vm124, %v3481
  %3536 = vst.msk [vmem:[#allocation3 + $0x90] sm:$0x3] %vm128, %v3482
  %3537 = vst.msk [vmem:[#allocation3 + $0xa0] sm:$0xff] %vm124, %v3483
  %3538 = vst.msk [vmem:[#allocation3 + $0xa8] sm:$0xff] %vm124, %v3484
  %3539 = vst.msk [vmem:[#allocation3 + $0xb0] sm:$0x3] %vm128, %v3485
  %3540 = vst.msk [vmem:[#allocation3 + $0xc0] sm:$0xff] %vm124, %v3486
  %3541 = vst.msk [vmem:[#allocation3 + $0xc8] sm:$0xff] %vm124, %v3487
  %3542 = vst.msk [vmem:[#allocation3 + $0xd0] sm:$0x3] %vm128, %v3488
  %3543 = vst.msk [vmem:[#allocation3 + $0xe0] sm:$0xff] %vm124, %v3489
  %3544 = vst.msk [vmem:[#allocation3 + $0xe8] sm:$0xff] %vm124, %v3490
  %3545 = vst.msk [vmem:[#allocation3 + $0xf0] sm:$0x3] %vm128, %v3491
  %3546 = vst.msk [vmem:[#allocation3 + $0x100] sm:$0xff] %vm124, %v3492
  %3547 = vst.msk [vmem:[#allocation3 + $0x108] sm:$0xff] %vm124, %v3493
  %3548 = vst.msk [vmem:[#allocation3 + $0x110] sm:$0x3] %vm128, %v3494
  %3549 = vst.msk [vmem:[#allocation3 + $0x120] sm:$0xff] %vm124, %v3495
  %3550 = vst.msk [vmem:[#allocation3 + $0x128] sm:$0xff] %vm124, %v3496
  %3551 = vst.msk [vmem:[#allocation3 + $0x130] sm:$0x3] %vm128, %v3497
  %3552 = vst.msk [vmem:[#allocation3 + $0x140] sm:$0xff] %vm124, %v3498
  %3553 = vst.msk [vmem:[#allocation3 + $0x148] sm:$0xff] %vm124, %v3499
  %3554 = vst.msk [vmem:[#allocation3 + $0x150] sm:$0x3] %vm128, %v3500
  %3555 = vst.msk [vmem:[#allocation3 + $0x160] sm:$0xff] %vm124, %v3501
  %3556 = vst.msk [vmem:[#allocation3 + $0x168] sm:$0xff] %vm124, %v3502
  %3557 = vst.msk [vmem:[#allocation3 + $0x170] sm:$0x3] %vm128, %v3503
  %3558 = vst.msk [vmem:[#allocation3 + $0x180] sm:$0xff] %vm124, %v3504
  %3559 = vst.msk [vmem:[#allocation3 + $0x188] sm:$0xff] %vm124, %v3505
  %3560 = vst.msk [vmem:[#allocation3 + $0x190] sm:$0x3] %vm128, %v3506
  %3561 = vst.msk [vmem:[#allocation3 + $0x1a0] sm:$0xff] %vm124, %v3507
  %3562 = vst.msk [vmem:[#allocation3 + $0x1a8] sm:$0xff] %vm124, %v3508
  %3563 = vst.msk [vmem:[#allocation3 + $0x1b0] sm:$0x3] %vm128, %v3509
  %3564 = vst.msk [vmem:[#allocation3 + $0x1c0] sm:$0xff] %vm124, %v3510
  %3565 = vst.msk [vmem:[#allocation3 + $0x1c8] sm:$0xff] %vm124, %v3511
  %3566 = vst.msk [vmem:[#allocation3 + $0x1d0] sm:$0x3] %vm128, %v3512
  %3567 = vst.msk [vmem:[#allocation3 + $0x1e0] sm:$0xff] %vm124, %v3513
  %3568 = vst.msk [vmem:[#allocation3 + $0x1e8] sm:$0xff] %vm124, %v3514
  %3569 = vst.msk [vmem:[#allocation3 + $0x1f0] sm:$0x3] %vm128, %v3515
  %3570 = vst.msk [vmem:[#allocation3 + $0x200] sm:$0xff] %vm124, %v3516
  %3571 = vst.msk [vmem:[#allocation3 + $0x208] sm:$0xff] %vm124, %v3517
  %3572 = vst.msk [vmem:[#allocation3 + $0x210] sm:$0x3] %vm128, %v3518
  %3573 = vst.msk [vmem:[#allocation3 + $0x220] sm:$0xff] %vm124, %v3519
  %3574 = vst.msk [vmem:[#allocation3 + $0x228] sm:$0xff] %vm124, %v3520
  %3575 = vst.msk [vmem:[#allocation3 + $0x230] sm:$0x3] %vm128, %v3521
  %v3576 = vld [vmem:[#allocation3] sm:$0xff]
  %v3577 = vld [vmem:[#allocation3 + $0x8] sm:$0xff]
  %v3578 = vld [vmem:[#allocation3 + $0x10] sm:$0xff]
  %v3579 = vld [vmem:[#allocation3 + $0x20] sm:$0xff]
  %v3580 = vld [vmem:[#allocation3 + $0x28] sm:$0xff]
  %v3581 = vld [vmem:[#allocation3 + $0x30] sm:$0xff]
  %v3582 = vld [vmem:[#allocation3 + $0x40] sm:$0xff]
  %v3583 = vld [vmem:[#allocation3 + $0x48] sm:$0xff]
  %v3584 = vld [vmem:[#allocation3 + $0x50] sm:$0xff]
  %v3585 = vld [vmem:[#allocation3 + $0x60] sm:$0xff]
  %v3586 = vld [vmem:[#allocation3 + $0x68] sm:$0xff]
  %v3587 = vld [vmem:[#allocation3 + $0x70] sm:$0xff]
  %v3588 = vld [vmem:[#allocation3 + $0x80] sm:$0xff]
  %v3589 = vld [vmem:[#allocation3 + $0x88] sm:$0xff]
  %v3590 = vld [vmem:[#allocation3 + $0x90] sm:$0xff]
  %v3591 = vld [vmem:[#allocation3 + $0xa0] sm:$0xff]
  %v3592 = vld [vmem:[#allocation3 + $0xa8] sm:$0xff]
  %v3593 = vld [vmem:[#allocation3 + $0xb0] sm:$0xff]
  %v3594 = vld [vmem:[#allocation3 + $0xc0] sm:$0xff]
  %v3595 = vld [vmem:[#allocation3 + $0xc8] sm:$0xff]
  %v3596 = vld [vmem:[#allocation3 + $0xd0] sm:$0xff]
  %v3597 = vld [vmem:[#allocation3 + $0xe0] sm:$0xff]
  %v3598 = vld [vmem:[#allocation3 + $0xe8] sm:$0xff]
  %v3599 = vld [vmem:[#allocation3 + $0xf0] sm:$0xff]
  %v3600 = vld [vmem:[#allocation3 + $0x100] sm:$0xff]
  %v3601 = vld [vmem:[#allocation3 + $0x108] sm:$0xff]
  %v3602 = vld [vmem:[#allocation3 + $0x110] sm:$0xff]
  %v3603 = vld [vmem:[#allocation3 + $0x120] sm:$0xff]
  %v3604 = vld [vmem:[#allocation3 + $0x128] sm:$0xff]
  %v3605 = vld [vmem:[#allocation3 + $0x130] sm:$0xff]
  %v3606 = vld [vmem:[#allocation3 + $0x140] sm:$0xff]
  %v3607 = vld [vmem:[#allocation3 + $0x148] sm:$0xff]
  %v3608 = vld [vmem:[#allocation3 + $0x150] sm:$0xff]
  %v3609 = vld [vmem:[#allocation3 + $0x160] sm:$0xff]
  %v3610 = vld [vmem:[#allocation3 + $0x168] sm:$0xff]
  %v3611 = vld [vmem:[#allocation3 + $0x170] sm:$0xff]
  %v3612 = vld [vmem:[#allocation3 + $0x180] sm:$0xff]
  %v3613 = vld [vmem:[#allocation3 + $0x188] sm:$0xff]
  %v3614 = vld [vmem:[#allocation3 + $0x190] sm:$0xff]
  %v3615 = vld [vmem:[#allocation3 + $0x1a0] sm:$0xff]
  %v3616 = vld [vmem:[#allocation3 + $0x1a8] sm:$0xff]
  %v3617 = vld [vmem:[#allocation3 + $0x1b0] sm:$0xff]
  %v3618 = vld [vmem:[#allocation3 + $0x1c0] sm:$0xff]
  %v3619 = vld [vmem:[#allocation3 + $0x1c8] sm:$0xff]
  %v3620 = vld [vmem:[#allocation3 + $0x1d0] sm:$0xff]
  %v3621 = vld [vmem:[#allocation3 + $0x1e0] sm:$0xff]
  %v3622 = vld [vmem:[#allocation3 + $0x1e8] sm:$0xff]
  %v3623 = vld [vmem:[#allocation3 + $0x1f0] sm:$0xff]
  %v3624 = vld [vmem:[#allocation3 + $0x200] sm:$0xff]
  %v3625 = vld [vmem:[#allocation3 + $0x208] sm:$0xff]
  %v3626 = vld [vmem:[#allocation3 + $0x210] sm:$0xff]
  %v3627 = vld [vmem:[#allocation3 + $0x220] sm:$0xff]
  %v3628 = vld [vmem:[#allocation3 + $0x228] sm:$0xff]
  %v3629 = vld [vmem:[#allocation3 + $0x230] sm:$0xff]
  %v3630 = vld [vmem:[#allocation3 + $0x240] sm:$0xff]
  %v3631 = vld [vmem:[#allocation3 + $0x248] sm:$0xff]
  %v3632 = vld [vmem:[#allocation3 + $0x250] sm:$0xff]
  %v3633 = vld [vmem:[#allocation3 + $0x1] sm:$0xff]
  %v3634 = vld [vmem:[#allocation3 + $0x9] sm:$0xff]
  %v3635 = vld [vmem:[#allocation3 + $0x11] sm:$0xff]
  %v3636 = vld [vmem:[#allocation3 + $0x21] sm:$0xff]
  %v3637 = vld [vmem:[#allocation3 + $0x29] sm:$0xff]
  %v3638 = vld [vmem:[#allocation3 + $0x31] sm:$0xff]
  %v3639 = vld [vmem:[#allocation3 + $0x41] sm:$0xff]
  %v3640 = vld [vmem:[#allocation3 + $0x49] sm:$0xff]
  %v3641 = vld [vmem:[#allocation3 + $0x51] sm:$0xff]
  %v3642 = vld [vmem:[#allocation3 + $0x61] sm:$0xff]
  %v3643 = vld [vmem:[#allocation3 + $0x69] sm:$0xff]
  %v3644 = vld [vmem:[#allocation3 + $0x71] sm:$0xff]
  %v3645 = vld [vmem:[#allocation3 + $0x81] sm:$0xff]
  %v3646 = vld [vmem:[#allocation3 + $0x89] sm:$0xff]
  %v3647 = vld [vmem:[#allocation3 + $0x91] sm:$0xff]
  %v3648 = vld [vmem:[#allocation3 + $0xa1] sm:$0xff]
  %v3649 = vld [vmem:[#allocation3 + $0xa9] sm:$0xff]
  %v3650 = vld [vmem:[#allocation3 + $0xb1] sm:$0xff]
  %v3651 = vld [vmem:[#allocation3 + $0xc1] sm:$0xff]
  %v3652 = vld [vmem:[#allocation3 + $0xc9] sm:$0xff]
  %v3653 = vld [vmem:[#allocation3 + $0xd1] sm:$0xff]
  %v3654 = vld [vmem:[#allocation3 + $0xe1] sm:$0xff]
  %v3655 = vld [vmem:[#allocation3 + $0xe9] sm:$0xff]
  %v3656 = vld [vmem:[#allocation3 + $0xf1] sm:$0xff]
  %v3657 = vld [vmem:[#allocation3 + $0x101] sm:$0xff]
  %v3658 = vld [vmem:[#allocation3 + $0x109] sm:$0xff]
  %v3659 = vld [vmem:[#allocation3 + $0x111] sm:$0xff]
  %v3660 = vld [vmem:[#allocation3 + $0x121] sm:$0xff]
  %v3661 = vld [vmem:[#allocation3 + $0x129] sm:$0xff]
  %v3662 = vld [vmem:[#allocation3 + $0x131] sm:$0xff]
  %v3663 = vld [vmem:[#allocation3 + $0x141] sm:$0xff]
  %v3664 = vld [vmem:[#allocation3 + $0x149] sm:$0xff]
  %v3665 = vld [vmem:[#allocation3 + $0x151] sm:$0xff]
  %v3666 = vld [vmem:[#allocation3 + $0x161] sm:$0xff]
  %v3667 = vld [vmem:[#allocation3 + $0x169] sm:$0xff]
  %v3668 = vld [vmem:[#allocation3 + $0x171] sm:$0xff]
  %v3669 = vld [vmem:[#allocation3 + $0x181] sm:$0xff]
  %v3670 = vld [vmem:[#allocation3 + $0x189] sm:$0xff]
  %v3671 = vld [vmem:[#allocation3 + $0x191] sm:$0xff]
  %v3672 = vld [vmem:[#allocation3 + $0x1a1] sm:$0xff]
  %v3673 = vld [vmem:[#allocation3 + $0x1a9] sm:$0xff]
  %v3674 = vld [vmem:[#allocation3 + $0x1b1] sm:$0xff]
  %v3675 = vld [vmem:[#allocation3 + $0x1c1] sm:$0xff]
  %v3676 = vld [vmem:[#allocation3 + $0x1c9] sm:$0xff]
  %v3677 = vld [vmem:[#allocation3 + $0x1d1] sm:$0xff]
  %v3678 = vld [vmem:[#allocation3 + $0x1e1] sm:$0xff]
  %v3679 = vld [vmem:[#allocation3 + $0x1e9] sm:$0xff]
  %v3680 = vld [vmem:[#allocation3 + $0x1f1] sm:$0xff]
  %v3681 = vld [vmem:[#allocation3 + $0x201] sm:$0xff]
  %v3682 = vld [vmem:[#allocation3 + $0x209] sm:$0xff]
  %v3683 = vld [vmem:[#allocation3 + $0x211] sm:$0xff]
  %v3684 = vld [vmem:[#allocation3 + $0x221] sm:$0xff]
  %v3685 = vld [vmem:[#allocation3 + $0x229] sm:$0xff]
  %v3686 = vld [vmem:[#allocation3 + $0x231] sm:$0xff]
  %v3687 = vld [vmem:[#allocation3 + $0x241] sm:$0xff]
  %v3688 = vld [vmem:[#allocation3 + $0x249] sm:$0xff]
  %v3689 = vld [vmem:[#allocation3 + $0x251] sm:$0xff]
  %3747 = vrot.lane.b32.xlu0 %v3633, 8
  %v3748 = vpop.permute.xlu0 %3747
  %3749 = vrot.lane.b32.xlu0 %v3634, 8
  %v3750 = vpop.permute.xlu0 %3749
  %3751 = vrot.lane.b32.xlu0 %v3635, 8
  %v3752 = vpop.permute.xlu0 %3751
  %3753 = vrot.lane.b32.xlu0 %v3636, 8
  %v3754 = vpop.permute.xlu0 %3753
  %3755 = vrot.lane.b32.xlu0 %v3637, 8
  %v3756 = vpop.permute.xlu0 %3755
  %3757 = vrot.lane.b32.xlu0 %v3638, 8
  %v3758 = vpop.permute.xlu0 %3757
  %3759 = vrot.lane.b32.xlu0 %v3639, 8
  %v3760 = vpop.permute.xlu0 %3759
  %3761 = vrot.lane.b32.xlu0 %v3640, 8
  %v3762 = vpop.permute.xlu0 %3761
  %3763 = vrot.lane.b32.xlu0 %v3641, 8
  %v3764 = vpop.permute.xlu0 %3763
  %3765 = vrot.lane.b32.xlu0 %v3642, 8
  %v3766 = vpop.permute.xlu0 %3765
  %3767 = vrot.lane.b32.xlu0 %v3643, 8
  %v3768 = vpop.permute.xlu0 %3767
  %3769 = vrot.lane.b32.xlu0 %v3644, 8
  %v3770 = vpop.permute.xlu0 %3769
  %3771 = vrot.lane.b32.xlu0 %v3645, 8
  %v3772 = vpop.permute.xlu0 %3771
  %3773 = vrot.lane.b32.xlu0 %v3646, 8
  %v3774 = vpop.permute.xlu0 %3773
  %3775 = vrot.lane.b32.xlu0 %v3647, 8
  %v3776 = vpop.permute.xlu0 %3775
  %3777 = vrot.lane.b32.xlu0 %v3648, 8
  %v3778 = vpop.permute.xlu0 %3777
  %3779 = vrot.lane.b32.xlu0 %v3649, 8
  %v3780 = vpop.permute.xlu0 %3779
  %3781 = vrot.lane.b32.xlu0 %v3650, 8
  %v3782 = vpop.permute.xlu0 %3781
  %3783 = vrot.lane.b32.xlu0 %v3651, 8
  %v3784 = vpop.permute.xlu0 %3783
  %3785 = vrot.lane.b32.xlu0 %v3652, 8
  %v3786 = vpop.permute.xlu0 %3785
  %3787 = vrot.lane.b32.xlu0 %v3653, 8
  %v3788 = vpop.permute.xlu0 %3787
  %3789 = vrot.lane.b32.xlu0 %v3654, 8
  %v3790 = vpop.permute.xlu0 %3789
  %3791 = vrot.lane.b32.xlu0 %v3655, 8
  %v3792 = vpop.permute.xlu0 %3791
  %3793 = vrot.lane.b32.xlu0 %v3656, 8
  %v3794 = vpop.permute.xlu0 %3793
  %3795 = vrot.lane.b32.xlu0 %v3657, 8
  %v3796 = vpop.permute.xlu0 %3795
  %3797 = vrot.lane.b32.xlu0 %v3658, 8
  %v3798 = vpop.permute.xlu0 %3797
  %3799 = vrot.lane.b32.xlu0 %v3659, 8
  %v3800 = vpop.permute.xlu0 %3799
  %3801 = vrot.lane.b32.xlu0 %v3660, 8
  %v3802 = vpop.permute.xlu0 %3801
  %3803 = vrot.lane.b32.xlu0 %v3661, 8
  %v3804 = vpop.permute.xlu0 %3803
  %3805 = vrot.lane.b32.xlu0 %v3662, 8
  %v3806 = vpop.permute.xlu0 %3805
  %3807 = vrot.lane.b32.xlu0 %v3663, 8
  %v3808 = vpop.permute.xlu0 %3807
  %3809 = vrot.lane.b32.xlu0 %v3664, 8
  %v3810 = vpop.permute.xlu0 %3809
  %3811 = vrot.lane.b32.xlu0 %v3665, 8
  %v3812 = vpop.permute.xlu0 %3811
  %3813 = vrot.lane.b32.xlu0 %v3666, 8
  %v3814 = vpop.permute.xlu0 %3813
  %3815 = vrot.lane.b32.xlu0 %v3667, 8
  %v3816 = vpop.permute.xlu0 %3815
  %3817 = vrot.lane.b32.xlu0 %v3668, 8
  %v3818 = vpop.permute.xlu0 %3817
  %3819 = vrot.lane.b32.xlu0 %v3669, 8
  %v3820 = vpop.permute.xlu0 %3819
  %3821 = vrot.lane.b32.xlu0 %v3670, 8
  %v3822 = vpop.permute.xlu0 %3821
  %3823 = vrot.lane.b32.xlu0 %v3671, 8
  %v3824 = vpop.permute.xlu0 %3823
  %3825 = vrot.lane.b32.xlu0 %v3672, 8
  %v3826 = vpop.permute.xlu0 %3825
  %3827 = vrot.lane.b32.xlu0 %v3673, 8
  %v3828 = vpop.permute.xlu0 %3827
  %3829 = vrot.lane.b32.xlu0 %v3674, 8
  %v3830 = vpop.permute.xlu0 %3829
  %3831 = vrot.lane.b32.xlu0 %v3675, 8
  %v3832 = vpop.permute.xlu0 %3831
  %3833 = vrot.lane.b32.xlu0 %v3676, 8
  %v3834 = vpop.permute.xlu0 %3833
  %3835 = vrot.lane.b32.xlu0 %v3677, 8
  %v3836 = vpop.permute.xlu0 %3835
  %3837 = vrot.lane.b32.xlu0 %v3678, 8
  %v3838 = vpop.permute.xlu0 %3837
  %3839 = vrot.lane.b32.xlu0 %v3679, 8
  %v3840 = vpop.permute.xlu0 %3839
  %3841 = vrot.lane.b32.xlu0 %v3680, 8
  %v3842 = vpop.permute.xlu0 %3841
  %3843 = vrot.lane.b32.xlu0 %v3681, 8
  %v3844 = vpop.permute.xlu0 %3843
  %3845 = vrot.lane.b32.xlu0 %v3682, 8
  %v3846 = vpop.permute.xlu0 %3845
  %3847 = vrot.lane.b32.xlu0 %v3683, 8
  %v3848 = vpop.permute.xlu0 %3847
  %3849 = vrot.lane.b32.xlu0 %v3684, 8
  %v3850 = vpop.permute.xlu0 %3849
  %3851 = vrot.lane.b32.xlu0 %v3685, 8
  %v3852 = vpop.permute.xlu0 %3851
  %3853 = vrot.lane.b32.xlu0 %v3686, 8
  %v3854 = vpop.permute.xlu0 %3853
  %3855 = vrot.lane.b32.xlu0 %v3687, 8
  %v3856 = vpop.permute.xlu0 %3855
  %3857 = vrot.lane.b32.xlu0 %v3688, 8
  %v3858 = vpop.permute.xlu0 %3857
  %3859 = vrot.lane.b32.xlu0 %v3689, 8
  %v3860 = vpop.permute.xlu0 %3859
  %v3918 = vsel %vm124, %v3576, %v3748
  %v3919 = vsel %vm124, %v3577, %v3750
  %v3920 = vsel %vm124, %v3578, %v3752
  %v3921 = vsel %vm124, %v3579, %v3754
  %v3922 = vsel %vm124, %v3580, %v3756
  %v3923 = vsel %vm124, %v3581, %v3758
  %v3924 = vsel %vm124, %v3582, %v3760
  %v3925 = vsel %vm124, %v3583, %v3762
  %v3926 = vsel %vm124, %v3584, %v3764
  %v3927 = vsel %vm124, %v3585, %v3766
  %v3928 = vsel %vm124, %v3586, %v3768
  %v3929 = vsel %vm124, %v3587, %v3770
  %v3930 = vsel %vm124, %v3588, %v3772
  %v3931 = vsel %vm124, %v3589, %v3774
  %v3932 = vsel %vm124, %v3590, %v3776
  %v3933 = vsel %vm124, %v3591, %v3778
  %v3934 = vsel %vm124, %v3592, %v3780
  %v3935 = vsel %vm124, %v3593, %v3782
  %v3936 = vsel %vm124, %v3594, %v3784
  %v3937 = vsel %vm124, %v3595, %v3786
  %v3938 = vsel %vm124, %v3596, %v3788
  %v3939 = vsel %vm124, %v3597, %v3790
  %v3940 = vsel %vm124, %v3598, %v3792
  %v3941 = vsel %vm124, %v3599, %v3794
  %v3942 = vsel %vm124, %v3600, %v3796
  %v3943 = vsel %vm124, %v3601, %v3798
  %v3944 = vsel %vm124, %v3602, %v3800
  %v3945 = vsel %vm124, %v3603, %v3802
  %v3946 = vsel %vm124, %v3604, %v3804
  %v3947 = vsel %vm124, %v3605, %v3806
  %v3948 = vsel %vm124, %v3606, %v3808
  %v3949 = vsel %vm124, %v3607, %v3810
  %v3950 = vsel %vm124, %v3608, %v3812
  %v3951 = vsel %vm124, %v3609, %v3814
  %v3952 = vsel %vm124, %v3610, %v3816
  %v3953 = vsel %vm124, %v3611, %v3818
  %v3954 = vsel %vm124, %v3612, %v3820
  %v3955 = vsel %vm124, %v3613, %v3822
  %v3956 = vsel %vm124, %v3614, %v3824
  %v3957 = vsel %vm124, %v3615, %v3826
  %v3958 = vsel %vm124, %v3616, %v3828
  %v3959 = vsel %vm124, %v3617, %v3830
  %v3960 = vsel %vm124, %v3618, %v3832
  %v3961 = vsel %vm124, %v3619, %v3834
  %v3962 = vsel %vm124, %v3620, %v3836
  %v3963 = vsel %vm124, %v3621, %v3838
  %v3964 = vsel %vm124, %v3622, %v3840
  %v3965 = vsel %vm124, %v3623, %v3842
  %v3966 = vsel %vm124, %v3624, %v3844
  %v3967 = vsel %vm124, %v3625, %v3846
  %v3968 = vsel %vm124, %v3626, %v3848
  %v3969 = vsel %vm124, %v3627, %v3850
  %v3970 = vsel %vm124, %v3628, %v3852
  %v3971 = vsel %vm124, %v3629, %v3854
  %v3972 = vsel %vm124, %v3630, %v3856
  %v3973 = vsel %vm124, %v3631, %v3858
  %v3974 = vsel %vm124, %v3632, %v3860
  %4029 = vrot.lane.b32.xlu0 %v3921, 16
  %v4030 = vpop.permute.xlu0 %4029
  %4031 = vrot.lane.b32.xlu0 %v3922, 16
  %v4032 = vpop.permute.xlu0 %4031
  %4033 = vrot.lane.b32.xlu0 %v3923, 16
  %v4034 = vpop.permute.xlu0 %4033
  %4035 = vrot.lane.b32.xlu0 %v3924, 16
  %v4036 = vpop.permute.xlu0 %4035
  %4037 = vrot.lane.b32.xlu0 %v3925, 16
  %v4038 = vpop.permute.xlu0 %4037
  %4039 = vrot.lane.b32.xlu0 %v3926, 16
  %v4040 = vpop.permute.xlu0 %4039
  %4041 = vrot.lane.b32.xlu0 %v3927, 16
  %v4042 = vpop.permute.xlu0 %4041
  %4043 = vrot.lane.b32.xlu0 %v3928, 16
  %v4044 = vpop.permute.xlu0 %4043
  %4045 = vrot.lane.b32.xlu0 %v3929, 16
  %v4046 = vpop.permute.xlu0 %4045
  %4047 = vrot.lane.b32.xlu0 %v3930, 16
  %v4048 = vpop.permute.xlu0 %4047
  %4049 = vrot.lane.b32.xlu0 %v3931, 16
  %v4050 = vpop.permute.xlu0 %4049
  %4051 = vrot.lane.b32.xlu0 %v3932, 16
  %v4052 = vpop.permute.xlu0 %4051
  %4053 = vrot.lane.b32.xlu0 %v3933, 16
  %v4054 = vpop.permute.xlu0 %4053
  %4055 = vrot.lane.b32.xlu0 %v3934, 16
  %v4056 = vpop.permute.xlu0 %4055
  %4057 = vrot.lane.b32.xlu0 %v3935, 16
  %v4058 = vpop.permute.xlu0 %4057
  %4059 = vrot.lane.b32.xlu0 %v3936, 16
  %v4060 = vpop.permute.xlu0 %4059
  %4061 = vrot.lane.b32.xlu0 %v3937, 16
  %v4062 = vpop.permute.xlu0 %4061
  %4063 = vrot.lane.b32.xlu0 %v3938, 16
  %v4064 = vpop.permute.xlu0 %4063
  %4065 = vrot.lane.b32.xlu0 %v3939, 16
  %v4066 = vpop.permute.xlu0 %4065
  %4067 = vrot.lane.b32.xlu0 %v3940, 16
  %v4068 = vpop.permute.xlu0 %4067
  %4069 = vrot.lane.b32.xlu0 %v3941, 16
  %v4070 = vpop.permute.xlu0 %4069
  %4071 = vrot.lane.b32.xlu0 %v3942, 16
  %v4072 = vpop.permute.xlu0 %4071
  %4073 = vrot.lane.b32.xlu0 %v3943, 16
  %v4074 = vpop.permute.xlu0 %4073
  %4075 = vrot.lane.b32.xlu0 %v3944, 16
  %v4076 = vpop.permute.xlu0 %4075
  %4077 = vrot.lane.b32.xlu0 %v3945, 16
  %v4078 = vpop.permute.xlu0 %4077
  %4079 = vrot.lane.b32.xlu0 %v3946, 16
  %v4080 = vpop.permute.xlu0 %4079
  %4081 = vrot.lane.b32.xlu0 %v3947, 16
  %v4082 = vpop.permute.xlu0 %4081
  %4083 = vrot.lane.b32.xlu0 %v3948, 16
  %v4084 = vpop.permute.xlu0 %4083
  %4085 = vrot.lane.b32.xlu0 %v3949, 16
  %v4086 = vpop.permute.xlu0 %4085
  %4087 = vrot.lane.b32.xlu0 %v3950, 16
  %v4088 = vpop.permute.xlu0 %4087
  %4089 = vrot.lane.b32.xlu0 %v3951, 16
  %v4090 = vpop.permute.xlu0 %4089
  %4091 = vrot.lane.b32.xlu0 %v3952, 16
  %v4092 = vpop.permute.xlu0 %4091
  %4093 = vrot.lane.b32.xlu0 %v3953, 16
  %v4094 = vpop.permute.xlu0 %4093
  %4095 = vrot.lane.b32.xlu0 %v3954, 16
  %v4096 = vpop.permute.xlu0 %4095
  %4097 = vrot.lane.b32.xlu0 %v3955, 16
  %v4098 = vpop.permute.xlu0 %4097
  %4099 = vrot.lane.b32.xlu0 %v3956, 16
  %v4100 = vpop.permute.xlu0 %4099
  %4101 = vrot.lane.b32.xlu0 %v3957, 16
  %v4102 = vpop.permute.xlu0 %4101
  %4103 = vrot.lane.b32.xlu0 %v3958, 16
  %v4104 = vpop.permute.xlu0 %4103
  %4105 = vrot.lane.b32.xlu0 %v3959, 16
  %v4106 = vpop.permute.xlu0 %4105
  %4107 = vrot.lane.b32.xlu0 %v3960, 16
  %v4108 = vpop.permute.xlu0 %4107
  %4109 = vrot.lane.b32.xlu0 %v3961, 16
  %v4110 = vpop.permute.xlu0 %4109
  %4111 = vrot.lane.b32.xlu0 %v3962, 16
  %v4112 = vpop.permute.xlu0 %4111
  %4113 = vrot.lane.b32.xlu0 %v3963, 16
  %v4114 = vpop.permute.xlu0 %4113
  %4115 = vrot.lane.b32.xlu0 %v3964, 16
  %v4116 = vpop.permute.xlu0 %4115
  %4117 = vrot.lane.b32.xlu0 %v3965, 16
  %v4118 = vpop.permute.xlu0 %4117
  %4119 = vrot.lane.b32.xlu0 %v3966, 16
  %v4120 = vpop.permute.xlu0 %4119
  %4121 = vrot.lane.b32.xlu0 %v3967, 16
  %v4122 = vpop.permute.xlu0 %4121
  %4123 = vrot.lane.b32.xlu0 %v3968, 16
  %v4124 = vpop.permute.xlu0 %4123
  %4125 = vrot.lane.b32.xlu0 %v3969, 16
  %v4126 = vpop.permute.xlu0 %4125
  %4127 = vrot.lane.b32.xlu0 %v3970, 16
  %v4128 = vpop.permute.xlu0 %4127
  %4129 = vrot.lane.b32.xlu0 %v3971, 16
  %v4130 = vpop.permute.xlu0 %4129
  %4131 = vrot.lane.b32.xlu0 %v3972, 16
  %v4132 = vpop.permute.xlu0 %4131
  %4133 = vrot.lane.b32.xlu0 %v3973, 16
  %v4134 = vpop.permute.xlu0 %4133
  %4135 = vrot.lane.b32.xlu0 %v3974, 16
  %v4136 = vpop.permute.xlu0 %4135
  %v4191 = vsel %vm2296, %v3918, %v4030
  %v4192 = vsel %vm2296, %v3919, %v4032
  %v4193 = vsel %vm2296, %v3920, %v4034
  %v4194 = vsel %vm2296, %v3921, %v4036
  %v4195 = vsel %vm2296, %v3922, %v4038
  %v4196 = vsel %vm2296, %v3923, %v4040
  %v4197 = vsel %vm2296, %v3924, %v4042
  %v4198 = vsel %vm2296, %v3925, %v4044
  %v4199 = vsel %vm2296, %v3926, %v4046
  %v4200 = vsel %vm2296, %v3927, %v4048
  %v4201 = vsel %vm2296, %v3928, %v4050
  %v4202 = vsel %vm2296, %v3929, %v4052
  %v4203 = vsel %vm2296, %v3930, %v4054
  %v4204 = vsel %vm2296, %v3931, %v4056
  %v4205 = vsel %vm2296, %v3932, %v4058
  %v4206 = vsel %vm2296, %v3933, %v4060
  %v4207 = vsel %vm2296, %v3934, %v4062
  %v4208 = vsel %vm2296, %v3935, %v4064
  %v4209 = vsel %vm2296, %v3936, %v4066
  %v4210 = vsel %vm2296, %v3937, %v4068
  %v4211 = vsel %vm2296, %v3938, %v4070
  %v4212 = vsel %vm2296, %v3939, %v4072
  %v4213 = vsel %vm2296, %v3940, %v4074
  %v4214 = vsel %vm2296, %v3941, %v4076
  %v4215 = vsel %vm2296, %v3942, %v4078
  %v4216 = vsel %vm2296, %v3943, %v4080
  %v4217 = vsel %vm2296, %v3944, %v4082
  %v4218 = vsel %vm2296, %v3945, %v4084
  %v4219 = vsel %vm2296, %v3946, %v4086
  %v4220 = vsel %vm2296, %v3947, %v4088
  %v4221 = vsel %vm2296, %v3948, %v4090
  %v4222 = vsel %vm2296, %v3949, %v4092
  %v4223 = vsel %vm2296, %v3950, %v4094
  %v4224 = vsel %vm2296, %v3951, %v4096
  %v4225 = vsel %vm2296, %v3952, %v4098
  %v4226 = vsel %vm2296, %v3953, %v4100
  %v4227 = vsel %vm2296, %v3954, %v4102
  %v4228 = vsel %vm2296, %v3955, %v4104
  %v4229 = vsel %vm2296, %v3956, %v4106
  %v4230 = vsel %vm2296, %v3957, %v4108
  %v4231 = vsel %vm2296, %v3958, %v4110
  %v4232 = vsel %vm2296, %v3959, %v4112
  %v4233 = vsel %vm2296, %v3960, %v4114
  %v4234 = vsel %vm2296, %v3961, %v4116
  %v4235 = vsel %vm2296, %v3962, %v4118
  %v4236 = vsel %vm2296, %v3963, %v4120
  %v4237 = vsel %vm2296, %v3964, %v4122
  %v4238 = vsel %vm2296, %v3965, %v4124
  %v4239 = vsel %vm2296, %v3966, %v4126
  %v4240 = vsel %vm2296, %v3967, %v4128
  %v4241 = vsel %vm2296, %v3968, %v4130
  %v4242 = vsel %vm2296, %v3969, %v4132
  %v4243 = vsel %vm2296, %v3970, %v4134
  %v4244 = vsel %vm2296, %v3971, %v4136
  %s4245 = scalar_lea.vmem %s1, 144
  %v4246 = vld [vmem:[%s4245] sm:$0xff]
  %v4247 = vld [vmem:[%s4245 + $0x8] sm:$0xff]
  %v4248 = vld [vmem:[%s4245 + $0x10] sm:$0xff]
  %v4249 = vld [vmem:[%s4245 + $0x18] sm:$0xff]
  %v4250 = vld [vmem:[%s2 + $0x2] sm:$0x1]
  %v4251 = vlaneseq
  %v4252 = vshrl.u32 %v4251, 7
  %v4253 = vsub.s32 0, %v4252
  %v4254 = vrot.slane %v4250, %v4253
  %vm4255 = vcmask 261120
  %v4257 = vsel %vm4255, %v4191, 0
  %v4260 = vsel %vm4255, %v4192, 0
  %v4263 = vsel %vm4255, %v4193, 0
  %v4266 = vsel %vm4255, %v4194, 0
  %v4269 = vsel %vm4255, %v4195, 0
  %v4272 = vsel %vm4255, %v4196, 0
  %v4275 = vsel %vm4255, %v4197, 0
  %v4278 = vsel %vm4255, %v4198, 0
  %v4281 = vsel %vm4255, %v4199, 0
  %v4284 = vsel %vm4255, %v4200, 0
  %v4287 = vsel %vm4255, %v4201, 0
  %v4290 = vsel %vm4255, %v4202, 0
  %v4293 = vsel %vm4255, %v4203, 0
  %v4296 = vsel %vm4255, %v4204, 0
  %v4299 = vsel %vm4255, %v4205, 0
  %v4302 = vsel %vm4255, %v4206, 0
  %v4305 = vsel %vm4255, %v4207, 0
  %v4308 = vsel %vm4255, %v4208, 0
  %v4311 = vsel %vm4255, %v4209, 0
  %v4314 = vsel %vm4255, %v4210, 0
  %v4317 = vsel %vm4255, %v4211, 0
  %v4320 = vsel %vm4255, %v4212, 0
  %v4323 = vsel %vm4255, %v4213, 0
  %v4326 = vsel %vm4255, %v4214, 0
  %v4329 = vsel %vm4255, %v4215, 0
  %v4332 = vsel %vm4255, %v4216, 0
  %v4335 = vsel %vm4255, %v4217, 0
  %v4338 = vsel %vm4255, %v4218, 0
  %v4341 = vsel %vm4255, %v4219, 0
  %v4344 = vsel %vm4255, %v4220, 0
  %v4347 = vsel %vm4255, %v4221, 0
  %v4350 = vsel %vm4255, %v4222, 0
  %v4353 = vsel %vm4255, %v4223, 0
  %v4356 = vsel %vm4255, %v4224, 0
  %v4359 = vsel %vm4255, %v4225, 0
  %v4362 = vsel %vm4255, %v4226, 0
  %v4365 = vsel %vm4255, %v4227, 0
  %v4368 = vsel %vm4255, %v4228, 0
  %v4371 = vsel %vm4255, %v4229, 0
  %v4374 = vsel %vm4255, %v4230, 0
  %v4377 = vsel %vm4255, %v4231, 0
  %v4380 = vsel %vm4255, %v4232, 0
  %v4383 = vsel %vm4255, %v4233, 0
  %v4386 = vsel %vm4255, %v4234, 0
  %v4389 = vsel %vm4255, %v4235, 0
  %v4392 = vsel %vm4255, %v4236, 0
  %v4395 = vsel %vm4255, %v4237, 0
  %v4398 = vsel %vm4255, %v4238, 0
  %v4401 = vsel %vm4255, %v4239, 0
  %v4404 = vsel %vm4255, %v4240, 0
  %v4407 = vsel %vm4255, %v4241, 0
  %v4410 = vsel %vm4255, %v4242, 0
  %v4413 = vsel %vm4255, %v4243, 0
  %v4416 = vsel %vm4255, %v4244, 0
  %4418 = vmatprep.subr.mxu0 0.0
  %4419 = vmatpush1.msra.mxu0 %v4246
  %4420 = vmatprep.subr.mxu0 0.0
  %4421 = vmatpush1.msra.mxu0 %v4247
  %4422 = vmatprep.subr.mxu0 0.0
  %4423 = vmatpush1.msra.mxu0 %v4248
  %4424 = vmatprep.subr.mxu0 0.0
  %4425 = vmatpush1.msra.mxu0 %v4249
  %4426 = vmatprep.subr.mxu0 0.0
  %4427 = vmatpush1.msra.mxu0 0.0
  %4428 = vmatprep.subr.mxu0 0.0
  %4429 = vmatpush1.msra.mxu0 0.0
  %4430 = vmatprep.subr.mxu0 0.0
  %4431 = vmatpush1.msra.mxu0 0.0
  %4432 = vmatprep.subr.mxu0 0.0
  %4433 = vmatpush1.msra.mxu0 0.0
  %4434 = vmatprep.subr.mxu0 0.0
  %4435 = vmatpush1.msra.mxu0 0.0
  %4436 = vmatprep.subr.mxu0 0.0
  %4437 = vmatpush1.msra.mxu0 0.0
  %4438 = vmatprep.subr.mxu0 0.0
  %4439 = vmatpush1.msra.mxu0 0.0
  %4440 = vmatprep.subr.mxu0 0.0
  %4441 = vmatpush1.msra.mxu0 0.0
  %4442 = vmatprep.subr.mxu0 0.0
  %4443 = vmatpush1.msra.mxu0 0.0
  %4444 = vmatprep.subr.mxu0 0.0
  %4445 = vmatpush1.msra.mxu0 0.0
  %4446 = vmatprep.subr.mxu0 0.0
  %4447 = vmatpush1.msra.mxu0 0.0
  %4448 = vmatprep.subr.mxu0 0.0
  %4449 = vmatpush1.msra.mxu0 0.0
  %4450 = vmatprep.subr.mxu0 0.0
  %4451 = vmatpush1.msra.mxu0 0.0
  %4452 = vmatprep.subr.mxu0 0.0
  %4453 = vmatpush1.msra.mxu0 0.0
  %4454 = vmatprep.subr.mxu0 0.0
  %4455 = vmatpush1.msra.mxu0 0.0
  %4456 = vmatprep.subr.mxu0 0.0
  %4457 = vmatpush1.msra.mxu0 0.0
  %4458 = vmatprep.subr.mxu0 0.0
  %4459 = vmatpush1.msra.mxu0 0.0
  %4460 = vmatprep.subr.mxu0 0.0
  %4461 = vmatpush1.msra.mxu0 0.0
  %4462 = vmatprep.subr.mxu0 0.0
  %4463 = vmatpush1.msra.mxu0 0.0
  %4464 = vmatprep.subr.mxu0 0.0
  %4465 = vmatpush1.msra.mxu0 0.0
  %4466 = vmatprep.subr.mxu0 0.0
  %4467 = vmatpush1.msra.mxu0 0.0
  %4468 = vmatprep.subr.mxu0 0.0
  %4469 = vmatpush1.msra.mxu0 0.0
  %4470 = vmatprep.subr.mxu0 0.0
  %4471 = vmatpush1.msra.mxu0 0.0
  %4472 = vmatprep.subr.mxu0 0.0
  %4473 = vmatpush1.msra.mxu0 0.0
  %4474 = vmatprep.subr.mxu0 0.0
  %4475 = vmatpush1.msra.mxu0 0.0
  %4476 = vmatprep.subr.mxu0 0.0
  %4477 = vmatpush1.msra.mxu0 0.0
  %4478 = vmatprep.subr.mxu0 0.0
  %4479 = vmatpush1.msra.mxu0 0.0
  %4480 = vmatprep.subr.mxu0 0.0
  %4481 = vmatpush1.msra.mxu0 0.0
  %4482 = vmatprep.mubr.f32.mxu0 0.0
  %4483 = vmatmul.mubr.f32.gmra.mrb[0].mxu0 %v4257
  %v4484 = vpop.f32.mrb[0].mxu0
  %v4485 = vadd.f32 %v4254, %v4484
  %v4486 = vpop.f32.mrb[0].mxu0
  %4487 = vmatprep.mubr.f32.mxu0 0.0
  %4488 = vmatmul.mubr.f32.gmra.mrb[0].mxu0 %v4260
  %v4489 = vpop.f32.mrb[0].mxu0
  %v4490 = vadd.f32 %v4254, %v4489
  %v4491 = vpop.f32.mrb[0].mxu0
  %4492 = vmatprep.mubr.f32.mxu0 0.0
  %4493 = vmatmul.mubr.f32.gmra.mrb[0].mxu0 %v4263
  %v4494 = vpop.f32.mrb[0].mxu0
  %v4495 = vadd.f32 %v4254, %v4494
  %v4496 = vpop.f32.mrb[0].mxu0
  %4497 = vmatprep.mubr.f32.mxu0 0.0
  %4498 = vmatmul.mubr.f32.gmra.mrb[0].mxu0 %v4266
  %v4499 = vpop.f32.mrb[0].mxu0
  %v4500 = vadd.f32 %v4254, %v4499
  %v4501 = vpop.f32.mrb[0].mxu0
  %4502 = vmatprep.mubr.f32.mxu0 0.0
  %4503 = vmatmul.mubr.f32.gmra.mrb[0].mxu0 %v4269
  %v4504 = vpop.f32.mrb[0].mxu0
  %v4505 = vadd.f32 %v4254, %v4504
  %v4506 = vpop.f32.mrb[0].mxu0
  %4507 = vmatprep.mubr.f32.mxu0 0.0
  %4508 = vmatmul.mubr.f32.gmra.mrb[0].mxu0 %v4272
  %v4509 = vpop.f32.mrb[0].mxu0
  %v4510 = vadd.f32 %v4254, %v4509
  %v4511 = vpop.f32.mrb[0].mxu0
  %4512 = vmatprep.mubr.f32.mxu0 0.0
  %4513 = vmatmul.mubr.f32.gmra.mrb[0].mxu0 %v4275
  %v4514 = vpop.f32.mrb[0].mxu0
  %v4515 = vadd.f32 %v4254, %v4514
  %v4516 = vpop.f32.mrb[0].mxu0
  %4517 = vmatprep.mubr.f32.mxu0 0.0
  %4518 = vmatmul.mubr.f32.gmra.mrb[0].mxu0 %v4278
  %v4519 = vpop.f32.mrb[0].mxu0
  %v4520 = vadd.f32 %v4254, %v4519
  %v4521 = vpop.f32.mrb[0].mxu0
  %4522 = vmatprep.mubr.f32.mxu0 0.0
  %4523 = vmatmul.mubr.f32.gmra.mrb[0].mxu0 %v4281
  %v4524 = vpop.f32.mrb[0].mxu0
  %v4525 = vadd.f32 %v4254, %v4524
  %v4526 = vpop.f32.mrb[0].mxu0
  %4527 = vmatprep.mubr.f32.mxu0 0.0
  %4528 = vmatmul.mubr.f32.gmra.mrb[0].mxu0 %v4284
  %v4529 = vpop.f32.mrb[0].mxu0
  %v4530 = vadd.f32 %v4254, %v4529
  %v4531 = vpop.f32.mrb[0].mxu0
  %4532 = vmatprep.mubr.f32.mxu0 0.0
  %4533 = vmatmul.mubr.f32.gmra.mrb[0].mxu0 %v4287
  %v4534 = vpop.f32.mrb[0].mxu0
  %v4535 = vadd.f32 %v4254, %v4534
  %v4536 = vpop.f32.mrb[0].mxu0
  %4537 = vmatprep.mubr.f32.mxu0 0.0
  %4538 = vmatmul.mubr.f32.gmra.mrb[0].mxu0 %v4290
  %v4539 = vpop.f32.mrb[0].mxu0
  %v4540 = vadd.f32 %v4254, %v4539
  %v4541 = vpop.f32.mrb[0].mxu0
  %4542 = vmatprep.mubr.f32.mxu0 0.0
  %4543 = vmatmul.mubr.f32.gmra.mrb[0].mxu0 %v4293
  %v4544 = vpop.f32.mrb[0].mxu0
  %v4545 = vadd.f32 %v4254, %v4544
  %v4546 = vpop.f32.mrb[0].mxu0
  %4547 = vmatprep.mubr.f32.mxu0 0.0
  %4548 = vmatmul.mubr.f32.gmra.mrb[0].mxu0 %v4296
  %v4549 = vpop.f32.mrb[0].mxu0
  %v4550 = vadd.f32 %v4254, %v4549
  %v4551 = vpop.f32.mrb[0].mxu0
  %4552 = vmatprep.mubr.f32.mxu0 0.0
  %4553 = vmatmul.mubr.f32.gmra.mrb[0].mxu0 %v4299
  %v4554 = vpop.f32.mrb[0].mxu0
  %v4555 = vadd.f32 %v4254, %v4554
  %v4556 = vpop.f32.mrb[0].mxu0
  %4557 = vmatprep.mubr.f32.mxu0 0.0
  %4558 = vmatmul.mubr.f32.gmra.mrb[0].mxu0 %v4302
  %v4559 = vpop.f32.mrb[0].mxu0
  %v4560 = vadd.f32 %v4254, %v4559
  %v4561 = vpop.f32.mrb[0].mxu0
  %4562 = vmatprep.mubr.f32.mxu0 0.0
  %4563 = vmatmul.mubr.f32.gmra.mrb[0].mxu0 %v4305
  %v4564 = vpop.f32.mrb[0].mxu0
  %v4565 = vadd.f32 %v4254, %v4564
  %v4566 = vpop.f32.mrb[0].mxu0
  %4567 = vmatprep.mubr.f32.mxu0 0.0
  %4568 = vmatmul.mubr.f32.gmra.mrb[0].mxu0 %v4308
  %v4569 = vpop.f32.mrb[0].mxu0
  %v4570 = vadd.f32 %v4254, %v4569
  %v4571 = vpop.f32.mrb[0].mxu0
  %4572 = vmatprep.mubr.f32.mxu0 0.0
  %4573 = vmatmul.mubr.f32.gmra.mrb[0].mxu0 %v4311
  %v4574 = vpop.f32.mrb[0].mxu0
  %v4575 = vadd.f32 %v4254, %v4574
  %v4576 = vpop.f32.mrb[0].mxu0
  %4577 = vmatprep.mubr.f32.mxu0 0.0
  %4578 = vmatmul.mubr.f32.gmra.mrb[0].mxu0 %v4314
  %v4579 = vpop.f32.mrb[0].mxu0
  %v4580 = vadd.f32 %v4254, %v4579
  %v4581 = vpop.f32.mrb[0].mxu0
  %4582 = vmatprep.mubr.f32.mxu0 0.0
  %4583 = vmatmul.mubr.f32.gmra.mrb[0].mxu0 %v4317
  %v4584 = vpop.f32.mrb[0].mxu0
  %v4585 = vadd.f32 %v4254, %v4584
  %v4586 = vpop.f32.mrb[0].mxu0
  %4587 = vmatprep.mubr.f32.mxu0 0.0
  %4588 = vmatmul.mubr.f32.gmra.mrb[0].mxu0 %v4320
  %v4589 = vpop.f32.mrb[0].mxu0
  %v4590 = vadd.f32 %v4254, %v4589
  %v4591 = vpop.f32.mrb[0].mxu0
  %4592 = vmatprep.mubr.f32.mxu0 0.0
  %4593 = vmatmul.mubr.f32.gmra.mrb[0].mxu0 %v4323
  %v4594 = vpop.f32.mrb[0].mxu0
  %v4595 = vadd.f32 %v4254, %v4594
  %v4596 = vpop.f32.mrb[0].mxu0
  %4597 = vmatprep.mubr.f32.mxu0 0.0
  %4598 = vmatmul.mubr.f32.gmra.mrb[0].mxu0 %v4326
  %v4599 = vpop.f32.mrb[0].mxu0
  %v4600 = vadd.f32 %v4254, %v4599
  %v4601 = vpop.f32.mrb[0].mxu0
  %4602 = vmatprep.mubr.f32.mxu0 0.0
  %4603 = vmatmul.mubr.f32.gmra.mrb[0].mxu0 %v4329
  %v4604 = vpop.f32.mrb[0].mxu0
  %v4605 = vadd.f32 %v4254, %v4604
  %v4606 = vpop.f32.mrb[0].mxu0
  %4607 = vmatprep.mubr.f32.mxu0 0.0
  %4608 = vmatmul.mubr.f32.gmra.mrb[0].mxu0 %v4332
  %v4609 = vpop.f32.mrb[0].mxu0
  %v4610 = vadd.f32 %v4254, %v4609
  %v4611 = vpop.f32.mrb[0].mxu0
  %4612 = vmatprep.mubr.f32.mxu0 0.0
  %4613 = vmatmul.mubr.f32.gmra.mrb[0].mxu0 %v4335
  %v4614 = vpop.f32.mrb[0].mxu0
  %v4615 = vadd.f32 %v4254, %v4614
  %v4616 = vpop.f32.mrb[0].mxu0
  %4617 = vmatprep.mubr.f32.mxu0 0.0
  %4618 = vmatmul.mubr.f32.gmra.mrb[0].mxu0 %v4338
  %v4619 = vpop.f32.mrb[0].mxu0
  %v4620 = vadd.f32 %v4254, %v4619
  %v4621 = vpop.f32.mrb[0].mxu0
  %4622 = vmatprep.mubr.f32.mxu0 0.0
  %4623 = vmatmul.mubr.f32.gmra.mrb[0].mxu0 %v4341
  %v4624 = vpop.f32.mrb[0].mxu0
  %v4625 = vadd.f32 %v4254, %v4624
  %v4626 = vpop.f32.mrb[0].mxu0
  %4627 = vmatprep.mubr.f32.mxu0 0.0
  %4628 = vmatmul.mubr.f32.gmra.mrb[0].mxu0 %v4344
  %v4629 = vpop.f32.mrb[0].mxu0
  %v4630 = vadd.f32 %v4254, %v4629
  %v4631 = vpop.f32.mrb[0].mxu0
  %4632 = vmatprep.mubr.f32.mxu0 0.0
  %4633 = vmatmul.mubr.f32.gmra.mrb[0].mxu0 %v4347
  %v4634 = vpop.f32.mrb[0].mxu0
  %v4635 = vadd.f32 %v4254, %v4634
  %v4636 = vpop.f32.mrb[0].mxu0
  %4637 = vmatprep.mubr.f32.mxu0 0.0
  %4638 = vmatmul.mubr.f32.gmra.mrb[0].mxu0 %v4350
  %v4639 = vpop.f32.mrb[0].mxu0
  %v4640 = vadd.f32 %v4254, %v4639
  %v4641 = vpop.f32.mrb[0].mxu0
  %4642 = vmatprep.mubr.f32.mxu0 0.0
  %4643 = vmatmul.mubr.f32.gmra.mrb[0].mxu0 %v4353
  %v4644 = vpop.f32.mrb[0].mxu0
  %v4645 = vadd.f32 %v4254, %v4644
  %v4646 = vpop.f32.mrb[0].mxu0
  %4647 = vmatprep.mubr.f32.mxu0 0.0
  %4648 = vmatmul.mubr.f32.gmra.mrb[0].mxu0 %v4356
  %v4649 = vpop.f32.mrb[0].mxu0
  %v4650 = vadd.f32 %v4254, %v4649
  %v4651 = vpop.f32.mrb[0].mxu0
  %4652 = vmatprep.mubr.f32.mxu0 0.0
  %4653 = vmatmul.mubr.f32.gmra.mrb[0].mxu0 %v4359
  %v4654 = vpop.f32.mrb[0].mxu0
  %v4655 = vadd.f32 %v4254, %v4654
  %v4656 = vpop.f32.mrb[0].mxu0
  %4657 = vmatprep.mubr.f32.mxu0 0.0
  %4658 = vmatmul.mubr.f32.gmra.mrb[0].mxu0 %v4362
  %v4659 = vpop.f32.mrb[0].mxu0
  %v4660 = vadd.f32 %v4254, %v4659
  %v4661 = vpop.f32.mrb[0].mxu0
  %4662 = vmatprep.mubr.f32.mxu0 0.0
  %4663 = vmatmul.mubr.f32.gmra.mrb[0].mxu0 %v4365
  %v4664 = vpop.f32.mrb[0].mxu0
  %v4665 = vadd.f32 %v4254, %v4664
  %v4666 = vpop.f32.mrb[0].mxu0
  %4667 = vmatprep.mubr.f32.mxu0 0.0
  %4668 = vmatmul.mubr.f32.gmra.mrb[0].mxu0 %v4368
  %v4669 = vpop.f32.mrb[0].mxu0
  %v4670 = vadd.f32 %v4254, %v4669
  %v4671 = vpop.f32.mrb[0].mxu0
  %4672 = vmatprep.mubr.f32.mxu0 0.0
  %4673 = vmatmul.mubr.f32.gmra.mrb[0].mxu0 %v4371
  %v4674 = vpop.f32.mrb[0].mxu0
  %v4675 = vadd.f32 %v4254, %v4674
  %v4676 = vpop.f32.mrb[0].mxu0
  %4677 = vmatprep.mubr.f32.mxu0 0.0
  %4678 = vmatmul.mubr.f32.gmra.mrb[0].mxu0 %v4374
  %v4679 = vpop.f32.mrb[0].mxu0
  %v4680 = vadd.f32 %v4254, %v4679
  %v4681 = vpop.f32.mrb[0].mxu0
  %4682 = vmatprep.mubr.f32.mxu0 0.0
  %4683 = vmatmul.mubr.f32.gmra.mrb[0].mxu0 %v4377
  %v4684 = vpop.f32.mrb[0].mxu0
  %v4685 = vadd.f32 %v4254, %v4684
  %v4686 = vpop.f32.mrb[0].mxu0
  %4687 = vmatprep.mubr.f32.mxu0 0.0
  %4688 = vmatmul.mubr.f32.gmra.mrb[0].mxu0 %v4380
  %v4689 = vpop.f32.mrb[0].mxu0
  %v4690 = vadd.f32 %v4254, %v4689
  %v4691 = vpop.f32.mrb[0].mxu0
  %4692 = vmatprep.mubr.f32.mxu0 0.0
  %4693 = vmatmul.mubr.f32.gmra.mrb[0].mxu0 %v4383
  %v4694 = vpop.f32.mrb[0].mxu0
  %v4695 = vadd.f32 %v4254, %v4694
  %v4696 = vpop.f32.mrb[0].mxu0
  %4697 = vmatprep.mubr.f32.mxu0 0.0
  %4698 = vmatmul.mubr.f32.gmra.mrb[0].mxu0 %v4386
  %v4699 = vpop.f32.mrb[0].mxu0
  %v4700 = vadd.f32 %v4254, %v4699
  %v4701 = vpop.f32.mrb[0].mxu0
  %4702 = vmatprep.mubr.f32.mxu0 0.0
  %4703 = vmatmul.mubr.f32.gmra.mrb[0].mxu0 %v4389
  %v4704 = vpop.f32.mrb[0].mxu0
  %v4705 = vadd.f32 %v4254, %v4704
  %v4706 = vpop.f32.mrb[0].mxu0
  %4707 = vmatprep.mubr.f32.mxu0 0.0
  %4708 = vmatmul.mubr.f32.gmra.mrb[0].mxu0 %v4392
  %v4709 = vpop.f32.mrb[0].mxu0
  %v4710 = vadd.f32 %v4254, %v4709
  %v4711 = vpop.f32.mrb[0].mxu0
  %4712 = vmatprep.mubr.f32.mxu0 0.0
  %4713 = vmatmul.mubr.f32.gmra.mrb[0].mxu0 %v4395
  %v4714 = vpop.f32.mrb[0].mxu0
  %v4715 = vadd.f32 %v4254, %v4714
  %v4716 = vpop.f32.mrb[0].mxu0
  %4717 = vmatprep.mubr.f32.mxu0 0.0
  %4718 = vmatmul.mubr.f32.gmra.mrb[0].mxu0 %v4398
  %v4719 = vpop.f32.mrb[0].mxu0
  %v4720 = vadd.f32 %v4254, %v4719
  %v4721 = vpop.f32.mrb[0].mxu0
  %4722 = vmatprep.mubr.f32.mxu0 0.0
  %4723 = vmatmul.mubr.f32.gmra.mrb[0].mxu0 %v4401
  %v4724 = vpop.f32.mrb[0].mxu0
  %v4725 = vadd.f32 %v4254, %v4724
  %v4726 = vpop.f32.mrb[0].mxu0
  %4727 = vmatprep.mubr.f32.mxu0 0.0
  %4728 = vmatmul.mubr.f32.gmra.mrb[0].mxu0 %v4404
  %v4729 = vpop.f32.mrb[0].mxu0
  %v4730 = vadd.f32 %v4254, %v4729
  %v4731 = vpop.f32.mrb[0].mxu0
  %4732 = vmatprep.mubr.f32.mxu0 0.0
  %4733 = vmatmul.mubr.f32.gmra.mrb[0].mxu0 %v4407
  %v4734 = vpop.f32.mrb[0].mxu0
  %v4735 = vadd.f32 %v4254, %v4734
  %v4736 = vpop.f32.mrb[0].mxu0
  %4737 = vmatprep.mubr.f32.mxu0 0.0
  %4738 = vmatmul.mubr.f32.gmra.mrb[0].mxu0 %v4410
  %v4739 = vpop.f32.mrb[0].mxu0
  %v4740 = vadd.f32 %v4254, %v4739
  %v4741 = vpop.f32.mrb[0].mxu0
  %4742 = vmatprep.mubr.f32.mxu0 0.0
  %4743 = vmatmul.mubr.f32.gmra.mrb[0].mxu0 %v4413
  %v4744 = vpop.f32.mrb[0].mxu0
  %v4745 = vadd.f32 %v4254, %v4744
  %v4746 = vpop.f32.mrb[0].mxu0
  %4747 = vmatprep.mubr.f32.mxu0 0.0
  %4748 = vmatmul.mubr.f32.gmra.mrb[0].mxu0 %v4416
  %v4749 = vpop.f32.mrb[0].mxu0
  %v4750 = vadd.f32 %v4254, %v4749
  %v4751 = vpop.f32.mrb[0].mxu0
  %4752 = vdwg.mxu0
  %vm4753 = vcmp.ge.f32.partialorder %v4485, 0.0
  %vm4754 = vcmp.ge.f32.partialorder %v4490, 0.0
  %vm4755 = vcmp.ge.f32.partialorder %v4495, 0.0
  %vm4756 = vcmp.ge.f32.partialorder %v4500, 0.0
  %vm4757 = vcmp.ge.f32.partialorder %v4505, 0.0
  %vm4758 = vcmp.ge.f32.partialorder %v4510, 0.0
  %vm4759 = vcmp.ge.f32.partialorder %v4515, 0.0
  %vm4760 = vcmp.ge.f32.partialorder %v4520, 0.0
  %vm4761 = vcmp.ge.f32.partialorder %v4525, 0.0
  %vm4762 = vcmp.ge.f32.partialorder %v4530, 0.0
  %vm4763 = vcmp.ge.f32.partialorder %v4535, 0.0
  %vm4764 = vcmp.ge.f32.partialorder %v4540, 0.0
  %vm4765 = vcmp.ge.f32.partialorder %v4545, 0.0
  %vm4766 = vcmp.ge.f32.partialorder %v4550, 0.0
  %vm4767 = vcmp.ge.f32.partialorder %v4555, 0.0
  %vm4768 = vcmp.ge.f32.partialorder %v4560, 0.0
  %vm4769 = vcmp.ge.f32.partialorder %v4565, 0.0
  %vm4770 = vcmp.ge.f32.partialorder %v4570, 0.0
  %vm4771 = vcmp.ge.f32.partialorder %v4575, 0.0
  %vm4772 = vcmp.ge.f32.partialorder %v4580, 0.0
  %vm4773 = vcmp.ge.f32.partialorder %v4585, 0.0
  %vm4774 = vcmp.ge.f32.partialorder %v4590, 0.0
  %vm4775 = vcmp.ge.f32.partialorder %v4595, 0.0
  %vm4776 = vcmp.ge.f32.partialorder %v4600, 0.0
  %vm4777 = vcmp.ge.f32.partialorder %v4605, 0.0
  %vm4778 = vcmp.ge.f32.partialorder %v4610, 0.0
  %vm4779 = vcmp.ge.f32.partialorder %v4615, 0.0
  %vm4780 = vcmp.ge.f32.partialorder %v4620, 0.0
  %vm4781 = vcmp.ge.f32.partialorder %v4625, 0.0
  %vm4782 = vcmp.ge.f32.partialorder %v4630, 0.0
  %vm4783 = vcmp.ge.f32.partialorder %v4635, 0.0
  %vm4784 = vcmp.ge.f32.partialorder %v4640, 0.0
  %vm4785 = vcmp.ge.f32.partialorder %v4645, 0.0
  %vm4786 = vcmp.ge.f32.partialorder %v4650, 0.0
  %vm4787 = vcmp.ge.f32.partialorder %v4655, 0.0
  %vm4788 = vcmp.ge.f32.partialorder %v4660, 0.0
  %vm4789 = vcmp.ge.f32.partialorder %v4665, 0.0
  %vm4790 = vcmp.ge.f32.partialorder %v4670, 0.0
  %vm4791 = vcmp.ge.f32.partialorder %v4675, 0.0
  %vm4792 = vcmp.ge.f32.partialorder %v4680, 0.0
  %vm4793 = vcmp.ge.f32.partialorder %v4685, 0.0
  %vm4794 = vcmp.ge.f32.partialorder %v4690, 0.0
  %vm4795 = vcmp.ge.f32.partialorder %v4695, 0.0
  %vm4796 = vcmp.ge.f32.partialorder %v4700, 0.0
  %vm4797 = vcmp.ge.f32.partialorder %v4705, 0.0
  %vm4798 = vcmp.ge.f32.partialorder %v4710, 0.0
  %vm4799 = vcmp.ge.f32.partialorder %v4715, 0.0
  %vm4800 = vcmp.ge.f32.partialorder %v4720, 0.0
  %vm4801 = vcmp.ge.f32.partialorder %v4725, 0.0
  %vm4802 = vcmp.ge.f32.partialorder %v4730, 0.0
  %vm4803 = vcmp.ge.f32.partialorder %v4735, 0.0
  %vm4804 = vcmp.ge.f32.partialorder %v4740, 0.0
  %vm4805 = vcmp.ge.f32.partialorder %v4745, 0.0
  %vm4806 = vcmp.ge.f32.partialorder %v4750, 0.0
  %v4807 = vmul.f32 %v4485, 0.1
  %v4808 = vmul.f32 %v4490, 0.1
  %v4809 = vmul.f32 %v4495, 0.1
  %v4810 = vmul.f32 %v4500, 0.1
  %v4811 = vmul.f32 %v4505, 0.1
  %v4812 = vmul.f32 %v4510, 0.1
  %v4813 = vmul.f32 %v4515, 0.1
  %v4814 = vmul.f32 %v4520, 0.1
  %v4815 = vmul.f32 %v4525, 0.1
  %v4816 = vmul.f32 %v4530, 0.1
  %v4817 = vmul.f32 %v4535, 0.1
  %v4818 = vmul.f32 %v4540, 0.1
  %v4819 = vmul.f32 %v4545, 0.1
  %v4820 = vmul.f32 %v4550, 0.1
  %v4821 = vmul.f32 %v4555, 0.1
  %v4822 = vmul.f32 %v4560, 0.1
  %v4823 = vmul.f32 %v4565, 0.1
  %v4824 = vmul.f32 %v4570, 0.1
  %v4825 = vmul.f32 %v4575, 0.1
  %v4826 = vmul.f32 %v4580, 0.1
  %v4827 = vmul.f32 %v4585, 0.1
  %v4828 = vmul.f32 %v4590, 0.1
  %v4829 = vmul.f32 %v4595, 0.1
  %v4830 = vmul.f32 %v4600, 0.1
  %v4831 = vmul.f32 %v4605, 0.1
  %v4832 = vmul.f32 %v4610, 0.1
  %v4833 = vmul.f32 %v4615, 0.1
  %v4834 = vmul.f32 %v4620, 0.1
  %v4835 = vmul.f32 %v4625, 0.1
  %v4836 = vmul.f32 %v4630, 0.1
  %v4837 = vmul.f32 %v4635, 0.1
  %v4838 = vmul.f32 %v4640, 0.1
  %v4839 = vmul.f32 %v4645, 0.1
  %v4840 = vmul.f32 %v4650, 0.1
  %v4841 = vmul.f32 %v4655, 0.1
  %v4842 = vmul.f32 %v4660, 0.1
  %v4843 = vmul.f32 %v4665, 0.1
  %v4844 = vmul.f32 %v4670, 0.1
  %v4845 = vmul.f32 %v4675, 0.1
  %v4846 = vmul.f32 %v4680, 0.1
  %v4847 = vmul.f32 %v4685, 0.1
  %v4848 = vmul.f32 %v4690, 0.1
  %v4849 = vmul.f32 %v4695, 0.1
  %v4850 = vmul.f32 %v4700, 0.1
  %v4851 = vmul.f32 %v4705, 0.1
  %v4852 = vmul.f32 %v4710, 0.1
  %v4853 = vmul.f32 %v4715, 0.1
  %v4854 = vmul.f32 %v4720, 0.1
  %v4855 = vmul.f32 %v4725, 0.1
  %v4856 = vmul.f32 %v4730, 0.1
  %v4857 = vmul.f32 %v4735, 0.1
  %v4858 = vmul.f32 %v4740, 0.1
  %v4859 = vmul.f32 %v4745, 0.1
  %v4860 = vmul.f32 %v4750, 0.1
  %v4861 = vsel %vm4753, %v4485, %v4807
  %v4862 = vsel %vm4754, %v4490, %v4808
  %v4863 = vsel %vm4755, %v4495, %v4809
  %v4864 = vsel %vm4756, %v4500, %v4810
  %v4865 = vsel %vm4757, %v4505, %v4811
  %v4866 = vsel %vm4758, %v4510, %v4812
  %v4867 = vsel %vm4759, %v4515, %v4813
  %v4868 = vsel %vm4760, %v4520, %v4814
  %v4869 = vsel %vm4761, %v4525, %v4815
  %v4870 = vsel %vm4762, %v4530, %v4816
  %v4871 = vsel %vm4763, %v4535, %v4817
  %v4872 = vsel %vm4764, %v4540, %v4818
  %v4873 = vsel %vm4765, %v4545, %v4819
  %v4874 = vsel %vm4766, %v4550, %v4820
  %v4875 = vsel %vm4767, %v4555, %v4821
  %v4876 = vsel %vm4768, %v4560, %v4822
  %v4877 = vsel %vm4769, %v4565, %v4823
  %v4878 = vsel %vm4770, %v4570, %v4824
  %v4879 = vsel %vm4771, %v4575, %v4825
  %v4880 = vsel %vm4772, %v4580, %v4826
  %v4881 = vsel %vm4773, %v4585, %v4827
  %v4882 = vsel %vm4774, %v4590, %v4828
  %v4883 = vsel %vm4775, %v4595, %v4829
  %v4884 = vsel %vm4776, %v4600, %v4830
  %v4885 = vsel %vm4777, %v4605, %v4831
  %v4886 = vsel %vm4778, %v4610, %v4832
  %v4887 = vsel %vm4779, %v4615, %v4833
  %v4888 = vsel %vm4780, %v4620, %v4834
  %v4889 = vsel %vm4781, %v4625, %v4835
  %v4890 = vsel %vm4782, %v4630, %v4836
  %v4891 = vsel %vm4783, %v4635, %v4837
  %v4892 = vsel %vm4784, %v4640, %v4838
  %v4893 = vsel %vm4785, %v4645, %v4839
  %v4894 = vsel %vm4786, %v4650, %v4840
  %v4895 = vsel %vm4787, %v4655, %v4841
  %v4896 = vsel %vm4788, %v4660, %v4842
  %v4897 = vsel %vm4789, %v4665, %v4843
  %v4898 = vsel %vm4790, %v4670, %v4844
  %v4899 = vsel %vm4791, %v4675, %v4845
  %v4900 = vsel %vm4792, %v4680, %v4846
  %v4901 = vsel %vm4793, %v4685, %v4847
  %v4902 = vsel %vm4794, %v4690, %v4848
  %v4903 = vsel %vm4795, %v4695, %v4849
  %v4904 = vsel %vm4796, %v4700, %v4850
  %v4905 = vsel %vm4797, %v4705, %v4851
  %v4906 = vsel %vm4798, %v4710, %v4852
  %v4907 = vsel %vm4799, %v4715, %v4853
  %v4908 = vsel %vm4800, %v4720, %v4854
  %v4909 = vsel %vm4801, %v4725, %v4855
  %v4910 = vsel %vm4802, %v4730, %v4856
  %v4911 = vsel %vm4803, %v4735, %v4857
  %v4912 = vsel %vm4804, %v4740, %v4858
  %v4913 = vsel %vm4805, %v4745, %v4859
  %v4914 = vsel %vm4806, %v4750, %v4860
  %4915 = vst [vmem:[%s3] sm:$0xff] %v4861
  %4916 = vst [vmem:[%s3 + $0x8] sm:$0xff] %v4862
  %4917 = vst [vmem:[%s3 + $0x10] sm:$0xff] %v4863
  %4918 = vst [vmem:[%s3 + $0x18] sm:$0xff] %v4864
  %4919 = vst [vmem:[%s3 + $0x20] sm:$0xff] %v4865
  %4920 = vst [vmem:[%s3 + $0x28] sm:$0xff] %v4866
  %4921 = vst [vmem:[%s3 + $0x30] sm:$0xff] %v4867
  %4922 = vst [vmem:[%s3 + $0x38] sm:$0xff] %v4868
  %4923 = vst [vmem:[%s3 + $0x40] sm:$0xff] %v4869
  %4924 = vst [vmem:[%s3 + $0x48] sm:$0xff] %v4870
  %4925 = vst [vmem:[%s3 + $0x50] sm:$0xff] %v4871
  %4926 = vst [vmem:[%s3 + $0x58] sm:$0xff] %v4872
  %4927 = vst [vmem:[%s3 + $0x60] sm:$0xff] %v4873
  %4928 = vst [vmem:[%s3 + $0x68] sm:$0xff] %v4874
  %4929 = vst [vmem:[%s3 + $0x70] sm:$0xff] %v4875
  %4930 = vst [vmem:[%s3 + $0x78] sm:$0xff] %v4876
  %4931 = vst [vmem:[%s3 + $0x80] sm:$0xff] %v4877
  %4932 = vst [vmem:[%s3 + $0x88] sm:$0xff] %v4878
  %4933 = vst [vmem:[%s3 + $0x90] sm:$0xff] %v4879
  %4934 = vst [vmem:[%s3 + $0x98] sm:$0xff] %v4880
  %4935 = vst [vmem:[%s3 + $0xa0] sm:$0xff] %v4881
  %4936 = vst [vmem:[%s3 + $0xa8] sm:$0xff] %v4882
  %4937 = vst [vmem:[%s3 + $0xb0] sm:$0xff] %v4883
  %4938 = vst [vmem:[%s3 + $0xb8] sm:$0xff] %v4884
  %4939 = vst [vmem:[%s3 + $0xc0] sm:$0xff] %v4885
  %4940 = vst [vmem:[%s3 + $0xc8] sm:$0xff] %v4886
  %4941 = vst [vmem:[%s3 + $0xd0] sm:$0xff] %v4887
  %4942 = vst [vmem:[%s3 + $0xd8] sm:$0xff] %v4888
  %4943 = vst [vmem:[%s3 + $0xe0] sm:$0xff] %v4889
  %4944 = vst [vmem:[%s3 + $0xe8] sm:$0xff] %v4890
  %4945 = vst [vmem:[%s3 + $0xf0] sm:$0xff] %v4891
  %4946 = vst [vmem:[%s3 + $0xf8] sm:$0xff] %v4892
  %4947 = vst [vmem:[%s3 + $0x100] sm:$0xff] %v4893
  %4948 = vst [vmem:[%s3 + $0x108] sm:$0xff] %v4894
  %4949 = vst [vmem:[%s3 + $0x110] sm:$0xff] %v4895
  %4950 = vst [vmem:[%s3 + $0x118] sm:$0xff] %v4896
  %4951 = vst [vmem:[%s3 + $0x120] sm:$0xff] %v4897
  %4952 = vst [vmem:[%s3 + $0x128] sm:$0xff] %v4898
  %4953 = vst [vmem:[%s3 + $0x130] sm:$0xff] %v4899
  %4954 = vst [vmem:[%s3 + $0x138] sm:$0xff] %v4900
  %4955 = vst [vmem:[%s3 + $0x140] sm:$0xff] %v4901
  %4956 = vst [vmem:[%s3 + $0x148] sm:$0xff] %v4902
  %4957 = vst [vmem:[%s3 + $0x150] sm:$0xff] %v4903
  %4958 = vst [vmem:[%s3 + $0x158] sm:$0xff] %v4904
  %4959 = vst [vmem:[%s3 + $0x160] sm:$0xff] %v4905
  %4960 = vst [vmem:[%s3 + $0x168] sm:$0xff] %v4906
  %4961 = vst [vmem:[%s3 + $0x170] sm:$0xff] %v4907
  %4962 = vst [vmem:[%s3 + $0x178] sm:$0xff] %v4908
  %4963 = vst [vmem:[%s3 + $0x180] sm:$0xff] %v4909
  %4964 = vst [vmem:[%s3 + $0x188] sm:$0xff] %v4910
  %4965 = vst [vmem:[%s3 + $0x190] sm:$0xff] %v4911
  %4966 = vst [vmem:[%s3 + $0x198] sm:$0xff] %v4912
  %4967 = vst [vmem:[%s3 + $0x1a0] sm:$0xff] %v4913
  %4968 = vst [vmem:[%s3 + $0x1a8] sm:$0xff] %v4914
  %s4969 = scalar_lea.vmem %s0, 256
  %v4970 = vld [vmem:[%s4969] sm:$0xff]
  %v4971 = vld [vmem:[%s4969 + $0x8] sm:$0xff]
  %v4972 = vld [vmem:[%s4969 + $0x10] sm:$0xff]
  %v4973 = vld [vmem:[%s4969 + $0x18] sm:$0xff]
  %v4974 = vld [vmem:[%s4969 + $0x20] sm:$0xff]
  %v4975 = vld [vmem:[%s4969 + $0x28] sm:$0xff]
  %v4976 = vld [vmem:[%s4969 + $0x30] sm:$0xff]
  %v4977 = vld [vmem:[%s4969 + $0x38] sm:$0xff]
  %v4978 = vld [vmem:[%s4969 + $0x40] sm:$0xff]
  %v4979 = vld [vmem:[%s4969 + $0x48] sm:$0xff]
  %v4980 = vld [vmem:[%s4969 + $0x50] sm:$0xff]
  %v4981 = vld [vmem:[%s4969 + $0x58] sm:$0xff]
  %v4982 = vld [vmem:[%s4969 + $0x60] sm:$0xff]
  %v4983 = vld [vmem:[%s4969 + $0x68] sm:$0xff]
  %v4984 = vld [vmem:[%s4969 + $0x70] sm:$0xff]
  %v4985 = vld [vmem:[%s4969 + $0x78] sm:$0xff]
  %v4986 = vld [vmem:[%s4969 + $0x80] sm:$0xff]
  %v4987 = vld [vmem:[%s4969 + $0x88] sm:$0xff]
  %v4988 = vld [vmem:[%s4969 + $0x90] sm:$0xff]
  %v4989 = vld [vmem:[%s4969 + $0x98] sm:$0xff]
  %v4990 = vld [vmem:[%s4969 + $0xa0] sm:$0xff]
  %v4991 = vld [vmem:[%s4969 + $0xa8] sm:$0xff]
  %v4992 = vld [vmem:[%s4969 + $0xb0] sm:$0xff]
  %v4993 = vld [vmem:[%s4969 + $0xb8] sm:$0xff]
  %v4994 = vld [vmem:[%s4969 + $0xc0] sm:$0xff]
  %v4995 = vld [vmem:[%s4969 + $0xc8] sm:$0xff]
  %v4996 = vld [vmem:[%s4969 + $0xd0] sm:$0xff]
  %v4997 = vld [vmem:[%s4969 + $0xd8] sm:$0xff]
  %v4998 = vld [vmem:[%s4969 + $0xe0] sm:$0xff]
  %v4999 = vld [vmem:[%s4969 + $0xe8] sm:$0xff]
  %v5000 = vld [vmem:[%s4969 + $0xf0] sm:$0xff]
  %v5001 = vld [vmem:[%s4969 + $0xf8] sm:$0xff]
  %s5002 = scalar_lea.vmem [#allocation2], 456
  %5003 = vst.msk [vmem:[%s5002 + $0x1] sm:$0xff] %vm14, %v4970
  %5004 = vst.msk [vmem:[%s5002 + $0x9] sm:$0xff] %vm14, %v4971
  %5005 = vst.msk [vmem:[%s5002 + $0x19] sm:$0xff] %vm14, %v4972
  %5006 = vst.msk [vmem:[%s5002 + $0x21] sm:$0xff] %vm14, %v4973
  %5007 = vst.msk [vmem:[%s5002 + $0x31] sm:$0xff] %vm14, %v4974
  %5008 = vst.msk [vmem:[%s5002 + $0x39] sm:$0xff] %vm14, %v4975
  %5009 = vst.msk [vmem:[%s5002 + $0x49] sm:$0xff] %vm14, %v4976
  %5010 = vst.msk [vmem:[%s5002 + $0x51] sm:$0xff] %vm14, %v4977
  %5011 = vst.msk [vmem:[%s5002 + $0x61] sm:$0xff] %vm14, %v4978
  %5012 = vst.msk [vmem:[%s5002 + $0x69] sm:$0xff] %vm14, %v4979
  %5013 = vst.msk [vmem:[%s5002 + $0x79] sm:$0xff] %vm14, %v4980
  %5014 = vst.msk [vmem:[%s5002 + $0x81] sm:$0xff] %vm14, %v4981
  %5015 = vst.msk [vmem:[%s5002 + $0x91] sm:$0xff] %vm14, %v4982
  %5016 = vst.msk [vmem:[%s5002 + $0x99] sm:$0xff] %vm14, %v4983
  %5017 = vst.msk [vmem:[%s5002 + $0xa9] sm:$0xff] %vm14, %v4984
  %5018 = vst.msk [vmem:[%s5002 + $0xb1] sm:$0xff] %vm14, %v4985
  %5019 = vst.msk [vmem:[%s5002 + $0xc1] sm:$0xff] %vm14, %v4986
  %5020 = vst.msk [vmem:[%s5002 + $0xc9] sm:$0xff] %vm14, %v4987
  %5021 = vst.msk [vmem:[%s5002 + $0xd9] sm:$0xff] %vm14, %v4988
  %5022 = vst.msk [vmem:[%s5002 + $0xe1] sm:$0xff] %vm14, %v4989
  %5023 = vst.msk [vmem:[%s5002 + $0xf1] sm:$0xff] %vm14, %v4990
  %5024 = vst.msk [vmem:[%s5002 + $0xf9] sm:$0xff] %vm14, %v4991
  %5025 = vst.msk [vmem:[%s5002 + $0x109] sm:$0xff] %vm14, %v4992
  %5026 = vst.msk [vmem:[%s5002 + $0x111] sm:$0xff] %vm14, %v4993
  %5027 = vst.msk [vmem:[%s5002 + $0x121] sm:$0xff] %vm14, %v4994
  %5028 = vst.msk [vmem:[%s5002 + $0x129] sm:$0xff] %vm14, %v4995
  %5029 = vst.msk [vmem:[%s5002 + $0x139] sm:$0xff] %vm14, %v4996
  %5030 = vst.msk [vmem:[%s5002 + $0x141] sm:$0xff] %vm14, %v4997
  %5031 = vst.msk [vmem:[%s5002 + $0x151] sm:$0xff] %vm14, %v4998
  %5032 = vst.msk [vmem:[%s5002 + $0x159] sm:$0xff] %vm14, %v4999
  %5033 = vst.msk [vmem:[%s5002 + $0x169] sm:$0xff] %vm14, %v5000
  %5034 = vst.msk [vmem:[%s5002 + $0x171] sm:$0xff] %vm14, %v5001
  %s5035 = scalar_lea.vmem [#allocation2], 432
  %v5036 = vld [vmem:[%s5035] sm:$0xff]
  %v5037 = vld [vmem:[%s5035 + $0x8] sm:$0xff]
  %v5038 = vld [vmem:[%s5035 + $0x18] sm:$0xff]
  %v5039 = vld [vmem:[%s5035 + $0x20] sm:$0xff]
  %v5040 = vld [vmem:[%s5035 + $0x30] sm:$0xff]
  %v5041 = vld [vmem:[%s5035 + $0x38] sm:$0xff]
  %v5042 = vld [vmem:[%s5035 + $0x48] sm:$0xff]
  %v5043 = vld [vmem:[%s5035 + $0x50] sm:$0xff]
  %v5044 = vld [vmem:[%s5035 + $0x60] sm:$0xff]
  %v5045 = vld [vmem:[%s5035 + $0x68] sm:$0xff]
  %v5046 = vld [vmem:[%s5035 + $0x78] sm:$0xff]
  %v5047 = vld [vmem:[%s5035 + $0x80] sm:$0xff]
  %v5048 = vld [vmem:[%s5035 + $0x90] sm:$0xff]
  %v5049 = vld [vmem:[%s5035 + $0x98] sm:$0xff]
  %v5050 = vld [vmem:[%s5035 + $0xa8] sm:$0xff]
  %v5051 = vld [vmem:[%s5035 + $0xb0] sm:$0xff]
  %v5052 = vld [vmem:[%s5035 + $0xc0] sm:$0xff]
  %v5053 = vld [vmem:[%s5035 + $0xc8] sm:$0xff]
  %v5054 = vld [vmem:[%s5035 + $0xd8] sm:$0xff]
  %v5055 = vld [vmem:[%s5035 + $0xe0] sm:$0xff]
  %v5056 = vld [vmem:[%s5035 + $0xf0] sm:$0xff]
  %v5057 = vld [vmem:[%s5035 + $0xf8] sm:$0xff]
  %v5058 = vld [vmem:[%s5035 + $0x108] sm:$0xff]
  %v5059 = vld [vmem:[%s5035 + $0x110] sm:$0xff]
  %v5060 = vld [vmem:[%s5035 + $0x120] sm:$0xff]
  %v5061 = vld [vmem:[%s5035 + $0x128] sm:$0xff]
  %v5062 = vld [vmem:[%s5035 + $0x138] sm:$0xff]
  %v5063 = vld [vmem:[%s5035 + $0x140] sm:$0xff]
  %v5064 = vld [vmem:[%s5035 + $0x150] sm:$0xff]
  %v5065 = vld [vmem:[%s5035 + $0x158] sm:$0xff]
  %v5066 = vld [vmem:[%s5035 + $0x168] sm:$0xff]
  %v5067 = vld [vmem:[%s5035 + $0x170] sm:$0xff]
  %v5068 = vld [vmem:[%s5035 + $0x180] sm:$0xff]
  %v5069 = vld [vmem:[%s5035 + $0x188] sm:$0xff]
  %v5070 = vld [vmem:[%s5035 + $0x198] sm:$0xff]
  %v5071 = vld [vmem:[%s5035 + $0x1a0] sm:$0xff]
  %v5072 = vld [vmem:[%s5035 + $0x1] sm:$0xff]
  %v5073 = vld [vmem:[%s5035 + $0x9] sm:$0xff]
  %v5074 = vld [vmem:[%s5035 + $0x19] sm:$0xff]
  %v5075 = vld [vmem:[%s5035 + $0x21] sm:$0xff]
  %v5076 = vld [vmem:[%s5035 + $0x31] sm:$0xff]
  %v5077 = vld [vmem:[%s5035 + $0x39] sm:$0xff]
  %v5078 = vld [vmem:[%s5035 + $0x49] sm:$0xff]
  %v5079 = vld [vmem:[%s5035 + $0x51] sm:$0xff]
  %v5080 = vld [vmem:[%s5035 + $0x61] sm:$0xff]
  %v5081 = vld [vmem:[%s5035 + $0x69] sm:$0xff]
  %v5082 = vld [vmem:[%s5035 + $0x79] sm:$0xff]
  %v5083 = vld [vmem:[%s5035 + $0x81] sm:$0xff]
  %v5084 = vld [vmem:[%s5035 + $0x91] sm:$0xff]
  %v5085 = vld [vmem:[%s5035 + $0x99] sm:$0xff]
  %v5086 = vld [vmem:[%s5035 + $0xa9] sm:$0xff]
  %v5087 = vld [vmem:[%s5035 + $0xb1] sm:$0xff]
  %v5088 = vld [vmem:[%s5035 + $0xc1] sm:$0xff]
  %v5089 = vld [vmem:[%s5035 + $0xc9] sm:$0xff]
  %v5090 = vld [vmem:[%s5035 + $0xd9] sm:$0xff]
  %v5091 = vld [vmem:[%s5035 + $0xe1] sm:$0xff]
  %v5092 = vld [vmem:[%s5035 + $0xf1] sm:$0xff]
  %v5093 = vld [vmem:[%s5035 + $0xf9] sm:$0xff]
  %v5094 = vld [vmem:[%s5035 + $0x109] sm:$0xff]
  %v5095 = vld [vmem:[%s5035 + $0x111] sm:$0xff]
  %v5096 = vld [vmem:[%s5035 + $0x121] sm:$0xff]
  %v5097 = vld [vmem:[%s5035 + $0x129] sm:$0xff]
  %v5098 = vld [vmem:[%s5035 + $0x139] sm:$0xff]
  %v5099 = vld [vmem:[%s5035 + $0x141] sm:$0xff]
  %v5100 = vld [vmem:[%s5035 + $0x151] sm:$0xff]
  %v5101 = vld [vmem:[%s5035 + $0x159] sm:$0xff]
  %v5102 = vld [vmem:[%s5035 + $0x169] sm:$0xff]
  %v5103 = vld [vmem:[%s5035 + $0x171] sm:$0xff]
  %v5104 = vld [vmem:[%s5035 + $0x181] sm:$0xff]
  %v5105 = vld [vmem:[%s5035 + $0x189] sm:$0xff]
  %v5106 = vld [vmem:[%s5035 + $0x199] sm:$0xff]
  %v5107 = vld [vmem:[%s5035 + $0x1a1] sm:$0xff]
  %v5108 = vld [vmem:[%s5035 + $0x2] sm:$0xff]
  %v5109 = vld [vmem:[%s5035 + $0xa] sm:$0xff]
  %v5110 = vld [vmem:[%s5035 + $0x1a] sm:$0xff]
  %v5111 = vld [vmem:[%s5035 + $0x22] sm:$0xff]
  %v5112 = vld [vmem:[%s5035 + $0x32] sm:$0xff]
  %v5113 = vld [vmem:[%s5035 + $0x3a] sm:$0xff]
  %v5114 = vld [vmem:[%s5035 + $0x4a] sm:$0xff]
  %v5115 = vld [vmem:[%s5035 + $0x52] sm:$0xff]
  %v5116 = vld [vmem:[%s5035 + $0x62] sm:$0xff]
  %v5117 = vld [vmem:[%s5035 + $0x6a] sm:$0xff]
  %v5118 = vld [vmem:[%s5035 + $0x7a] sm:$0xff]
  %v5119 = vld [vmem:[%s5035 + $0x82] sm:$0xff]
  %v5120 = vld [vmem:[%s5035 + $0x92] sm:$0xff]
  %v5121 = vld [vmem:[%s5035 + $0x9a] sm:$0xff]
  %v5122 = vld [vmem:[%s5035 + $0xaa] sm:$0xff]
  %v5123 = vld [vmem:[%s5035 + $0xb2] sm:$0xff]
  %v5124 = vld [vmem:[%s5035 + $0xc2] sm:$0xff]
  %v5125 = vld [vmem:[%s5035 + $0xca] sm:$0xff]
  %v5126 = vld [vmem:[%s5035 + $0xda] sm:$0xff]
  %v5127 = vld [vmem:[%s5035 + $0xe2] sm:$0xff]
  %v5128 = vld [vmem:[%s5035 + $0xf2] sm:$0xff]
  %v5129 = vld [vmem:[%s5035 + $0xfa] sm:$0xff]
  %v5130 = vld [vmem:[%s5035 + $0x10a] sm:$0xff]
  %v5131 = vld [vmem:[%s5035 + $0x112] sm:$0xff]
  %v5132 = vld [vmem:[%s5035 + $0x122] sm:$0xff]
  %v5133 = vld [vmem:[%s5035 + $0x12a] sm:$0xff]
  %v5134 = vld [vmem:[%s5035 + $0x13a] sm:$0xff]
  %v5135 = vld [vmem:[%s5035 + $0x142] sm:$0xff]
  %v5136 = vld [vmem:[%s5035 + $0x152] sm:$0xff]
  %v5137 = vld [vmem:[%s5035 + $0x15a] sm:$0xff]
  %v5138 = vld [vmem:[%s5035 + $0x16a] sm:$0xff]
  %v5139 = vld [vmem:[%s5035 + $0x172] sm:$0xff]
  %v5140 = vld [vmem:[%s5035 + $0x182] sm:$0xff]
  %v5141 = vld [vmem:[%s5035 + $0x18a] sm:$0xff]
  %v5142 = vld [vmem:[%s5035 + $0x19a] sm:$0xff]
  %v5143 = vld [vmem:[%s5035 + $0x1a2] sm:$0xff]
  %5180 = vrot.lane.b32.xlu0 %v5072, 4
  %v5181 = vpop.permute.xlu0 %5180
  %5182 = vrot.lane.b32.xlu0 %v5073, 4
  %v5183 = vpop.permute.xlu0 %5182
  %5184 = vrot.lane.b32.xlu0 %v5074, 4
  %v5185 = vpop.permute.xlu0 %5184
  %5186 = vrot.lane.b32.xlu0 %v5075, 4
  %v5187 = vpop.permute.xlu0 %5186
  %5188 = vrot.lane.b32.xlu0 %v5076, 4
  %v5189 = vpop.permute.xlu0 %5188
  %5190 = vrot.lane.b32.xlu0 %v5077, 4
  %v5191 = vpop.permute.xlu0 %5190
  %5192 = vrot.lane.b32.xlu0 %v5078, 4
  %v5193 = vpop.permute.xlu0 %5192
  %5194 = vrot.lane.b32.xlu0 %v5079, 4
  %v5195 = vpop.permute.xlu0 %5194
  %5196 = vrot.lane.b32.xlu0 %v5080, 4
  %v5197 = vpop.permute.xlu0 %5196
  %5198 = vrot.lane.b32.xlu0 %v5081, 4
  %v5199 = vpop.permute.xlu0 %5198
  %5200 = vrot.lane.b32.xlu0 %v5082, 4
  %v5201 = vpop.permute.xlu0 %5200
  %5202 = vrot.lane.b32.xlu0 %v5083, 4
  %v5203 = vpop.permute.xlu0 %5202
  %5204 = vrot.lane.b32.xlu0 %v5084, 4
  %v5205 = vpop.permute.xlu0 %5204
  %5206 = vrot.lane.b32.xlu0 %v5085, 4
  %v5207 = vpop.permute.xlu0 %5206
  %5208 = vrot.lane.b32.xlu0 %v5086, 4
  %v5209 = vpop.permute.xlu0 %5208
  %5210 = vrot.lane.b32.xlu0 %v5087, 4
  %v5211 = vpop.permute.xlu0 %5210
  %5212 = vrot.lane.b32.xlu0 %v5088, 4
  %v5213 = vpop.permute.xlu0 %5212
  %5214 = vrot.lane.b32.xlu0 %v5089, 4
  %v5215 = vpop.permute.xlu0 %5214
  %5216 = vrot.lane.b32.xlu0 %v5090, 4
  %v5217 = vpop.permute.xlu0 %5216
  %5218 = vrot.lane.b32.xlu0 %v5091, 4
  %v5219 = vpop.permute.xlu0 %5218
  %5220 = vrot.lane.b32.xlu0 %v5092, 4
  %v5221 = vpop.permute.xlu0 %5220
  %5222 = vrot.lane.b32.xlu0 %v5093, 4
  %v5223 = vpop.permute.xlu0 %5222
  %5224 = vrot.lane.b32.xlu0 %v5094, 4
  %v5225 = vpop.permute.xlu0 %5224
  %5226 = vrot.lane.b32.xlu0 %v5095, 4
  %v5227 = vpop.permute.xlu0 %5226
  %5228 = vrot.lane.b32.xlu0 %v5096, 4
  %v5229 = vpop.permute.xlu0 %5228
  %5230 = vrot.lane.b32.xlu0 %v5097, 4
  %v5231 = vpop.permute.xlu0 %5230
  %5232 = vrot.lane.b32.xlu0 %v5098, 4
  %v5233 = vpop.permute.xlu0 %5232
  %5234 = vrot.lane.b32.xlu0 %v5099, 4
  %v5235 = vpop.permute.xlu0 %5234
  %5236 = vrot.lane.b32.xlu0 %v5100, 4
  %v5237 = vpop.permute.xlu0 %5236
  %5238 = vrot.lane.b32.xlu0 %v5101, 4
  %v5239 = vpop.permute.xlu0 %5238
  %5240 = vrot.lane.b32.xlu0 %v5102, 4
  %v5241 = vpop.permute.xlu0 %5240
  %5242 = vrot.lane.b32.xlu0 %v5103, 4
  %v5243 = vpop.permute.xlu0 %5242
  %5244 = vrot.lane.b32.xlu0 %v5104, 4
  %v5245 = vpop.permute.xlu0 %5244
  %5246 = vrot.lane.b32.xlu0 %v5105, 4
  %v5247 = vpop.permute.xlu0 %5246
  %5248 = vrot.lane.b32.xlu0 %v5106, 4
  %v5249 = vpop.permute.xlu0 %5248
  %5250 = vrot.lane.b32.xlu0 %v5107, 4
  %v5251 = vpop.permute.xlu0 %5250
  %5324 = vrot.lane.b32.xlu0 %v5108, 8
  %v5325 = vpop.permute.xlu0 %5324
  %5326 = vrot.lane.b32.xlu0 %v5109, 8
  %v5327 = vpop.permute.xlu0 %5326
  %5328 = vrot.lane.b32.xlu0 %v5110, 8
  %v5329 = vpop.permute.xlu0 %5328
  %5330 = vrot.lane.b32.xlu0 %v5111, 8
  %v5331 = vpop.permute.xlu0 %5330
  %5332 = vrot.lane.b32.xlu0 %v5112, 8
  %v5333 = vpop.permute.xlu0 %5332
  %5334 = vrot.lane.b32.xlu0 %v5113, 8
  %v5335 = vpop.permute.xlu0 %5334
  %5336 = vrot.lane.b32.xlu0 %v5114, 8
  %v5337 = vpop.permute.xlu0 %5336
  %5338 = vrot.lane.b32.xlu0 %v5115, 8
  %v5339 = vpop.permute.xlu0 %5338
  %5340 = vrot.lane.b32.xlu0 %v5116, 8
  %v5341 = vpop.permute.xlu0 %5340
  %5342 = vrot.lane.b32.xlu0 %v5117, 8
  %v5343 = vpop.permute.xlu0 %5342
  %5344 = vrot.lane.b32.xlu0 %v5118, 8
  %v5345 = vpop.permute.xlu0 %5344
  %5346 = vrot.lane.b32.xlu0 %v5119, 8
  %v5347 = vpop.permute.xlu0 %5346
  %5348 = vrot.lane.b32.xlu0 %v5120, 8
  %v5349 = vpop.permute.xlu0 %5348
  %5350 = vrot.lane.b32.xlu0 %v5121, 8
  %v5351 = vpop.permute.xlu0 %5350
  %5352 = vrot.lane.b32.xlu0 %v5122, 8
  %v5353 = vpop.permute.xlu0 %5352
  %5354 = vrot.lane.b32.xlu0 %v5123, 8
  %v5355 = vpop.permute.xlu0 %5354
  %5356 = vrot.lane.b32.xlu0 %v5124, 8
  %v5357 = vpop.permute.xlu0 %5356
  %5358 = vrot.lane.b32.xlu0 %v5125, 8
  %v5359 = vpop.permute.xlu0 %5358
  %5360 = vrot.lane.b32.xlu0 %v5126, 8
  %v5361 = vpop.permute.xlu0 %5360
  %5362 = vrot.lane.b32.xlu0 %v5127, 8
  %v5363 = vpop.permute.xlu0 %5362
  %5364 = vrot.lane.b32.xlu0 %v5128, 8
  %v5365 = vpop.permute.xlu0 %5364
  %5366 = vrot.lane.b32.xlu0 %v5129, 8
  %v5367 = vpop.permute.xlu0 %5366
  %5368 = vrot.lane.b32.xlu0 %v5130, 8
  %v5369 = vpop.permute.xlu0 %5368
  %5370 = vrot.lane.b32.xlu0 %v5131, 8
  %v5371 = vpop.permute.xlu0 %5370
  %5372 = vrot.lane.b32.xlu0 %v5132, 8
  %v5373 = vpop.permute.xlu0 %5372
  %5374 = vrot.lane.b32.xlu0 %v5133, 8
  %v5375 = vpop.permute.xlu0 %5374
  %5376 = vrot.lane.b32.xlu0 %v5134, 8
  %v5377 = vpop.permute.xlu0 %5376
  %5378 = vrot.lane.b32.xlu0 %v5135, 8
  %v5379 = vpop.permute.xlu0 %5378
  %5380 = vrot.lane.b32.xlu0 %v5136, 8
  %v5381 = vpop.permute.xlu0 %5380
  %5382 = vrot.lane.b32.xlu0 %v5137, 8
  %v5383 = vpop.permute.xlu0 %5382
  %5384 = vrot.lane.b32.xlu0 %v5138, 8
  %v5385 = vpop.permute.xlu0 %5384
  %5386 = vrot.lane.b32.xlu0 %v5139, 8
  %v5387 = vpop.permute.xlu0 %5386
  %5388 = vrot.lane.b32.xlu0 %v5140, 8
  %v5389 = vpop.permute.xlu0 %5388
  %5390 = vrot.lane.b32.xlu0 %v5141, 8
  %v5391 = vpop.permute.xlu0 %5390
  %5392 = vrot.lane.b32.xlu0 %v5142, 8
  %v5393 = vpop.permute.xlu0 %5392
  %5394 = vrot.lane.b32.xlu0 %v5143, 8
  %v5395 = vpop.permute.xlu0 %5394
  %v5432 = vsel %vm14, %v5036, %v5181
  %v5433 = vsel %vm14, %v5037, %v5183
  %v5434 = vsel %vm14, %v5038, %v5185
  %v5435 = vsel %vm14, %v5039, %v5187
  %v5436 = vsel %vm14, %v5040, %v5189
  %v5437 = vsel %vm14, %v5041, %v5191
  %v5438 = vsel %vm14, %v5042, %v5193
  %v5439 = vsel %vm14, %v5043, %v5195
  %v5440 = vsel %vm14, %v5044, %v5197
  %v5441 = vsel %vm14, %v5045, %v5199
  %v5442 = vsel %vm14, %v5046, %v5201
  %v5443 = vsel %vm14, %v5047, %v5203
  %v5444 = vsel %vm14, %v5048, %v5205
  %v5445 = vsel %vm14, %v5049, %v5207
  %v5446 = vsel %vm14, %v5050, %v5209
  %v5447 = vsel %vm14, %v5051, %v5211
  %v5448 = vsel %vm14, %v5052, %v5213
  %v5449 = vsel %vm14, %v5053, %v5215
  %v5450 = vsel %vm14, %v5054, %v5217
  %v5451 = vsel %vm14, %v5055, %v5219
  %v5452 = vsel %vm14, %v5056, %v5221
  %v5453 = vsel %vm14, %v5057, %v5223
  %v5454 = vsel %vm14, %v5058, %v5225
  %v5455 = vsel %vm14, %v5059, %v5227
  %v5456 = vsel %vm14, %v5060, %v5229
  %v5457 = vsel %vm14, %v5061, %v5231
  %v5458 = vsel %vm14, %v5062, %v5233
  %v5459 = vsel %vm14, %v5063, %v5235
  %v5460 = vsel %vm14, %v5064, %v5237
  %v5461 = vsel %vm14, %v5065, %v5239
  %v5462 = vsel %vm14, %v5066, %v5241
  %v5463 = vsel %vm14, %v5067, %v5243
  %v5464 = vsel %vm14, %v5068, %v5245
  %v5465 = vsel %vm14, %v5069, %v5247
  %v5466 = vsel %vm14, %v5070, %v5249
  %v5467 = vsel %vm14, %v5071, %v5251
  %v5468 = vsel %vm124, %v5432, %v5325
  %v5469 = vsel %vm124, %v5433, %v5327
  %v5470 = vsel %vm124, %v5434, %v5329
  %v5471 = vsel %vm124, %v5435, %v5331
  %v5472 = vsel %vm124, %v5436, %v5333
  %v5473 = vsel %vm124, %v5437, %v5335
  %v5474 = vsel %vm124, %v5438, %v5337
  %v5475 = vsel %vm124, %v5439, %v5339
  %v5476 = vsel %vm124, %v5440, %v5341
  %v5477 = vsel %vm124, %v5441, %v5343
  %v5478 = vsel %vm124, %v5442, %v5345
  %v5479 = vsel %vm124, %v5443, %v5347
  %v5480 = vsel %vm124, %v5444, %v5349
  %v5481 = vsel %vm124, %v5445, %v5351
  %v5482 = vsel %vm124, %v5446, %v5353
  %v5483 = vsel %vm124, %v5447, %v5355
  %v5484 = vsel %vm124, %v5448, %v5357
  %v5485 = vsel %vm124, %v5449, %v5359
  %v5486 = vsel %vm124, %v5450, %v5361
  %v5487 = vsel %vm124, %v5451, %v5363
  %v5488 = vsel %vm124, %v5452, %v5365
  %v5489 = vsel %vm124, %v5453, %v5367
  %v5490 = vsel %vm124, %v5454, %v5369
  %v5491 = vsel %vm124, %v5455, %v5371
  %v5492 = vsel %vm124, %v5456, %v5373
  %v5493 = vsel %vm124, %v5457, %v5375
  %v5494 = vsel %vm124, %v5458, %v5377
  %v5495 = vsel %vm124, %v5459, %v5379
  %v5496 = vsel %vm124, %v5460, %v5381
  %v5497 = vsel %vm124, %v5461, %v5383
  %v5498 = vsel %vm124, %v5462, %v5385
  %v5499 = vsel %vm124, %v5463, %v5387
  %v5500 = vsel %vm124, %v5464, %v5389
  %v5501 = vsel %vm124, %v5465, %v5391
  %v5502 = vsel %vm124, %v5466, %v5393
  %v5503 = vsel %vm124, %v5467, %v5395
  %5536 = vrot.lane.b32.xlu0 %v5470, 12
  %v5537 = vpop.permute.xlu0 %5536
  %5538 = vrot.lane.b32.xlu0 %v5471, 12
  %v5539 = vpop.permute.xlu0 %5538
  %5540 = vrot.lane.b32.xlu0 %v5472, 12
  %v5541 = vpop.permute.xlu0 %5540
  %5542 = vrot.lane.b32.xlu0 %v5473, 12
  %v5543 = vpop.permute.xlu0 %5542
  %5544 = vrot.lane.b32.xlu0 %v5474, 12
  %v5545 = vpop.permute.xlu0 %5544
  %5546 = vrot.lane.b32.xlu0 %v5475, 12
  %v5547 = vpop.permute.xlu0 %5546
  %5548 = vrot.lane.b32.xlu0 %v5476, 12
  %v5549 = vpop.permute.xlu0 %5548
  %5550 = vrot.lane.b32.xlu0 %v5477, 12
  %v5551 = vpop.permute.xlu0 %5550
  %5552 = vrot.lane.b32.xlu0 %v5478, 12
  %v5553 = vpop.permute.xlu0 %5552
  %5554 = vrot.lane.b32.xlu0 %v5479, 12
  %v5555 = vpop.permute.xlu0 %5554
  %5556 = vrot.lane.b32.xlu0 %v5480, 12
  %v5557 = vpop.permute.xlu0 %5556
  %5558 = vrot.lane.b32.xlu0 %v5481, 12
  %v5559 = vpop.permute.xlu0 %5558
  %5560 = vrot.lane.b32.xlu0 %v5482, 12
  %v5561 = vpop.permute.xlu0 %5560
  %5562 = vrot.lane.b32.xlu0 %v5483, 12
  %v5563 = vpop.permute.xlu0 %5562
  %5564 = vrot.lane.b32.xlu0 %v5484, 12
  %v5565 = vpop.permute.xlu0 %5564
  %5566 = vrot.lane.b32.xlu0 %v5485, 12
  %v5567 = vpop.permute.xlu0 %5566
  %5568 = vrot.lane.b32.xlu0 %v5486, 12
  %v5569 = vpop.permute.xlu0 %5568
  %5570 = vrot.lane.b32.xlu0 %v5487, 12
  %v5571 = vpop.permute.xlu0 %5570
  %5572 = vrot.lane.b32.xlu0 %v5488, 12
  %v5573 = vpop.permute.xlu0 %5572
  %5574 = vrot.lane.b32.xlu0 %v5489, 12
  %v5575 = vpop.permute.xlu0 %5574
  %5576 = vrot.lane.b32.xlu0 %v5490, 12
  %v5577 = vpop.permute.xlu0 %5576
  %5578 = vrot.lane.b32.xlu0 %v5491, 12
  %v5579 = vpop.permute.xlu0 %5578
  %5580 = vrot.lane.b32.xlu0 %v5492, 12
  %v5581 = vpop.permute.xlu0 %5580
  %5582 = vrot.lane.b32.xlu0 %v5493, 12
  %v5583 = vpop.permute.xlu0 %5582
  %5584 = vrot.lane.b32.xlu0 %v5494, 12
  %v5585 = vpop.permute.xlu0 %5584
  %5586 = vrot.lane.b32.xlu0 %v5495, 12
  %v5587 = vpop.permute.xlu0 %5586
  %5588 = vrot.lane.b32.xlu0 %v5496, 12
  %v5589 = vpop.permute.xlu0 %5588
  %5590 = vrot.lane.b32.xlu0 %v5497, 12
  %v5591 = vpop.permute.xlu0 %5590
  %5592 = vrot.lane.b32.xlu0 %v5498, 12
  %v5593 = vpop.permute.xlu0 %5592
  %5594 = vrot.lane.b32.xlu0 %v5499, 12
  %v5595 = vpop.permute.xlu0 %5594
  %5596 = vrot.lane.b32.xlu0 %v5500, 12
  %v5597 = vpop.permute.xlu0 %5596
  %5598 = vrot.lane.b32.xlu0 %v5501, 12
  %v5599 = vpop.permute.xlu0 %5598
  %5634 = vrot.lane.b32.xlu0 %v5472, 24
  %v5635 = vpop.permute.xlu0 %5634
  %5636 = vrot.lane.b32.xlu0 %v5473, 24
  %v5637 = vpop.permute.xlu0 %5636
  %5638 = vrot.lane.b32.xlu0 %v5474, 24
  %v5639 = vpop.permute.xlu0 %5638
  %5640 = vrot.lane.b32.xlu0 %v5475, 24
  %v5641 = vpop.permute.xlu0 %5640
  %5642 = vrot.lane.b32.xlu0 %v5476, 24
  %v5643 = vpop.permute.xlu0 %5642
  %5644 = vrot.lane.b32.xlu0 %v5477, 24
  %v5645 = vpop.permute.xlu0 %5644
  %5646 = vrot.lane.b32.xlu0 %v5478, 24
  %v5647 = vpop.permute.xlu0 %5646
  %5648 = vrot.lane.b32.xlu0 %v5479, 24
  %v5649 = vpop.permute.xlu0 %5648
  %5650 = vrot.lane.b32.xlu0 %v5480, 24
  %v5651 = vpop.permute.xlu0 %5650
  %5652 = vrot.lane.b32.xlu0 %v5481, 24
  %v5653 = vpop.permute.xlu0 %5652
  %5654 = vrot.lane.b32.xlu0 %v5482, 24
  %v5655 = vpop.permute.xlu0 %5654
  %5656 = vrot.lane.b32.xlu0 %v5483, 24
  %v5657 = vpop.permute.xlu0 %5656
  %5658 = vrot.lane.b32.xlu0 %v5484, 24
  %v5659 = vpop.permute.xlu0 %5658
  %5660 = vrot.lane.b32.xlu0 %v5485, 24
  %v5661 = vpop.permute.xlu0 %5660
  %5662 = vrot.lane.b32.xlu0 %v5486, 24
  %v5663 = vpop.permute.xlu0 %5662
  %5664 = vrot.lane.b32.xlu0 %v5487, 24
  %v5665 = vpop.permute.xlu0 %5664
  %5666 = vrot.lane.b32.xlu0 %v5488, 24
  %v5667 = vpop.permute.xlu0 %5666
  %5668 = vrot.lane.b32.xlu0 %v5489, 24
  %v5669 = vpop.permute.xlu0 %5668
  %5670 = vrot.lane.b32.xlu0 %v5490, 24
  %v5671 = vpop.permute.xlu0 %5670
  %5672 = vrot.lane.b32.xlu0 %v5491, 24
  %v5673 = vpop.permute.xlu0 %5672
  %5674 = vrot.lane.b32.xlu0 %v5492, 24
  %v5675 = vpop.permute.xlu0 %5674
  %5676 = vrot.lane.b32.xlu0 %v5493, 24
  %v5677 = vpop.permute.xlu0 %5676
  %5678 = vrot.lane.b32.xlu0 %v5494, 24
  %v5679 = vpop.permute.xlu0 %5678
  %5680 = vrot.lane.b32.xlu0 %v5495, 24
  %v5681 = vpop.permute.xlu0 %5680
  %5682 = vrot.lane.b32.xlu0 %v5496, 24
  %v5683 = vpop.permute.xlu0 %5682
  %5684 = vrot.lane.b32.xlu0 %v5497, 24
  %v5685 = vpop.permute.xlu0 %5684
  %5686 = vrot.lane.b32.xlu0 %v5498, 24
  %v5687 = vpop.permute.xlu0 %5686
  %5688 = vrot.lane.b32.xlu0 %v5499, 24
  %v5689 = vpop.permute.xlu0 %5688
  %5690 = vrot.lane.b32.xlu0 %v5500, 24
  %v5691 = vpop.permute.xlu0 %5690
  %5692 = vrot.lane.b32.xlu0 %v5501, 24
  %v5693 = vpop.permute.xlu0 %5692
  %5694 = vrot.lane.b32.xlu0 %v5502, 24
  %v5695 = vpop.permute.xlu0 %5694
  %5696 = vrot.lane.b32.xlu0 %v5503, 24
  %v5697 = vpop.permute.xlu0 %5696
  %v5730 = vsel %vm1045, %v5468, %v5537
  %v5731 = vsel %vm1045, %v5469, %v5539
  %v5732 = vsel %vm1045, %v5470, %v5541
  %v5733 = vsel %vm1045, %v5471, %v5543
  %v5734 = vsel %vm1045, %v5472, %v5545
  %v5735 = vsel %vm1045, %v5473, %v5547
  %v5736 = vsel %vm1045, %v5474, %v5549
  %v5737 = vsel %vm1045, %v5475, %v5551
  %v5738 = vsel %vm1045, %v5476, %v5553
  %v5739 = vsel %vm1045, %v5477, %v5555
  %v5740 = vsel %vm1045, %v5478, %v5557
  %v5741 = vsel %vm1045, %v5479, %v5559
  %v5742 = vsel %vm1045, %v5480, %v5561
  %v5743 = vsel %vm1045, %v5481, %v5563
  %v5744 = vsel %vm1045, %v5482, %v5565
  %v5745 = vsel %vm1045, %v5483, %v5567
  %v5746 = vsel %vm1045, %v5484, %v5569
  %v5747 = vsel %vm1045, %v5485, %v5571
  %v5748 = vsel %vm1045, %v5486, %v5573
  %v5749 = vsel %vm1045, %v5487, %v5575
  %v5750 = vsel %vm1045, %v5488, %v5577
  %v5751 = vsel %vm1045, %v5489, %v5579
  %v5752 = vsel %vm1045, %v5490, %v5581
  %v5753 = vsel %vm1045, %v5491, %v5583
  %v5754 = vsel %vm1045, %v5492, %v5585
  %v5755 = vsel %vm1045, %v5493, %v5587
  %v5756 = vsel %vm1045, %v5494, %v5589
  %v5757 = vsel %vm1045, %v5495, %v5591
  %v5758 = vsel %vm1045, %v5496, %v5593
  %v5759 = vsel %vm1045, %v5497, %v5595
  %v5760 = vsel %vm1045, %v5498, %v5597
  %v5761 = vsel %vm1045, %v5499, %v5599
  %v5762 = vsel %vm1078, %v5730, %v5635
  %v5763 = vsel %vm1078, %v5731, %v5637
  %v5764 = vsel %vm1078, %v5732, %v5639
  %v5765 = vsel %vm1078, %v5733, %v5641
  %v5766 = vsel %vm1078, %v5734, %v5643
  %v5767 = vsel %vm1078, %v5735, %v5645
  %v5768 = vsel %vm1078, %v5736, %v5647
  %v5769 = vsel %vm1078, %v5737, %v5649
  %v5770 = vsel %vm1078, %v5738, %v5651
  %v5771 = vsel %vm1078, %v5739, %v5653
  %v5772 = vsel %vm1078, %v5740, %v5655
  %v5773 = vsel %vm1078, %v5741, %v5657
  %v5774 = vsel %vm1078, %v5742, %v5659
  %v5775 = vsel %vm1078, %v5743, %v5661
  %v5776 = vsel %vm1078, %v5744, %v5663
  %v5777 = vsel %vm1078, %v5745, %v5665
  %v5778 = vsel %vm1078, %v5746, %v5667
  %v5779 = vsel %vm1078, %v5747, %v5669
  %v5780 = vsel %vm1078, %v5748, %v5671
  %v5781 = vsel %vm1078, %v5749, %v5673
  %v5782 = vsel %vm1078, %v5750, %v5675
  %v5783 = vsel %vm1078, %v5751, %v5677
  %v5784 = vsel %vm1078, %v5752, %v5679
  %v5785 = vsel %vm1078, %v5753, %v5681
  %v5786 = vsel %vm1078, %v5754, %v5683
  %v5787 = vsel %vm1078, %v5755, %v5685
  %v5788 = vsel %vm1078, %v5756, %v5687
  %v5789 = vsel %vm1078, %v5757, %v5689
  %v5790 = vsel %vm1078, %v5758, %v5691
  %v5791 = vsel %vm1078, %v5759, %v5693
  %v5792 = vsel %vm1078, %v5760, %v5695
  %v5793 = vsel %vm1078, %v5761, %v5697
  %v5794 = vld [vmem:[%s1] sm:$0xff]
  %v5795 = vld [vmem:[%s1 + $0x8] sm:$0xff]
  %v5796 = vld [vmem:[%s1 + $0x10] sm:$0xff]
  %v5797 = vld [vmem:[%s1 + $0x18] sm:$0xff]
  %v5798 = vld [vmem:[%s1 + $0x20] sm:$0xf]
  %v5799 = vld [vmem:[%s2] sm:$0x1]
  %v5800 = vlaneseq
  %v5801 = vshrl.u32 %v5800, 7
  %v5802 = vsub.s32 0, %v5801
  %v5803 = vrot.slane %v5799, %v5802
  %v5805 = vsel %vm1121, %v5762, 0
  %v5808 = vsel %vm1121, %v5763, 0
  %v5811 = vsel %vm1121, %v5764, 0
  %v5814 = vsel %vm1121, %v5765, 0
  %v5817 = vsel %vm1121, %v5766, 0
  %v5820 = vsel %vm1121, %v5767, 0
  %v5823 = vsel %vm1121, %v5768, 0
  %v5826 = vsel %vm1121, %v5769, 0
  %v5829 = vsel %vm1121, %v5770, 0
  %v5832 = vsel %vm1121, %v5771, 0
  %v5835 = vsel %vm1121, %v5772, 0
  %v5838 = vsel %vm1121, %v5773, 0
  %v5841 = vsel %vm1121, %v5774, 0
  %v5844 = vsel %vm1121, %v5775, 0
  %v5847 = vsel %vm1121, %v5776, 0
  %v5850 = vsel %vm1121, %v5777, 0
  %v5853 = vsel %vm1121, %v5778, 0
  %v5856 = vsel %vm1121, %v5779, 0
  %v5859 = vsel %vm1121, %v5780, 0
  %v5862 = vsel %vm1121, %v5781, 0
  %v5865 = vsel %vm1121, %v5782, 0
  %v5868 = vsel %vm1121, %v5783, 0
  %v5871 = vsel %vm1121, %v5784, 0
  %v5874 = vsel %vm1121, %v5785, 0
  %v5877 = vsel %vm1121, %v5786, 0
  %v5880 = vsel %vm1121, %v5787, 0
  %v5883 = vsel %vm1121, %v5788, 0
  %v5886 = vsel %vm1121, %v5789, 0
  %v5889 = vsel %vm1121, %v5790, 0
  %v5892 = vsel %vm1121, %v5791, 0
  %v5895 = vsel %vm1121, %v5792, 0
  %v5898 = vsel %vm1121, %v5793, 0
  %v5901 = vsel %vm1218, %v5798, 0
  %5903 = vmatprep.subr.mxu0 0.0
  %5904 = vmatpush1.msra.mxu0 %v5794
  %5905 = vmatprep.subr.mxu0 0.0
  %5906 = vmatpush1.msra.mxu0 %v5795
  %5907 = vmatprep.subr.mxu0 0.0
  %5908 = vmatpush1.msra.mxu0 %v5796
  %5909 = vmatprep.subr.mxu0 0.0
  %5910 = vmatpush1.msra.mxu0 %v5797
  %5911 = vmatprep.subr.mxu0 0.0
  %5912 = vmatpush1.msra.mxu0 %v5901
  %5913 = vmatprep.subr.mxu0 0.0
  %5914 = vmatpush1.msra.mxu0 0.0
  %5915 = vmatprep.subr.mxu0 0.0
  %5916 = vmatpush1.msra.mxu0 0.0
  %5917 = vmatprep.subr.mxu0 0.0
  %5918 = vmatpush1.msra.mxu0 0.0
  %5919 = vmatprep.subr.mxu0 0.0
  %5920 = vmatpush1.msra.mxu0 0.0
  %5921 = vmatprep.subr.mxu0 0.0
  %5922 = vmatpush1.msra.mxu0 0.0
  %5923 = vmatprep.subr.mxu0 0.0
  %5924 = vmatpush1.msra.mxu0 0.0
  %5925 = vmatprep.subr.mxu0 0.0
  %5926 = vmatpush1.msra.mxu0 0.0
  %5927 = vmatprep.subr.mxu0 0.0
  %5928 = vmatpush1.msra.mxu0 0.0
  %5929 = vmatprep.subr.mxu0 0.0
  %5930 = vmatpush1.msra.mxu0 0.0
  %5931 = vmatprep.subr.mxu0 0.0
  %5932 = vmatpush1.msra.mxu0 0.0
  %5933 = vmatprep.subr.mxu0 0.0
  %5934 = vmatpush1.msra.mxu0 0.0
  %5935 = vmatprep.subr.mxu0 0.0
  %5936 = vmatpush1.msra.mxu0 0.0
  %5937 = vmatprep.subr.mxu0 0.0
  %5938 = vmatpush1.msra.mxu0 0.0
  %5939 = vmatprep.subr.mxu0 0.0
  %5940 = vmatpush1.msra.mxu0 0.0
  %5941 = vmatprep.subr.mxu0 0.0
  %5942 = vmatpush1.msra.mxu0 0.0
  %5943 = vmatprep.subr.mxu0 0.0
  %5944 = vmatpush1.msra.mxu0 0.0
  %5945 = vmatprep.subr.mxu0 0.0
  %5946 = vmatpush1.msra.mxu0 0.0
  %5947 = vmatprep.subr.mxu0 0.0
  %5948 = vmatpush1.msra.mxu0 0.0
  %5949 = vmatprep.subr.mxu0 0.0
  %5950 = vmatpush1.msra.mxu0 0.0
  %5951 = vmatprep.subr.mxu0 0.0
  %5952 = vmatpush1.msra.mxu0 0.0
  %5953 = vmatprep.subr.mxu0 0.0
  %5954 = vmatpush1.msra.mxu0 0.0
  %5955 = vmatprep.subr.mxu0 0.0
  %5956 = vmatpush1.msra.mxu0 0.0
  %5957 = vmatprep.subr.mxu0 0.0
  %5958 = vmatpush1.msra.mxu0 0.0
  %5959 = vmatprep.subr.mxu0 0.0
  %5960 = vmatpush1.msra.mxu0 0.0
  %5961 = vmatprep.subr.mxu0 0.0
  %5962 = vmatpush1.msra.mxu0 0.0
  %5963 = vmatprep.subr.mxu0 0.0
  %5964 = vmatpush1.msra.mxu0 0.0
  %5965 = vmatprep.subr.mxu0 0.0
  %5966 = vmatpush1.msra.mxu0 0.0
  %5967 = vmatprep.mubr.f32.mxu0 0.0
  %5968 = vmatmul.mubr.f32.gmra.mrb[0].mxu0 %v5805
  %v5969 = vpop.f32.mrb[0].mxu0
  %v5970 = vadd.f32 %v5803, %v5969
  %v5971 = vpop.f32.mrb[0].mxu0
  %5972 = vmatprep.mubr.f32.mxu0 0.0
  %5973 = vmatmul.mubr.f32.gmra.mrb[0].mxu0 %v5808
  %v5974 = vpop.f32.mrb[0].mxu0
  %v5975 = vadd.f32 %v5803, %v5974
  %v5976 = vpop.f32.mrb[0].mxu0
  %5977 = vmatprep.mubr.f32.mxu0 0.0
  %5978 = vmatmul.mubr.f32.gmra.mrb[0].mxu0 %v5811
  %v5979 = vpop.f32.mrb[0].mxu0
  %v5980 = vadd.f32 %v5803, %v5979
  %v5981 = vpop.f32.mrb[0].mxu0
  %5982 = vmatprep.mubr.f32.mxu0 0.0
  %5983 = vmatmul.mubr.f32.gmra.mrb[0].mxu0 %v5814
  %v5984 = vpop.f32.mrb[0].mxu0
  %v5985 = vadd.f32 %v5803, %v5984
  %v5986 = vpop.f32.mrb[0].mxu0
  %5987 = vmatprep.mubr.f32.mxu0 0.0
  %5988 = vmatmul.mubr.f32.gmra.mrb[0].mxu0 %v5817
  %v5989 = vpop.f32.mrb[0].mxu0
  %v5990 = vadd.f32 %v5803, %v5989
  %v5991 = vpop.f32.mrb[0].mxu0
  %5992 = vmatprep.mubr.f32.mxu0 0.0
  %5993 = vmatmul.mubr.f32.gmra.mrb[0].mxu0 %v5820
  %v5994 = vpop.f32.mrb[0].mxu0
  %v5995 = vadd.f32 %v5803, %v5994
  %v5996 = vpop.f32.mrb[0].mxu0
  %5997 = vmatprep.mubr.f32.mxu0 0.0
  %5998 = vmatmul.mubr.f32.gmra.mrb[0].mxu0 %v5823
  %v5999 = vpop.f32.mrb[0].mxu0
  %v6000 = vadd.f32 %v5803, %v5999
  %v6001 = vpop.f32.mrb[0].mxu0
  %6002 = vmatprep.mubr.f32.mxu0 0.0
  %6003 = vmatmul.mubr.f32.gmra.mrb[0].mxu0 %v5826
  %v6004 = vpop.f32.mrb[0].mxu0
  %v6005 = vadd.f32 %v5803, %v6004
  %v6006 = vpop.f32.mrb[0].mxu0
  %6007 = vmatprep.mubr.f32.mxu0 0.0
  %6008 = vmatmul.mubr.f32.gmra.mrb[0].mxu0 %v5829
  %v6009 = vpop.f32.mrb[0].mxu0
  %v6010 = vadd.f32 %v5803, %v6009
  %v6011 = vpop.f32.mrb[0].mxu0
  %6012 = vmatprep.mubr.f32.mxu0 0.0
  %6013 = vmatmul.mubr.f32.gmra.mrb[0].mxu0 %v5832
  %v6014 = vpop.f32.mrb[0].mxu0
  %v6015 = vadd.f32 %v5803, %v6014
  %v6016 = vpop.f32.mrb[0].mxu0
  %6017 = vmatprep.mubr.f32.mxu0 0.0
  %6018 = vmatmul.mubr.f32.gmra.mrb[0].mxu0 %v5835
  %v6019 = vpop.f32.mrb[0].mxu0
  %v6020 = vadd.f32 %v5803, %v6019
  %v6021 = vpop.f32.mrb[0].mxu0
  %6022 = vmatprep.mubr.f32.mxu0 0.0
  %6023 = vmatmul.mubr.f32.gmra.mrb[0].mxu0 %v5838
  %v6024 = vpop.f32.mrb[0].mxu0
  %v6025 = vadd.f32 %v5803, %v6024
  %v6026 = vpop.f32.mrb[0].mxu0
  %6027 = vmatprep.mubr.f32.mxu0 0.0
  %6028 = vmatmul.mubr.f32.gmra.mrb[0].mxu0 %v5841
  %v6029 = vpop.f32.mrb[0].mxu0
  %v6030 = vadd.f32 %v5803, %v6029
  %v6031 = vpop.f32.mrb[0].mxu0
  %6032 = vmatprep.mubr.f32.mxu0 0.0
  %6033 = vmatmul.mubr.f32.gmra.mrb[0].mxu0 %v5844
  %v6034 = vpop.f32.mrb[0].mxu0
  %v6035 = vadd.f32 %v5803, %v6034
  %v6036 = vpop.f32.mrb[0].mxu0
  %6037 = vmatprep.mubr.f32.mxu0 0.0
  %6038 = vmatmul.mubr.f32.gmra.mrb[0].mxu0 %v5847
  %v6039 = vpop.f32.mrb[0].mxu0
  %v6040 = vadd.f32 %v5803, %v6039
  %v6041 = vpop.f32.mrb[0].mxu0
  %6042 = vmatprep.mubr.f32.mxu0 0.0
  %6043 = vmatmul.mubr.f32.gmra.mrb[0].mxu0 %v5850
  %v6044 = vpop.f32.mrb[0].mxu0
  %v6045 = vadd.f32 %v5803, %v6044
  %v6046 = vpop.f32.mrb[0].mxu0
  %6047 = vmatprep.mubr.f32.mxu0 0.0
  %6048 = vmatmul.mubr.f32.gmra.mrb[0].mxu0 %v5853
  %v6049 = vpop.f32.mrb[0].mxu0
  %v6050 = vadd.f32 %v5803, %v6049
  %v6051 = vpop.f32.mrb[0].mxu0
  %6052 = vmatprep.mubr.f32.mxu0 0.0
  %6053 = vmatmul.mubr.f32.gmra.mrb[0].mxu0 %v5856
  %v6054 = vpop.f32.mrb[0].mxu0
  %v6055 = vadd.f32 %v5803, %v6054
  %v6056 = vpop.f32.mrb[0].mxu0
  %6057 = vmatprep.mubr.f32.mxu0 0.0
  %6058 = vmatmul.mubr.f32.gmra.mrb[0].mxu0 %v5859
  %v6059 = vpop.f32.mrb[0].mxu0
  %v6060 = vadd.f32 %v5803, %v6059
  %v6061 = vpop.f32.mrb[0].mxu0
  %6062 = vmatprep.mubr.f32.mxu0 0.0
  %6063 = vmatmul.mubr.f32.gmra.mrb[0].mxu0 %v5862
  %v6064 = vpop.f32.mrb[0].mxu0
  %v6065 = vadd.f32 %v5803, %v6064
  %v6066 = vpop.f32.mrb[0].mxu0
  %6067 = vmatprep.mubr.f32.mxu0 0.0
  %6068 = vmatmul.mubr.f32.gmra.mrb[0].mxu0 %v5865
  %v6069 = vpop.f32.mrb[0].mxu0
  %v6070 = vadd.f32 %v5803, %v6069
  %v6071 = vpop.f32.mrb[0].mxu0
  %6072 = vmatprep.mubr.f32.mxu0 0.0
  %6073 = vmatmul.mubr.f32.gmra.mrb[0].mxu0 %v5868
  %v6074 = vpop.f32.mrb[0].mxu0
  %v6075 = vadd.f32 %v5803, %v6074
  %v6076 = vpop.f32.mrb[0].mxu0
  %6077 = vmatprep.mubr.f32.mxu0 0.0
  %6078 = vmatmul.mubr.f32.gmra.mrb[0].mxu0 %v5871
  %v6079 = vpop.f32.mrb[0].mxu0
  %v6080 = vadd.f32 %v5803, %v6079
  %v6081 = vpop.f32.mrb[0].mxu0
  %6082 = vmatprep.mubr.f32.mxu0 0.0
  %6083 = vmatmul.mubr.f32.gmra.mrb[0].mxu0 %v5874
  %v6084 = vpop.f32.mrb[0].mxu0
  %v6085 = vadd.f32 %v5803, %v6084
  %v6086 = vpop.f32.mrb[0].mxu0
  %6087 = vmatprep.mubr.f32.mxu0 0.0
  %6088 = vmatmul.mubr.f32.gmra.mrb[0].mxu0 %v5877
  %v6089 = vpop.f32.mrb[0].mxu0
  %v6090 = vadd.f32 %v5803, %v6089
  %v6091 = vpop.f32.mrb[0].mxu0
  %6092 = vmatprep.mubr.f32.mxu0 0.0
  %6093 = vmatmul.mubr.f32.gmra.mrb[0].mxu0 %v5880
  %v6094 = vpop.f32.mrb[0].mxu0
  %v6095 = vadd.f32 %v5803, %v6094
  %v6096 = vpop.f32.mrb[0].mxu0
  %6097 = vmatprep.mubr.f32.mxu0 0.0
  %6098 = vmatmul.mubr.f32.gmra.mrb[0].mxu0 %v5883
  %v6099 = vpop.f32.mrb[0].mxu0
  %v6100 = vadd.f32 %v5803, %v6099
  %v6101 = vpop.f32.mrb[0].mxu0
  %6102 = vmatprep.mubr.f32.mxu0 0.0
  %6103 = vmatmul.mubr.f32.gmra.mrb[0].mxu0 %v5886
  %v6104 = vpop.f32.mrb[0].mxu0
  %v6105 = vadd.f32 %v5803, %v6104
  %v6106 = vpop.f32.mrb[0].mxu0
  %6107 = vmatprep.mubr.f32.mxu0 0.0
  %6108 = vmatmul.mubr.f32.gmra.mrb[0].mxu0 %v5889
  %v6109 = vpop.f32.mrb[0].mxu0
  %v6110 = vadd.f32 %v5803, %v6109
  %v6111 = vpop.f32.mrb[0].mxu0
  %6112 = vmatprep.mubr.f32.mxu0 0.0
  %6113 = vmatmul.mubr.f32.gmra.mrb[0].mxu0 %v5892
  %v6114 = vpop.f32.mrb[0].mxu0
  %v6115 = vadd.f32 %v5803, %v6114
  %v6116 = vpop.f32.mrb[0].mxu0
  %6117 = vmatprep.mubr.f32.mxu0 0.0
  %6118 = vmatmul.mubr.f32.gmra.mrb[0].mxu0 %v5895
  %v6119 = vpop.f32.mrb[0].mxu0
  %v6120 = vadd.f32 %v5803, %v6119
  %v6121 = vpop.f32.mrb[0].mxu0
  %6122 = vmatprep.mubr.f32.mxu0 0.0
  %6123 = vmatmul.mubr.f32.gmra.mrb[0].mxu0 %v5898
  %v6124 = vpop.f32.mrb[0].mxu0
  %v6125 = vadd.f32 %v5803, %v6124
  %v6126 = vpop.f32.mrb[0].mxu0
  %6127 = vdwg.mxu0
  %vm6128 = vcmp.ge.f32.partialorder %v5970, 0.0
  %vm6129 = vcmp.ge.f32.partialorder %v5975, 0.0
  %vm6130 = vcmp.ge.f32.partialorder %v5980, 0.0
  %vm6131 = vcmp.ge.f32.partialorder %v5985, 0.0
  %vm6132 = vcmp.ge.f32.partialorder %v5990, 0.0
  %vm6133 = vcmp.ge.f32.partialorder %v5995, 0.0
  %vm6134 = vcmp.ge.f32.partialorder %v6000, 0.0
  %vm6135 = vcmp.ge.f32.partialorder %v6005, 0.0
  %vm6136 = vcmp.ge.f32.partialorder %v6010, 0.0
  %vm6137 = vcmp.ge.f32.partialorder %v6015, 0.0
  %vm6138 = vcmp.ge.f32.partialorder %v6020, 0.0
  %vm6139 = vcmp.ge.f32.partialorder %v6025, 0.0
  %vm6140 = vcmp.ge.f32.partialorder %v6030, 0.0
  %vm6141 = vcmp.ge.f32.partialorder %v6035, 0.0
  %vm6142 = vcmp.ge.f32.partialorder %v6040, 0.0
  %vm6143 = vcmp.ge.f32.partialorder %v6045, 0.0
  %vm6144 = vcmp.ge.f32.partialorder %v6050, 0.0
  %vm6145 = vcmp.ge.f32.partialorder %v6055, 0.0
  %vm6146 = vcmp.ge.f32.partialorder %v6060, 0.0
  %vm6147 = vcmp.ge.f32.partialorder %v6065, 0.0
  %vm6148 = vcmp.ge.f32.partialorder %v6070, 0.0
  %vm6149 = vcmp.ge.f32.partialorder %v6075, 0.0
  %vm6150 = vcmp.ge.f32.partialorder %v6080, 0.0
  %vm6151 = vcmp.ge.f32.partialorder %v6085, 0.0
  %vm6152 = vcmp.ge.f32.partialorder %v6090, 0.0
  %vm6153 = vcmp.ge.f32.partialorder %v6095, 0.0
  %vm6154 = vcmp.ge.f32.partialorder %v6100, 0.0
  %vm6155 = vcmp.ge.f32.partialorder %v6105, 0.0
  %vm6156 = vcmp.ge.f32.partialorder %v6110, 0.0
  %vm6157 = vcmp.ge.f32.partialorder %v6115, 0.0
  %vm6158 = vcmp.ge.f32.partialorder %v6120, 0.0
  %vm6159 = vcmp.ge.f32.partialorder %v6125, 0.0
  %v6160 = vmul.f32 %v5970, 0.1
  %v6161 = vmul.f32 %v5975, 0.1
  %v6162 = vmul.f32 %v5980, 0.1
  %v6163 = vmul.f32 %v5985, 0.1
  %v6164 = vmul.f32 %v5990, 0.1
  %v6165 = vmul.f32 %v5995, 0.1
  %v6166 = vmul.f32 %v6000, 0.1
  %v6167 = vmul.f32 %v6005, 0.1
  %v6168 = vmul.f32 %v6010, 0.1
  %v6169 = vmul.f32 %v6015, 0.1
  %v6170 = vmul.f32 %v6020, 0.1
  %v6171 = vmul.f32 %v6025, 0.1
  %v6172 = vmul.f32 %v6030, 0.1
  %v6173 = vmul.f32 %v6035, 0.1
  %v6174 = vmul.f32 %v6040, 0.1
  %v6175 = vmul.f32 %v6045, 0.1
  %v6176 = vmul.f32 %v6050, 0.1
  %v6177 = vmul.f32 %v6055, 0.1
  %v6178 = vmul.f32 %v6060, 0.1
  %v6179 = vmul.f32 %v6065, 0.1
  %v6180 = vmul.f32 %v6070, 0.1
  %v6181 = vmul.f32 %v6075, 0.1
  %v6182 = vmul.f32 %v6080, 0.1
  %v6183 = vmul.f32 %v6085, 0.1
  %v6184 = vmul.f32 %v6090, 0.1
  %v6185 = vmul.f32 %v6095, 0.1
  %v6186 = vmul.f32 %v6100, 0.1
  %v6187 = vmul.f32 %v6105, 0.1
  %v6188 = vmul.f32 %v6110, 0.1
  %v6189 = vmul.f32 %v6115, 0.1
  %v6190 = vmul.f32 %v6120, 0.1
  %v6191 = vmul.f32 %v6125, 0.1
  %v6192 = vsel %vm6128, %v5970, %v6160
  %v6193 = vsel %vm6129, %v5975, %v6161
  %v6194 = vsel %vm6130, %v5980, %v6162
  %v6195 = vsel %vm6131, %v5985, %v6163
  %v6196 = vsel %vm6132, %v5990, %v6164
  %v6197 = vsel %vm6133, %v5995, %v6165
  %v6198 = vsel %vm6134, %v6000, %v6166
  %v6199 = vsel %vm6135, %v6005, %v6167
  %v6200 = vsel %vm6136, %v6010, %v6168
  %v6201 = vsel %vm6137, %v6015, %v6169
  %v6202 = vsel %vm6138, %v6020, %v6170
  %v6203 = vsel %vm6139, %v6025, %v6171
  %v6204 = vsel %vm6140, %v6030, %v6172
  %v6205 = vsel %vm6141, %v6035, %v6173
  %v6206 = vsel %vm6142, %v6040, %v6174
  %v6207 = vsel %vm6143, %v6045, %v6175
  %v6208 = vsel %vm6144, %v6050, %v6176
  %v6209 = vsel %vm6145, %v6055, %v6177
  %v6210 = vsel %vm6146, %v6060, %v6178
  %v6211 = vsel %vm6147, %v6065, %v6179
  %v6212 = vsel %vm6148, %v6070, %v6180
  %v6213 = vsel %vm6149, %v6075, %v6181
  %v6214 = vsel %vm6150, %v6080, %v6182
  %v6215 = vsel %vm6151, %v6085, %v6183
  %v6216 = vsel %vm6152, %v6090, %v6184
  %v6217 = vsel %vm6153, %v6095, %v6185
  %v6218 = vsel %vm6154, %v6100, %v6186
  %v6219 = vsel %vm6155, %v6105, %v6187
  %v6220 = vsel %vm6156, %v6110, %v6188
  %v6221 = vsel %vm6157, %v6115, %v6189
  %v6222 = vsel %vm6158, %v6120, %v6190
  %v6223 = vsel %vm6159, %v6125, %v6191
  %s6224 = scalar_lea.vmem [#allocation3], 704
  %6225 = vst.msk [vmem:[%s6224 + $0x2] sm:$0xff] %vm124, %v6192
  %6226 = vst.msk [vmem:[%s6224 + $0xa] sm:$0xff] %vm124, %v6193
  %6227 = vst.msk [vmem:[%s6224 + $0x22] sm:$0xff] %vm124, %v6194
  %6228 = vst.msk [vmem:[%s6224 + $0x2a] sm:$0xff] %vm124, %v6195
  %6229 = vst.msk [vmem:[%s6224 + $0x42] sm:$0xff] %vm124, %v6196
  %6230 = vst.msk [vmem:[%s6224 + $0x4a] sm:$0xff] %vm124, %v6197
  %6231 = vst.msk [vmem:[%s6224 + $0x62] sm:$0xff] %vm124, %v6198
  %6232 = vst.msk [vmem:[%s6224 + $0x6a] sm:$0xff] %vm124, %v6199
  %6233 = vst.msk [vmem:[%s6224 + $0x82] sm:$0xff] %vm124, %v6200
  %6234 = vst.msk [vmem:[%s6224 + $0x8a] sm:$0xff] %vm124, %v6201
  %6235 = vst.msk [vmem:[%s6224 + $0xa2] sm:$0xff] %vm124, %v6202
  %6236 = vst.msk [vmem:[%s6224 + $0xaa] sm:$0xff] %vm124, %v6203
  %6237 = vst.msk [vmem:[%s6224 + $0xc2] sm:$0xff] %vm124, %v6204
  %6238 = vst.msk [vmem:[%s6224 + $0xca] sm:$0xff] %vm124, %v6205
  %6239 = vst.msk [vmem:[%s6224 + $0xe2] sm:$0xff] %vm124, %v6206
  %6240 = vst.msk [vmem:[%s6224 + $0xea] sm:$0xff] %vm124, %v6207
  %6241 = vst.msk [vmem:[%s6224 + $0x102] sm:$0xff] %vm124, %v6208
  %6242 = vst.msk [vmem:[%s6224 + $0x10a] sm:$0xff] %vm124, %v6209
  %6243 = vst.msk [vmem:[%s6224 + $0x122] sm:$0xff] %vm124, %v6210
  %6244 = vst.msk [vmem:[%s6224 + $0x12a] sm:$0xff] %vm124, %v6211
  %6245 = vst.msk [vmem:[%s6224 + $0x142] sm:$0xff] %vm124, %v6212
  %6246 = vst.msk [vmem:[%s6224 + $0x14a] sm:$0xff] %vm124, %v6213
  %6247 = vst.msk [vmem:[%s6224 + $0x162] sm:$0xff] %vm124, %v6214
  %6248 = vst.msk [vmem:[%s6224 + $0x16a] sm:$0xff] %vm124, %v6215
  %6249 = vst.msk [vmem:[%s6224 + $0x182] sm:$0xff] %vm124, %v6216
  %6250 = vst.msk [vmem:[%s6224 + $0x18a] sm:$0xff] %vm124, %v6217
  %6251 = vst.msk [vmem:[%s6224 + $0x1a2] sm:$0xff] %vm124, %v6218
  %6252 = vst.msk [vmem:[%s6224 + $0x1aa] sm:$0xff] %vm124, %v6219
  %6253 = vst.msk [vmem:[%s6224 + $0x1c2] sm:$0xff] %vm124, %v6220
  %6254 = vst.msk [vmem:[%s6224 + $0x1ca] sm:$0xff] %vm124, %v6221
  %6255 = vst.msk [vmem:[%s6224 + $0x1e2] sm:$0xff] %vm124, %v6222
  %6256 = vst.msk [vmem:[%s6224 + $0x1ea] sm:$0xff] %vm124, %v6223
  %s6257 = scalar_lea.vmem [#allocation3], 640
  %v6258 = vld [vmem:[%s6257] sm:$0xff]
  %v6259 = vld [vmem:[%s6257 + $0x8] sm:$0xff]
  %v6260 = vld [vmem:[%s6257 + $0x10] sm:$0xff]
  %v6261 = vld [vmem:[%s6257 + $0x20] sm:$0xff]
  %v6262 = vld [vmem:[%s6257 + $0x28] sm:$0xff]
  %v6263 = vld [vmem:[%s6257 + $0x30] sm:$0xff]
  %v6264 = vld [vmem:[%s6257 + $0x40] sm:$0xff]
  %v6265 = vld [vmem:[%s6257 + $0x48] sm:$0xff]
  %v6266 = vld [vmem:[%s6257 + $0x50] sm:$0xff]
  %v6267 = vld [vmem:[%s6257 + $0x60] sm:$0xff]
  %v6268 = vld [vmem:[%s6257 + $0x68] sm:$0xff]
  %v6269 = vld [vmem:[%s6257 + $0x70] sm:$0xff]
  %v6270 = vld [vmem:[%s6257 + $0x80] sm:$0xff]
  %v6271 = vld [vmem:[%s6257 + $0x88] sm:$0xff]
  %v6272 = vld [vmem:[%s6257 + $0x90] sm:$0xff]
  %v6273 = vld [vmem:[%s6257 + $0xa0] sm:$0xff]
  %v6274 = vld [vmem:[%s6257 + $0xa8] sm:$0xff]
  %v6275 = vld [vmem:[%s6257 + $0xb0] sm:$0xff]
  %v6276 = vld [vmem:[%s6257 + $0xc0] sm:$0xff]
  %v6277 = vld [vmem:[%s6257 + $0xc8] sm:$0xff]
  %v6278 = vld [vmem:[%s6257 + $0xd0] sm:$0xff]
  %v6279 = vld [vmem:[%s6257 + $0xe0] sm:$0xff]
  %v6280 = vld [vmem:[%s6257 + $0xe8] sm:$0xff]
  %v6281 = vld [vmem:[%s6257 + $0xf0] sm:$0xff]
  %v6282 = vld [vmem:[%s6257 + $0x100] sm:$0xff]
  %v6283 = vld [vmem:[%s6257 + $0x108] sm:$0xff]
  %v6284 = vld [vmem:[%s6257 + $0x110] sm:$0xff]
  %v6285 = vld [vmem:[%s6257 + $0x120] sm:$0xff]
  %v6286 = vld [vmem:[%s6257 + $0x128] sm:$0xff]
  %v6287 = vld [vmem:[%s6257 + $0x130] sm:$0xff]
  %v6288 = vld [vmem:[%s6257 + $0x140] sm:$0xff]
  %v6289 = vld [vmem:[%s6257 + $0x148] sm:$0xff]
  %v6290 = vld [vmem:[%s6257 + $0x150] sm:$0xff]
  %v6291 = vld [vmem:[%s6257 + $0x160] sm:$0xff]
  %v6292 = vld [vmem:[%s6257 + $0x168] sm:$0xff]
  %v6293 = vld [vmem:[%s6257 + $0x170] sm:$0xff]
  %v6294 = vld [vmem:[%s6257 + $0x180] sm:$0xff]
  %v6295 = vld [vmem:[%s6257 + $0x188] sm:$0xff]
  %v6296 = vld [vmem:[%s6257 + $0x190] sm:$0xff]
  %v6297 = vld [vmem:[%s6257 + $0x1a0] sm:$0xff]
  %v6298 = vld [vmem:[%s6257 + $0x1a8] sm:$0xff]
  %v6299 = vld [vmem:[%s6257 + $0x1b0] sm:$0xff]
  %v6300 = vld [vmem:[%s6257 + $0x1c0] sm:$0xff]
  %v6301 = vld [vmem:[%s6257 + $0x1c8] sm:$0xff]
  %v6302 = vld [vmem:[%s6257 + $0x1d0] sm:$0xff]
  %v6303 = vld [vmem:[%s6257 + $0x1e0] sm:$0xff]
  %v6304 = vld [vmem:[%s6257 + $0x1e8] sm:$0xff]
  %v6305 = vld [vmem:[%s6257 + $0x1f0] sm:$0xff]
  %v6306 = vld [vmem:[%s6257 + $0x200] sm:$0xff]
  %v6307 = vld [vmem:[%s6257 + $0x208] sm:$0xff]
  %v6308 = vld [vmem:[%s6257 + $0x210] sm:$0xff]
  %v6309 = vld [vmem:[%s6257 + $0x220] sm:$0xff]
  %v6310 = vld [vmem:[%s6257 + $0x228] sm:$0xff]
  %v6311 = vld [vmem:[%s6257 + $0x230] sm:$0xff]
  %v6312 = vld [vmem:[%s6257 + $0x240] sm:$0xff]
  %v6313 = vld [vmem:[%s6257 + $0x248] sm:$0xff]
  %v6314 = vld [vmem:[%s6257 + $0x250] sm:$0xff]
  %v6315 = vld [vmem:[%s6257 + $0x260] sm:$0xff]
  %v6316 = vld [vmem:[%s6257 + $0x268] sm:$0xff]
  %v6317 = vld [vmem:[%s6257 + $0x270] sm:$0xff]
  %v6318 = vld [vmem:[%s6257 + $0x1] sm:$0xff]
  %v6319 = vld [vmem:[%s6257 + $0x9] sm:$0xff]
  %v6320 = vld [vmem:[%s6257 + $0x11] sm:$0xff]
  %v6321 = vld [vmem:[%s6257 + $0x21] sm:$0xff]
  %v6322 = vld [vmem:[%s6257 + $0x29] sm:$0xff]
  %v6323 = vld [vmem:[%s6257 + $0x31] sm:$0xff]
  %v6324 = vld [vmem:[%s6257 + $0x41] sm:$0xff]
  %v6325 = vld [vmem:[%s6257 + $0x49] sm:$0xff]
  %v6326 = vld [vmem:[%s6257 + $0x51] sm:$0xff]
  %v6327 = vld [vmem:[%s6257 + $0x61] sm:$0xff]
  %v6328 = vld [vmem:[%s6257 + $0x69] sm:$0xff]
  %v6329 = vld [vmem:[%s6257 + $0x71] sm:$0xff]
  %v6330 = vld [vmem:[%s6257 + $0x81] sm:$0xff]
  %v6331 = vld [vmem:[%s6257 + $0x89] sm:$0xff]
  %v6332 = vld [vmem:[%s6257 + $0x91] sm:$0xff]
  %v6333 = vld [vmem:[%s6257 + $0xa1] sm:$0xff]
  %v6334 = vld [vmem:[%s6257 + $0xa9] sm:$0xff]
  %v6335 = vld [vmem:[%s6257 + $0xb1] sm:$0xff]
  %v6336 = vld [vmem:[%s6257 + $0xc1] sm:$0xff]
  %v6337 = vld [vmem:[%s6257 + $0xc9] sm:$0xff]
  %v6338 = vld [vmem:[%s6257 + $0xd1] sm:$0xff]
  %v6339 = vld [vmem:[%s6257 + $0xe1] sm:$0xff]
  %v6340 = vld [vmem:[%s6257 + $0xe9] sm:$0xff]
  %v6341 = vld [vmem:[%s6257 + $0xf1] sm:$0xff]
  %v6342 = vld [vmem:[%s6257 + $0x101] sm:$0xff]
  %v6343 = vld [vmem:[%s6257 + $0x109] sm:$0xff]
  %v6344 = vld [vmem:[%s6257 + $0x111] sm:$0xff]
  %v6345 = vld [vmem:[%s6257 + $0x121] sm:$0xff]
  %v6346 = vld [vmem:[%s6257 + $0x129] sm:$0xff]
  %v6347 = vld [vmem:[%s6257 + $0x131] sm:$0xff]
  %v6348 = vld [vmem:[%s6257 + $0x141] sm:$0xff]
  %v6349 = vld [vmem:[%s6257 + $0x149] sm:$0xff]
  %v6350 = vld [vmem:[%s6257 + $0x151] sm:$0xff]
  %v6351 = vld [vmem:[%s6257 + $0x161] sm:$0xff]
  %v6352 = vld [vmem:[%s6257 + $0x169] sm:$0xff]
  %v6353 = vld [vmem:[%s6257 + $0x171] sm:$0xff]
  %v6354 = vld [vmem:[%s6257 + $0x181] sm:$0xff]
  %v6355 = vld [vmem:[%s6257 + $0x189] sm:$0xff]
  %v6356 = vld [vmem:[%s6257 + $0x191] sm:$0xff]
  %v6357 = vld [vmem:[%s6257 + $0x1a1] sm:$0xff]
  %v6358 = vld [vmem:[%s6257 + $0x1a9] sm:$0xff]
  %v6359 = vld [vmem:[%s6257 + $0x1b1] sm:$0xff]
  %v6360 = vld [vmem:[%s6257 + $0x1c1] sm:$0xff]
  %v6361 = vld [vmem:[%s6257 + $0x1c9] sm:$0xff]
  %v6362 = vld [vmem:[%s6257 + $0x1d1] sm:$0xff]
  %v6363 = vld [vmem:[%s6257 + $0x1e1] sm:$0xff]
  %v6364 = vld [vmem:[%s6257 + $0x1e9] sm:$0xff]
  %v6365 = vld [vmem:[%s6257 + $0x1f1] sm:$0xff]
  %v6366 = vld [vmem:[%s6257 + $0x201] sm:$0xff]
  %v6367 = vld [vmem:[%s6257 + $0x209] sm:$0xff]
  %v6368 = vld [vmem:[%s6257 + $0x211] sm:$0xff]
  %v6369 = vld [vmem:[%s6257 + $0x221] sm:$0xff]
  %v6370 = vld [vmem:[%s6257 + $0x229] sm:$0xff]
  %v6371 = vld [vmem:[%s6257 + $0x231] sm:$0xff]
  %v6372 = vld [vmem:[%s6257 + $0x241] sm:$0xff]
  %v6373 = vld [vmem:[%s6257 + $0x249] sm:$0xff]
  %v6374 = vld [vmem:[%s6257 + $0x251] sm:$0xff]
  %v6375 = vld [vmem:[%s6257 + $0x261] sm:$0xff]
  %v6376 = vld [vmem:[%s6257 + $0x269] sm:$0xff]
  %v6377 = vld [vmem:[%s6257 + $0x271] sm:$0xff]
  %v6378 = vld [vmem:[%s6257 + $0x2] sm:$0xff]
  %v6379 = vld [vmem:[%s6257 + $0xa] sm:$0xff]
  %v6380 = vld [vmem:[%s6257 + $0x12] sm:$0xff]
  %v6381 = vld [vmem:[%s6257 + $0x22] sm:$0xff]
  %v6382 = vld [vmem:[%s6257 + $0x2a] sm:$0xff]
  %v6383 = vld [vmem:[%s6257 + $0x32] sm:$0xff]
  %v6384 = vld [vmem:[%s6257 + $0x42] sm:$0xff]
  %v6385 = vld [vmem:[%s6257 + $0x4a] sm:$0xff]
  %v6386 = vld [vmem:[%s6257 + $0x52] sm:$0xff]
  %v6387 = vld [vmem:[%s6257 + $0x62] sm:$0xff]
  %v6388 = vld [vmem:[%s6257 + $0x6a] sm:$0xff]
  %v6389 = vld [vmem:[%s6257 + $0x72] sm:$0xff]
  %v6390 = vld [vmem:[%s6257 + $0x82] sm:$0xff]
  %v6391 = vld [vmem:[%s6257 + $0x8a] sm:$0xff]
  %v6392 = vld [vmem:[%s6257 + $0x92] sm:$0xff]
  %v6393 = vld [vmem:[%s6257 + $0xa2] sm:$0xff]
  %v6394 = vld [vmem:[%s6257 + $0xaa] sm:$0xff]
  %v6395 = vld [vmem:[%s6257 + $0xb2] sm:$0xff]
  %v6396 = vld [vmem:[%s6257 + $0xc2] sm:$0xff]
  %v6397 = vld [vmem:[%s6257 + $0xca] sm:$0xff]
  %v6398 = vld [vmem:[%s6257 + $0xd2] sm:$0xff]
  %v6399 = vld [vmem:[%s6257 + $0xe2] sm:$0xff]
  %v6400 = vld [vmem:[%s6257 + $0xea] sm:$0xff]
  %v6401 = vld [vmem:[%s6257 + $0xf2] sm:$0xff]
  %v6402 = vld [vmem:[%s6257 + $0x102] sm:$0xff]
  %v6403 = vld [vmem:[%s6257 + $0x10a] sm:$0xff]
  %v6404 = vld [vmem:[%s6257 + $0x112] sm:$0xff]
  %v6405 = vld [vmem:[%s6257 + $0x122] sm:$0xff]
  %v6406 = vld [vmem:[%s6257 + $0x12a] sm:$0xff]
  %v6407 = vld [vmem:[%s6257 + $0x132] sm:$0xff]
  %v6408 = vld [vmem:[%s6257 + $0x142] sm:$0xff]
  %v6409 = vld [vmem:[%s6257 + $0x14a] sm:$0xff]
  %v6410 = vld [vmem:[%s6257 + $0x152] sm:$0xff]
  %v6411 = vld [vmem:[%s6257 + $0x162] sm:$0xff]
  %v6412 = vld [vmem:[%s6257 + $0x16a] sm:$0xff]
  %v6413 = vld [vmem:[%s6257 + $0x172] sm:$0xff]
  %v6414 = vld [vmem:[%s6257 + $0x182] sm:$0xff]
  %v6415 = vld [vmem:[%s6257 + $0x18a] sm:$0xff]
  %v6416 = vld [vmem:[%s6257 + $0x192] sm:$0xff]
  %v6417 = vld [vmem:[%s6257 + $0x1a2] sm:$0xff]
  %v6418 = vld [vmem:[%s6257 + $0x1aa] sm:$0xff]
  %v6419 = vld [vmem:[%s6257 + $0x1b2] sm:$0xff]
  %v6420 = vld [vmem:[%s6257 + $0x1c2] sm:$0xff]
  %v6421 = vld [vmem:[%s6257 + $0x1ca] sm:$0xff]
  %v6422 = vld [vmem:[%s6257 + $0x1d2] sm:$0xff]
  %v6423 = vld [vmem:[%s6257 + $0x1e2] sm:$0xff]
  %v6424 = vld [vmem:[%s6257 + $0x1ea] sm:$0xff]
  %v6425 = vld [vmem:[%s6257 + $0x1f2] sm:$0xff]
  %v6426 = vld [vmem:[%s6257 + $0x202] sm:$0xff]
  %v6427 = vld [vmem:[%s6257 + $0x20a] sm:$0xff]
  %v6428 = vld [vmem:[%s6257 + $0x212] sm:$0xff]
  %v6429 = vld [vmem:[%s6257 + $0x222] sm:$0xff]
  %v6430 = vld [vmem:[%s6257 + $0x22a] sm:$0xff]
  %v6431 = vld [vmem:[%s6257 + $0x232] sm:$0xff]
  %v6432 = vld [vmem:[%s6257 + $0x242] sm:$0xff]
  %v6433 = vld [vmem:[%s6257 + $0x24a] sm:$0xff]
  %v6434 = vld [vmem:[%s6257 + $0x252] sm:$0xff]
  %v6435 = vld [vmem:[%s6257 + $0x262] sm:$0xff]
  %v6436 = vld [vmem:[%s6257 + $0x26a] sm:$0xff]
  %v6437 = vld [vmem:[%s6257 + $0x272] sm:$0xff]
  %6498 = vrot.lane.b32.xlu0 %v6318, 8
  %v6499 = vpop.permute.xlu0 %6498
  %6500 = vrot.lane.b32.xlu0 %v6319, 8
  %v6501 = vpop.permute.xlu0 %6500
  %6502 = vrot.lane.b32.xlu0 %v6320, 8
  %v6503 = vpop.permute.xlu0 %6502
  %6504 = vrot.lane.b32.xlu0 %v6321, 8
  %v6505 = vpop.permute.xlu0 %6504
  %6506 = vrot.lane.b32.xlu0 %v6322, 8
  %v6507 = vpop.permute.xlu0 %6506
  %6508 = vrot.lane.b32.xlu0 %v6323, 8
  %v6509 = vpop.permute.xlu0 %6508
  %6510 = vrot.lane.b32.xlu0 %v6324, 8
  %v6511 = vpop.permute.xlu0 %6510
  %6512 = vrot.lane.b32.xlu0 %v6325, 8
  %v6513 = vpop.permute.xlu0 %6512
  %6514 = vrot.lane.b32.xlu0 %v6326, 8
  %v6515 = vpop.permute.xlu0 %6514
  %6516 = vrot.lane.b32.xlu0 %v6327, 8
  %v6517 = vpop.permute.xlu0 %6516
  %6518 = vrot.lane.b32.xlu0 %v6328, 8
  %v6519 = vpop.permute.xlu0 %6518
  %6520 = vrot.lane.b32.xlu0 %v6329, 8
  %v6521 = vpop.permute.xlu0 %6520
  %6522 = vrot.lane.b32.xlu0 %v6330, 8
  %v6523 = vpop.permute.xlu0 %6522
  %6524 = vrot.lane.b32.xlu0 %v6331, 8
  %v6525 = vpop.permute.xlu0 %6524
  %6526 = vrot.lane.b32.xlu0 %v6332, 8
  %v6527 = vpop.permute.xlu0 %6526
  %6528 = vrot.lane.b32.xlu0 %v6333, 8
  %v6529 = vpop.permute.xlu0 %6528
  %6530 = vrot.lane.b32.xlu0 %v6334, 8
  %v6531 = vpop.permute.xlu0 %6530
  %6532 = vrot.lane.b32.xlu0 %v6335, 8
  %v6533 = vpop.permute.xlu0 %6532
  %6534 = vrot.lane.b32.xlu0 %v6336, 8
  %v6535 = vpop.permute.xlu0 %6534
  %6536 = vrot.lane.b32.xlu0 %v6337, 8
  %v6537 = vpop.permute.xlu0 %6536
  %6538 = vrot.lane.b32.xlu0 %v6338, 8
  %v6539 = vpop.permute.xlu0 %6538
  %6540 = vrot.lane.b32.xlu0 %v6339, 8
  %v6541 = vpop.permute.xlu0 %6540
  %6542 = vrot.lane.b32.xlu0 %v6340, 8
  %v6543 = vpop.permute.xlu0 %6542
  %6544 = vrot.lane.b32.xlu0 %v6341, 8
  %v6545 = vpop.permute.xlu0 %6544
  %6546 = vrot.lane.b32.xlu0 %v6342, 8
  %v6547 = vpop.permute.xlu0 %6546
  %6548 = vrot.lane.b32.xlu0 %v6343, 8
  %v6549 = vpop.permute.xlu0 %6548
  %6550 = vrot.lane.b32.xlu0 %v6344, 8
  %v6551 = vpop.permute.xlu0 %6550
  %6552 = vrot.lane.b32.xlu0 %v6345, 8
  %v6553 = vpop.permute.xlu0 %6552
  %6554 = vrot.lane.b32.xlu0 %v6346, 8
  %v6555 = vpop.permute.xlu0 %6554
  %6556 = vrot.lane.b32.xlu0 %v6347, 8
  %v6557 = vpop.permute.xlu0 %6556
  %6558 = vrot.lane.b32.xlu0 %v6348, 8
  %v6559 = vpop.permute.xlu0 %6558
  %6560 = vrot.lane.b32.xlu0 %v6349, 8
  %v6561 = vpop.permute.xlu0 %6560
  %6562 = vrot.lane.b32.xlu0 %v6350, 8
  %v6563 = vpop.permute.xlu0 %6562
  %6564 = vrot.lane.b32.xlu0 %v6351, 8
  %v6565 = vpop.permute.xlu0 %6564
  %6566 = vrot.lane.b32.xlu0 %v6352, 8
  %v6567 = vpop.permute.xlu0 %6566
  %6568 = vrot.lane.b32.xlu0 %v6353, 8
  %v6569 = vpop.permute.xlu0 %6568
  %6570 = vrot.lane.b32.xlu0 %v6354, 8
  %v6571 = vpop.permute.xlu0 %6570
  %6572 = vrot.lane.b32.xlu0 %v6355, 8
  %v6573 = vpop.permute.xlu0 %6572
  %6574 = vrot.lane.b32.xlu0 %v6356, 8
  %v6575 = vpop.permute.xlu0 %6574
  %6576 = vrot.lane.b32.xlu0 %v6357, 8
  %v6577 = vpop.permute.xlu0 %6576
  %6578 = vrot.lane.b32.xlu0 %v6358, 8
  %v6579 = vpop.permute.xlu0 %6578
  %6580 = vrot.lane.b32.xlu0 %v6359, 8
  %v6581 = vpop.permute.xlu0 %6580
  %6582 = vrot.lane.b32.xlu0 %v6360, 8
  %v6583 = vpop.permute.xlu0 %6582
  %6584 = vrot.lane.b32.xlu0 %v6361, 8
  %v6585 = vpop.permute.xlu0 %6584
  %6586 = vrot.lane.b32.xlu0 %v6362, 8
  %v6587 = vpop.permute.xlu0 %6586
  %6588 = vrot.lane.b32.xlu0 %v6363, 8
  %v6589 = vpop.permute.xlu0 %6588
  %6590 = vrot.lane.b32.xlu0 %v6364, 8
  %v6591 = vpop.permute.xlu0 %6590
  %6592 = vrot.lane.b32.xlu0 %v6365, 8
  %v6593 = vpop.permute.xlu0 %6592
  %6594 = vrot.lane.b32.xlu0 %v6366, 8
  %v6595 = vpop.permute.xlu0 %6594
  %6596 = vrot.lane.b32.xlu0 %v6367, 8
  %v6597 = vpop.permute.xlu0 %6596
  %6598 = vrot.lane.b32.xlu0 %v6368, 8
  %v6599 = vpop.permute.xlu0 %6598
  %6600 = vrot.lane.b32.xlu0 %v6369, 8
  %v6601 = vpop.permute.xlu0 %6600
  %6602 = vrot.lane.b32.xlu0 %v6370, 8
  %v6603 = vpop.permute.xlu0 %6602
  %6604 = vrot.lane.b32.xlu0 %v6371, 8
  %v6605 = vpop.permute.xlu0 %6604
  %6606 = vrot.lane.b32.xlu0 %v6372, 8
  %v6607 = vpop.permute.xlu0 %6606
  %6608 = vrot.lane.b32.xlu0 %v6373, 8
  %v6609 = vpop.permute.xlu0 %6608
  %6610 = vrot.lane.b32.xlu0 %v6374, 8
  %v6611 = vpop.permute.xlu0 %6610
  %6612 = vrot.lane.b32.xlu0 %v6375, 8
  %v6613 = vpop.permute.xlu0 %6612
  %6614 = vrot.lane.b32.xlu0 %v6376, 8
  %v6615 = vpop.permute.xlu0 %6614
  %6616 = vrot.lane.b32.xlu0 %v6377, 8
  %v6617 = vpop.permute.xlu0 %6616
  %6738 = vrot.lane.b32.xlu0 %v6378, 16
  %v6739 = vpop.permute.xlu0 %6738
  %6740 = vrot.lane.b32.xlu0 %v6379, 16
  %v6741 = vpop.permute.xlu0 %6740
  %6742 = vrot.lane.b32.xlu0 %v6380, 16
  %v6743 = vpop.permute.xlu0 %6742
  %6744 = vrot.lane.b32.xlu0 %v6381, 16
  %v6745 = vpop.permute.xlu0 %6744
  %6746 = vrot.lane.b32.xlu0 %v6382, 16
  %v6747 = vpop.permute.xlu0 %6746
  %6748 = vrot.lane.b32.xlu0 %v6383, 16
  %v6749 = vpop.permute.xlu0 %6748
  %6750 = vrot.lane.b32.xlu0 %v6384, 16
  %v6751 = vpop.permute.xlu0 %6750
  %6752 = vrot.lane.b32.xlu0 %v6385, 16
  %v6753 = vpop.permute.xlu0 %6752
  %6754 = vrot.lane.b32.xlu0 %v6386, 16
  %v6755 = vpop.permute.xlu0 %6754
  %6756 = vrot.lane.b32.xlu0 %v6387, 16
  %v6757 = vpop.permute.xlu0 %6756
  %6758 = vrot.lane.b32.xlu0 %v6388, 16
  %v6759 = vpop.permute.xlu0 %6758
  %6760 = vrot.lane.b32.xlu0 %v6389, 16
  %v6761 = vpop.permute.xlu0 %6760
  %6762 = vrot.lane.b32.xlu0 %v6390, 16
  %v6763 = vpop.permute.xlu0 %6762
  %6764 = vrot.lane.b32.xlu0 %v6391, 16
  %v6765 = vpop.permute.xlu0 %6764
  %6766 = vrot.lane.b32.xlu0 %v6392, 16
  %v6767 = vpop.permute.xlu0 %6766
  %6768 = vrot.lane.b32.xlu0 %v6393, 16
  %v6769 = vpop.permute.xlu0 %6768
  %6770 = vrot.lane.b32.xlu0 %v6394, 16
  %v6771 = vpop.permute.xlu0 %6770
  %6772 = vrot.lane.b32.xlu0 %v6395, 16
  %v6773 = vpop.permute.xlu0 %6772
  %6774 = vrot.lane.b32.xlu0 %v6396, 16
  %v6775 = vpop.permute.xlu0 %6774
  %6776 = vrot.lane.b32.xlu0 %v6397, 16
  %v6777 = vpop.permute.xlu0 %6776
  %6778 = vrot.lane.b32.xlu0 %v6398, 16
  %v6779 = vpop.permute.xlu0 %6778
  %6780 = vrot.lane.b32.xlu0 %v6399, 16
  %v6781 = vpop.permute.xlu0 %6780
  %6782 = vrot.lane.b32.xlu0 %v6400, 16
  %v6783 = vpop.permute.xlu0 %6782
  %6784 = vrot.lane.b32.xlu0 %v6401, 16
  %v6785 = vpop.permute.xlu0 %6784
  %6786 = vrot.lane.b32.xlu0 %v6402, 16
  %v6787 = vpop.permute.xlu0 %6786
  %6788 = vrot.lane.b32.xlu0 %v6403, 16
  %v6789 = vpop.permute.xlu0 %6788
  %6790 = vrot.lane.b32.xlu0 %v6404, 16
  %v6791 = vpop.permute.xlu0 %6790
  %6792 = vrot.lane.b32.xlu0 %v6405, 16
  %v6793 = vpop.permute.xlu0 %6792
  %6794 = vrot.lane.b32.xlu0 %v6406, 16
  %v6795 = vpop.permute.xlu0 %6794
  %6796 = vrot.lane.b32.xlu0 %v6407, 16
  %v6797 = vpop.permute.xlu0 %6796
  %6798 = vrot.lane.b32.xlu0 %v6408, 16
  %v6799 = vpop.permute.xlu0 %6798
  %6800 = vrot.lane.b32.xlu0 %v6409, 16
  %v6801 = vpop.permute.xlu0 %6800
  %6802 = vrot.lane.b32.xlu0 %v6410, 16
  %v6803 = vpop.permute.xlu0 %6802
  %6804 = vrot.lane.b32.xlu0 %v6411, 16
  %v6805 = vpop.permute.xlu0 %6804
  %6806 = vrot.lane.b32.xlu0 %v6412, 16
  %v6807 = vpop.permute.xlu0 %6806
  %6808 = vrot.lane.b32.xlu0 %v6413, 16
  %v6809 = vpop.permute.xlu0 %6808
  %6810 = vrot.lane.b32.xlu0 %v6414, 16
  %v6811 = vpop.permute.xlu0 %6810
  %6812 = vrot.lane.b32.xlu0 %v6415, 16
  %v6813 = vpop.permute.xlu0 %6812
  %6814 = vrot.lane.b32.xlu0 %v6416, 16
  %v6815 = vpop.permute.xlu0 %6814
  %6816 = vrot.lane.b32.xlu0 %v6417, 16
  %v6817 = vpop.permute.xlu0 %6816
  %6818 = vrot.lane.b32.xlu0 %v6418, 16
  %v6819 = vpop.permute.xlu0 %6818
  %6820 = vrot.lane.b32.xlu0 %v6419, 16
  %v6821 = vpop.permute.xlu0 %6820
  %6822 = vrot.lane.b32.xlu0 %v6420, 16
  %v6823 = vpop.permute.xlu0 %6822
  %6824 = vrot.lane.b32.xlu0 %v6421, 16
  %v6825 = vpop.permute.xlu0 %6824
  %6826 = vrot.lane.b32.xlu0 %v6422, 16
  %v6827 = vpop.permute.xlu0 %6826
  %6828 = vrot.lane.b32.xlu0 %v6423, 16
  %v6829 = vpop.permute.xlu0 %6828
  %6830 = vrot.lane.b32.xlu0 %v6424, 16
  %v6831 = vpop.permute.xlu0 %6830
  %6832 = vrot.lane.b32.xlu0 %v6425, 16
  %v6833 = vpop.permute.xlu0 %6832
  %6834 = vrot.lane.b32.xlu0 %v6426, 16
  %v6835 = vpop.permute.xlu0 %6834
  %6836 = vrot.lane.b32.xlu0 %v6427, 16
  %v6837 = vpop.permute.xlu0 %6836
  %6838 = vrot.lane.b32.xlu0 %v6428, 16
  %v6839 = vpop.permute.xlu0 %6838
  %6840 = vrot.lane.b32.xlu0 %v6429, 16
  %v6841 = vpop.permute.xlu0 %6840
  %6842 = vrot.lane.b32.xlu0 %v6430, 16
  %v6843 = vpop.permute.xlu0 %6842
  %6844 = vrot.lane.b32.xlu0 %v6431, 16
  %v6845 = vpop.permute.xlu0 %6844
  %6846 = vrot.lane.b32.xlu0 %v6432, 16
  %v6847 = vpop.permute.xlu0 %6846
  %6848 = vrot.lane.b32.xlu0 %v6433, 16
  %v6849 = vpop.permute.xlu0 %6848
  %6850 = vrot.lane.b32.xlu0 %v6434, 16
  %v6851 = vpop.permute.xlu0 %6850
  %6852 = vrot.lane.b32.xlu0 %v6435, 16
  %v6853 = vpop.permute.xlu0 %6852
  %6854 = vrot.lane.b32.xlu0 %v6436, 16
  %v6855 = vpop.permute.xlu0 %6854
  %6856 = vrot.lane.b32.xlu0 %v6437, 16
  %v6857 = vpop.permute.xlu0 %6856
  %v6918 = vsel %vm124, %v6258, %v6499
  %v6919 = vsel %vm124, %v6259, %v6501
  %v6920 = vsel %vm124, %v6260, %v6503
  %v6921 = vsel %vm124, %v6261, %v6505
  %v6922 = vsel %vm124, %v6262, %v6507
  %v6923 = vsel %vm124, %v6263, %v6509
  %v6924 = vsel %vm124, %v6264, %v6511
  %v6925 = vsel %vm124, %v6265, %v6513
  %v6926 = vsel %vm124, %v6266, %v6515
  %v6927 = vsel %vm124, %v6267, %v6517
  %v6928 = vsel %vm124, %v6268, %v6519
  %v6929 = vsel %vm124, %v6269, %v6521
  %v6930 = vsel %vm124, %v6270, %v6523
  %v6931 = vsel %vm124, %v6271, %v6525
  %v6932 = vsel %vm124, %v6272, %v6527
  %v6933 = vsel %vm124, %v6273, %v6529
  %v6934 = vsel %vm124, %v6274, %v6531
  %v6935 = vsel %vm124, %v6275, %v6533
  %v6936 = vsel %vm124, %v6276, %v6535
  %v6937 = vsel %vm124, %v6277, %v6537
  %v6938 = vsel %vm124, %v6278, %v6539
  %v6939 = vsel %vm124, %v6279, %v6541
  %v6940 = vsel %vm124, %v6280, %v6543
  %v6941 = vsel %vm124, %v6281, %v6545
  %v6942 = vsel %vm124, %v6282, %v6547
  %v6943 = vsel %vm124, %v6283, %v6549
  %v6944 = vsel %vm124, %v6284, %v6551
  %v6945 = vsel %vm124, %v6285, %v6553
  %v6946 = vsel %vm124, %v6286, %v6555
  %v6947 = vsel %vm124, %v6287, %v6557
  %v6948 = vsel %vm124, %v6288, %v6559
  %v6949 = vsel %vm124, %v6289, %v6561
  %v6950 = vsel %vm124, %v6290, %v6563
  %v6951 = vsel %vm124, %v6291, %v6565
  %v6952 = vsel %vm124, %v6292, %v6567
  %v6953 = vsel %vm124, %v6293, %v6569
  %v6954 = vsel %vm124, %v6294, %v6571
  %v6955 = vsel %vm124, %v6295, %v6573
  %v6956 = vsel %vm124, %v6296, %v6575
  %v6957 = vsel %vm124, %v6297, %v6577
  %v6958 = vsel %vm124, %v6298, %v6579
  %v6959 = vsel %vm124, %v6299, %v6581
  %v6960 = vsel %vm124, %v6300, %v6583
  %v6961 = vsel %vm124, %v6301, %v6585
  %v6962 = vsel %vm124, %v6302, %v6587
  %v6963 = vsel %vm124, %v6303, %v6589
  %v6964 = vsel %vm124, %v6304, %v6591
  %v6965 = vsel %vm124, %v6305, %v6593
  %v6966 = vsel %vm124, %v6306, %v6595
  %v6967 = vsel %vm124, %v6307, %v6597
  %v6968 = vsel %vm124, %v6308, %v6599
  %v6969 = vsel %vm124, %v6309, %v6601
  %v6970 = vsel %vm124, %v6310, %v6603
  %v6971 = vsel %vm124, %v6311, %v6605
  %v6972 = vsel %vm124, %v6312, %v6607
  %v6973 = vsel %vm124, %v6313, %v6609
  %v6974 = vsel %vm124, %v6314, %v6611
  %v6975 = vsel %vm124, %v6315, %v6613
  %v6976 = vsel %vm124, %v6316, %v6615
  %v6977 = vsel %vm124, %v6317, %v6617
  %v6978 = vsel %vm2296, %v6918, %v6739
  %v6979 = vsel %vm2296, %v6919, %v6741
  %v6980 = vsel %vm2296, %v6920, %v6743
  %v6981 = vsel %vm2296, %v6921, %v6745
  %v6982 = vsel %vm2296, %v6922, %v6747
  %v6983 = vsel %vm2296, %v6923, %v6749
  %v6984 = vsel %vm2296, %v6924, %v6751
  %v6985 = vsel %vm2296, %v6925, %v6753
  %v6986 = vsel %vm2296, %v6926, %v6755
  %v6987 = vsel %vm2296, %v6927, %v6757
  %v6988 = vsel %vm2296, %v6928, %v6759
  %v6989 = vsel %vm2296, %v6929, %v6761
  %v6990 = vsel %vm2296, %v6930, %v6763
  %v6991 = vsel %vm2296, %v6931, %v6765
  %v6992 = vsel %vm2296, %v6932, %v6767
  %v6993 = vsel %vm2296, %v6933, %v6769
  %v6994 = vsel %vm2296, %v6934, %v6771
  %v6995 = vsel %vm2296, %v6935, %v6773
  %v6996 = vsel %vm2296, %v6936, %v6775
  %v6997 = vsel %vm2296, %v6937, %v6777
  %v6998 = vsel %vm2296, %v6938, %v6779
  %v6999 = vsel %vm2296, %v6939, %v6781
  %v7000 = vsel %vm2296, %v6940, %v6783
  %v7001 = vsel %vm2296, %v6941, %v6785
  %v7002 = vsel %vm2296, %v6942, %v6787
  %v7003 = vsel %vm2296, %v6943, %v6789
  %v7004 = vsel %vm2296, %v6944, %v6791
  %v7005 = vsel %vm2296, %v6945, %v6793
  %v7006 = vsel %vm2296, %v6946, %v6795
  %v7007 = vsel %vm2296, %v6947, %v6797
  %v7008 = vsel %vm2296, %v6948, %v6799
  %v7009 = vsel %vm2296, %v6949, %v6801
  %v7010 = vsel %vm2296, %v6950, %v6803
  %v7011 = vsel %vm2296, %v6951, %v6805
  %v7012 = vsel %vm2296, %v6952, %v6807
  %v7013 = vsel %vm2296, %v6953, %v6809
  %v7014 = vsel %vm2296, %v6954, %v6811
  %v7015 = vsel %vm2296, %v6955, %v6813
  %v7016 = vsel %vm2296, %v6956, %v6815
  %v7017 = vsel %vm2296, %v6957, %v6817
  %v7018 = vsel %vm2296, %v6958, %v6819
  %v7019 = vsel %vm2296, %v6959, %v6821
  %v7020 = vsel %vm2296, %v6960, %v6823
  %v7021 = vsel %vm2296, %v6961, %v6825
  %v7022 = vsel %vm2296, %v6962, %v6827
  %v7023 = vsel %vm2296, %v6963, %v6829
  %v7024 = vsel %vm2296, %v6964, %v6831
  %v7025 = vsel %vm2296, %v6965, %v6833
  %v7026 = vsel %vm2296, %v6966, %v6835
  %v7027 = vsel %vm2296, %v6967, %v6837
  %v7028 = vsel %vm2296, %v6968, %v6839
  %v7029 = vsel %vm2296, %v6969, %v6841
  %v7030 = vsel %vm2296, %v6970, %v6843
  %v7031 = vsel %vm2296, %v6971, %v6845
  %v7032 = vsel %vm2296, %v6972, %v6847
  %v7033 = vsel %vm2296, %v6973, %v6849
  %v7034 = vsel %vm2296, %v6974, %v6851
  %v7035 = vsel %vm2296, %v6975, %v6853
  %v7036 = vsel %vm2296, %v6976, %v6855
  %v7037 = vsel %vm2296, %v6977, %v6857
  %7092 = vrot.lane.b32.xlu0 %v6981, 24
  %v7093 = vpop.permute.xlu0 %7092
  %7094 = vrot.lane.b32.xlu0 %v6982, 24
  %v7095 = vpop.permute.xlu0 %7094
  %7096 = vrot.lane.b32.xlu0 %v6983, 24
  %v7097 = vpop.permute.xlu0 %7096
  %7098 = vrot.lane.b32.xlu0 %v6984, 24
  %v7099 = vpop.permute.xlu0 %7098
  %7100 = vrot.lane.b32.xlu0 %v6985, 24
  %v7101 = vpop.permute.xlu0 %7100
  %7102 = vrot.lane.b32.xlu0 %v6986, 24
  %v7103 = vpop.permute.xlu0 %7102
  %7104 = vrot.lane.b32.xlu0 %v6987, 24
  %v7105 = vpop.permute.xlu0 %7104
  %7106 = vrot.lane.b32.xlu0 %v6988, 24
  %v7107 = vpop.permute.xlu0 %7106
  %7108 = vrot.lane.b32.xlu0 %v6989, 24
  %v7109 = vpop.permute.xlu0 %7108
  %7110 = vrot.lane.b32.xlu0 %v6990, 24
  %v7111 = vpop.permute.xlu0 %7110
  %7112 = vrot.lane.b32.xlu0 %v6991, 24
  %v7113 = vpop.permute.xlu0 %7112
  %7114 = vrot.lane.b32.xlu0 %v6992, 24
  %v7115 = vpop.permute.xlu0 %7114
  %7116 = vrot.lane.b32.xlu0 %v6993, 24
  %v7117 = vpop.permute.xlu0 %7116
  %7118 = vrot.lane.b32.xlu0 %v6994, 24
  %v7119 = vpop.permute.xlu0 %7118
  %7120 = vrot.lane.b32.xlu0 %v6995, 24
  %v7121 = vpop.permute.xlu0 %7120
  %7122 = vrot.lane.b32.xlu0 %v6996, 24
  %v7123 = vpop.permute.xlu0 %7122
  %7124 = vrot.lane.b32.xlu0 %v6997, 24
  %v7125 = vpop.permute.xlu0 %7124
  %7126 = vrot.lane.b32.xlu0 %v6998, 24
  %v7127 = vpop.permute.xlu0 %7126
  %7128 = vrot.lane.b32.xlu0 %v6999, 24
  %v7129 = vpop.permute.xlu0 %7128
  %7130 = vrot.lane.b32.xlu0 %v7000, 24
  %v7131 = vpop.permute.xlu0 %7130
  %7132 = vrot.lane.b32.xlu0 %v7001, 24
  %v7133 = vpop.permute.xlu0 %7132
  %7134 = vrot.lane.b32.xlu0 %v7002, 24
  %v7135 = vpop.permute.xlu0 %7134
  %7136 = vrot.lane.b32.xlu0 %v7003, 24
  %v7137 = vpop.permute.xlu0 %7136
  %7138 = vrot.lane.b32.xlu0 %v7004, 24
  %v7139 = vpop.permute.xlu0 %7138
  %7140 = vrot.lane.b32.xlu0 %v7005, 24
  %v7141 = vpop.permute.xlu0 %7140
  %7142 = vrot.lane.b32.xlu0 %v7006, 24
  %v7143 = vpop.permute.xlu0 %7142
  %7144 = vrot.lane.b32.xlu0 %v7007, 24
  %v7145 = vpop.permute.xlu0 %7144
  %7146 = vrot.lane.b32.xlu0 %v7008, 24
  %v7147 = vpop.permute.xlu0 %7146
  %7148 = vrot.lane.b32.xlu0 %v7009, 24
  %v7149 = vpop.permute.xlu0 %7148
  %7150 = vrot.lane.b32.xlu0 %v7010, 24
  %v7151 = vpop.permute.xlu0 %7150
  %7152 = vrot.lane.b32.xlu0 %v7011, 24
  %v7153 = vpop.permute.xlu0 %7152
  %7154 = vrot.lane.b32.xlu0 %v7012, 24
  %v7155 = vpop.permute.xlu0 %7154
  %7156 = vrot.lane.b32.xlu0 %v7013, 24
  %v7157 = vpop.permute.xlu0 %7156
  %7158 = vrot.lane.b32.xlu0 %v7014, 24
  %v7159 = vpop.permute.xlu0 %7158
  %7160 = vrot.lane.b32.xlu0 %v7015, 24
  %v7161 = vpop.permute.xlu0 %7160
  %7162 = vrot.lane.b32.xlu0 %v7016, 24
  %v7163 = vpop.permute.xlu0 %7162
  %7164 = vrot.lane.b32.xlu0 %v7017, 24
  %v7165 = vpop.permute.xlu0 %7164
  %7166 = vrot.lane.b32.xlu0 %v7018, 24
  %v7167 = vpop.permute.xlu0 %7166
  %7168 = vrot.lane.b32.xlu0 %v7019, 24
  %v7169 = vpop.permute.xlu0 %7168
  %7170 = vrot.lane.b32.xlu0 %v7020, 24
  %v7171 = vpop.permute.xlu0 %7170
  %7172 = vrot.lane.b32.xlu0 %v7021, 24
  %v7173 = vpop.permute.xlu0 %7172
  %7174 = vrot.lane.b32.xlu0 %v7022, 24
  %v7175 = vpop.permute.xlu0 %7174
  %7176 = vrot.lane.b32.xlu0 %v7023, 24
  %v7177 = vpop.permute.xlu0 %7176
  %7178 = vrot.lane.b32.xlu0 %v7024, 24
  %v7179 = vpop.permute.xlu0 %7178
  %7180 = vrot.lane.b32.xlu0 %v7025, 24
  %v7181 = vpop.permute.xlu0 %7180
  %7182 = vrot.lane.b32.xlu0 %v7026, 24
  %v7183 = vpop.permute.xlu0 %7182
  %7184 = vrot.lane.b32.xlu0 %v7027, 24
  %v7185 = vpop.permute.xlu0 %7184
  %7186 = vrot.lane.b32.xlu0 %v7028, 24
  %v7187 = vpop.permute.xlu0 %7186
  %7188 = vrot.lane.b32.xlu0 %v7029, 24
  %v7189 = vpop.permute.xlu0 %7188
  %7190 = vrot.lane.b32.xlu0 %v7030, 24
  %v7191 = vpop.permute.xlu0 %7190
  %7192 = vrot.lane.b32.xlu0 %v7031, 24
  %v7193 = vpop.permute.xlu0 %7192
  %7194 = vrot.lane.b32.xlu0 %v7032, 24
  %v7195 = vpop.permute.xlu0 %7194
  %7196 = vrot.lane.b32.xlu0 %v7033, 24
  %v7197 = vpop.permute.xlu0 %7196
  %7198 = vrot.lane.b32.xlu0 %v7034, 24
  %v7199 = vpop.permute.xlu0 %7198
  %7257 = vrot.lane.b32.xlu0 %v6984, 48
  %v7258 = vpop.permute.xlu0 %7257
  %7259 = vrot.lane.b32.xlu0 %v6985, 48
  %v7260 = vpop.permute.xlu0 %7259
  %7261 = vrot.lane.b32.xlu0 %v6986, 48
  %v7262 = vpop.permute.xlu0 %7261
  %7263 = vrot.lane.b32.xlu0 %v6987, 48
  %v7264 = vpop.permute.xlu0 %7263
  %7265 = vrot.lane.b32.xlu0 %v6988, 48
  %v7266 = vpop.permute.xlu0 %7265
  %7267 = vrot.lane.b32.xlu0 %v6989, 48
  %v7268 = vpop.permute.xlu0 %7267
  %7269 = vrot.lane.b32.xlu0 %v6990, 48
  %v7270 = vpop.permute.xlu0 %7269
  %7271 = vrot.lane.b32.xlu0 %v6991, 48
  %v7272 = vpop.permute.xlu0 %7271
  %7273 = vrot.lane.b32.xlu0 %v6992, 48
  %v7274 = vpop.permute.xlu0 %7273
  %7275 = vrot.lane.b32.xlu0 %v6993, 48
  %v7276 = vpop.permute.xlu0 %7275
  %7277 = vrot.lane.b32.xlu0 %v6994, 48
  %v7278 = vpop.permute.xlu0 %7277
  %7279 = vrot.lane.b32.xlu0 %v6995, 48
  %v7280 = vpop.permute.xlu0 %7279
  %7281 = vrot.lane.b32.xlu0 %v6996, 48
  %v7282 = vpop.permute.xlu0 %7281
  %7283 = vrot.lane.b32.xlu0 %v6997, 48
  %v7284 = vpop.permute.xlu0 %7283
  %7285 = vrot.lane.b32.xlu0 %v6998, 48
  %v7286 = vpop.permute.xlu0 %7285
  %7287 = vrot.lane.b32.xlu0 %v6999, 48
  %v7288 = vpop.permute.xlu0 %7287
  %7289 = vrot.lane.b32.xlu0 %v7000, 48
  %v7290 = vpop.permute.xlu0 %7289
  %7291 = vrot.lane.b32.xlu0 %v7001, 48
  %v7292 = vpop.permute.xlu0 %7291
  %7293 = vrot.lane.b32.xlu0 %v7002, 48
  %v7294 = vpop.permute.xlu0 %7293
  %7295 = vrot.lane.b32.xlu0 %v7003, 48
  %v7296 = vpop.permute.xlu0 %7295
  %7297 = vrot.lane.b32.xlu0 %v7004, 48
  %v7298 = vpop.permute.xlu0 %7297
  %7299 = vrot.lane.b32.xlu0 %v7005, 48
  %v7300 = vpop.permute.xlu0 %7299
  %7301 = vrot.lane.b32.xlu0 %v7006, 48
  %v7302 = vpop.permute.xlu0 %7301
  %7303 = vrot.lane.b32.xlu0 %v7007, 48
  %v7304 = vpop.permute.xlu0 %7303
  %7305 = vrot.lane.b32.xlu0 %v7008, 48
  %v7306 = vpop.permute.xlu0 %7305
  %7307 = vrot.lane.b32.xlu0 %v7009, 48
  %v7308 = vpop.permute.xlu0 %7307
  %7309 = vrot.lane.b32.xlu0 %v7010, 48
  %v7310 = vpop.permute.xlu0 %7309
  %7311 = vrot.lane.b32.xlu0 %v7011, 48
  %v7312 = vpop.permute.xlu0 %7311
  %7313 = vrot.lane.b32.xlu0 %v7012, 48
  %v7314 = vpop.permute.xlu0 %7313
  %7315 = vrot.lane.b32.xlu0 %v7013, 48
  %v7316 = vpop.permute.xlu0 %7315
  %7317 = vrot.lane.b32.xlu0 %v7014, 48
  %v7318 = vpop.permute.xlu0 %7317
  %7319 = vrot.lane.b32.xlu0 %v7015, 48
  %v7320 = vpop.permute.xlu0 %7319
  %7321 = vrot.lane.b32.xlu0 %v7016, 48
  %v7322 = vpop.permute.xlu0 %7321
  %7323 = vrot.lane.b32.xlu0 %v7017, 48
  %v7324 = vpop.permute.xlu0 %7323
  %7325 = vrot.lane.b32.xlu0 %v7018, 48
  %v7326 = vpop.permute.xlu0 %7325
  %7327 = vrot.lane.b32.xlu0 %v7019, 48
  %v7328 = vpop.permute.xlu0 %7327
  %7329 = vrot.lane.b32.xlu0 %v7020, 48
  %v7330 = vpop.permute.xlu0 %7329
  %7331 = vrot.lane.b32.xlu0 %v7021, 48
  %v7332 = vpop.permute.xlu0 %7331
  %7333 = vrot.lane.b32.xlu0 %v7022, 48
  %v7334 = vpop.permute.xlu0 %7333
  %7335 = vrot.lane.b32.xlu0 %v7023, 48
  %v7336 = vpop.permute.xlu0 %7335
  %7337 = vrot.lane.b32.xlu0 %v7024, 48
  %v7338 = vpop.permute.xlu0 %7337
  %7339 = vrot.lane.b32.xlu0 %v7025, 48
  %v7340 = vpop.permute.xlu0 %7339
  %7341 = vrot.lane.b32.xlu0 %v7026, 48
  %v7342 = vpop.permute.xlu0 %7341
  %7343 = vrot.lane.b32.xlu0 %v7027, 48
  %v7344 = vpop.permute.xlu0 %7343
  %7345 = vrot.lane.b32.xlu0 %v7028, 48
  %v7346 = vpop.permute.xlu0 %7345
  %7347 = vrot.lane.b32.xlu0 %v7029, 48
  %v7348 = vpop.permute.xlu0 %7347
  %7349 = vrot.lane.b32.xlu0 %v7030, 48
  %v7350 = vpop.permute.xlu0 %7349
  %7351 = vrot.lane.b32.xlu0 %v7031, 48
  %v7352 = vpop.permute.xlu0 %7351
  %7353 = vrot.lane.b32.xlu0 %v7032, 48
  %v7354 = vpop.permute.xlu0 %7353
  %7355 = vrot.lane.b32.xlu0 %v7033, 48
  %v7356 = vpop.permute.xlu0 %7355
  %7357 = vrot.lane.b32.xlu0 %v7034, 48
  %v7358 = vpop.permute.xlu0 %7357
  %7359 = vrot.lane.b32.xlu0 %v7035, 48
  %v7360 = vpop.permute.xlu0 %7359
  %7361 = vrot.lane.b32.xlu0 %v7036, 48
  %v7362 = vpop.permute.xlu0 %7361
  %7363 = vrot.lane.b32.xlu0 %v7037, 48
  %v7364 = vpop.permute.xlu0 %7363
  %v7419 = vsel %vm1078, %v6978, %v7093
  %v7420 = vsel %vm1078, %v6979, %v7095
  %v7421 = vsel %vm1078, %v6980, %v7097
  %v7422 = vsel %vm1078, %v6981, %v7099
  %v7423 = vsel %vm1078, %v6982, %v7101
  %v7424 = vsel %vm1078, %v6983, %v7103
  %v7425 = vsel %vm1078, %v6984, %v7105
  %v7426 = vsel %vm1078, %v6985, %v7107
  %v7427 = vsel %vm1078, %v6986, %v7109
  %v7428 = vsel %vm1078, %v6987, %v7111
  %v7429 = vsel %vm1078, %v6988, %v7113
  %v7430 = vsel %vm1078, %v6989, %v7115
  %v7431 = vsel %vm1078, %v6990, %v7117
  %v7432 = vsel %vm1078, %v6991, %v7119
  %v7433 = vsel %vm1078, %v6992, %v7121
  %v7434 = vsel %vm1078, %v6993, %v7123
  %v7435 = vsel %vm1078, %v6994, %v7125
  %v7436 = vsel %vm1078, %v6995, %v7127
  %v7437 = vsel %vm1078, %v6996, %v7129
  %v7438 = vsel %vm1078, %v6997, %v7131
  %v7439 = vsel %vm1078, %v6998, %v7133
  %v7440 = vsel %vm1078, %v6999, %v7135
  %v7441 = vsel %vm1078, %v7000, %v7137
  %v7442 = vsel %vm1078, %v7001, %v7139
  %v7443 = vsel %vm1078, %v7002, %v7141
  %v7444 = vsel %vm1078, %v7003, %v7143
  %v7445 = vsel %vm1078, %v7004, %v7145
  %v7446 = vsel %vm1078, %v7005, %v7147
  %v7447 = vsel %vm1078, %v7006, %v7149
  %v7448 = vsel %vm1078, %v7007, %v7151
  %v7449 = vsel %vm1078, %v7008, %v7153
  %v7450 = vsel %vm1078, %v7009, %v7155
  %v7451 = vsel %vm1078, %v7010, %v7157
  %v7452 = vsel %vm1078, %v7011, %v7159
  %v7453 = vsel %vm1078, %v7012, %v7161
  %v7454 = vsel %vm1078, %v7013, %v7163
  %v7455 = vsel %vm1078, %v7014, %v7165
  %v7456 = vsel %vm1078, %v7015, %v7167
  %v7457 = vsel %vm1078, %v7016, %v7169
  %v7458 = vsel %vm1078, %v7017, %v7171
  %v7459 = vsel %vm1078, %v7018, %v7173
  %v7460 = vsel %vm1078, %v7019, %v7175
  %v7461 = vsel %vm1078, %v7020, %v7177
  %v7462 = vsel %vm1078, %v7021, %v7179
  %v7463 = vsel %vm1078, %v7022, %v7181
  %v7464 = vsel %vm1078, %v7023, %v7183
  %v7465 = vsel %vm1078, %v7024, %v7185
  %v7466 = vsel %vm1078, %v7025, %v7187
  %v7467 = vsel %vm1078, %v7026, %v7189
  %v7468 = vsel %vm1078, %v7027, %v7191
  %v7469 = vsel %vm1078, %v7028, %v7193
  %v7470 = vsel %vm1078, %v7029, %v7195
  %v7471 = vsel %vm1078, %v7030, %v7197
  %v7472 = vsel %vm1078, %v7031, %v7199
  %v7473 = vsel %vm2792, %v7419, %v7258
  %v7474 = vsel %vm2792, %v7420, %v7260
  %v7475 = vsel %vm2792, %v7421, %v7262
  %v7476 = vsel %vm2792, %v7422, %v7264
  %v7477 = vsel %vm2792, %v7423, %v7266
  %v7478 = vsel %vm2792, %v7424, %v7268
  %v7479 = vsel %vm2792, %v7425, %v7270
  %v7480 = vsel %vm2792, %v7426, %v7272
  %v7481 = vsel %vm2792, %v7427, %v7274
  %v7482 = vsel %vm2792, %v7428, %v7276
  %v7483 = vsel %vm2792, %v7429, %v7278
  %v7484 = vsel %vm2792, %v7430, %v7280
  %v7485 = vsel %vm2792, %v7431, %v7282
  %v7486 = vsel %vm2792, %v7432, %v7284
  %v7487 = vsel %vm2792, %v7433, %v7286
  %v7488 = vsel %vm2792, %v7434, %v7288
  %v7489 = vsel %vm2792, %v7435, %v7290
  %v7490 = vsel %vm2792, %v7436, %v7292
  %v7491 = vsel %vm2792, %v7437, %v7294
  %v7492 = vsel %vm2792, %v7438, %v7296
  %v7493 = vsel %vm2792, %v7439, %v7298
  %v7494 = vsel %vm2792, %v7440, %v7300
  %v7495 = vsel %vm2792, %v7441, %v7302
  %v7496 = vsel %vm2792, %v7442, %v7304
  %v7497 = vsel %vm2792, %v7443, %v7306
  %v7498 = vsel %vm2792, %v7444, %v7308
  %v7499 = vsel %vm2792, %v7445, %v7310
  %v7500 = vsel %vm2792, %v7446, %v7312
  %v7501 = vsel %vm2792, %v7447, %v7314
  %v7502 = vsel %vm2792, %v7448, %v7316
  %v7503 = vsel %vm2792, %v7449, %v7318
  %v7504 = vsel %vm2792, %v7450, %v7320
  %v7505 = vsel %vm2792, %v7451, %v7322
  %v7506 = vsel %vm2792, %v7452, %v7324
  %v7507 = vsel %vm2792, %v7453, %v7326
  %v7508 = vsel %vm2792, %v7454, %v7328
  %v7509 = vsel %vm2792, %v7455, %v7330
  %v7510 = vsel %vm2792, %v7456, %v7332
  %v7511 = vsel %vm2792, %v7457, %v7334
  %v7512 = vsel %vm2792, %v7458, %v7336
  %v7513 = vsel %vm2792, %v7459, %v7338
  %v7514 = vsel %vm2792, %v7460, %v7340
  %v7515 = vsel %vm2792, %v7461, %v7342
  %v7516 = vsel %vm2792, %v7462, %v7344
  %v7517 = vsel %vm2792, %v7463, %v7346
  %v7518 = vsel %vm2792, %v7464, %v7348
  %v7519 = vsel %vm2792, %v7465, %v7350
  %v7520 = vsel %vm2792, %v7466, %v7352
  %v7521 = vsel %vm2792, %v7467, %v7354
  %v7522 = vsel %vm2792, %v7468, %v7356
  %v7523 = vsel %vm2792, %v7469, %v7358
  %v7524 = vsel %vm2792, %v7470, %v7360
  %v7525 = vsel %vm2792, %v7471, %v7362
  %v7526 = vsel %vm2792, %v7472, %v7364
  %v7527 = vld [vmem:[%s2847] sm:$0xff]
  %v7528 = vld [vmem:[%s2847 + $0x8] sm:$0xff]
  %v7529 = vld [vmem:[%s2847 + $0x10] sm:$0xff]
  %v7530 = vld [vmem:[%s2847 + $0x18] sm:$0xff]
  %v7531 = vld [vmem:[%s2847 + $0x20] sm:$0xff]
  %v7532 = vld [vmem:[%s2847 + $0x28] sm:$0xff]
  %v7533 = vld [vmem:[%s2847 + $0x30] sm:$0xff]
  %v7534 = vld [vmem:[%s2847 + $0x38] sm:$0xff]
  %v7535 = vld [vmem:[%s2847 + $0x40] sm:$0xff]
  %v7536 = vld [vmem:[%s2 + $0x1] sm:$0x1]
  %v7537 = vlaneseq
  %v7538 = vshrl.u32 %v7537, 7
  %v7539 = vsub.s32 0, %v7538
  %v7540 = vrot.slane %v7536, %v7539
  %v7542 = vsel %vm2862, %v7473, 0
  %v7545 = vsel %vm2862, %v7474, 0
  %v7548 = vsel %vm2862, %v7475, 0
  %v7551 = vsel %vm2862, %v7476, 0
  %v7554 = vsel %vm2862, %v7477, 0
  %v7557 = vsel %vm2862, %v7478, 0
  %v7560 = vsel %vm2862, %v7479, 0
  %v7563 = vsel %vm2862, %v7480, 0
  %v7566 = vsel %vm2862, %v7481, 0
  %v7569 = vsel %vm2862, %v7482, 0
  %v7572 = vsel %vm2862, %v7483, 0
  %v7575 = vsel %vm2862, %v7484, 0
  %v7578 = vsel %vm2862, %v7485, 0
  %v7581 = vsel %vm2862, %v7486, 0
  %v7584 = vsel %vm2862, %v7487, 0
  %v7587 = vsel %vm2862, %v7488, 0
  %v7590 = vsel %vm2862, %v7489, 0
  %v7593 = vsel %vm2862, %v7490, 0
  %v7596 = vsel %vm2862, %v7491, 0
  %v7599 = vsel %vm2862, %v7492, 0
  %v7602 = vsel %vm2862, %v7493, 0
  %v7605 = vsel %vm2862, %v7494, 0
  %v7608 = vsel %vm2862, %v7495, 0
  %v7611 = vsel %vm2862, %v7496, 0
  %v7614 = vsel %vm2862, %v7497, 0
  %v7617 = vsel %vm2862, %v7498, 0
  %v7620 = vsel %vm2862, %v7499, 0
  %v7623 = vsel %vm2862, %v7500, 0
  %v7626 = vsel %vm2862, %v7501, 0
  %v7629 = vsel %vm2862, %v7502, 0
  %v7632 = vsel %vm2862, %v7503, 0
  %v7635 = vsel %vm2862, %v7504, 0
  %v7638 = vsel %vm2862, %v7505, 0
  %v7641 = vsel %vm2862, %v7506, 0
  %v7644 = vsel %vm2862, %v7507, 0
  %v7647 = vsel %vm2862, %v7508, 0
  %v7650 = vsel %vm2862, %v7509, 0
  %v7653 = vsel %vm2862, %v7510, 0
  %v7656 = vsel %vm2862, %v7511, 0
  %v7659 = vsel %vm2862, %v7512, 0
  %v7662 = vsel %vm2862, %v7513, 0
  %v7665 = vsel %vm2862, %v7514, 0
  %v7668 = vsel %vm2862, %v7515, 0
  %v7671 = vsel %vm2862, %v7516, 0
  %v7674 = vsel %vm2862, %v7517, 0
  %v7677 = vsel %vm2862, %v7518, 0
  %v7680 = vsel %vm2862, %v7519, 0
  %v7683 = vsel %vm2862, %v7520, 0
  %v7686 = vsel %vm2862, %v7521, 0
  %v7689 = vsel %vm2862, %v7522, 0
  %v7692 = vsel %vm2862, %v7523, 0
  %v7695 = vsel %vm2862, %v7524, 0
  %v7698 = vsel %vm2862, %v7525, 0
  %v7701 = vsel %vm2862, %v7526, 0
  %7703 = vmatprep.subr.mxu0 0.0
  %7704 = vmatpush1.msra.mxu0 %v7527
  %7705 = vmatprep.subr.mxu0 0.0
  %7706 = vmatpush1.msra.mxu0 %v7528
  %7707 = vmatprep.subr.mxu0 0.0
  %7708 = vmatpush1.msra.mxu0 %v7529
  %7709 = vmatprep.subr.mxu0 0.0
  %7710 = vmatpush1.msra.mxu0 %v7530
  %7711 = vmatprep.subr.mxu0 0.0
  %7712 = vmatpush1.msra.mxu0 %v7531
  %7713 = vmatprep.subr.mxu0 0.0
  %7714 = vmatpush1.msra.mxu0 %v7532
  %7715 = vmatprep.subr.mxu0 0.0
  %7716 = vmatpush1.msra.mxu0 %v7533
  %7717 = vmatprep.subr.mxu0 0.0
  %7718 = vmatpush1.msra.mxu0 %v7534
  %7719 = vmatprep.subr.mxu0 0.0
  %7720 = vmatpush1.msra.mxu0 %v7535
  %7721 = vmatprep.subr.mxu0 0.0
  %7722 = vmatpush1.msra.mxu0 0.0
  %7723 = vmatprep.subr.mxu0 0.0
  %7724 = vmatpush1.msra.mxu0 0.0
  %7725 = vmatprep.subr.mxu0 0.0
  %7726 = vmatpush1.msra.mxu0 0.0
  %7727 = vmatprep.subr.mxu0 0.0
  %7728 = vmatpush1.msra.mxu0 0.0
  %7729 = vmatprep.subr.mxu0 0.0
  %7730 = vmatpush1.msra.mxu0 0.0
  %7731 = vmatprep.subr.mxu0 0.0
  %7732 = vmatpush1.msra.mxu0 0.0
  %7733 = vmatprep.subr.mxu0 0.0
  %7734 = vmatpush1.msra.mxu0 0.0
  %7735 = vmatprep.subr.mxu0 0.0
  %7736 = vmatpush1.msra.mxu0 0.0
  %7737 = vmatprep.subr.mxu0 0.0
  %7738 = vmatpush1.msra.mxu0 0.0
  %7739 = vmatprep.subr.mxu0 0.0
  %7740 = vmatpush1.msra.mxu0 0.0
  %7741 = vmatprep.subr.mxu0 0.0
  %7742 = vmatpush1.msra.mxu0 0.0
  %7743 = vmatprep.subr.mxu0 0.0
  %7744 = vmatpush1.msra.mxu0 0.0
  %7745 = vmatprep.subr.mxu0 0.0
  %7746 = vmatpush1.msra.mxu0 0.0
  %7747 = vmatprep.subr.mxu0 0.0
  %7748 = vmatpush1.msra.mxu0 0.0
  %7749 = vmatprep.subr.mxu0 0.0
  %7750 = vmatpush1.msra.mxu0 0.0
  %7751 = vmatprep.subr.mxu0 0.0
  %7752 = vmatpush1.msra.mxu0 0.0
  %7753 = vmatprep.subr.mxu0 0.0
  %7754 = vmatpush1.msra.mxu0 0.0
  %7755 = vmatprep.subr.mxu0 0.0
  %7756 = vmatpush1.msra.mxu0 0.0
  %7757 = vmatprep.subr.mxu0 0.0
  %7758 = vmatpush1.msra.mxu0 0.0
  %7759 = vmatprep.subr.mxu0 0.0
  %7760 = vmatpush1.msra.mxu0 0.0
  %7761 = vmatprep.subr.mxu0 0.0
  %7762 = vmatpush1.msra.mxu0 0.0
  %7763 = vmatprep.subr.mxu0 0.0
  %7764 = vmatpush1.msra.mxu0 0.0
  %7765 = vmatprep.subr.mxu0 0.0
  %7766 = vmatpush1.msra.mxu0 0.0
  %7767 = vmatprep.mubr.f32.mxu0 0.0
  %7768 = vmatmul.mubr.f32.gmra.mrb[0].mxu0 %v7542
  %v7769 = vpop.f32.mrb[0].mxu0
  %v7770 = vadd.f32 %v7540, %v7769
  %v7771 = vpop.f32.mrb[0].mxu0
  %7772 = vmatprep.mubr.f32.mxu0 0.0
  %7773 = vmatmul.mubr.f32.gmra.mrb[0].mxu0 %v7545
  %v7774 = vpop.f32.mrb[0].mxu0
  %v7775 = vadd.f32 %v7540, %v7774
  %v7776 = vpop.f32.mrb[0].mxu0
  %7777 = vmatprep.mubr.f32.mxu0 0.0
  %7778 = vmatmul.mubr.f32.gmra.mrb[0].mxu0 %v7548
  %v7779 = vpop.f32.mrb[0].mxu0
  %v7780 = vadd.f32 %v7540, %v7779
  %v7781 = vpop.f32.mrb[0].mxu0
  %7782 = vmatprep.mubr.f32.mxu0 0.0
  %7783 = vmatmul.mubr.f32.gmra.mrb[0].mxu0 %v7551
  %v7784 = vpop.f32.mrb[0].mxu0
  %v7785 = vadd.f32 %v7540, %v7784
  %v7786 = vpop.f32.mrb[0].mxu0
  %7787 = vmatprep.mubr.f32.mxu0 0.0
  %7788 = vmatmul.mubr.f32.gmra.mrb[0].mxu0 %v7554
  %v7789 = vpop.f32.mrb[0].mxu0
  %v7790 = vadd.f32 %v7540, %v7789
  %v7791 = vpop.f32.mrb[0].mxu0
  %7792 = vmatprep.mubr.f32.mxu0 0.0
  %7793 = vmatmul.mubr.f32.gmra.mrb[0].mxu0 %v7557
  %v7794 = vpop.f32.mrb[0].mxu0
  %v7795 = vadd.f32 %v7540, %v7794
  %v7796 = vpop.f32.mrb[0].mxu0
  %7797 = vmatprep.mubr.f32.mxu0 0.0
  %7798 = vmatmul.mubr.f32.gmra.mrb[0].mxu0 %v7560
  %v7799 = vpop.f32.mrb[0].mxu0
  %v7800 = vadd.f32 %v7540, %v7799
  %v7801 = vpop.f32.mrb[0].mxu0
  %7802 = vmatprep.mubr.f32.mxu0 0.0
  %7803 = vmatmul.mubr.f32.gmra.mrb[0].mxu0 %v7563
  %v7804 = vpop.f32.mrb[0].mxu0
  %v7805 = vadd.f32 %v7540, %v7804
  %v7806 = vpop.f32.mrb[0].mxu0
  %7807 = vmatprep.mubr.f32.mxu0 0.0
  %7808 = vmatmul.mubr.f32.gmra.mrb[0].mxu0 %v7566
  %v7809 = vpop.f32.mrb[0].mxu0
  %v7810 = vadd.f32 %v7540, %v7809
  %v7811 = vpop.f32.mrb[0].mxu0
  %7812 = vmatprep.mubr.f32.mxu0 0.0
  %7813 = vmatmul.mubr.f32.gmra.mrb[0].mxu0 %v7569
  %v7814 = vpop.f32.mrb[0].mxu0
  %v7815 = vadd.f32 %v7540, %v7814
  %v7816 = vpop.f32.mrb[0].mxu0
  %7817 = vmatprep.mubr.f32.mxu0 0.0
  %7818 = vmatmul.mubr.f32.gmra.mrb[0].mxu0 %v7572
  %v7819 = vpop.f32.mrb[0].mxu0
  %v7820 = vadd.f32 %v7540, %v7819
  %v7821 = vpop.f32.mrb[0].mxu0
  %7822 = vmatprep.mubr.f32.mxu0 0.0
  %7823 = vmatmul.mubr.f32.gmra.mrb[0].mxu0 %v7575
  %v7824 = vpop.f32.mrb[0].mxu0
  %v7825 = vadd.f32 %v7540, %v7824
  %v7826 = vpop.f32.mrb[0].mxu0
  %7827 = vmatprep.mubr.f32.mxu0 0.0
  %7828 = vmatmul.mubr.f32.gmra.mrb[0].mxu0 %v7578
  %v7829 = vpop.f32.mrb[0].mxu0
  %v7830 = vadd.f32 %v7540, %v7829
  %v7831 = vpop.f32.mrb[0].mxu0
  %7832 = vmatprep.mubr.f32.mxu0 0.0
  %7833 = vmatmul.mubr.f32.gmra.mrb[0].mxu0 %v7581
  %v7834 = vpop.f32.mrb[0].mxu0
  %v7835 = vadd.f32 %v7540, %v7834
  %v7836 = vpop.f32.mrb[0].mxu0
  %7837 = vmatprep.mubr.f32.mxu0 0.0
  %7838 = vmatmul.mubr.f32.gmra.mrb[0].mxu0 %v7584
  %v7839 = vpop.f32.mrb[0].mxu0
  %v7840 = vadd.f32 %v7540, %v7839
  %v7841 = vpop.f32.mrb[0].mxu0
  %7842 = vmatprep.mubr.f32.mxu0 0.0
  %7843 = vmatmul.mubr.f32.gmra.mrb[0].mxu0 %v7587
  %v7844 = vpop.f32.mrb[0].mxu0
  %v7845 = vadd.f32 %v7540, %v7844
  %v7846 = vpop.f32.mrb[0].mxu0
  %7847 = vmatprep.mubr.f32.mxu0 0.0
  %7848 = vmatmul.mubr.f32.gmra.mrb[0].mxu0 %v7590
  %v7849 = vpop.f32.mrb[0].mxu0
  %v7850 = vadd.f32 %v7540, %v7849
  %v7851 = vpop.f32.mrb[0].mxu0
  %7852 = vmatprep.mubr.f32.mxu0 0.0
  %7853 = vmatmul.mubr.f32.gmra.mrb[0].mxu0 %v7593
  %v7854 = vpop.f32.mrb[0].mxu0
  %v7855 = vadd.f32 %v7540, %v7854
  %v7856 = vpop.f32.mrb[0].mxu0
  %7857 = vmatprep.mubr.f32.mxu0 0.0
  %7858 = vmatmul.mubr.f32.gmra.mrb[0].mxu0 %v7596
  %v7859 = vpop.f32.mrb[0].mxu0
  %v7860 = vadd.f32 %v7540, %v7859
  %v7861 = vpop.f32.mrb[0].mxu0
  %7862 = vmatprep.mubr.f32.mxu0 0.0
  %7863 = vmatmul.mubr.f32.gmra.mrb[0].mxu0 %v7599
  %v7864 = vpop.f32.mrb[0].mxu0
  %v7865 = vadd.f32 %v7540, %v7864
  %v7866 = vpop.f32.mrb[0].mxu0
  %7867 = vmatprep.mubr.f32.mxu0 0.0
  %7868 = vmatmul.mubr.f32.gmra.mrb[0].mxu0 %v7602
  %v7869 = vpop.f32.mrb[0].mxu0
  %v7870 = vadd.f32 %v7540, %v7869
  %v7871 = vpop.f32.mrb[0].mxu0
  %7872 = vmatprep.mubr.f32.mxu0 0.0
  %7873 = vmatmul.mubr.f32.gmra.mrb[0].mxu0 %v7605
  %v7874 = vpop.f32.mrb[0].mxu0
  %v7875 = vadd.f32 %v7540, %v7874
  %v7876 = vpop.f32.mrb[0].mxu0
  %7877 = vmatprep.mubr.f32.mxu0 0.0
  %7878 = vmatmul.mubr.f32.gmra.mrb[0].mxu0 %v7608
  %v7879 = vpop.f32.mrb[0].mxu0
  %v7880 = vadd.f32 %v7540, %v7879
  %v7881 = vpop.f32.mrb[0].mxu0
  %7882 = vmatprep.mubr.f32.mxu0 0.0
  %7883 = vmatmul.mubr.f32.gmra.mrb[0].mxu0 %v7611
  %v7884 = vpop.f32.mrb[0].mxu0
  %v7885 = vadd.f32 %v7540, %v7884
  %v7886 = vpop.f32.mrb[0].mxu0
  %7887 = vmatprep.mubr.f32.mxu0 0.0
  %7888 = vmatmul.mubr.f32.gmra.mrb[0].mxu0 %v7614
  %v7889 = vpop.f32.mrb[0].mxu0
  %v7890 = vadd.f32 %v7540, %v7889
  %v7891 = vpop.f32.mrb[0].mxu0
  %7892 = vmatprep.mubr.f32.mxu0 0.0
  %7893 = vmatmul.mubr.f32.gmra.mrb[0].mxu0 %v7617
  %v7894 = vpop.f32.mrb[0].mxu0
  %v7895 = vadd.f32 %v7540, %v7894
  %v7896 = vpop.f32.mrb[0].mxu0
  %7897 = vmatprep.mubr.f32.mxu0 0.0
  %7898 = vmatmul.mubr.f32.gmra.mrb[0].mxu0 %v7620
  %v7899 = vpop.f32.mrb[0].mxu0
  %v7900 = vadd.f32 %v7540, %v7899
  %v7901 = vpop.f32.mrb[0].mxu0
  %7902 = vmatprep.mubr.f32.mxu0 0.0
  %7903 = vmatmul.mubr.f32.gmra.mrb[0].mxu0 %v7623
  %v7904 = vpop.f32.mrb[0].mxu0
  %v7905 = vadd.f32 %v7540, %v7904
  %v7906 = vpop.f32.mrb[0].mxu0
  %7907 = vmatprep.mubr.f32.mxu0 0.0
  %7908 = vmatmul.mubr.f32.gmra.mrb[0].mxu0 %v7626
  %v7909 = vpop.f32.mrb[0].mxu0
  %v7910 = vadd.f32 %v7540, %v7909
  %v7911 = vpop.f32.mrb[0].mxu0
  %7912 = vmatprep.mubr.f32.mxu0 0.0
  %7913 = vmatmul.mubr.f32.gmra.mrb[0].mxu0 %v7629
  %v7914 = vpop.f32.mrb[0].mxu0
  %v7915 = vadd.f32 %v7540, %v7914
  %v7916 = vpop.f32.mrb[0].mxu0
  %7917 = vmatprep.mubr.f32.mxu0 0.0
  %7918 = vmatmul.mubr.f32.gmra.mrb[0].mxu0 %v7632
  %v7919 = vpop.f32.mrb[0].mxu0
  %v7920 = vadd.f32 %v7540, %v7919
  %v7921 = vpop.f32.mrb[0].mxu0
  %7922 = vmatprep.mubr.f32.mxu0 0.0
  %7923 = vmatmul.mubr.f32.gmra.mrb[0].mxu0 %v7635
  %v7924 = vpop.f32.mrb[0].mxu0
  %v7925 = vadd.f32 %v7540, %v7924
  %v7926 = vpop.f32.mrb[0].mxu0
  %7927 = vmatprep.mubr.f32.mxu0 0.0
  %7928 = vmatmul.mubr.f32.gmra.mrb[0].mxu0 %v7638
  %v7929 = vpop.f32.mrb[0].mxu0
  %v7930 = vadd.f32 %v7540, %v7929
  %v7931 = vpop.f32.mrb[0].mxu0
  %7932 = vmatprep.mubr.f32.mxu0 0.0
  %7933 = vmatmul.mubr.f32.gmra.mrb[0].mxu0 %v7641
  %v7934 = vpop.f32.mrb[0].mxu0
  %v7935 = vadd.f32 %v7540, %v7934
  %v7936 = vpop.f32.mrb[0].mxu0
  %7937 = vmatprep.mubr.f32.mxu0 0.0
  %7938 = vmatmul.mubr.f32.gmra.mrb[0].mxu0 %v7644
  %v7939 = vpop.f32.mrb[0].mxu0
  %v7940 = vadd.f32 %v7540, %v7939
  %v7941 = vpop.f32.mrb[0].mxu0
  %7942 = vmatprep.mubr.f32.mxu0 0.0
  %7943 = vmatmul.mubr.f32.gmra.mrb[0].mxu0 %v7647
  %v7944 = vpop.f32.mrb[0].mxu0
  %v7945 = vadd.f32 %v7540, %v7944
  %v7946 = vpop.f32.mrb[0].mxu0
  %7947 = vmatprep.mubr.f32.mxu0 0.0
  %7948 = vmatmul.mubr.f32.gmra.mrb[0].mxu0 %v7650
  %v7949 = vpop.f32.mrb[0].mxu0
  %v7950 = vadd.f32 %v7540, %v7949
  %v7951 = vpop.f32.mrb[0].mxu0
  %7952 = vmatprep.mubr.f32.mxu0 0.0
  %7953 = vmatmul.mubr.f32.gmra.mrb[0].mxu0 %v7653
  %v7954 = vpop.f32.mrb[0].mxu0
  %v7955 = vadd.f32 %v7540, %v7954
  %v7956 = vpop.f32.mrb[0].mxu0
  %7957 = vmatprep.mubr.f32.mxu0 0.0
  %7958 = vmatmul.mubr.f32.gmra.mrb[0].mxu0 %v7656
  %v7959 = vpop.f32.mrb[0].mxu0
  %v7960 = vadd.f32 %v7540, %v7959
  %v7961 = vpop.f32.mrb[0].mxu0
  %7962 = vmatprep.mubr.f32.mxu0 0.0
  %7963 = vmatmul.mubr.f32.gmra.mrb[0].mxu0 %v7659
  %v7964 = vpop.f32.mrb[0].mxu0
  %v7965 = vadd.f32 %v7540, %v7964
  %v7966 = vpop.f32.mrb[0].mxu0
  %7967 = vmatprep.mubr.f32.mxu0 0.0
  %7968 = vmatmul.mubr.f32.gmra.mrb[0].mxu0 %v7662
  %v7969 = vpop.f32.mrb[0].mxu0
  %v7970 = vadd.f32 %v7540, %v7969
  %v7971 = vpop.f32.mrb[0].mxu0
  %7972 = vmatprep.mubr.f32.mxu0 0.0
  %7973 = vmatmul.mubr.f32.gmra.mrb[0].mxu0 %v7665
  %v7974 = vpop.f32.mrb[0].mxu0
  %v7975 = vadd.f32 %v7540, %v7974
  %v7976 = vpop.f32.mrb[0].mxu0
  %7977 = vmatprep.mubr.f32.mxu0 0.0
  %7978 = vmatmul.mubr.f32.gmra.mrb[0].mxu0 %v7668
  %v7979 = vpop.f32.mrb[0].mxu0
  %v7980 = vadd.f32 %v7540, %v7979
  %v7981 = vpop.f32.mrb[0].mxu0
  %7982 = vmatprep.mubr.f32.mxu0 0.0
  %7983 = vmatmul.mubr.f32.gmra.mrb[0].mxu0 %v7671
  %v7984 = vpop.f32.mrb[0].mxu0
  %v7985 = vadd.f32 %v7540, %v7984
  %v7986 = vpop.f32.mrb[0].mxu0
  %7987 = vmatprep.mubr.f32.mxu0 0.0
  %7988 = vmatmul.mubr.f32.gmra.mrb[0].mxu0 %v7674
  %v7989 = vpop.f32.mrb[0].mxu0
  %v7990 = vadd.f32 %v7540, %v7989
  %v7991 = vpop.f32.mrb[0].mxu0
  %7992 = vmatprep.mubr.f32.mxu0 0.0
  %7993 = vmatmul.mubr.f32.gmra.mrb[0].mxu0 %v7677
  %v7994 = vpop.f32.mrb[0].mxu0
  %v7995 = vadd.f32 %v7540, %v7994
  %v7996 = vpop.f32.mrb[0].mxu0
  %7997 = vmatprep.mubr.f32.mxu0 0.0
  %7998 = vmatmul.mubr.f32.gmra.mrb[0].mxu0 %v7680
  %v7999 = vpop.f32.mrb[0].mxu0
  %v8000 = vadd.f32 %v7540, %v7999
  %v8001 = vpop.f32.mrb[0].mxu0
  %8002 = vmatprep.mubr.f32.mxu0 0.0
  %8003 = vmatmul.mubr.f32.gmra.mrb[0].mxu0 %v7683
  %v8004 = vpop.f32.mrb[0].mxu0
  %v8005 = vadd.f32 %v7540, %v8004
  %v8006 = vpop.f32.mrb[0].mxu0
  %8007 = vmatprep.mubr.f32.mxu0 0.0
  %8008 = vmatmul.mubr.f32.gmra.mrb[0].mxu0 %v7686
  %v8009 = vpop.f32.mrb[0].mxu0
  %v8010 = vadd.f32 %v7540, %v8009
  %v8011 = vpop.f32.mrb[0].mxu0
  %8012 = vmatprep.mubr.f32.mxu0 0.0
  %8013 = vmatmul.mubr.f32.gmra.mrb[0].mxu0 %v7689
  %v8014 = vpop.f32.mrb[0].mxu0
  %v8015 = vadd.f32 %v7540, %v8014
  %v8016 = vpop.f32.mrb[0].mxu0
  %8017 = vmatprep.mubr.f32.mxu0 0.0
  %8018 = vmatmul.mubr.f32.gmra.mrb[0].mxu0 %v7692
  %v8019 = vpop.f32.mrb[0].mxu0
  %v8020 = vadd.f32 %v7540, %v8019
  %v8021 = vpop.f32.mrb[0].mxu0
  %8022 = vmatprep.mubr.f32.mxu0 0.0
  %8023 = vmatmul.mubr.f32.gmra.mrb[0].mxu0 %v7695
  %v8024 = vpop.f32.mrb[0].mxu0
  %v8025 = vadd.f32 %v7540, %v8024
  %v8026 = vpop.f32.mrb[0].mxu0
  %8027 = vmatprep.mubr.f32.mxu0 0.0
  %8028 = vmatmul.mubr.f32.gmra.mrb[0].mxu0 %v7698
  %v8029 = vpop.f32.mrb[0].mxu0
  %v8030 = vadd.f32 %v7540, %v8029
  %v8031 = vpop.f32.mrb[0].mxu0
  %8032 = vmatprep.mubr.f32.mxu0 0.0
  %8033 = vmatmul.mubr.f32.gmra.mrb[0].mxu0 %v7701
  %v8034 = vpop.f32.mrb[0].mxu0
  %v8035 = vadd.f32 %v7540, %v8034
  %v8036 = vpop.f32.mrb[0].mxu0
  %8037 = vdwg.mxu0
  %vm8038 = vcmp.ge.f32.partialorder %v7770, 0.0
  %vm8039 = vcmp.ge.f32.partialorder %v7775, 0.0
  %vm8040 = vcmp.ge.f32.partialorder %v7780, 0.0
  %vm8041 = vcmp.ge.f32.partialorder %v7785, 0.0
  %vm8042 = vcmp.ge.f32.partialorder %v7790, 0.0
  %vm8043 = vcmp.ge.f32.partialorder %v7795, 0.0
  %vm8044 = vcmp.ge.f32.partialorder %v7800, 0.0
  %vm8045 = vcmp.ge.f32.partialorder %v7805, 0.0
  %vm8046 = vcmp.ge.f32.partialorder %v7810, 0.0
  %vm8047 = vcmp.ge.f32.partialorder %v7815, 0.0
  %vm8048 = vcmp.ge.f32.partialorder %v7820, 0.0
  %vm8049 = vcmp.ge.f32.partialorder %v7825, 0.0
  %vm8050 = vcmp.ge.f32.partialorder %v7830, 0.0
  %vm8051 = vcmp.ge.f32.partialorder %v7835, 0.0
  %vm8052 = vcmp.ge.f32.partialorder %v7840, 0.0
  %vm8053 = vcmp.ge.f32.partialorder %v7845, 0.0
  %vm8054 = vcmp.ge.f32.partialorder %v7850, 0.0
  %vm8055 = vcmp.ge.f32.partialorder %v7855, 0.0
  %vm8056 = vcmp.ge.f32.partialorder %v7860, 0.0
  %vm8057 = vcmp.ge.f32.partialorder %v7865, 0.0
  %vm8058 = vcmp.ge.f32.partialorder %v7870, 0.0
  %vm8059 = vcmp.ge.f32.partialorder %v7875, 0.0
  %vm8060 = vcmp.ge.f32.partialorder %v7880, 0.0
  %vm8061 = vcmp.ge.f32.partialorder %v7885, 0.0
  %vm8062 = vcmp.ge.f32.partialorder %v7890, 0.0
  %vm8063 = vcmp.ge.f32.partialorder %v7895, 0.0
  %vm8064 = vcmp.ge.f32.partialorder %v7900, 0.0
  %vm8065 = vcmp.ge.f32.partialorder %v7905, 0.0
  %vm8066 = vcmp.ge.f32.partialorder %v7910, 0.0
  %vm8067 = vcmp.ge.f32.partialorder %v7915, 0.0
  %vm8068 = vcmp.ge.f32.partialorder %v7920, 0.0
  %vm8069 = vcmp.ge.f32.partialorder %v7925, 0.0
  %vm8070 = vcmp.ge.f32.partialorder %v7930, 0.0
  %vm8071 = vcmp.ge.f32.partialorder %v7935, 0.0
  %vm8072 = vcmp.ge.f32.partialorder %v7940, 0.0
  %vm8073 = vcmp.ge.f32.partialorder %v7945, 0.0
  %vm8074 = vcmp.ge.f32.partialorder %v7950, 0.0
  %vm8075 = vcmp.ge.f32.partialorder %v7955, 0.0
  %vm8076 = vcmp.ge.f32.partialorder %v7960, 0.0
  %vm8077 = vcmp.ge.f32.partialorder %v7965, 0.0
  %vm8078 = vcmp.ge.f32.partialorder %v7970, 0.0
  %vm8079 = vcmp.ge.f32.partialorder %v7975, 0.0
  %vm8080 = vcmp.ge.f32.partialorder %v7980, 0.0
  %vm8081 = vcmp.ge.f32.partialorder %v7985, 0.0
  %vm8082 = vcmp.ge.f32.partialorder %v7990, 0.0
  %vm8083 = vcmp.ge.f32.partialorder %v7995, 0.0
  %vm8084 = vcmp.ge.f32.partialorder %v8000, 0.0
  %vm8085 = vcmp.ge.f32.partialorder %v8005, 0.0
  %vm8086 = vcmp.ge.f32.partialorder %v8010, 0.0
  %vm8087 = vcmp.ge.f32.partialorder %v8015, 0.0
  %vm8088 = vcmp.ge.f32.partialorder %v8020, 0.0
  %vm8089 = vcmp.ge.f32.partialorder %v8025, 0.0
  %vm8090 = vcmp.ge.f32.partialorder %v8030, 0.0
  %vm8091 = vcmp.ge.f32.partialorder %v8035, 0.0
  %v8092 = vmul.f32 %v7770, 0.1
  %v8093 = vmul.f32 %v7775, 0.1
  %v8094 = vmul.f32 %v7780, 0.1
  %v8095 = vmul.f32 %v7785, 0.1
  %v8096 = vmul.f32 %v7790, 0.1
  %v8097 = vmul.f32 %v7795, 0.1
  %v8098 = vmul.f32 %v7800, 0.1
  %v8099 = vmul.f32 %v7805, 0.1
  %v8100 = vmul.f32 %v7810, 0.1
  %v8101 = vmul.f32 %v7815, 0.1
  %v8102 = vmul.f32 %v7820, 0.1
  %v8103 = vmul.f32 %v7825, 0.1
  %v8104 = vmul.f32 %v7830, 0.1
  %v8105 = vmul.f32 %v7835, 0.1
  %v8106 = vmul.f32 %v7840, 0.1
  %v8107 = vmul.f32 %v7845, 0.1
  %v8108 = vmul.f32 %v7850, 0.1
  %v8109 = vmul.f32 %v7855, 0.1
  %v8110 = vmul.f32 %v7860, 0.1
  %v8111 = vmul.f32 %v7865, 0.1
  %v8112 = vmul.f32 %v7870, 0.1
  %v8113 = vmul.f32 %v7875, 0.1
  %v8114 = vmul.f32 %v7880, 0.1
  %v8115 = vmul.f32 %v7885, 0.1
  %v8116 = vmul.f32 %v7890, 0.1
  %v8117 = vmul.f32 %v7895, 0.1
  %v8118 = vmul.f32 %v7900, 0.1
  %v8119 = vmul.f32 %v7905, 0.1
  %v8120 = vmul.f32 %v7910, 0.1
  %v8121 = vmul.f32 %v7915, 0.1
  %v8122 = vmul.f32 %v7920, 0.1
  %v8123 = vmul.f32 %v7925, 0.1
  %v8124 = vmul.f32 %v7930, 0.1
  %v8125 = vmul.f32 %v7935, 0.1
  %v8126 = vmul.f32 %v7940, 0.1
  %v8127 = vmul.f32 %v7945, 0.1
  %v8128 = vmul.f32 %v7950, 0.1
  %v8129 = vmul.f32 %v7955, 0.1
  %v8130 = vmul.f32 %v7960, 0.1
  %v8131 = vmul.f32 %v7965, 0.1
  %v8132 = vmul.f32 %v7970, 0.1
  %v8133 = vmul.f32 %v7975, 0.1
  %v8134 = vmul.f32 %v7980, 0.1
  %v8135 = vmul.f32 %v7985, 0.1
  %v8136 = vmul.f32 %v7990, 0.1
  %v8137 = vmul.f32 %v7995, 0.1
  %v8138 = vmul.f32 %v8000, 0.1
  %v8139 = vmul.f32 %v8005, 0.1
  %v8140 = vmul.f32 %v8010, 0.1
  %v8141 = vmul.f32 %v8015, 0.1
  %v8142 = vmul.f32 %v8020, 0.1
  %v8143 = vmul.f32 %v8025, 0.1
  %v8144 = vmul.f32 %v8030, 0.1
  %v8145 = vmul.f32 %v8035, 0.1
  %v8146 = vsel %vm8038, %v7770, %v8092
  %v8147 = vsel %vm8039, %v7775, %v8093
  %v8148 = vsel %vm8040, %v7780, %v8094
  %v8149 = vsel %vm8041, %v7785, %v8095
  %v8150 = vsel %vm8042, %v7790, %v8096
  %v8151 = vsel %vm8043, %v7795, %v8097
  %v8152 = vsel %vm8044, %v7800, %v8098
  %v8153 = vsel %vm8045, %v7805, %v8099
  %v8154 = vsel %vm8046, %v7810, %v8100
  %v8155 = vsel %vm8047, %v7815, %v8101
  %v8156 = vsel %vm8048, %v7820, %v8102
  %v8157 = vsel %vm8049, %v7825, %v8103
  %v8158 = vsel %vm8050, %v7830, %v8104
  %v8159 = vsel %vm8051, %v7835, %v8105
  %v8160 = vsel %vm8052, %v7840, %v8106
  %v8161 = vsel %vm8053, %v7845, %v8107
  %v8162 = vsel %vm8054, %v7850, %v8108
  %v8163 = vsel %vm8055, %v7855, %v8109
  %v8164 = vsel %vm8056, %v7860, %v8110
  %v8165 = vsel %vm8057, %v7865, %v8111
  %v8166 = vsel %vm8058, %v7870, %v8112
  %v8167 = vsel %vm8059, %v7875, %v8113
  %v8168 = vsel %vm8060, %v7880, %v8114
  %v8169 = vsel %vm8061, %v7885, %v8115
  %v8170 = vsel %vm8062, %v7890, %v8116
  %v8171 = vsel %vm8063, %v7895, %v8117
  %v8172 = vsel %vm8064, %v7900, %v8118
  %v8173 = vsel %vm8065, %v7905, %v8119
  %v8174 = vsel %vm8066, %v7910, %v8120
  %v8175 = vsel %vm8067, %v7915, %v8121
  %v8176 = vsel %vm8068, %v7920, %v8122
  %v8177 = vsel %vm8069, %v7925, %v8123
  %v8178 = vsel %vm8070, %v7930, %v8124
  %v8179 = vsel %vm8071, %v7935, %v8125
  %v8180 = vsel %vm8072, %v7940, %v8126
  %v8181 = vsel %vm8073, %v7945, %v8127
  %v8182 = vsel %vm8074, %v7950, %v8128
  %v8183 = vsel %vm8075, %v7955, %v8129
  %v8184 = vsel %vm8076, %v7960, %v8130
  %v8185 = vsel %vm8077, %v7965, %v8131
  %v8186 = vsel %vm8078, %v7970, %v8132
  %v8187 = vsel %vm8079, %v7975, %v8133
  %v8188 = vsel %vm8080, %v7980, %v8134
  %v8189 = vsel %vm8081, %v7985, %v8135
  %v8190 = vsel %vm8082, %v7990, %v8136
  %v8191 = vsel %vm8083, %v7995, %v8137
  %v8192 = vsel %vm8084, %v8000, %v8138
  %v8193 = vsel %vm8085, %v8005, %v8139
  %v8194 = vsel %vm8086, %v8010, %v8140
  %v8195 = vsel %vm8087, %v8015, %v8141
  %v8196 = vsel %vm8088, %v8020, %v8142
  %v8197 = vsel %vm8089, %v8025, %v8143
  %v8198 = vsel %vm8090, %v8030, %v8144
  %v8199 = vsel %vm8091, %v8035, %v8145
  %8200 = vst.msk [vmem:[%s6257] sm:$0xff] %vm124, %v8146
  %8201 = vst.msk [vmem:[%s6257 + $0x8] sm:$0xff] %vm124, %v8147
  %8202 = vst.msk [vmem:[%s6257 + $0x10] sm:$0x3] %vm128, %v8148
  %8203 = vst.msk [vmem:[%s6257 + $0x20] sm:$0xff] %vm124, %v8149
  %8204 = vst.msk [vmem:[%s6257 + $0x28] sm:$0xff] %vm124, %v8150
  %8205 = vst.msk [vmem:[%s6257 + $0x30] sm:$0x3] %vm128, %v8151
  %8206 = vst.msk [vmem:[%s6257 + $0x40] sm:$0xff] %vm124, %v8152
  %8207 = vst.msk [vmem:[%s6257 + $0x48] sm:$0xff] %vm124, %v8153
  %8208 = vst.msk [vmem:[%s6257 + $0x50] sm:$0x3] %vm128, %v8154
  %8209 = vst.msk [vmem:[%s6257 + $0x60] sm:$0xff] %vm124, %v8155
  %8210 = vst.msk [vmem:[%s6257 + $0x68] sm:$0xff] %vm124, %v8156
  %8211 = vst.msk [vmem:[%s6257 + $0x70] sm:$0x3] %vm128, %v8157
  %8212 = vst.msk [vmem:[%s6257 + $0x80] sm:$0xff] %vm124, %v8158
  %8213 = vst.msk [vmem:[%s6257 + $0x88] sm:$0xff] %vm124, %v8159
  %8214 = vst.msk [vmem:[%s6257 + $0x90] sm:$0x3] %vm128, %v8160
  %8215 = vst.msk [vmem:[%s6257 + $0xa0] sm:$0xff] %vm124, %v8161
  %8216 = vst.msk [vmem:[%s6257 + $0xa8] sm:$0xff] %vm124, %v8162
  %8217 = vst.msk [vmem:[%s6257 + $0xb0] sm:$0x3] %vm128, %v8163
  %8218 = vst.msk [vmem:[%s6257 + $0xc0] sm:$0xff] %vm124, %v8164
  %8219 = vst.msk [vmem:[%s6257 + $0xc8] sm:$0xff] %vm124, %v8165
  %8220 = vst.msk [vmem:[%s6257 + $0xd0] sm:$0x3] %vm128, %v8166
  %8221 = vst.msk [vmem:[%s6257 + $0xe0] sm:$0xff] %vm124, %v8167
  %8222 = vst.msk [vmem:[%s6257 + $0xe8] sm:$0xff] %vm124, %v8168
  %8223 = vst.msk [vmem:[%s6257 + $0xf0] sm:$0x3] %vm128, %v8169
  %8224 = vst.msk [vmem:[%s6257 + $0x100] sm:$0xff] %vm124, %v8170
  %8225 = vst.msk [vmem:[%s6257 + $0x108] sm:$0xff] %vm124, %v8171
  %8226 = vst.msk [vmem:[%s6257 + $0x110] sm:$0x3] %vm128, %v8172
  %8227 = vst.msk [vmem:[%s6257 + $0x120] sm:$0xff] %vm124, %v8173
  %8228 = vst.msk [vmem:[%s6257 + $0x128] sm:$0xff] %vm124, %v8174
  %8229 = vst.msk [vmem:[%s6257 + $0x130] sm:$0x3] %vm128, %v8175
  %8230 = vst.msk [vmem:[%s6257 + $0x140] sm:$0xff] %vm124, %v8176
  %8231 = vst.msk [vmem:[%s6257 + $0x148] sm:$0xff] %vm124, %v8177
  %8232 = vst.msk [vmem:[%s6257 + $0x150] sm:$0x3] %vm128, %v8178
  %8233 = vst.msk [vmem:[%s6257 + $0x160] sm:$0xff] %vm124, %v8179
  %8234 = vst.msk [vmem:[%s6257 + $0x168] sm:$0xff] %vm124, %v8180
  %8235 = vst.msk [vmem:[%s6257 + $0x170] sm:$0x3] %vm128, %v8181
  %8236 = vst.msk [vmem:[%s6257 + $0x180] sm:$0xff] %vm124, %v8182
  %8237 = vst.msk [vmem:[%s6257 + $0x188] sm:$0xff] %vm124, %v8183
  %8238 = vst.msk [vmem:[%s6257 + $0x190] sm:$0x3] %vm128, %v8184
  %8239 = vst.msk [vmem:[%s6257 + $0x1a0] sm:$0xff] %vm124, %v8185
  %8240 = vst.msk [vmem:[%s6257 + $0x1a8] sm:$0xff] %vm124, %v8186
  %8241 = vst.msk [vmem:[%s6257 + $0x1b0] sm:$0x3] %vm128, %v8187
  %8242 = vst.msk [vmem:[%s6257 + $0x1c0] sm:$0xff] %vm124, %v8188
  %8243 = vst.msk [vmem:[%s6257 + $0x1c8] sm:$0xff] %vm124, %v8189
  %8244 = vst.msk [vmem:[%s6257 + $0x1d0] sm:$0x3] %vm128, %v8190
  %8245 = vst.msk [vmem:[%s6257 + $0x1e0] sm:$0xff] %vm124, %v8191
  %8246 = vst.msk [vmem:[%s6257 + $0x1e8] sm:$0xff] %vm124, %v8192
  %8247 = vst.msk [vmem:[%s6257 + $0x1f0] sm:$0x3] %vm128, %v8193
  %8248 = vst.msk [vmem:[%s6257 + $0x200] sm:$0xff] %vm124, %v8194
  %8249 = vst.msk [vmem:[%s6257 + $0x208] sm:$0xff] %vm124, %v8195
  %8250 = vst.msk [vmem:[%s6257 + $0x210] sm:$0x3] %vm128, %v8196
  %8251 = vst.msk [vmem:[%s6257 + $0x220] sm:$0xff] %vm124, %v8197
  %8252 = vst.msk [vmem:[%s6257 + $0x228] sm:$0xff] %vm124, %v8198
  %8253 = vst.msk [vmem:[%s6257 + $0x230] sm:$0x3] %vm128, %v8199
  %v8254 = vld [vmem:[%s6257] sm:$0xff]
  %v8255 = vld [vmem:[%s6257 + $0x8] sm:$0xff]
  %v8256 = vld [vmem:[%s6257 + $0x10] sm:$0xff]
  %v8257 = vld [vmem:[%s6257 + $0x20] sm:$0xff]
  %v8258 = vld [vmem:[%s6257 + $0x28] sm:$0xff]
  %v8259 = vld [vmem:[%s6257 + $0x30] sm:$0xff]
  %v8260 = vld [vmem:[%s6257 + $0x40] sm:$0xff]
  %v8261 = vld [vmem:[%s6257 + $0x48] sm:$0xff]
  %v8262 = vld [vmem:[%s6257 + $0x50] sm:$0xff]
  %v8263 = vld [vmem:[%s6257 + $0x60] sm:$0xff]
  %v8264 = vld [vmem:[%s6257 + $0x68] sm:$0xff]
  %v8265 = vld [vmem:[%s6257 + $0x70] sm:$0xff]
  %v8266 = vld [vmem:[%s6257 + $0x80] sm:$0xff]
  %v8267 = vld [vmem:[%s6257 + $0x88] sm:$0xff]
  %v8268 = vld [vmem:[%s6257 + $0x90] sm:$0xff]
  %v8269 = vld [vmem:[%s6257 + $0xa0] sm:$0xff]
  %v8270 = vld [vmem:[%s6257 + $0xa8] sm:$0xff]
  %v8271 = vld [vmem:[%s6257 + $0xb0] sm:$0xff]
  %v8272 = vld [vmem:[%s6257 + $0xc0] sm:$0xff]
  %v8273 = vld [vmem:[%s6257 + $0xc8] sm:$0xff]
  %v8274 = vld [vmem:[%s6257 + $0xd0] sm:$0xff]
  %v8275 = vld [vmem:[%s6257 + $0xe0] sm:$0xff]
  %v8276 = vld [vmem:[%s6257 + $0xe8] sm:$0xff]
  %v8277 = vld [vmem:[%s6257 + $0xf0] sm:$0xff]
  %v8278 = vld [vmem:[%s6257 + $0x100] sm:$0xff]
  %v8279 = vld [vmem:[%s6257 + $0x108] sm:$0xff]
  %v8280 = vld [vmem:[%s6257 + $0x110] sm:$0xff]
  %v8281 = vld [vmem:[%s6257 + $0x120] sm:$0xff]
  %v8282 = vld [vmem:[%s6257 + $0x128] sm:$0xff]
  %v8283 = vld [vmem:[%s6257 + $0x130] sm:$0xff]
  %v8284 = vld [vmem:[%s6257 + $0x140] sm:$0xff]
  %v8285 = vld [vmem:[%s6257 + $0x148] sm:$0xff]
  %v8286 = vld [vmem:[%s6257 + $0x150] sm:$0xff]
  %v8287 = vld [vmem:[%s6257 + $0x160] sm:$0xff]
  %v8288 = vld [vmem:[%s6257 + $0x168] sm:$0xff]
  %v8289 = vld [vmem:[%s6257 + $0x170] sm:$0xff]
  %v8290 = vld [vmem:[%s6257 + $0x180] sm:$0xff]
  %v8291 = vld [vmem:[%s6257 + $0x188] sm:$0xff]
  %v8292 = vld [vmem:[%s6257 + $0x190] sm:$0xff]
  %v8293 = vld [vmem:[%s6257 + $0x1a0] sm:$0xff]
  %v8294 = vld [vmem:[%s6257 + $0x1a8] sm:$0xff]
  %v8295 = vld [vmem:[%s6257 + $0x1b0] sm:$0xff]
  %v8296 = vld [vmem:[%s6257 + $0x1c0] sm:$0xff]
  %v8297 = vld [vmem:[%s6257 + $0x1c8] sm:$0xff]
  %v8298 = vld [vmem:[%s6257 + $0x1d0] sm:$0xff]
  %v8299 = vld [vmem:[%s6257 + $0x1e0] sm:$0xff]
  %v8300 = vld [vmem:[%s6257 + $0x1e8] sm:$0xff]
  %v8301 = vld [vmem:[%s6257 + $0x1f0] sm:$0xff]
  %v8302 = vld [vmem:[%s6257 + $0x200] sm:$0xff]
  %v8303 = vld [vmem:[%s6257 + $0x208] sm:$0xff]
  %v8304 = vld [vmem:[%s6257 + $0x210] sm:$0xff]
  %v8305 = vld [vmem:[%s6257 + $0x220] sm:$0xff]
  %v8306 = vld [vmem:[%s6257 + $0x228] sm:$0xff]
  %v8307 = vld [vmem:[%s6257 + $0x230] sm:$0xff]
  %v8308 = vld [vmem:[%s6257 + $0x240] sm:$0xff]
  %v8309 = vld [vmem:[%s6257 + $0x248] sm:$0xff]
  %v8310 = vld [vmem:[%s6257 + $0x250] sm:$0xff]
  %v8311 = vld [vmem:[%s6257 + $0x1] sm:$0xff]
  %v8312 = vld [vmem:[%s6257 + $0x9] sm:$0xff]
  %v8313 = vld [vmem:[%s6257 + $0x11] sm:$0xff]
  %v8314 = vld [vmem:[%s6257 + $0x21] sm:$0xff]
  %v8315 = vld [vmem:[%s6257 + $0x29] sm:$0xff]
  %v8316 = vld [vmem:[%s6257 + $0x31] sm:$0xff]
  %v8317 = vld [vmem:[%s6257 + $0x41] sm:$0xff]
  %v8318 = vld [vmem:[%s6257 + $0x49] sm:$0xff]
  %v8319 = vld [vmem:[%s6257 + $0x51] sm:$0xff]
  %v8320 = vld [vmem:[%s6257 + $0x61] sm:$0xff]
  %v8321 = vld [vmem:[%s6257 + $0x69] sm:$0xff]
  %v8322 = vld [vmem:[%s6257 + $0x71] sm:$0xff]
  %v8323 = vld [vmem:[%s6257 + $0x81] sm:$0xff]
  %v8324 = vld [vmem:[%s6257 + $0x89] sm:$0xff]
  %v8325 = vld [vmem:[%s6257 + $0x91] sm:$0xff]
  %v8326 = vld [vmem:[%s6257 + $0xa1] sm:$0xff]
  %v8327 = vld [vmem:[%s6257 + $0xa9] sm:$0xff]
  %v8328 = vld [vmem:[%s6257 + $0xb1] sm:$0xff]
  %v8329 = vld [vmem:[%s6257 + $0xc1] sm:$0xff]
  %v8330 = vld [vmem:[%s6257 + $0xc9] sm:$0xff]
  %v8331 = vld [vmem:[%s6257 + $0xd1] sm:$0xff]
  %v8332 = vld [vmem:[%s6257 + $0xe1] sm:$0xff]
  %v8333 = vld [vmem:[%s6257 + $0xe9] sm:$0xff]
  %v8334 = vld [vmem:[%s6257 + $0xf1] sm:$0xff]
  %v8335 = vld [vmem:[%s6257 + $0x101] sm:$0xff]
  %v8336 = vld [vmem:[%s6257 + $0x109] sm:$0xff]
  %v8337 = vld [vmem:[%s6257 + $0x111] sm:$0xff]
  %v8338 = vld [vmem:[%s6257 + $0x121] sm:$0xff]
  %v8339 = vld [vmem:[%s6257 + $0x129] sm:$0xff]
  %v8340 = vld [vmem:[%s6257 + $0x131] sm:$0xff]
  %v8341 = vld [vmem:[%s6257 + $0x141] sm:$0xff]
  %v8342 = vld [vmem:[%s6257 + $0x149] sm:$0xff]
  %v8343 = vld [vmem:[%s6257 + $0x151] sm:$0xff]
  %v8344 = vld [vmem:[%s6257 + $0x161] sm:$0xff]
  %v8345 = vld [vmem:[%s6257 + $0x169] sm:$0xff]
  %v8346 = vld [vmem:[%s6257 + $0x171] sm:$0xff]
  %v8347 = vld [vmem:[%s6257 + $0x181] sm:$0xff]
  %v8348 = vld [vmem:[%s6257 + $0x189] sm:$0xff]
  %v8349 = vld [vmem:[%s6257 + $0x191] sm:$0xff]
  %v8350 = vld [vmem:[%s6257 + $0x1a1] sm:$0xff]
  %v8351 = vld [vmem:[%s6257 + $0x1a9] sm:$0xff]
  %v8352 = vld [vmem:[%s6257 + $0x1b1] sm:$0xff]
  %v8353 = vld [vmem:[%s6257 + $0x1c1] sm:$0xff]
  %v8354 = vld [vmem:[%s6257 + $0x1c9] sm:$0xff]
  %v8355 = vld [vmem:[%s6257 + $0x1d1] sm:$0xff]
  %v8356 = vld [vmem:[%s6257 + $0x1e1] sm:$0xff]
  %v8357 = vld [vmem:[%s6257 + $0x1e9] sm:$0xff]
  %v8358 = vld [vmem:[%s6257 + $0x1f1] sm:$0xff]
  %v8359 = vld [vmem:[%s6257 + $0x201] sm:$0xff]
  %v8360 = vld [vmem:[%s6257 + $0x209] sm:$0xff]
  %v8361 = vld [vmem:[%s6257 + $0x211] sm:$0xff]
  %v8362 = vld [vmem:[%s6257 + $0x221] sm:$0xff]
  %v8363 = vld [vmem:[%s6257 + $0x229] sm:$0xff]
  %v8364 = vld [vmem:[%s6257 + $0x231] sm:$0xff]
  %v8365 = vld [vmem:[%s6257 + $0x241] sm:$0xff]
  %v8366 = vld [vmem:[%s6257 + $0x249] sm:$0xff]
  %v8367 = vld [vmem:[%s6257 + $0x251] sm:$0xff]
  %8425 = vrot.lane.b32.xlu0 %v8311, 8
  %v8426 = vpop.permute.xlu0 %8425
  %8427 = vrot.lane.b32.xlu0 %v8312, 8
  %v8428 = vpop.permute.xlu0 %8427
  %8429 = vrot.lane.b32.xlu0 %v8313, 8
  %v8430 = vpop.permute.xlu0 %8429
  %8431 = vrot.lane.b32.xlu0 %v8314, 8
  %v8432 = vpop.permute.xlu0 %8431
  %8433 = vrot.lane.b32.xlu0 %v8315, 8
  %v8434 = vpop.permute.xlu0 %8433
  %8435 = vrot.lane.b32.xlu0 %v8316, 8
  %v8436 = vpop.permute.xlu0 %8435
  %8437 = vrot.lane.b32.xlu0 %v8317, 8
  %v8438 = vpop.permute.xlu0 %8437
  %8439 = vrot.lane.b32.xlu0 %v8318, 8
  %v8440 = vpop.permute.xlu0 %8439
  %8441 = vrot.lane.b32.xlu0 %v8319, 8
  %v8442 = vpop.permute.xlu0 %8441
  %8443 = vrot.lane.b32.xlu0 %v8320, 8
  %v8444 = vpop.permute.xlu0 %8443
  %8445 = vrot.lane.b32.xlu0 %v8321, 8
  %v8446 = vpop.permute.xlu0 %8445
  %8447 = vrot.lane.b32.xlu0 %v8322, 8
  %v8448 = vpop.permute.xlu0 %8447
  %8449 = vrot.lane.b32.xlu0 %v8323, 8
  %v8450 = vpop.permute.xlu0 %8449
  %8451 = vrot.lane.b32.xlu0 %v8324, 8
  %v8452 = vpop.permute.xlu0 %8451
  %8453 = vrot.lane.b32.xlu0 %v8325, 8
  %v8454 = vpop.permute.xlu0 %8453
  %8455 = vrot.lane.b32.xlu0 %v8326, 8
  %v8456 = vpop.permute.xlu0 %8455
  %8457 = vrot.lane.b32.xlu0 %v8327, 8
  %v8458 = vpop.permute.xlu0 %8457
  %8459 = vrot.lane.b32.xlu0 %v8328, 8
  %v8460 = vpop.permute.xlu0 %8459
  %8461 = vrot.lane.b32.xlu0 %v8329, 8
  %v8462 = vpop.permute.xlu0 %8461
  %8463 = vrot.lane.b32.xlu0 %v8330, 8
  %v8464 = vpop.permute.xlu0 %8463
  %8465 = vrot.lane.b32.xlu0 %v8331, 8
  %v8466 = vpop.permute.xlu0 %8465
  %8467 = vrot.lane.b32.xlu0 %v8332, 8
  %v8468 = vpop.permute.xlu0 %8467
  %8469 = vrot.lane.b32.xlu0 %v8333, 8
  %v8470 = vpop.permute.xlu0 %8469
  %8471 = vrot.lane.b32.xlu0 %v8334, 8
  %v8472 = vpop.permute.xlu0 %8471
  %8473 = vrot.lane.b32.xlu0 %v8335, 8
  %v8474 = vpop.permute.xlu0 %8473
  %8475 = vrot.lane.b32.xlu0 %v8336, 8
  %v8476 = vpop.permute.xlu0 %8475
  %8477 = vrot.lane.b32.xlu0 %v8337, 8
  %v8478 = vpop.permute.xlu0 %8477
  %8479 = vrot.lane.b32.xlu0 %v8338, 8
  %v8480 = vpop.permute.xlu0 %8479
  %8481 = vrot.lane.b32.xlu0 %v8339, 8
  %v8482 = vpop.permute.xlu0 %8481
  %8483 = vrot.lane.b32.xlu0 %v8340, 8
  %v8484 = vpop.permute.xlu0 %8483
  %8485 = vrot.lane.b32.xlu0 %v8341, 8
  %v8486 = vpop.permute.xlu0 %8485
  %8487 = vrot.lane.b32.xlu0 %v8342, 8
  %v8488 = vpop.permute.xlu0 %8487
  %8489 = vrot.lane.b32.xlu0 %v8343, 8
  %v8490 = vpop.permute.xlu0 %8489
  %8491 = vrot.lane.b32.xlu0 %v8344, 8
  %v8492 = vpop.permute.xlu0 %8491
  %8493 = vrot.lane.b32.xlu0 %v8345, 8
  %v8494 = vpop.permute.xlu0 %8493
  %8495 = vrot.lane.b32.xlu0 %v8346, 8
  %v8496 = vpop.permute.xlu0 %8495
  %8497 = vrot.lane.b32.xlu0 %v8347, 8
  %v8498 = vpop.permute.xlu0 %8497
  %8499 = vrot.lane.b32.xlu0 %v8348, 8
  %v8500 = vpop.permute.xlu0 %8499
  %8501 = vrot.lane.b32.xlu0 %v8349, 8
  %v8502 = vpop.permute.xlu0 %8501
  %8503 = vrot.lane.b32.xlu0 %v8350, 8
  %v8504 = vpop.permute.xlu0 %8503
  %8505 = vrot.lane.b32.xlu0 %v8351, 8
  %v8506 = vpop.permute.xlu0 %8505
  %8507 = vrot.lane.b32.xlu0 %v8352, 8
  %v8508 = vpop.permute.xlu0 %8507
  %8509 = vrot.lane.b32.xlu0 %v8353, 8
  %v8510 = vpop.permute.xlu0 %8509
  %8511 = vrot.lane.b32.xlu0 %v8354, 8
  %v8512 = vpop.permute.xlu0 %8511
  %8513 = vrot.lane.b32.xlu0 %v8355, 8
  %v8514 = vpop.permute.xlu0 %8513
  %8515 = vrot.lane.b32.xlu0 %v8356, 8
  %v8516 = vpop.permute.xlu0 %8515
  %8517 = vrot.lane.b32.xlu0 %v8357, 8
  %v8518 = vpop.permute.xlu0 %8517
  %8519 = vrot.lane.b32.xlu0 %v8358, 8
  %v8520 = vpop.permute.xlu0 %8519
  %8521 = vrot.lane.b32.xlu0 %v8359, 8
  %v8522 = vpop.permute.xlu0 %8521
  %8523 = vrot.lane.b32.xlu0 %v8360, 8
  %v8524 = vpop.permute.xlu0 %8523
  %8525 = vrot.lane.b32.xlu0 %v8361, 8
  %v8526 = vpop.permute.xlu0 %8525
  %8527 = vrot.lane.b32.xlu0 %v8362, 8
  %v8528 = vpop.permute.xlu0 %8527
  %8529 = vrot.lane.b32.xlu0 %v8363, 8
  %v8530 = vpop.permute.xlu0 %8529
  %8531 = vrot.lane.b32.xlu0 %v8364, 8
  %v8532 = vpop.permute.xlu0 %8531
  %8533 = vrot.lane.b32.xlu0 %v8365, 8
  %v8534 = vpop.permute.xlu0 %8533
  %8535 = vrot.lane.b32.xlu0 %v8366, 8
  %v8536 = vpop.permute.xlu0 %8535
  %8537 = vrot.lane.b32.xlu0 %v8367, 8
  %v8538 = vpop.permute.xlu0 %8537
  %v8596 = vsel %vm124, %v8254, %v8426
  %v8597 = vsel %vm124, %v8255, %v8428
  %v8598 = vsel %vm124, %v8256, %v8430
  %v8599 = vsel %vm124, %v8257, %v8432
  %v8600 = vsel %vm124, %v8258, %v8434
  %v8601 = vsel %vm124, %v8259, %v8436
  %v8602 = vsel %vm124, %v8260, %v8438
  %v8603 = vsel %vm124, %v8261, %v8440
  %v8604 = vsel %vm124, %v8262, %v8442
  %v8605 = vsel %vm124, %v8263, %v8444
  %v8606 = vsel %vm124, %v8264, %v8446
  %v8607 = vsel %vm124, %v8265, %v8448
  %v8608 = vsel %vm124, %v8266, %v8450
  %v8609 = vsel %vm124, %v8267, %v8452
  %v8610 = vsel %vm124, %v8268, %v8454
  %v8611 = vsel %vm124, %v8269, %v8456
  %v8612 = vsel %vm124, %v8270, %v8458
  %v8613 = vsel %vm124, %v8271, %v8460
  %v8614 = vsel %vm124, %v8272, %v8462
  %v8615 = vsel %vm124, %v8273, %v8464
  %v8616 = vsel %vm124, %v8274, %v8466
  %v8617 = vsel %vm124, %v8275, %v8468
  %v8618 = vsel %vm124, %v8276, %v8470
  %v8619 = vsel %vm124, %v8277, %v8472
  %v8620 = vsel %vm124, %v8278, %v8474
  %v8621 = vsel %vm124, %v8279, %v8476
  %v8622 = vsel %vm124, %v8280, %v8478
  %v8623 = vsel %vm124, %v8281, %v8480
  %v8624 = vsel %vm124, %v8282, %v8482
  %v8625 = vsel %vm124, %v8283, %v8484
  %v8626 = vsel %vm124, %v8284, %v8486
  %v8627 = vsel %vm124, %v8285, %v8488
  %v8628 = vsel %vm124, %v8286, %v8490
  %v8629 = vsel %vm124, %v8287, %v8492
  %v8630 = vsel %vm124, %v8288, %v8494
  %v8631 = vsel %vm124, %v8289, %v8496
  %v8632 = vsel %vm124, %v8290, %v8498
  %v8633 = vsel %vm124, %v8291, %v8500
  %v8634 = vsel %vm124, %v8292, %v8502
  %v8635 = vsel %vm124, %v8293, %v8504
  %v8636 = vsel %vm124, %v8294, %v8506
  %v8637 = vsel %vm124, %v8295, %v8508
  %v8638 = vsel %vm124, %v8296, %v8510
  %v8639 = vsel %vm124, %v8297, %v8512
  %v8640 = vsel %vm124, %v8298, %v8514
  %v8641 = vsel %vm124, %v8299, %v8516
  %v8642 = vsel %vm124, %v8300, %v8518
  %v8643 = vsel %vm124, %v8301, %v8520
  %v8644 = vsel %vm124, %v8302, %v8522
  %v8645 = vsel %vm124, %v8303, %v8524
  %v8646 = vsel %vm124, %v8304, %v8526
  %v8647 = vsel %vm124, %v8305, %v8528
  %v8648 = vsel %vm124, %v8306, %v8530
  %v8649 = vsel %vm124, %v8307, %v8532
  %v8650 = vsel %vm124, %v8308, %v8534
  %v8651 = vsel %vm124, %v8309, %v8536
  %v8652 = vsel %vm124, %v8310, %v8538
  %8707 = vrot.lane.b32.xlu0 %v8599, 16
  %v8708 = vpop.permute.xlu0 %8707
  %8709 = vrot.lane.b32.xlu0 %v8600, 16
  %v8710 = vpop.permute.xlu0 %8709
  %8711 = vrot.lane.b32.xlu0 %v8601, 16
  %v8712 = vpop.permute.xlu0 %8711
  %8713 = vrot.lane.b32.xlu0 %v8602, 16
  %v8714 = vpop.permute.xlu0 %8713
  %8715 = vrot.lane.b32.xlu0 %v8603, 16
  %v8716 = vpop.permute.xlu0 %8715
  %8717 = vrot.lane.b32.xlu0 %v8604, 16
  %v8718 = vpop.permute.xlu0 %8717
  %8719 = vrot.lane.b32.xlu0 %v8605, 16
  %v8720 = vpop.permute.xlu0 %8719
  %8721 = vrot.lane.b32.xlu0 %v8606, 16
  %v8722 = vpop.permute.xlu0 %8721
  %8723 = vrot.lane.b32.xlu0 %v8607, 16
  %v8724 = vpop.permute.xlu0 %8723
  %8725 = vrot.lane.b32.xlu0 %v8608, 16
  %v8726 = vpop.permute.xlu0 %8725
  %8727 = vrot.lane.b32.xlu0 %v8609, 16
  %v8728 = vpop.permute.xlu0 %8727
  %8729 = vrot.lane.b32.xlu0 %v8610, 16
  %v8730 = vpop.permute.xlu0 %8729
  %8731 = vrot.lane.b32.xlu0 %v8611, 16
  %v8732 = vpop.permute.xlu0 %8731
  %8733 = vrot.lane.b32.xlu0 %v8612, 16
  %v8734 = vpop.permute.xlu0 %8733
  %8735 = vrot.lane.b32.xlu0 %v8613, 16
  %v8736 = vpop.permute.xlu0 %8735
  %8737 = vrot.lane.b32.xlu0 %v8614, 16
  %v8738 = vpop.permute.xlu0 %8737
  %8739 = vrot.lane.b32.xlu0 %v8615, 16
  %v8740 = vpop.permute.xlu0 %8739
  %8741 = vrot.lane.b32.xlu0 %v8616, 16
  %v8742 = vpop.permute.xlu0 %8741
  %8743 = vrot.lane.b32.xlu0 %v8617, 16
  %v8744 = vpop.permute.xlu0 %8743
  %8745 = vrot.lane.b32.xlu0 %v8618, 16
  %v8746 = vpop.permute.xlu0 %8745
  %8747 = vrot.lane.b32.xlu0 %v8619, 16
  %v8748 = vpop.permute.xlu0 %8747
  %8749 = vrot.lane.b32.xlu0 %v8620, 16
  %v8750 = vpop.permute.xlu0 %8749
  %8751 = vrot.lane.b32.xlu0 %v8621, 16
  %v8752 = vpop.permute.xlu0 %8751
  %8753 = vrot.lane.b32.xlu0 %v8622, 16
  %v8754 = vpop.permute.xlu0 %8753
  %8755 = vrot.lane.b32.xlu0 %v8623, 16
  %v8756 = vpop.permute.xlu0 %8755
  %8757 = vrot.lane.b32.xlu0 %v8624, 16
  %v8758 = vpop.permute.xlu0 %8757
  %8759 = vrot.lane.b32.xlu0 %v8625, 16
  %v8760 = vpop.permute.xlu0 %8759
  %8761 = vrot.lane.b32.xlu0 %v8626, 16
  %v8762 = vpop.permute.xlu0 %8761
  %8763 = vrot.lane.b32.xlu0 %v8627, 16
  %v8764 = vpop.permute.xlu0 %8763
  %8765 = vrot.lane.b32.xlu0 %v8628, 16
  %v8766 = vpop.permute.xlu0 %8765
  %8767 = vrot.lane.b32.xlu0 %v8629, 16
  %v8768 = vpop.permute.xlu0 %8767
  %8769 = vrot.lane.b32.xlu0 %v8630, 16
  %v8770 = vpop.permute.xlu0 %8769
  %8771 = vrot.lane.b32.xlu0 %v8631, 16
  %v8772 = vpop.permute.xlu0 %8771
  %8773 = vrot.lane.b32.xlu0 %v8632, 16
  %v8774 = vpop.permute.xlu0 %8773
  %8775 = vrot.lane.b32.xlu0 %v8633, 16
  %v8776 = vpop.permute.xlu0 %8775
  %8777 = vrot.lane.b32.xlu0 %v8634, 16
  %v8778 = vpop.permute.xlu0 %8777
  %8779 = vrot.lane.b32.xlu0 %v8635, 16
  %v8780 = vpop.permute.xlu0 %8779
  %8781 = vrot.lane.b32.xlu0 %v8636, 16
  %v8782 = vpop.permute.xlu0 %8781
  %8783 = vrot.lane.b32.xlu0 %v8637, 16
  %v8784 = vpop.permute.xlu0 %8783
  %8785 = vrot.lane.b32.xlu0 %v8638, 16
  %v8786 = vpop.permute.xlu0 %8785
  %8787 = vrot.lane.b32.xlu0 %v8639, 16
  %v8788 = vpop.permute.xlu0 %8787
  %8789 = vrot.lane.b32.xlu0 %v8640, 16
  %v8790 = vpop.permute.xlu0 %8789
  %8791 = vrot.lane.b32.xlu0 %v8641, 16
  %v8792 = vpop.permute.xlu0 %8791
  %8793 = vrot.lane.b32.xlu0 %v8642, 16
  %v8794 = vpop.permute.xlu0 %8793
  %8795 = vrot.lane.b32.xlu0 %v8643, 16
  %v8796 = vpop.permute.xlu0 %8795
  %8797 = vrot.lane.b32.xlu0 %v8644, 16
  %v8798 = vpop.permute.xlu0 %8797
  %8799 = vrot.lane.b32.xlu0 %v8645, 16
  %v8800 = vpop.permute.xlu0 %8799
  %8801 = vrot.lane.b32.xlu0 %v8646, 16
  %v8802 = vpop.permute.xlu0 %8801
  %8803 = vrot.lane.b32.xlu0 %v8647, 16
  %v8804 = vpop.permute.xlu0 %8803
  %8805 = vrot.lane.b32.xlu0 %v8648, 16
  %v8806 = vpop.permute.xlu0 %8805
  %8807 = vrot.lane.b32.xlu0 %v8649, 16
  %v8808 = vpop.permute.xlu0 %8807
  %8809 = vrot.lane.b32.xlu0 %v8650, 16
  %v8810 = vpop.permute.xlu0 %8809
  %8811 = vrot.lane.b32.xlu0 %v8651, 16
  %v8812 = vpop.permute.xlu0 %8811
  %8813 = vrot.lane.b32.xlu0 %v8652, 16
  %v8814 = vpop.permute.xlu0 %8813
  %v8869 = vsel %vm2296, %v8596, %v8708
  %v8870 = vsel %vm2296, %v8597, %v8710
  %v8871 = vsel %vm2296, %v8598, %v8712
  %v8872 = vsel %vm2296, %v8599, %v8714
  %v8873 = vsel %vm2296, %v8600, %v8716
  %v8874 = vsel %vm2296, %v8601, %v8718
  %v8875 = vsel %vm2296, %v8602, %v8720
  %v8876 = vsel %vm2296, %v8603, %v8722
  %v8877 = vsel %vm2296, %v8604, %v8724
  %v8878 = vsel %vm2296, %v8605, %v8726
  %v8879 = vsel %vm2296, %v8606, %v8728
  %v8880 = vsel %vm2296, %v8607, %v8730
  %v8881 = vsel %vm2296, %v8608, %v8732
  %v8882 = vsel %vm2296, %v8609, %v8734
  %v8883 = vsel %vm2296, %v8610, %v8736
  %v8884 = vsel %vm2296, %v8611, %v8738
  %v8885 = vsel %vm2296, %v8612, %v8740
  %v8886 = vsel %vm2296, %v8613, %v8742
  %v8887 = vsel %vm2296, %v8614, %v8744
  %v8888 = vsel %vm2296, %v8615, %v8746
  %v8889 = vsel %vm2296, %v8616, %v8748
  %v8890 = vsel %vm2296, %v8617, %v8750
  %v8891 = vsel %vm2296, %v8618, %v8752
  %v8892 = vsel %vm2296, %v8619, %v8754
  %v8893 = vsel %vm2296, %v8620, %v8756
  %v8894 = vsel %vm2296, %v8621, %v8758
  %v8895 = vsel %vm2296, %v8622, %v8760
  %v8896 = vsel %vm2296, %v8623, %v8762
  %v8897 = vsel %vm2296, %v8624, %v8764
  %v8898 = vsel %vm2296, %v8625, %v8766
  %v8899 = vsel %vm2296, %v8626, %v8768
  %v8900 = vsel %vm2296, %v8627, %v8770
  %v8901 = vsel %vm2296, %v8628, %v8772
  %v8902 = vsel %vm2296, %v8629, %v8774
  %v8903 = vsel %vm2296, %v8630, %v8776
  %v8904 = vsel %vm2296, %v8631, %v8778
  %v8905 = vsel %vm2296, %v8632, %v8780
  %v8906 = vsel %vm2296, %v8633, %v8782
  %v8907 = vsel %vm2296, %v8634, %v8784
  %v8908 = vsel %vm2296, %v8635, %v8786
  %v8909 = vsel %vm2296, %v8636, %v8788
  %v8910 = vsel %vm2296, %v8637, %v8790
  %v8911 = vsel %vm2296, %v8638, %v8792
  %v8912 = vsel %vm2296, %v8639, %v8794
  %v8913 = vsel %vm2296, %v8640, %v8796
  %v8914 = vsel %vm2296, %v8641, %v8798
  %v8915 = vsel %vm2296, %v8642, %v8800
  %v8916 = vsel %vm2296, %v8643, %v8802
  %v8917 = vsel %vm2296, %v8644, %v8804
  %v8918 = vsel %vm2296, %v8645, %v8806
  %v8919 = vsel %vm2296, %v8646, %v8808
  %v8920 = vsel %vm2296, %v8647, %v8810
  %v8921 = vsel %vm2296, %v8648, %v8812
  %v8922 = vsel %vm2296, %v8649, %v8814
  %v8923 = vld [vmem:[%s4245] sm:$0xff]
  %v8924 = vld [vmem:[%s4245 + $0x8] sm:$0xff]
  %v8925 = vld [vmem:[%s4245 + $0x10] sm:$0xff]
  %v8926 = vld [vmem:[%s4245 + $0x18] sm:$0xff]
  %v8927 = vld [vmem:[%s2 + $0x2] sm:$0x1]
  %v8928 = vlaneseq
  %v8929 = vshrl.u32 %v8928, 7
  %v8930 = vsub.s32 0, %v8929
  %v8931 = vrot.slane %v8927, %v8930
  %v8933 = vsel %vm4255, %v8869, 0
  %v8936 = vsel %vm4255, %v8870, 0
  %v8939 = vsel %vm4255, %v8871, 0
  %v8942 = vsel %vm4255, %v8872, 0
  %v8945 = vsel %vm4255, %v8873, 0
  %v8948 = vsel %vm4255, %v8874, 0
  %v8951 = vsel %vm4255, %v8875, 0
  %v8954 = vsel %vm4255, %v8876, 0
  %v8957 = vsel %vm4255, %v8877, 0
  %v8960 = vsel %vm4255, %v8878, 0
  %v8963 = vsel %vm4255, %v8879, 0
  %v8966 = vsel %vm4255, %v8880, 0
  %v8969 = vsel %vm4255, %v8881, 0
  %v8972 = vsel %vm4255, %v8882, 0
  %v8975 = vsel %vm4255, %v8883, 0
  %v8978 = vsel %vm4255, %v8884, 0
  %v8981 = vsel %vm4255, %v8885, 0
  %v8984 = vsel %vm4255, %v8886, 0
  %v8987 = vsel %vm4255, %v8887, 0
  %v8990 = vsel %vm4255, %v8888, 0
  %v8993 = vsel %vm4255, %v8889, 0
  %v8996 = vsel %vm4255, %v8890, 0
  %v8999 = vsel %vm4255, %v8891, 0
  %v9002 = vsel %vm4255, %v8892, 0
  %v9005 = vsel %vm4255, %v8893, 0
  %v9008 = vsel %vm4255, %v8894, 0
  %v9011 = vsel %vm4255, %v8895, 0
  %v9014 = vsel %vm4255, %v8896, 0
  %v9017 = vsel %vm4255, %v8897, 0
  %v9020 = vsel %vm4255, %v8898, 0
  %v9023 = vsel %vm4255, %v8899, 0
  %v9026 = vsel %vm4255, %v8900, 0
  %v9029 = vsel %vm4255, %v8901, 0
  %v9032 = vsel %vm4255, %v8902, 0
  %v9035 = vsel %vm4255, %v8903, 0
  %v9038 = vsel %vm4255, %v8904, 0
  %v9041 = vsel %vm4255, %v8905, 0
  %v9044 = vsel %vm4255, %v8906, 0
  %v9047 = vsel %vm4255, %v8907, 0
  %v9050 = vsel %vm4255, %v8908, 0
  %v9053 = vsel %vm4255, %v8909, 0
  %v9056 = vsel %vm4255, %v8910, 0
  %v9059 = vsel %vm4255, %v8911, 0
  %v9062 = vsel %vm4255, %v8912, 0
  %v9065 = vsel %vm4255, %v8913, 0
  %v9068 = vsel %vm4255, %v8914, 0
  %v9071 = vsel %vm4255, %v8915, 0
  %v9074 = vsel %vm4255, %v8916, 0
  %v9077 = vsel %vm4255, %v8917, 0
  %v9080 = vsel %vm4255, %v8918, 0
  %v9083 = vsel %vm4255, %v8919, 0
  %v9086 = vsel %vm4255, %v8920, 0
  %v9089 = vsel %vm4255, %v8921, 0
  %v9092 = vsel %vm4255, %v8922, 0
  %9094 = vmatprep.subr.mxu0 0.0
  %9095 = vmatpush1.msra.mxu0 %v8923
  %9096 = vmatprep.subr.mxu0 0.0
  %9097 = vmatpush1.msra.mxu0 %v8924
  %9098 = vmatprep.subr.mxu0 0.0
  %9099 = vmatpush1.msra.mxu0 %v8925
  %9100 = vmatprep.subr.mxu0 0.0
  %9101 = vmatpush1.msra.mxu0 %v8926
  %9102 = vmatprep.subr.mxu0 0.0
  %9103 = vmatpush1.msra.mxu0 0.0
  %9104 = vmatprep.subr.mxu0 0.0
  %9105 = vmatpush1.msra.mxu0 0.0
  %9106 = vmatprep.subr.mxu0 0.0
  %9107 = vmatpush1.msra.mxu0 0.0
  %9108 = vmatprep.subr.mxu0 0.0
  %9109 = vmatpush1.msra.mxu0 0.0
  %9110 = vmatprep.subr.mxu0 0.0
  %9111 = vmatpush1.msra.mxu0 0.0
  %9112 = vmatprep.subr.mxu0 0.0
  %9113 = vmatpush1.msra.mxu0 0.0
  %9114 = vmatprep.subr.mxu0 0.0
  %9115 = vmatpush1.msra.mxu0 0.0
  %9116 = vmatprep.subr.mxu0 0.0
  %9117 = vmatpush1.msra.mxu0 0.0
  %9118 = vmatprep.subr.mxu0 0.0
  %9119 = vmatpush1.msra.mxu0 0.0
  %9120 = vmatprep.subr.mxu0 0.0
  %9121 = vmatpush1.msra.mxu0 0.0
  %9122 = vmatprep.subr.mxu0 0.0
  %9123 = vmatpush1.msra.mxu0 0.0
  %9124 = vmatprep.subr.mxu0 0.0
  %9125 = vmatpush1.msra.mxu0 0.0
  %9126 = vmatprep.subr.mxu0 0.0
  %9127 = vmatpush1.msra.mxu0 0.0
  %9128 = vmatprep.subr.mxu0 0.0
  %9129 = vmatpush1.msra.mxu0 0.0
  %9130 = vmatprep.subr.mxu0 0.0
  %9131 = vmatpush1.msra.mxu0 0.0
  %9132 = vmatprep.subr.mxu0 0.0
  %9133 = vmatpush1.msra.mxu0 0.0
  %9134 = vmatprep.subr.mxu0 0.0
  %9135 = vmatpush1.msra.mxu0 0.0
  %9136 = vmatprep.subr.mxu0 0.0
  %9137 = vmatpush1.msra.mxu0 0.0
  %9138 = vmatprep.subr.mxu0 0.0
  %9139 = vmatpush1.msra.mxu0 0.0
  %9140 = vmatprep.subr.mxu0 0.0
  %9141 = vmatpush1.msra.mxu0 0.0
  %9142 = vmatprep.subr.mxu0 0.0
  %9143 = vmatpush1.msra.mxu0 0.0
  %9144 = vmatprep.subr.mxu0 0.0
  %9145 = vmatpush1.msra.mxu0 0.0
  %9146 = vmatprep.subr.mxu0 0.0
  %9147 = vmatpush1.msra.mxu0 0.0
  %9148 = vmatprep.subr.mxu0 0.0
  %9149 = vmatpush1.msra.mxu0 0.0
  %9150 = vmatprep.subr.mxu0 0.0
  %9151 = vmatpush1.msra.mxu0 0.0
  %9152 = vmatprep.subr.mxu0 0.0
  %9153 = vmatpush1.msra.mxu0 0.0
  %9154 = vmatprep.subr.mxu0 0.0
  %9155 = vmatpush1.msra.mxu0 0.0
  %9156 = vmatprep.subr.mxu0 0.0
  %9157 = vmatpush1.msra.mxu0 0.0
  %9158 = vmatprep.mubr.f32.mxu0 0.0
  %9159 = vmatmul.mubr.f32.gmra.mrb[0].mxu0 %v8933
  %v9160 = vpop.f32.mrb[0].mxu0
  %v9161 = vadd.f32 %v8931, %v9160
  %v9162 = vpop.f32.mrb[0].mxu0
  %9163 = vmatprep.mubr.f32.mxu0 0.0
  %9164 = vmatmul.mubr.f32.gmra.mrb[0].mxu0 %v8936
  %v9165 = vpop.f32.mrb[0].mxu0
  %v9166 = vadd.f32 %v8931, %v9165
  %v9167 = vpop.f32.mrb[0].mxu0
  %9168 = vmatprep.mubr.f32.mxu0 0.0
  %9169 = vmatmul.mubr.f32.gmra.mrb[0].mxu0 %v8939
  %v9170 = vpop.f32.mrb[0].mxu0
  %v9171 = vadd.f32 %v8931, %v9170
  %v9172 = vpop.f32.mrb[0].mxu0
  %9173 = vmatprep.mubr.f32.mxu0 0.0
  %9174 = vmatmul.mubr.f32.gmra.mrb[0].mxu0 %v8942
  %v9175 = vpop.f32.mrb[0].mxu0
  %v9176 = vadd.f32 %v8931, %v9175
  %v9177 = vpop.f32.mrb[0].mxu0
  %9178 = vmatprep.mubr.f32.mxu0 0.0
  %9179 = vmatmul.mubr.f32.gmra.mrb[0].mxu0 %v8945
  %v9180 = vpop.f32.mrb[0].mxu0
  %v9181 = vadd.f32 %v8931, %v9180
  %v9182 = vpop.f32.mrb[0].mxu0
  %9183 = vmatprep.mubr.f32.mxu0 0.0
  %9184 = vmatmul.mubr.f32.gmra.mrb[0].mxu0 %v8948
  %v9185 = vpop.f32.mrb[0].mxu0
  %v9186 = vadd.f32 %v8931, %v9185
  %v9187 = vpop.f32.mrb[0].mxu0
  %9188 = vmatprep.mubr.f32.mxu0 0.0
  %9189 = vmatmul.mubr.f32.gmra.mrb[0].mxu0 %v8951
  %v9190 = vpop.f32.mrb[0].mxu0
  %v9191 = vadd.f32 %v8931, %v9190
  %v9192 = vpop.f32.mrb[0].mxu0
  %9193 = vmatprep.mubr.f32.mxu0 0.0
  %9194 = vmatmul.mubr.f32.gmra.mrb[0].mxu0 %v8954
  %v9195 = vpop.f32.mrb[0].mxu0
  %v9196 = vadd.f32 %v8931, %v9195
  %v9197 = vpop.f32.mrb[0].mxu0
  %9198 = vmatprep.mubr.f32.mxu0 0.0
  %9199 = vmatmul.mubr.f32.gmra.mrb[0].mxu0 %v8957
  %v9200 = vpop.f32.mrb[0].mxu0
  %v9201 = vadd.f32 %v8931, %v9200
  %v9202 = vpop.f32.mrb[0].mxu0
  %9203 = vmatprep.mubr.f32.mxu0 0.0
  %9204 = vmatmul.mubr.f32.gmra.mrb[0].mxu0 %v8960
  %v9205 = vpop.f32.mrb[0].mxu0
  %v9206 = vadd.f32 %v8931, %v9205
  %v9207 = vpop.f32.mrb[0].mxu0
  %9208 = vmatprep.mubr.f32.mxu0 0.0
  %9209 = vmatmul.mubr.f32.gmra.mrb[0].mxu0 %v8963
  %v9210 = vpop.f32.mrb[0].mxu0
  %v9211 = vadd.f32 %v8931, %v9210
  %v9212 = vpop.f32.mrb[0].mxu0
  %9213 = vmatprep.mubr.f32.mxu0 0.0
  %9214 = vmatmul.mubr.f32.gmra.mrb[0].mxu0 %v8966
  %v9215 = vpop.f32.mrb[0].mxu0
  %v9216 = vadd.f32 %v8931, %v9215
  %v9217 = vpop.f32.mrb[0].mxu0
  %9218 = vmatprep.mubr.f32.mxu0 0.0
  %9219 = vmatmul.mubr.f32.gmra.mrb[0].mxu0 %v8969
  %v9220 = vpop.f32.mrb[0].mxu0
  %v9221 = vadd.f32 %v8931, %v9220
  %v9222 = vpop.f32.mrb[0].mxu0
  %9223 = vmatprep.mubr.f32.mxu0 0.0
  %9224 = vmatmul.mubr.f32.gmra.mrb[0].mxu0 %v8972
  %v9225 = vpop.f32.mrb[0].mxu0
  %v9226 = vadd.f32 %v8931, %v9225
  %v9227 = vpop.f32.mrb[0].mxu0
  %9228 = vmatprep.mubr.f32.mxu0 0.0
  %9229 = vmatmul.mubr.f32.gmra.mrb[0].mxu0 %v8975
  %v9230 = vpop.f32.mrb[0].mxu0
  %v9231 = vadd.f32 %v8931, %v9230
  %v9232 = vpop.f32.mrb[0].mxu0
  %9233 = vmatprep.mubr.f32.mxu0 0.0
  %9234 = vmatmul.mubr.f32.gmra.mrb[0].mxu0 %v8978
  %v9235 = vpop.f32.mrb[0].mxu0
  %v9236 = vadd.f32 %v8931, %v9235
  %v9237 = vpop.f32.mrb[0].mxu0
  %9238 = vmatprep.mubr.f32.mxu0 0.0
  %9239 = vmatmul.mubr.f32.gmra.mrb[0].mxu0 %v8981
  %v9240 = vpop.f32.mrb[0].mxu0
  %v9241 = vadd.f32 %v8931, %v9240
  %v9242 = vpop.f32.mrb[0].mxu0
  %9243 = vmatprep.mubr.f32.mxu0 0.0
  %9244 = vmatmul.mubr.f32.gmra.mrb[0].mxu0 %v8984
  %v9245 = vpop.f32.mrb[0].mxu0
  %v9246 = vadd.f32 %v8931, %v9245
  %v9247 = vpop.f32.mrb[0].mxu0
  %9248 = vmatprep.mubr.f32.mxu0 0.0
  %9249 = vmatmul.mubr.f32.gmra.mrb[0].mxu0 %v8987
  %v9250 = vpop.f32.mrb[0].mxu0
  %v9251 = vadd.f32 %v8931, %v9250
  %v9252 = vpop.f32.mrb[0].mxu0
  %9253 = vmatprep.mubr.f32.mxu0 0.0
  %9254 = vmatmul.mubr.f32.gmra.mrb[0].mxu0 %v8990
  %v9255 = vpop.f32.mrb[0].mxu0
  %v9256 = vadd.f32 %v8931, %v9255
  %v9257 = vpop.f32.mrb[0].mxu0
  %9258 = vmatprep.mubr.f32.mxu0 0.0
  %9259 = vmatmul.mubr.f32.gmra.mrb[0].mxu0 %v8993
  %v9260 = vpop.f32.mrb[0].mxu0
  %v9261 = vadd.f32 %v8931, %v9260
  %v9262 = vpop.f32.mrb[0].mxu0
  %9263 = vmatprep.mubr.f32.mxu0 0.0
  %9264 = vmatmul.mubr.f32.gmra.mrb[0].mxu0 %v8996
  %v9265 = vpop.f32.mrb[0].mxu0
  %v9266 = vadd.f32 %v8931, %v9265
  %v9267 = vpop.f32.mrb[0].mxu0
  %9268 = vmatprep.mubr.f32.mxu0 0.0
  %9269 = vmatmul.mubr.f32.gmra.mrb[0].mxu0 %v8999
  %v9270 = vpop.f32.mrb[0].mxu0
  %v9271 = vadd.f32 %v8931, %v9270
  %v9272 = vpop.f32.mrb[0].mxu0
  %9273 = vmatprep.mubr.f32.mxu0 0.0
  %9274 = vmatmul.mubr.f32.gmra.mrb[0].mxu0 %v9002
  %v9275 = vpop.f32.mrb[0].mxu0
  %v9276 = vadd.f32 %v8931, %v9275
  %v9277 = vpop.f32.mrb[0].mxu0
  %9278 = vmatprep.mubr.f32.mxu0 0.0
  %9279 = vmatmul.mubr.f32.gmra.mrb[0].mxu0 %v9005
  %v9280 = vpop.f32.mrb[0].mxu0
  %v9281 = vadd.f32 %v8931, %v9280
  %v9282 = vpop.f32.mrb[0].mxu0
  %9283 = vmatprep.mubr.f32.mxu0 0.0
  %9284 = vmatmul.mubr.f32.gmra.mrb[0].mxu0 %v9008
  %v9285 = vpop.f32.mrb[0].mxu0
  %v9286 = vadd.f32 %v8931, %v9285
  %v9287 = vpop.f32.mrb[0].mxu0
  %9288 = vmatprep.mubr.f32.mxu0 0.0
  %9289 = vmatmul.mubr.f32.gmra.mrb[0].mxu0 %v9011
  %v9290 = vpop.f32.mrb[0].mxu0
  %v9291 = vadd.f32 %v8931, %v9290
  %v9292 = vpop.f32.mrb[0].mxu0
  %9293 = vmatprep.mubr.f32.mxu0 0.0
  %9294 = vmatmul.mubr.f32.gmra.mrb[0].mxu0 %v9014
  %v9295 = vpop.f32.mrb[0].mxu0
  %v9296 = vadd.f32 %v8931, %v9295
  %v9297 = vpop.f32.mrb[0].mxu0
  %9298 = vmatprep.mubr.f32.mxu0 0.0
  %9299 = vmatmul.mubr.f32.gmra.mrb[0].mxu0 %v9017
  %v9300 = vpop.f32.mrb[0].mxu0
  %v9301 = vadd.f32 %v8931, %v9300
  %v9302 = vpop.f32.mrb[0].mxu0
  %9303 = vmatprep.mubr.f32.mxu0 0.0
  %9304 = vmatmul.mubr.f32.gmra.mrb[0].mxu0 %v9020
  %v9305 = vpop.f32.mrb[0].mxu0
  %v9306 = vadd.f32 %v8931, %v9305
  %v9307 = vpop.f32.mrb[0].mxu0
  %9308 = vmatprep.mubr.f32.mxu0 0.0
  %9309 = vmatmul.mubr.f32.gmra.mrb[0].mxu0 %v9023
  %v9310 = vpop.f32.mrb[0].mxu0
  %v9311 = vadd.f32 %v8931, %v9310
  %v9312 = vpop.f32.mrb[0].mxu0
  %9313 = vmatprep.mubr.f32.mxu0 0.0
  %9314 = vmatmul.mubr.f32.gmra.mrb[0].mxu0 %v9026
  %v9315 = vpop.f32.mrb[0].mxu0
  %v9316 = vadd.f32 %v8931, %v9315
  %v9317 = vpop.f32.mrb[0].mxu0
  %9318 = vmatprep.mubr.f32.mxu0 0.0
  %9319 = vmatmul.mubr.f32.gmra.mrb[0].mxu0 %v9029
  %v9320 = vpop.f32.mrb[0].mxu0
  %v9321 = vadd.f32 %v8931, %v9320
  %v9322 = vpop.f32.mrb[0].mxu0
  %9323 = vmatprep.mubr.f32.mxu0 0.0
  %9324 = vmatmul.mubr.f32.gmra.mrb[0].mxu0 %v9032
  %v9325 = vpop.f32.mrb[0].mxu0
  %v9326 = vadd.f32 %v8931, %v9325
  %v9327 = vpop.f32.mrb[0].mxu0
  %9328 = vmatprep.mubr.f32.mxu0 0.0
  %9329 = vmatmul.mubr.f32.gmra.mrb[0].mxu0 %v9035
  %v9330 = vpop.f32.mrb[0].mxu0
  %v9331 = vadd.f32 %v8931, %v9330
  %v9332 = vpop.f32.mrb[0].mxu0
  %9333 = vmatprep.mubr.f32.mxu0 0.0
  %9334 = vmatmul.mubr.f32.gmra.mrb[0].mxu0 %v9038
  %v9335 = vpop.f32.mrb[0].mxu0
  %v9336 = vadd.f32 %v8931, %v9335
  %v9337 = vpop.f32.mrb[0].mxu0
  %9338 = vmatprep.mubr.f32.mxu0 0.0
  %9339 = vmatmul.mubr.f32.gmra.mrb[0].mxu0 %v9041
  %v9340 = vpop.f32.mrb[0].mxu0
  %v9341 = vadd.f32 %v8931, %v9340
  %v9342 = vpop.f32.mrb[0].mxu0
  %9343 = vmatprep.mubr.f32.mxu0 0.0
  %9344 = vmatmul.mubr.f32.gmra.mrb[0].mxu0 %v9044
  %v9345 = vpop.f32.mrb[0].mxu0
  %v9346 = vadd.f32 %v8931, %v9345
  %v9347 = vpop.f32.mrb[0].mxu0
  %9348 = vmatprep.mubr.f32.mxu0 0.0
  %9349 = vmatmul.mubr.f32.gmra.mrb[0].mxu0 %v9047
  %v9350 = vpop.f32.mrb[0].mxu0
  %v9351 = vadd.f32 %v8931, %v9350
  %v9352 = vpop.f32.mrb[0].mxu0
  %9353 = vmatprep.mubr.f32.mxu0 0.0
  %9354 = vmatmul.mubr.f32.gmra.mrb[0].mxu0 %v9050
  %v9355 = vpop.f32.mrb[0].mxu0
  %v9356 = vadd.f32 %v8931, %v9355
  %v9357 = vpop.f32.mrb[0].mxu0
  %9358 = vmatprep.mubr.f32.mxu0 0.0
  %9359 = vmatmul.mubr.f32.gmra.mrb[0].mxu0 %v9053
  %v9360 = vpop.f32.mrb[0].mxu0
  %v9361 = vadd.f32 %v8931, %v9360
  %v9362 = vpop.f32.mrb[0].mxu0
  %9363 = vmatprep.mubr.f32.mxu0 0.0
  %9364 = vmatmul.mubr.f32.gmra.mrb[0].mxu0 %v9056
  %v9365 = vpop.f32.mrb[0].mxu0
  %v9366 = vadd.f32 %v8931, %v9365
  %v9367 = vpop.f32.mrb[0].mxu0
  %9368 = vmatprep.mubr.f32.mxu0 0.0
  %9369 = vmatmul.mubr.f32.gmra.mrb[0].mxu0 %v9059
  %v9370 = vpop.f32.mrb[0].mxu0
  %v9371 = vadd.f32 %v8931, %v9370
  %v9372 = vpop.f32.mrb[0].mxu0
  %9373 = vmatprep.mubr.f32.mxu0 0.0
  %9374 = vmatmul.mubr.f32.gmra.mrb[0].mxu0 %v9062
  %v9375 = vpop.f32.mrb[0].mxu0
  %v9376 = vadd.f32 %v8931, %v9375
  %v9377 = vpop.f32.mrb[0].mxu0
  %9378 = vmatprep.mubr.f32.mxu0 0.0
  %9379 = vmatmul.mubr.f32.gmra.mrb[0].mxu0 %v9065
  %v9380 = vpop.f32.mrb[0].mxu0
  %v9381 = vadd.f32 %v8931, %v9380
  %v9382 = vpop.f32.mrb[0].mxu0
  %9383 = vmatprep.mubr.f32.mxu0 0.0
  %9384 = vmatmul.mubr.f32.gmra.mrb[0].mxu0 %v9068
  %v9385 = vpop.f32.mrb[0].mxu0
  %v9386 = vadd.f32 %v8931, %v9385
  %v9387 = vpop.f32.mrb[0].mxu0
  %9388 = vmatprep.mubr.f32.mxu0 0.0
  %9389 = vmatmul.mubr.f32.gmra.mrb[0].mxu0 %v9071
  %v9390 = vpop.f32.mrb[0].mxu0
  %v9391 = vadd.f32 %v8931, %v9390
  %v9392 = vpop.f32.mrb[0].mxu0
  %9393 = vmatprep.mubr.f32.mxu0 0.0
  %9394 = vmatmul.mubr.f32.gmra.mrb[0].mxu0 %v9074
  %v9395 = vpop.f32.mrb[0].mxu0
  %v9396 = vadd.f32 %v8931, %v9395
  %v9397 = vpop.f32.mrb[0].mxu0
  %9398 = vmatprep.mubr.f32.mxu0 0.0
  %9399 = vmatmul.mubr.f32.gmra.mrb[0].mxu0 %v9077
  %v9400 = vpop.f32.mrb[0].mxu0
  %v9401 = vadd.f32 %v8931, %v9400
  %v9402 = vpop.f32.mrb[0].mxu0
  %9403 = vmatprep.mubr.f32.mxu0 0.0
  %9404 = vmatmul.mubr.f32.gmra.mrb[0].mxu0 %v9080
  %v9405 = vpop.f32.mrb[0].mxu0
  %v9406 = vadd.f32 %v8931, %v9405
  %v9407 = vpop.f32.mrb[0].mxu0
  %9408 = vmatprep.mubr.f32.mxu0 0.0
  %9409 = vmatmul.mubr.f32.gmra.mrb[0].mxu0 %v9083
  %v9410 = vpop.f32.mrb[0].mxu0
  %v9411 = vadd.f32 %v8931, %v9410
  %v9412 = vpop.f32.mrb[0].mxu0
  %9413 = vmatprep.mubr.f32.mxu0 0.0
  %9414 = vmatmul.mubr.f32.gmra.mrb[0].mxu0 %v9086
  %v9415 = vpop.f32.mrb[0].mxu0
  %v9416 = vadd.f32 %v8931, %v9415
  %v9417 = vpop.f32.mrb[0].mxu0
  %9418 = vmatprep.mubr.f32.mxu0 0.0
  %9419 = vmatmul.mubr.f32.gmra.mrb[0].mxu0 %v9089
  %v9420 = vpop.f32.mrb[0].mxu0
  %v9421 = vadd.f32 %v8931, %v9420
  %v9422 = vpop.f32.mrb[0].mxu0
  %9423 = vmatprep.mubr.f32.mxu0 0.0
  %9424 = vmatmul.mubr.f32.gmra.mrb[0].mxu0 %v9092
  %v9425 = vpop.f32.mrb[0].mxu0
  %v9426 = vadd.f32 %v8931, %v9425
  %v9427 = vpop.f32.mrb[0].mxu0
  %9428 = vdwg.mxu0
  %vm9429 = vcmp.ge.f32.partialorder %v9161, 0.0
  %vm9430 = vcmp.ge.f32.partialorder %v9166, 0.0
  %vm9431 = vcmp.ge.f32.partialorder %v9171, 0.0
  %vm9432 = vcmp.ge.f32.partialorder %v9176, 0.0
  %vm9433 = vcmp.ge.f32.partialorder %v9181, 0.0
  %vm9434 = vcmp.ge.f32.partialorder %v9186, 0.0
  %vm9435 = vcmp.ge.f32.partialorder %v9191, 0.0
  %vm9436 = vcmp.ge.f32.partialorder %v9196, 0.0
  %vm9437 = vcmp.ge.f32.partialorder %v9201, 0.0
  %vm9438 = vcmp.ge.f32.partialorder %v9206, 0.0
  %vm9439 = vcmp.ge.f32.partialorder %v9211, 0.0
  %vm9440 = vcmp.ge.f32.partialorder %v9216, 0.0
  %vm9441 = vcmp.ge.f32.partialorder %v9221, 0.0
  %vm9442 = vcmp.ge.f32.partialorder %v9226, 0.0
  %vm9443 = vcmp.ge.f32.partialorder %v9231, 0.0
  %vm9444 = vcmp.ge.f32.partialorder %v9236, 0.0
  %vm9445 = vcmp.ge.f32.partialorder %v9241, 0.0
  %vm9446 = vcmp.ge.f32.partialorder %v9246, 0.0
  %vm9447 = vcmp.ge.f32.partialorder %v9251, 0.0
  %vm9448 = vcmp.ge.f32.partialorder %v9256, 0.0
  %vm9449 = vcmp.ge.f32.partialorder %v9261, 0.0
  %vm9450 = vcmp.ge.f32.partialorder %v9266, 0.0
  %vm9451 = vcmp.ge.f32.partialorder %v9271, 0.0
  %vm9452 = vcmp.ge.f32.partialorder %v9276, 0.0
  %vm9453 = vcmp.ge.f32.partialorder %v9281, 0.0
  %vm9454 = vcmp.ge.f32.partialorder %v9286, 0.0
  %vm9455 = vcmp.ge.f32.partialorder %v9291, 0.0
  %vm9456 = vcmp.ge.f32.partialorder %v9296, 0.0
  %vm9457 = vcmp.ge.f32.partialorder %v9301, 0.0
  %vm9458 = vcmp.ge.f32.partialorder %v9306, 0.0
  %vm9459 = vcmp.ge.f32.partialorder %v9311, 0.0
  %vm9460 = vcmp.ge.f32.partialorder %v9316, 0.0
  %vm9461 = vcmp.ge.f32.partialorder %v9321, 0.0
  %vm9462 = vcmp.ge.f32.partialorder %v9326, 0.0
  %vm9463 = vcmp.ge.f32.partialorder %v9331, 0.0
  %vm9464 = vcmp.ge.f32.partialorder %v9336, 0.0
  %vm9465 = vcmp.ge.f32.partialorder %v9341, 0.0
  %vm9466 = vcmp.ge.f32.partialorder %v9346, 0.0
  %vm9467 = vcmp.ge.f32.partialorder %v9351, 0.0
  %vm9468 = vcmp.ge.f32.partialorder %v9356, 0.0
  %vm9469 = vcmp.ge.f32.partialorder %v9361, 0.0
  %vm9470 = vcmp.ge.f32.partialorder %v9366, 0.0
  %vm9471 = vcmp.ge.f32.partialorder %v9371, 0.0
  %vm9472 = vcmp.ge.f32.partialorder %v9376, 0.0
  %vm9473 = vcmp.ge.f32.partialorder %v9381, 0.0
  %vm9474 = vcmp.ge.f32.partialorder %v9386, 0.0
  %vm9475 = vcmp.ge.f32.partialorder %v9391, 0.0
  %vm9476 = vcmp.ge.f32.partialorder %v9396, 0.0
  %vm9477 = vcmp.ge.f32.partialorder %v9401, 0.0
  %vm9478 = vcmp.ge.f32.partialorder %v9406, 0.0
  %vm9479 = vcmp.ge.f32.partialorder %v9411, 0.0
  %vm9480 = vcmp.ge.f32.partialorder %v9416, 0.0
  %vm9481 = vcmp.ge.f32.partialorder %v9421, 0.0
  %vm9482 = vcmp.ge.f32.partialorder %v9426, 0.0
  %v9483 = vmul.f32 %v9161, 0.1
  %v9484 = vmul.f32 %v9166, 0.1
  %v9485 = vmul.f32 %v9171, 0.1
  %v9486 = vmul.f32 %v9176, 0.1
  %v9487 = vmul.f32 %v9181, 0.1
  %v9488 = vmul.f32 %v9186, 0.1
  %v9489 = vmul.f32 %v9191, 0.1
  %v9490 = vmul.f32 %v9196, 0.1
  %v9491 = vmul.f32 %v9201, 0.1
  %v9492 = vmul.f32 %v9206, 0.1
  %v9493 = vmul.f32 %v9211, 0.1
  %v9494 = vmul.f32 %v9216, 0.1
  %v9495 = vmul.f32 %v9221, 0.1
  %v9496 = vmul.f32 %v9226, 0.1
  %v9497 = vmul.f32 %v9231, 0.1
  %v9498 = vmul.f32 %v9236, 0.1
  %v9499 = vmul.f32 %v9241, 0.1
  %v9500 = vmul.f32 %v9246, 0.1
  %v9501 = vmul.f32 %v9251, 0.1
  %v9502 = vmul.f32 %v9256, 0.1
  %v9503 = vmul.f32 %v9261, 0.1
  %v9504 = vmul.f32 %v9266, 0.1
  %v9505 = vmul.f32 %v9271, 0.1
  %v9506 = vmul.f32 %v9276, 0.1
  %v9507 = vmul.f32 %v9281, 0.1
  %v9508 = vmul.f32 %v9286, 0.1
  %v9509 = vmul.f32 %v9291, 0.1
  %v9510 = vmul.f32 %v9296, 0.1
  %v9511 = vmul.f32 %v9301, 0.1
  %v9512 = vmul.f32 %v9306, 0.1
  %v9513 = vmul.f32 %v9311, 0.1
  %v9514 = vmul.f32 %v9316, 0.1
  %v9515 = vmul.f32 %v9321, 0.1
  %v9516 = vmul.f32 %v9326, 0.1
  %v9517 = vmul.f32 %v9331, 0.1
  %v9518 = vmul.f32 %v9336, 0.1
  %v9519 = vmul.f32 %v9341, 0.1
  %v9520 = vmul.f32 %v9346, 0.1
  %v9521 = vmul.f32 %v9351, 0.1
  %v9522 = vmul.f32 %v9356, 0.1
  %v9523 = vmul.f32 %v9361, 0.1
  %v9524 = vmul.f32 %v9366, 0.1
  %v9525 = vmul.f32 %v9371, 0.1
  %v9526 = vmul.f32 %v9376, 0.1
  %v9527 = vmul.f32 %v9381, 0.1
  %v9528 = vmul.f32 %v9386, 0.1
  %v9529 = vmul.f32 %v9391, 0.1
  %v9530 = vmul.f32 %v9396, 0.1
  %v9531 = vmul.f32 %v9401, 0.1
  %v9532 = vmul.f32 %v9406, 0.1
  %v9533 = vmul.f32 %v9411, 0.1
  %v9534 = vmul.f32 %v9416, 0.1
  %v9535 = vmul.f32 %v9421, 0.1
  %v9536 = vmul.f32 %v9426, 0.1
  %v9537 = vsel %vm9429, %v9161, %v9483
  %v9538 = vsel %vm9430, %v9166, %v9484
  %v9539 = vsel %vm9431, %v9171, %v9485
  %v9540 = vsel %vm9432, %v9176, %v9486
  %v9541 = vsel %vm9433, %v9181, %v9487
  %v9542 = vsel %vm9434, %v9186, %v9488
  %v9543 = vsel %vm9435, %v9191, %v9489
  %v9544 = vsel %vm9436, %v9196, %v9490
  %v9545 = vsel %vm9437, %v9201, %v9491
  %v9546 = vsel %vm9438, %v9206, %v9492
  %v9547 = vsel %vm9439, %v9211, %v9493
  %v9548 = vsel %vm9440, %v9216, %v9494
  %v9549 = vsel %vm9441, %v9221, %v9495
  %v9550 = vsel %vm9442, %v9226, %v9496
  %v9551 = vsel %vm9443, %v9231, %v9497
  %v9552 = vsel %vm9444, %v9236, %v9498
  %v9553 = vsel %vm9445, %v9241, %v9499
  %v9554 = vsel %vm9446, %v9246, %v9500
  %v9555 = vsel %vm9447, %v9251, %v9501
  %v9556 = vsel %vm9448, %v9256, %v9502
  %v9557 = vsel %vm9449, %v9261, %v9503
  %v9558 = vsel %vm9450, %v9266, %v9504
  %v9559 = vsel %vm9451, %v9271, %v9505
  %v9560 = vsel %vm9452, %v9276, %v9506
  %v9561 = vsel %vm9453, %v9281, %v9507
  %v9562 = vsel %vm9454, %v9286, %v9508
  %v9563 = vsel %vm9455, %v9291, %v9509
  %v9564 = vsel %vm9456, %v9296, %v9510
  %v9565 = vsel %vm9457, %v9301, %v9511
  %v9566 = vsel %vm9458, %v9306, %v9512
  %v9567 = vsel %vm9459, %v9311, %v9513
  %v9568 = vsel %vm9460, %v9316, %v9514
  %v9569 = vsel %vm9461, %v9321, %v9515
  %v9570 = vsel %vm9462, %v9326, %v9516
  %v9571 = vsel %vm9463, %v9331, %v9517
  %v9572 = vsel %vm9464, %v9336, %v9518
  %v9573 = vsel %vm9465, %v9341, %v9519
  %v9574 = vsel %vm9466, %v9346, %v9520
  %v9575 = vsel %vm9467, %v9351, %v9521
  %v9576 = vsel %vm9468, %v9356, %v9522
  %v9577 = vsel %vm9469, %v9361, %v9523
  %v9578 = vsel %vm9470, %v9366, %v9524
  %v9579 = vsel %vm9471, %v9371, %v9525
  %v9580 = vsel %vm9472, %v9376, %v9526
  %v9581 = vsel %vm9473, %v9381, %v9527
  %v9582 = vsel %vm9474, %v9386, %v9528
  %v9583 = vsel %vm9475, %v9391, %v9529
  %v9584 = vsel %vm9476, %v9396, %v9530
  %v9585 = vsel %vm9477, %v9401, %v9531
  %v9586 = vsel %vm9478, %v9406, %v9532
  %v9587 = vsel %vm9479, %v9411, %v9533
  %v9588 = vsel %vm9480, %v9416, %v9534
  %v9589 = vsel %vm9481, %v9421, %v9535
  %v9590 = vsel %vm9482, %v9426, %v9536
  %s9591 = scalar_lea.vmem %s3, 432
  %9592 = vst [vmem:[%s9591] sm:$0xff] %v9537
  %9593 = vst [vmem:[%s9591 + $0x8] sm:$0xff] %v9538
  %9594 = vst [vmem:[%s9591 + $0x10] sm:$0xff] %v9539
  %9595 = vst [vmem:[%s9591 + $0x18] sm:$0xff] %v9540
  %9596 = vst [vmem:[%s9591 + $0x20] sm:$0xff] %v9541
  %9597 = vst [vmem:[%s9591 + $0x28] sm:$0xff] %v9542
  %9598 = vst [vmem:[%s9591 + $0x30] sm:$0xff] %v9543
  %9599 = vst [vmem:[%s9591 + $0x38] sm:$0xff] %v9544
  %9600 = vst [vmem:[%s9591 + $0x40] sm:$0xff] %v9545
  %9601 = vst [vmem:[%s9591 + $0x48] sm:$0xff] %v9546
  %9602 = vst [vmem:[%s9591 + $0x50] sm:$0xff] %v9547
  %9603 = vst [vmem:[%s9591 + $0x58] sm:$0xff] %v9548
  %9604 = vst [vmem:[%s9591 + $0x60] sm:$0xff] %v9549
  %9605 = vst [vmem:[%s9591 + $0x68] sm:$0xff] %v9550
  %9606 = vst [vmem:[%s9591 + $0x70] sm:$0xff] %v9551
  %9607 = vst [vmem:[%s9591 + $0x78] sm:$0xff] %v9552
  %9608 = vst [vmem:[%s9591 + $0x80] sm:$0xff] %v9553
  %9609 = vst [vmem:[%s9591 + $0x88] sm:$0xff] %v9554
  %9610 = vst [vmem:[%s9591 + $0x90] sm:$0xff] %v9555
  %9611 = vst [vmem:[%s9591 + $0x98] sm:$0xff] %v9556
  %9612 = vst [vmem:[%s9591 + $0xa0] sm:$0xff] %v9557
  %9613 = vst [vmem:[%s9591 + $0xa8] sm:$0xff] %v9558
  %9614 = vst [vmem:[%s9591 + $0xb0] sm:$0xff] %v9559
  %9615 = vst [vmem:[%s9591 + $0xb8] sm:$0xff] %v9560
  %9616 = vst [vmem:[%s9591 + $0xc0] sm:$0xff] %v9561
  %9617 = vst [vmem:[%s9591 + $0xc8] sm:$0xff] %v9562
  %9618 = vst [vmem:[%s9591 + $0xd0] sm:$0xff] %v9563
  %9619 = vst [vmem:[%s9591 + $0xd8] sm:$0xff] %v9564
  %9620 = vst [vmem:[%s9591 + $0xe0] sm:$0xff] %v9565
  %9621 = vst [vmem:[%s9591 + $0xe8] sm:$0xff] %v9566
  %9622 = vst [vmem:[%s9591 + $0xf0] sm:$0xff] %v9567
  %9623 = vst [vmem:[%s9591 + $0xf8] sm:$0xff] %v9568
  %9624 = vst [vmem:[%s9591 + $0x100] sm:$0xff] %v9569
  %9625 = vst [vmem:[%s9591 + $0x108] sm:$0xff] %v9570
  %9626 = vst [vmem:[%s9591 + $0x110] sm:$0xff] %v9571
  %9627 = vst [vmem:[%s9591 + $0x118] sm:$0xff] %v9572
  %9628 = vst [vmem:[%s9591 + $0x120] sm:$0xff] %v9573
  %9629 = vst [vmem:[%s9591 + $0x128] sm:$0xff] %v9574
  %9630 = vst [vmem:[%s9591 + $0x130] sm:$0xff] %v9575
  %9631 = vst [vmem:[%s9591 + $0x138] sm:$0xff] %v9576
  %9632 = vst [vmem:[%s9591 + $0x140] sm:$0xff] %v9577
  %9633 = vst [vmem:[%s9591 + $0x148] sm:$0xff] %v9578
  %9634 = vst [vmem:[%s9591 + $0x150] sm:$0xff] %v9579
  %9635 = vst [vmem:[%s9591 + $0x158] sm:$0xff] %v9580
  %9636 = vst [vmem:[%s9591 + $0x160] sm:$0xff] %v9581
  %9637 = vst [vmem:[%s9591 + $0x168] sm:$0xff] %v9582
  %9638 = vst [vmem:[%s9591 + $0x170] sm:$0xff] %v9583
  %9639 = vst [vmem:[%s9591 + $0x178] sm:$0xff] %v9584
  %9640 = vst [vmem:[%s9591 + $0x180] sm:$0xff] %v9585
  %9641 = vst [vmem:[%s9591 + $0x188] sm:$0xff] %v9586
  %9642 = vst [vmem:[%s9591 + $0x190] sm:$0xff] %v9587
  %9643 = vst [vmem:[%s9591 + $0x198] sm:$0xff] %v9588
  %9644 = vst [vmem:[%s9591 + $0x1a0] sm:$0xff] %v9589
  %9645 = vst [vmem:[%s9591 + $0x1a8] sm:$0xff] %v9590
  // Predicated region
  $region14: #{decoder_forward.1} parent=0 // pred_check
    _
  $region15: #{decoder_forward.1} parent=0 // pred_check_branch
    %9647 = sbr.rel (0) target = $region17
  $region16: #{decoder_forward.1} parent=0 // pred_region
    _
  $region17: #{decoder_forward.1} parent=0 // pred_fallthru
    _
  // Predicated region
  $region18: #{decoder_forward.1} parent=0 // pred_check
    _
  $region19: #{decoder_forward.1} parent=0 // pred_check_branch
    %9649 = sbr.rel (0) target = $region21
  $region20: #{decoder_forward.1} parent=0 // pred_region
    _
  $region21: #{decoder_forward.1} parent=0 // pred_fallthru
    _

</llo_original>
